<compile_context>
chip_gen: v7x
topology: tpu7x:2x2x1
jax: 0.10.0
libtpu: 0.0.40
codegen_flags: <defaults>
</compile_context>

<pallas_src>
import functools

import jax
import jax.numpy as jnp
from jax import lax
from jax.experimental import pallas as pl
from jax.experimental.pallas import tpu as pltpu

HP = 128          # padded hidden width (one full lane group)
GP = 4 * HP       # padded gate width: [i | f | o | g], 128 lanes each
DP = 128          # padded input-feature width fed to every LSTM layer
NP = 128          # padded output-feature width (lane-dense writeback)


# ----------------------------- fused RAE kernel -----------------------------
def _rae_kernel(x_ref,
                wih1, whh1, b1,
                wih2, whh2, b2,
                wih3, whh3, b3,
                wih4, whh4, b4,
                wout, bout,
                out_ref):
    S = x_ref.shape[0]
    bf16 = jnp.bfloat16
    zeros = jnp.zeros((1, HP), jnp.float32)

    def cell(gates, c):
        # gate layout [i | f | o | g]: one 3-block sigmoid + one tanh per step.
        ifo = jax.nn.sigmoid(gates[:, :3 * HP])
        g = jnp.tanh(gates[:, 3 * HP:])
        i = ifo[:, 0 * HP:1 * HP]
        f = ifo[:, 1 * HP:2 * HP]
        o = ifo[:, 2 * HP:3 * HP]
        c = f * c + i * g
        h = o * jnp.tanh(c)
        return h, c

    # -------------------------------- Encoder -------------------------------
    # enc_rnn1 input projection hoisted: one (S,128)x(128,512) bf16 matmul,
    # kept as a register value (4 vregs) and row-sliced statically below.
    xp1 = jnp.dot(x_ref[...], wih1[...],
                  preferred_element_type=jnp.float32) + b1[...]        # (S, GP)

    # Skewed interleave: enc_rnn2 step t follows enc_rnn1 step t directly.
    h1, c1 = zeros, zeros
    h2, c2 = zeros, zeros
    for t in range(S):                                   # fully unrolled (S=8)
        g1 = xp1[t:t + 1, :] + jnp.dot(h1.astype(bf16), whh1[...],
                                       preferred_element_type=jnp.float32)
        h1, c1 = cell(g1, c1)
        g2 = (jnp.dot(h1.astype(bf16), wih2[...],
                      preferred_element_type=jnp.float32)
              + jnp.dot(h2.astype(bf16), whh2[...],
                        preferred_element_type=jnp.float32)
              + b2[...])
        h2, c2 = cell(g2, c2)
    z = h2                                               # embedding, (1, HP)

    # -------------------------------- Decoder -------------------------------
    # dec_rnn1's input is z at every step -> one constant input projection.
    zp = jnp.dot(z.astype(bf16), wih3[...],
                 preferred_element_type=jnp.float32) + b3[...]          # (1, GP)

    h3, c3 = zeros, zeros
    h4, c4 = zeros, zeros
    h4_rows = []
    for t in range(S):
        g3 = zp + jnp.dot(h3.astype(bf16), whh3[...],
                          preferred_element_type=jnp.float32)
        h3, c3 = cell(g3, c3)
        g4 = (jnp.dot(h3.astype(bf16), wih4[...],
                      preferred_element_type=jnp.float32)
              + jnp.dot(h4.astype(bf16), whh4[...],
                        preferred_element_type=jnp.float32)
              + b4[...])
        h4, c4 = cell(g4, c4)
        h4_rows.append(h4)

    # ----------------------------- Output linear ----------------------------
    # Single dense (S,128)x(128,128) matmul; lane-dense (S,128) store.
    hseq = jnp.concatenate(h4_rows, axis=0)                             # (S, HP)
    out_ref[...] = (jnp.dot(hseq.astype(bf16), wout[...],
                            preferred_element_type=jnp.float32)
                    + bout[...]).astype(out_ref.dtype)


# --------------------------- parameter preparation --------------------------
def _pad_lstm(w_ih, w_hh, b_ih, b_hh):
    """PyTorch-layout LSTM params -> transposed, gate-reordered, padded arrays.

    Gate order is changed from PyTorch's [i,f,g,o] to [i,f,o,g] (so sigmoid
    covers the first 3*HP lanes and tanh the last HP).  Each gate occupies a
    full 128-lane block; padded entries are zero (=> padded c/h lanes provably
    stay 0 through the recurrence).  Weights are bf16 (MXU operands), the
    fused bias stays f32 (VPU add).
    """
    four_h, d_in = w_ih.shape
    H = four_h // 4
    perm = jnp.array([0, 1, 3, 2])                       # [i, f, g, o] -> [i, f, o, g]

    wih = jnp.asarray(w_ih, jnp.float32).T.reshape(d_in, 4, H)[:, perm, :]
    wih = jnp.pad(wih, ((0, DP - d_in), (0, 0), (0, HP - H))).reshape(DP, GP)
    whh = jnp.asarray(w_hh, jnp.float32).T.reshape(H, 4, H)[:, perm, :]
    whh = jnp.pad(whh, ((0, HP - H), (0, 0), (0, HP - H))).reshape(HP, GP)
    b = (jnp.asarray(b_ih, jnp.float32)
         + jnp.asarray(b_hh, jnp.float32)).reshape(4, H)[perm]
    b = jnp.pad(b, ((0, 0), (0, HP - H))).reshape(1, GP)
    return wih.astype(jnp.bfloat16), whh.astype(jnp.bfloat16), b


def prepare_params(params, n_features):
    """One-time transpose / pad / gate-reorder / bf16 cast of all weights."""
    hidden2 = params["dec_out_w"].shape[1]                          # 2E
    wout = jnp.asarray(params["dec_out_w"], jnp.float32).T          # (2E, nf)
    wout = jnp.pad(wout, ((0, HP - hidden2), (0, NP - n_features)))  # (HP, NP)
    bout = jnp.pad(jnp.asarray(params["dec_out_b"],
                               jnp.float32).reshape(1, n_features),
                   ((0, 0), (0, NP - n_features)))                   # (1, NP)
    return {
        "enc_rnn1": _pad_lstm(*params["enc_rnn1"]),
        "enc_rnn2": _pad_lstm(*params["enc_rnn2"]),
        "dec_rnn1": _pad_lstm(*params["dec_rnn1"]),
        "dec_rnn2": _pad_lstm(*params["dec_rnn2"]),
        "dec_out_w": wout.astype(jnp.bfloat16),
        "dec_out_b": bout,
    }


# --------------------------------- forward ----------------------------------
@functools.partial(jax.jit, static_argnames=("seq_len", "n_features",
                                             "embedding_dim"))
def rae_forward(prepped, x, seq_len, n_features, embedding_dim):
    # The reference PyTorch module's reshape tricks only make sense for a
    # single feature (batch of 1); keep that contract explicit.
    assert n_features == 1

    x = jnp.asarray(x, jnp.float32).reshape(seq_len, n_features)
    x_pad = jnp.pad(x, ((0, 0), (0, DP - n_features))).astype(jnp.bfloat16)

    full = lambda shape: pl.BlockSpec(shape, lambda i: (0, 0))

    args = [x_pad]
    in_specs = [full((seq_len, DP))]
    for name in ("enc_rnn1", "enc_rnn2", "dec_rnn1", "dec_rnn2"):
        wih, whh, b = prepped[name]
        args += [wih, whh, b]
        in_specs += [full((DP, GP)), full((HP, GP)), full((1, GP))]
    args += [prepped["dec_out_w"], prepped["dec_out_b"]]
    in_specs += [full((HP, NP)), full((1, NP))]

    # NOTE(v7x): with batch=1 the second TensorCore is idle; for batched
    # sequences add a leading "parallel" grid axis over sequences.
    out_pad = pl.pallas_call(
        _rae_kernel,
        out_shape=jax.ShapeDtypeStruct((seq_len, NP), jnp.float32),
        grid=(1,),
        in_specs=in_specs,
        out_specs=full((seq_len, NP)),
        compiler_params=pltpu.CompilerParams(
            dimension_semantics=("arbitrary",)),
    )(*args)
    return out_pad[:, :n_features]


# ------------------------------- parameters ---------------------------------
def init_params(key, n_features, embedding_dim):
    hidden = 2 * embedding_dim

    def lstm_params(k, in_dim, h):
        bound = 1.0 / float(h) ** 0.5
        ks = jax.random.split(k, 4)
        return (
            jax.random.uniform(ks[0], (4 * h, in_dim), minval=-bound, maxval=bound),
            jax.random.uniform(ks[1], (4 * h, h), minval=-bound, maxval=bound),
            jax.random.uniform(ks[2], (4 * h,), minval=-bound, maxval=bound),
            jax.random.uniform(ks[3], (4 * h,), minval=-bound, maxval=bound),
        )

    keys = jax.random.split(key, 6)
    lin_bound = 1.0 / float(hidden) ** 0.5
    return {
        "enc_rnn1": lstm_params(keys[0], n_features, hidden),            # nf -> 2E
        "enc_rnn2": lstm_params(keys[1], hidden, embedding_dim),         # 2E -> E
        "dec_rnn1": lstm_params(keys[2], embedding_dim, embedding_dim),  # E -> E
        "dec_rnn2": lstm_params(keys[3], embedding_dim, hidden),         # E -> 2E
        "dec_out_w": jax.random.uniform(keys[4], (n_features, hidden),
                                        minval=-lin_bound, maxval=lin_bound),
        "dec_out_b": jax.random.uniform(keys[5], (n_features,),
                                        minval=-lin_bound, maxval=lin_bound),
    }


# --------------------------- pure-JAX reference ------------------------------
def rae_reference(params, x, seq_len, n_features, embedding_dim):
    hp = lax.Precision.HIGHEST

    def lstm(x_seq, w_ih, w_hh, b_ih, b_hh):
        H = w_hh.shape[1]

        def step(carry, x_t):
            h, c = carry
            gates = (jnp.dot(x_t, w_ih.T, precision=hp)
                     + jnp.dot(h, w_hh.T, precision=hp) + b_ih + b_hh)
            i = jax.nn.sigmoid(gates[0:H])
            f = jax.nn.sigmoid(gates[H:2 * H])
            g = jnp.tanh(gates[2 * H:3 * H])
            o = jax.nn.sigmoid(gates[3 * H:4 * H])
            c = f * c + i * g
            h = o * jnp.tanh(c)
            return (h, c), h

        init = (jnp.zeros((H,), jnp.float32), jnp.zeros((H,), jnp.float32))
        (h, _), hs = lax.scan(step, init, x_seq)
        return hs, h

    x = jnp.asarray(x, jnp.float32).reshape(seq_len, n_features)
    h1, _ = lstm(x, *params["enc_rnn1"])
    _, z = lstm(h1, *params["enc_rnn2"])
    z = z.reshape(n_features, embedding_dim)
    xd = jnp.tile(z, (seq_len, n_features)).reshape(
        n_features, seq_len, embedding_dim)[0]
    d1, _ = lstm(xd, *params["dec_rnn1"])
    d2, _ = lstm(d1, *params["dec_rnn2"])
    return (jnp.dot(d2, params["dec_out_w"].T, precision=hp)
            + params["dec_out_b"])


# ----------------------------------- main ------------------------------------
if __name__ == "__main__":
    seq_len, n_features, embedding_dim = 8, 1, 32
    key = jax.random.PRNGKey(0)
    pkey, xkey = jax.random.split(key)
    params = init_params(pkey, n_features, embedding_dim)
    prepped = prepare_params(params, n_features)
    x = jax.random.normal(xkey, (seq_len, n_features), dtype=jnp.float32)

    out = rae_forward(prepped, x, seq_len, n_features, embedding_dim)
    out = jax.block_until_ready(out)
    assert out.shape == (seq_len, n_features), out.shape
    assert bool(jnp.all(jnp.isfinite(out)))

    ref = rae_reference(params, x, seq_len, n_features, embedding_dim)
    err = float(jnp.max(jnp.abs(out - ref)))
    # bf16 MXU operands (f32 accumulation) vs. f32-HIGHEST reference.
    assert err < 5e-2, f"max abs error vs reference: {err}"
    print("KERNEL_OK")
</pallas_src>

<mosaic_0001>
module attributes {stable_mosaic.version = 11 : i64} {
  func.func @_rae_kernel(%arg0: i32, %arg1: memref<8x128xbf16, #tpu.memory_space<vmem>>, %arg2: memref<128x512xbf16, #tpu.memory_space<vmem>>, %arg3: memref<128x512xbf16, #tpu.memory_space<vmem>>, %arg4: memref<1x512xf32, #tpu.memory_space<vmem>>, %arg5: memref<128x512xbf16, #tpu.memory_space<vmem>>, %arg6: memref<128x512xbf16, #tpu.memory_space<vmem>>, %arg7: memref<1x512xf32, #tpu.memory_space<vmem>>, %arg8: memref<128x512xbf16, #tpu.memory_space<vmem>>, %arg9: memref<128x512xbf16, #tpu.memory_space<vmem>>, %arg10: memref<1x512xf32, #tpu.memory_space<vmem>>, %arg11: memref<128x512xbf16, #tpu.memory_space<vmem>>, %arg12: memref<128x512xbf16, #tpu.memory_space<vmem>>, %arg13: memref<1x512xf32, #tpu.memory_space<vmem>>, %arg14: memref<128x128xbf16, #tpu.memory_space<vmem>>, %arg15: memref<1x128xf32, #tpu.memory_space<vmem>>, %arg16: memref<8x128xf32, #tpu.memory_space<vmem>>) attributes {dimension_semantics = [#tpu.dimension_semantics<arbitrary>], iteration_bounds = array<i64: 1>, scalar_prefetch = 0 : i64, scratch_operands = 0 : i64, tpu.core_type = #tpu.core_type<tc>, window_params = [{pipeline_mode = #tpu.pipeline_mode<synchronous>, transform_indices = @transform_0, window_bounds = array<i64: 8, 128>}, {pipeline_mode = #tpu.pipeline_mode<synchronous>, transform_indices = @transform_1, window_bounds = array<i64: 128, 512>}, {pipeline_mode = #tpu.pipeline_mode<synchronous>, transform_indices = @transform_2, window_bounds = array<i64: 128, 512>}, {pipeline_mode = #tpu.pipeline_mode<synchronous>, transform_indices = @transform_3, window_bounds = array<i64: 1, 512>}, {pipeline_mode = #tpu.pipeline_mode<synchronous>, transform_indices = @transform_4, window_bounds = array<i64: 128, 512>}, {pipeline_mode = #tpu.pipeline_mode<synchronous>, transform_indices = @transform_5, window_bounds = array<i64: 128, 512>}, {pipeline_mode = #tpu.pipeline_mode<synchronous>, transform_indices = @transform_6, window_bounds = array<i64: 1, 512>}, {pipeline_mode = #tpu.pipeline_mode<synchronous>, transform_indices = @transform_7, window_bounds = array<i64: 128, 512>}, {pipeline_mode = #tpu.pipeline_mode<synchronous>, transform_indices = @transform_8, window_bounds = array<i64: 128, 512>}, {pipeline_mode = #tpu.pipeline_mode<synchronous>, transform_indices = @transform_9, window_bounds = array<i64: 1, 512>}, {pipeline_mode = #tpu.pipeline_mode<synchronous>, transform_indices = @transform_10, window_bounds = array<i64: 128, 512>}, {pipeline_mode = #tpu.pipeline_mode<synchronous>, transform_indices = @transform_11, window_bounds = array<i64: 128, 512>}, {pipeline_mode = #tpu.pipeline_mode<synchronous>, transform_indices = @transform_12, window_bounds = array<i64: 1, 512>}, {pipeline_mode = #tpu.pipeline_mode<synchronous>, transform_indices = @transform_13, window_bounds = array<i64: 128, 128>}, {pipeline_mode = #tpu.pipeline_mode<synchronous>, transform_indices = @transform_14, window_bounds = array<i64: 1, 128>}, {pipeline_mode = #tpu.pipeline_mode<synchronous>, transform_indices = @transform_15, window_bounds = array<i64: 8, 128>}]} {
    %cst = arith.constant 0.000000e+00 : f32
    %0 = vector.broadcast %cst : f32 to vector<1x128xf32>
    %c0 = arith.constant 0 : index
    %c0_0 = arith.constant 0 : index
    %1 = vector.load %arg1[%c0, %c0_0] : memref<8x128xbf16, #tpu.memory_space<vmem>>, vector<8x128xbf16>
    %c0_1 = arith.constant 0 : index
    %c0_2 = arith.constant 0 : index
    %2 = vector.load %arg2[%c0_1, %c0_2] : memref<128x512xbf16, #tpu.memory_space<vmem>>, vector<128x512xbf16>
    %cst_3 = arith.constant dense<0.000000e+00> : vector<8x512xf32>
    %3 = tpu.matmul %1, %2, %cst_3 {dimension_numbers = #tpu.dot_dimension_numbers<[1], [0], [0], [1], [0, 0, 1, 1], [], []>} : vector<8x128xbf16>, vector<128x512xbf16>, vector<8x512xf32> -> vector<8x512xf32>
    %c0_4 = arith.constant 0 : index
    %c0_5 = arith.constant 0 : index
    %4 = vector.load %arg4[%c0_4, %c0_5] : memref<1x512xf32, #tpu.memory_space<vmem>>, vector<1x512xf32>
    %5 = vector.broadcast %4 : vector<1x512xf32> to vector<8x512xf32>
    %6 = arith.addf %3, %5 : vector<8x512xf32>
    %7 = vector.extract_strided_slice %6 {offsets = [0, 0], sizes = [1, 512], strides = [1, 1]} : vector<8x512xf32> to vector<1x512xf32>
    %8 = arith.truncf %0 : vector<1x128xf32> to vector<1x128xbf16>
    %c0_6 = arith.constant 0 : index
    %c0_7 = arith.constant 0 : index
    %9 = vector.load %arg3[%c0_6, %c0_7] : memref<128x512xbf16, #tpu.memory_space<vmem>>, vector<128x512xbf16>
    %cst_8 = arith.constant dense<0.000000e+00> : vector<1x512xf32>
    %10 = tpu.matmul %8, %9, %cst_8 {dimension_numbers = #tpu.dot_dimension_numbers<[1], [0], [0], [1], [0, 0, 1, 1], [], []>} : vector<1x128xbf16>, vector<128x512xbf16>, vector<1x512xf32> -> vector<1x512xf32>
    %11 = arith.addf %7, %10 : vector<1x512xf32>
    %12 = vector.extract_strided_slice %11 {offsets = [0, 0], sizes = [1, 384], strides = [1, 1]} : vector<1x512xf32> to vector<1x384xf32>
    %13 = arith.negf %12 : vector<1x384xf32>
    %14 = math.exp %13 : vector<1x384xf32>
    %cst_9 = arith.constant 1.000000e+00 : f32
    %15 = vector.broadcast %cst_9 : f32 to vector<1x384xf32>
    %16 = arith.addf %15, %14 : vector<1x384xf32>
    %17 = arith.divf %15, %16 : vector<1x384xf32>
    %18 = vector.extract_strided_slice %11 {offsets = [0, 384], sizes = [1, 128], strides = [1, 1]} : vector<1x512xf32> to vector<1x128xf32>
    %19 = math.tanh %18 : vector<1x128xf32>
    %20 = vector.extract_strided_slice %17 {offsets = [0, 0], sizes = [1, 128], strides = [1, 1]} : vector<1x384xf32> to vector<1x128xf32>
    %21 = vector.extract_strided_slice %17 {offsets = [0, 128], sizes = [1, 128], strides = [1, 1]} : vector<1x384xf32> to vector<1x128xf32>
    %22 = vector.extract_strided_slice %17 {offsets = [0, 256], sizes = [1, 128], strides = [1, 1]} : vector<1x384xf32> to vector<1x128xf32>
    %23 = arith.mulf %21, %0 : vector<1x128xf32>
    %24 = arith.mulf %20, %19 : vector<1x128xf32>
    %25 = arith.addf %23, %24 : vector<1x128xf32>
    %26 = math.tanh %25 : vector<1x128xf32>
    %27 = arith.mulf %22, %26 : vector<1x128xf32>
    %28 = arith.truncf %27 : vector<1x128xf32> to vector<1x128xbf16>
    %c0_10 = arith.constant 0 : index
    %c0_11 = arith.constant 0 : index
    %29 = vector.load %arg5[%c0_10, %c0_11] : memref<128x512xbf16, #tpu.memory_space<vmem>>, vector<128x512xbf16>
    %cst_12 = arith.constant dense<0.000000e+00> : vector<1x512xf32>
    %30 = tpu.matmul %28, %29, %cst_12 {dimension_numbers = #tpu.dot_dimension_numbers<[1], [0], [0], [1], [0, 0, 1, 1], [], []>} : vector<1x128xbf16>, vector<128x512xbf16>, vector<1x512xf32> -> vector<1x512xf32>
    %31 = arith.truncf %0 : vector<1x128xf32> to vector<1x128xbf16>
    %c0_13 = arith.constant 0 : index
    %c0_14 = arith.constant 0 : index
    %32 = vector.load %arg6[%c0_13, %c0_14] : memref<128x512xbf16, #tpu.memory_space<vmem>>, vector<128x512xbf16>
    %cst_15 = arith.constant dense<0.000000e+00> : vector<1x512xf32>
    %33 = tpu.matmul %31, %32, %cst_15 {dimension_numbers = #tpu.dot_dimension_numbers<[1], [0], [0], [1], [0, 0, 1, 1], [], []>} : vector<1x128xbf16>, vector<128x512xbf16>, vector<1x512xf32> -> vector<1x512xf32>
    %34 = arith.addf %30, %33 : vector<1x512xf32>
    %c0_16 = arith.constant 0 : index
    %c0_17 = arith.constant 0 : index
    %35 = vector.load %arg7[%c0_16, %c0_17] : memref<1x512xf32, #tpu.memory_space<vmem>>, vector<1x512xf32>
    %36 = arith.addf %34, %35 : vector<1x512xf32>
    %37 = vector.extract_strided_slice %36 {offsets = [0, 0], sizes = [1, 384], strides = [1, 1]} : vector<1x512xf32> to vector<1x384xf32>
    %38 = arith.negf %37 : vector<1x384xf32>
    %39 = math.exp %38 : vector<1x384xf32>
    %cst_18 = arith.constant 1.000000e+00 : f32
    %40 = vector.broadcast %cst_18 : f32 to vector<1x384xf32>
    %41 = arith.addf %40, %39 : vector<1x384xf32>
    %42 = arith.divf %40, %41 : vector<1x384xf32>
    %43 = vector.extract_strided_slice %36 {offsets = [0, 384], sizes = [1, 128], strides = [1, 1]} : vector<1x512xf32> to vector<1x128xf32>
    %44 = math.tanh %43 : vector<1x128xf32>
    %45 = vector.extract_strided_slice %42 {offsets = [0, 0], sizes = [1, 128], strides = [1, 1]} : vector<1x384xf32> to vector<1x128xf32>
    %46 = vector.extract_strided_slice %42 {offsets = [0, 128], sizes = [1, 128], strides = [1, 1]} : vector<1x384xf32> to vector<1x128xf32>
    %47 = vector.extract_strided_slice %42 {offsets = [0, 256], sizes = [1, 128], strides = [1, 1]} : vector<1x384xf32> to vector<1x128xf32>
    %48 = arith.mulf %46, %0 : vector<1x128xf32>
    %49 = arith.mulf %45, %44 : vector<1x128xf32>
    %50 = arith.addf %48, %49 : vector<1x128xf32>
    %51 = math.tanh %50 : vector<1x128xf32>
    %52 = arith.mulf %47, %51 : vector<1x128xf32>
    %53 = vector.extract_strided_slice %6 {offsets = [1, 0], sizes = [1, 512], strides = [1, 1]} : vector<8x512xf32> to vector<1x512xf32>
    %54 = arith.truncf %27 : vector<1x128xf32> to vector<1x128xbf16>
    %c0_19 = arith.constant 0 : index
    %c0_20 = arith.constant 0 : index
    %55 = vector.load %arg3[%c0_19, %c0_20] : memref<128x512xbf16, #tpu.memory_space<vmem>>, vector<128x512xbf16>
    %cst_21 = arith.constant dense<0.000000e+00> : vector<1x512xf32>
    %56 = tpu.matmul %54, %55, %cst_21 {dimension_numbers = #tpu.dot_dimension_numbers<[1], [0], [0], [1], [0, 0, 1, 1], [], []>} : vector<1x128xbf16>, vector<128x512xbf16>, vector<1x512xf32> -> vector<1x512xf32>
    %57 = arith.addf %53, %56 : vector<1x512xf32>
    %58 = vector.extract_strided_slice %57 {offsets = [0, 0], sizes = [1, 384], strides = [1, 1]} : vector<1x512xf32> to vector<1x384xf32>
    %59 = arith.negf %58 : vector<1x384xf32>
    %60 = math.exp %59 : vector<1x384xf32>
    %cst_22 = arith.constant 1.000000e+00 : f32
    %61 = vector.broadcast %cst_22 : f32 to vector<1x384xf32>
    %62 = arith.addf %61, %60 : vector<1x384xf32>
    %63 = arith.divf %61, %62 : vector<1x384xf32>
    %64 = vector.extract_strided_slice %57 {offsets = [0, 384], sizes = [1, 128], strides = [1, 1]} : vector<1x512xf32> to vector<1x128xf32>
    %65 = math.tanh %64 : vector<1x128xf32>
    %66 = vector.extract_strided_slice %63 {offsets = [0, 0], sizes = [1, 128], strides = [1, 1]} : vector<1x384xf32> to vector<1x128xf32>
    %67 = vector.extract_strided_slice %63 {offsets = [0, 128], sizes = [1, 128], strides = [1, 1]} : vector<1x384xf32> to vector<1x128xf32>
    %68 = vector.extract_strided_slice %63 {offsets = [0, 256], sizes = [1, 128], strides = [1, 1]} : vector<1x384xf32> to vector<1x128xf32>
    %69 = arith.mulf %67, %25 : vector<1x128xf32>
    %70 = arith.mulf %66, %65 : vector<1x128xf32>
    %71 = arith.addf %69, %70 : vector<1x128xf32>
    %72 = math.tanh %71 : vector<1x128xf32>
    %73 = arith.mulf %68, %72 : vector<1x128xf32>
    %74 = arith.truncf %73 : vector<1x128xf32> to vector<1x128xbf16>
    %c0_23 = arith.constant 0 : index
    %c0_24 = arith.constant 0 : index
    %75 = vector.load %arg5[%c0_23, %c0_24] : memref<128x512xbf16, #tpu.memory_space<vmem>>, vector<128x512xbf16>
    %cst_25 = arith.constant dense<0.000000e+00> : vector<1x512xf32>
    %76 = tpu.matmul %74, %75, %cst_25 {dimension_numbers = #tpu.dot_dimension_numbers<[1], [0], [0], [1], [0, 0, 1, 1], [], []>} : vector<1x128xbf16>, vector<128x512xbf16>, vector<1x512xf32> -> vector<1x512xf32>
    %77 = arith.truncf %52 : vector<1x128xf32> to vector<1x128xbf16>
    %c0_26 = arith.constant 0 : index
    %c0_27 = arith.constant 0 : index
    %78 = vector.load %arg6[%c0_26, %c0_27] : memref<128x512xbf16, #tpu.memory_space<vmem>>, vector<128x512xbf16>
    %cst_28 = arith.constant dense<0.000000e+00> : vector<1x512xf32>
    %79 = tpu.matmul %77, %78, %cst_28 {dimension_numbers = #tpu.dot_dimension_numbers<[1], [0], [0], [1], [0, 0, 1, 1], [], []>} : vector<1x128xbf16>, vector<128x512xbf16>, vector<1x512xf32> -> vector<1x512xf32>
    %80 = arith.addf %76, %79 : vector<1x512xf32>
    %c0_29 = arith.constant 0 : index
    %c0_30 = arith.constant 0 : index
    %81 = vector.load %arg7[%c0_29, %c0_30] : memref<1x512xf32, #tpu.memory_space<vmem>>, vector<1x512xf32>
    %82 = arith.addf %80, %81 : vector<1x512xf32>
    %83 = vector.extract_strided_slice %82 {offsets = [0, 0], sizes = [1, 384], strides = [1, 1]} : vector<1x512xf32> to vector<1x384xf32>
    %84 = arith.negf %83 : vector<1x384xf32>
    %85 = math.exp %84 : vector<1x384xf32>
    %cst_31 = arith.constant 1.000000e+00 : f32
    %86 = vector.broadcast %cst_31 : f32 to vector<1x384xf32>
    %87 = arith.addf %86, %85 : vector<1x384xf32>
    %88 = arith.divf %86, %87 : vector<1x384xf32>
    %89 = vector.extract_strided_slice %82 {offsets = [0, 384], sizes = [1, 128], strides = [1, 1]} : vector<1x512xf32> to vector<1x128xf32>
    %90 = math.tanh %89 : vector<1x128xf32>
    %91 = vector.extract_strided_slice %88 {offsets = [0, 0], sizes = [1, 128], strides = [1, 1]} : vector<1x384xf32> to vector<1x128xf32>
    %92 = vector.extract_strided_slice %88 {offsets = [0, 128], sizes = [1, 128], strides = [1, 1]} : vector<1x384xf32> to vector<1x128xf32>
    %93 = vector.extract_strided_slice %88 {offsets = [0, 256], sizes = [1, 128], strides = [1, 1]} : vector<1x384xf32> to vector<1x128xf32>
    %94 = arith.mulf %92, %50 : vector<1x128xf32>
    %95 = arith.mulf %91, %90 : vector<1x128xf32>
    %96 = arith.addf %94, %95 : vector<1x128xf32>
    %97 = math.tanh %96 : vector<1x128xf32>
    %98 = arith.mulf %93, %97 : vector<1x128xf32>
    %99 = vector.extract_strided_slice %6 {offsets = [2, 0], sizes = [1, 512], strides = [1, 1]} : vector<8x512xf32> to vector<1x512xf32>
    %100 = arith.truncf %73 : vector<1x128xf32> to vector<1x128xbf16>
    %c0_32 = arith.constant 0 : index
    %c0_33 = arith.constant 0 : index
    %101 = vector.load %arg3[%c0_32, %c0_33] : memref<128x512xbf16, #tpu.memory_space<vmem>>, vector<128x512xbf16>
    %cst_34 = arith.constant dense<0.000000e+00> : vector<1x512xf32>
    %102 = tpu.matmul %100, %101, %cst_34 {dimension_numbers = #tpu.dot_dimension_numbers<[1], [0], [0], [1], [0, 0, 1, 1], [], []>} : vector<1x128xbf16>, vector<128x512xbf16>, vector<1x512xf32> -> vector<1x512xf32>
    %103 = arith.addf %99, %102 : vector<1x512xf32>
    %104 = vector.extract_strided_slice %103 {offsets = [0, 0], sizes = [1, 384], strides = [1, 1]} : vector<1x512xf32> to vector<1x384xf32>
    %105 = arith.negf %104 : vector<1x384xf32>
    %106 = math.exp %105 : vector<1x384xf32>
    %cst_35 = arith.constant 1.000000e+00 : f32
    %107 = vector.broadcast %cst_35 : f32 to vector<1x384xf32>
    %108 = arith.addf %107, %106 : vector<1x384xf32>
    %109 = arith.divf %107, %108 : vector<1x384xf32>
    %110 = vector.extract_strided_slice %103 {offsets = [0, 384], sizes = [1, 128], strides = [1, 1]} : vector<1x512xf32> to vector<1x128xf32>
    %111 = math.tanh %110 : vector<1x128xf32>
    %112 = vector.extract_strided_slice %109 {offsets = [0, 0], sizes = [1, 128], strides = [1, 1]} : vector<1x384xf32> to vector<1x128xf32>
    %113 = vector.extract_strided_slice %109 {offsets = [0, 128], sizes = [1, 128], strides = [1, 1]} : vector<1x384xf32> to vector<1x128xf32>
    %114 = vector.extract_strided_slice %109 {offsets = [0, 256], sizes = [1, 128], strides = [1, 1]} : vector<1x384xf32> to vector<1x128xf32>
    %115 = arith.mulf %113, %71 : vector<1x128xf32>
    %116 = arith.mulf %112, %111 : vector<1x128xf32>
    %117 = arith.addf %115, %116 : vector<1x128xf32>
    %118 = math.tanh %117 : vector<1x128xf32>
    %119 = arith.mulf %114, %118 : vector<1x128xf32>
    %120 = arith.truncf %119 : vector<1x128xf32> to vector<1x128xbf16>
    %c0_36 = arith.constant 0 : index
    %c0_37 = arith.constant 0 : index
    %121 = vector.load %arg5[%c0_36, %c0_37] : memref<128x512xbf16, #tpu.memory_space<vmem>>, vector<128x512xbf16>
    %cst_38 = arith.constant dense<0.000000e+00> : vector<1x512xf32>
    %122 = tpu.matmul %120, %121, %cst_38 {dimension_numbers = #tpu.dot_dimension_numbers<[1], [0], [0], [1], [0, 0, 1, 1], [], []>} : vector<1x128xbf16>, vector<128x512xbf16>, vector<1x512xf32> -> vector<1x512xf32>
    %123 = arith.truncf %98 : vector<1x128xf32> to vector<1x128xbf16>
    %c0_39 = arith.constant 0 : index
    %c0_40 = arith.constant 0 : index
    %124 = vector.load %arg6[%c0_39, %c0_40] : memref<128x512xbf16, #tpu.memory_space<vmem>>, vector<128x512xbf16>
    %cst_41 = arith.constant dense<0.000000e+00> : vector<1x512xf32>
    %125 = tpu.matmul %123, %124, %cst_41 {dimension_numbers = #tpu.dot_dimension_numbers<[1], [0], [0], [1], [0, 0, 1, 1], [], []>} : vector<1x128xbf16>, vector<128x512xbf16>, vector<1x512xf32> -> vector<1x512xf32>
    %126 = arith.addf %122, %125 : vector<1x512xf32>
    %c0_42 = arith.constant 0 : index
    %c0_43 = arith.constant 0 : index
    %127 = vector.load %arg7[%c0_42, %c0_43] : memref<1x512xf32, #tpu.memory_space<vmem>>, vector<1x512xf32>
    %128 = arith.addf %126, %127 : vector<1x512xf32>
    %129 = vector.extract_strided_slice %128 {offsets = [0, 0], sizes = [1, 384], strides = [1, 1]} : vector<1x512xf32> to vector<1x384xf32>
    %130 = arith.negf %129 : vector<1x384xf32>
    %131 = math.exp %130 : vector<1x384xf32>
    %cst_44 = arith.constant 1.000000e+00 : f32
    %132 = vector.broadcast %cst_44 : f32 to vector<1x384xf32>
    %133 = arith.addf %132, %131 : vector<1x384xf32>
    %134 = arith.divf %132, %133 : vector<1x384xf32>
    %135 = vector.extract_strided_slice %128 {offsets = [0, 384], sizes = [1, 128], strides = [1, 1]} : vector<1x512xf32> to vector<1x128xf32>
    %136 = math.tanh %135 : vector<1x128xf32>
    %137 = vector.extract_strided_slice %134 {offsets = [0, 0], sizes = [1, 128], strides = [1, 1]} : vector<1x384xf32> to vector<1x128xf32>
    %138 = vector.extract_strided_slice %134 {offsets = [0, 128], sizes = [1, 128], strides = [1, 1]} : vector<1x384xf32> to vector<1x128xf32>
    %139 = vector.extract_strided_slice %134 {offsets = [0, 256], sizes = [1, 128], strides = [1, 1]} : vector<1x384xf32> to vector<1x128xf32>
    %140 = arith.mulf %138, %96 : vector<1x128xf32>
    %141 = arith.mulf %137, %136 : vector<1x128xf32>
    %142 = arith.addf %140, %141 : vector<1x128xf32>
    %143 = math.tanh %142 : vector<1x128xf32>
    %144 = arith.mulf %139, %143 : vector<1x128xf32>
    %145 = vector.extract_strided_slice %6 {offsets = [3, 0], sizes = [1, 512], strides = [1, 1]} : vector<8x512xf32> to vector<1x512xf32>
    %146 = arith.truncf %119 : vector<1x128xf32> to vector<1x128xbf16>
    %c0_45 = arith.constant 0 : index
    %c0_46 = arith.constant 0 : index
    %147 = vector.load %arg3[%c0_45, %c0_46] : memref<128x512xbf16, #tpu.memory_space<vmem>>, vector<128x512xbf16>
    %cst_47 = arith.constant dense<0.000000e+00> : vector<1x512xf32>
    %148 = tpu.matmul %146, %147, %cst_47 {dimension_numbers = #tpu.dot_dimension_numbers<[1], [0], [0], [1], [0, 0, 1, 1], [], []>} : vector<1x128xbf16>, vector<128x512xbf16>, vector<1x512xf32> -> vector<1x512xf32>
    %149 = arith.addf %145, %148 : vector<1x512xf32>
    %150 = vector.extract_strided_slice %149 {offsets = [0, 0], sizes = [1, 384], strides = [1, 1]} : vector<1x512xf32> to vector<1x384xf32>
    %151 = arith.negf %150 : vector<1x384xf32>
    %152 = math.exp %151 : vector<1x384xf32>
    %cst_48 = arith.constant 1.000000e+00 : f32
    %153 = vector.broadcast %cst_48 : f32 to vector<1x384xf32>
    %154 = arith.addf %153, %152 : vector<1x384xf32>
    %155 = arith.divf %153, %154 : vector<1x384xf32>
    %156 = vector.extract_strided_slice %149 {offsets = [0, 384], sizes = [1, 128], strides = [1, 1]} : vector<1x512xf32> to vector<1x128xf32>
    %157 = math.tanh %156 : vector<1x128xf32>
    %158 = vector.extract_strided_slice %155 {offsets = [0, 0], sizes = [1, 128], strides = [1, 1]} : vector<1x384xf32> to vector<1x128xf32>
    %159 = vector.extract_strided_slice %155 {offsets = [0, 128], sizes = [1, 128], strides = [1, 1]} : vector<1x384xf32> to vector<1x128xf32>
    %160 = vector.extract_strided_slice %155 {offsets = [0, 256], sizes = [1, 128], strides = [1, 1]} : vector<1x384xf32> to vector<1x128xf32>
    %161 = arith.mulf %159, %117 : vector<1x128xf32>
    %162 = arith.mulf %158, %157 : vector<1x128xf32>
    %163 = arith.addf %161, %162 : vector<1x128xf32>
    %164 = math.tanh %163 : vector<1x128xf32>
    %165 = arith.mulf %160, %164 : vector<1x128xf32>
    %166 = arith.truncf %165 : vector<1x128xf32> to vector<1x128xbf16>
    %c0_49 = arith.constant 0 : index
    %c0_50 = arith.constant 0 : index
    %167 = vector.load %arg5[%c0_49, %c0_50] : memref<128x512xbf16, #tpu.memory_space<vmem>>, vector<128x512xbf16>
    %cst_51 = arith.constant dense<0.000000e+00> : vector<1x512xf32>
    %168 = tpu.matmul %166, %167, %cst_51 {dimension_numbers = #tpu.dot_dimension_numbers<[1], [0], [0], [1], [0, 0, 1, 1], [], []>} : vector<1x128xbf16>, vector<128x512xbf16>, vector<1x512xf32> -> vector<1x512xf32>
    %169 = arith.truncf %144 : vector<1x128xf32> to vector<1x128xbf16>
    %c0_52 = arith.constant 0 : index
    %c0_53 = arith.constant 0 : index
    %170 = vector.load %arg6[%c0_52, %c0_53] : memref<128x512xbf16, #tpu.memory_space<vmem>>, vector<128x512xbf16>
    %cst_54 = arith.constant dense<0.000000e+00> : vector<1x512xf32>
    %171 = tpu.matmul %169, %170, %cst_54 {dimension_numbers = #tpu.dot_dimension_numbers<[1], [0], [0], [1], [0, 0, 1, 1], [], []>} : vector<1x128xbf16>, vector<128x512xbf16>, vector<1x512xf32> -> vector<1x512xf32>
    %172 = arith.addf %168, %171 : vector<1x512xf32>
    %c0_55 = arith.constant 0 : index
    %c0_56 = arith.constant 0 : index
    %173 = vector.load %arg7[%c0_55, %c0_56] : memref<1x512xf32, #tpu.memory_space<vmem>>, vector<1x512xf32>
    %174 = arith.addf %172, %173 : vector<1x512xf32>
    %175 = vector.extract_strided_slice %174 {offsets = [0, 0], sizes = [1, 384], strides = [1, 1]} : vector<1x512xf32> to vector<1x384xf32>
    %176 = arith.negf %175 : vector<1x384xf32>
    %177 = math.exp %176 : vector<1x384xf32>
    %cst_57 = arith.constant 1.000000e+00 : f32
    %178 = vector.broadcast %cst_57 : f32 to vector<1x384xf32>
    %179 = arith.addf %178, %177 : vector<1x384xf32>
    %180 = arith.divf %178, %179 : vector<1x384xf32>
    %181 = vector.extract_strided_slice %174 {offsets = [0, 384], sizes = [1, 128], strides = [1, 1]} : vector<1x512xf32> to vector<1x128xf32>
    %182 = math.tanh %181 : vector<1x128xf32>
    %183 = vector.extract_strided_slice %180 {offsets = [0, 0], sizes = [1, 128], strides = [1, 1]} : vector<1x384xf32> to vector<1x128xf32>
    %184 = vector.extract_strided_slice %180 {offsets = [0, 128], sizes = [1, 128], strides = [1, 1]} : vector<1x384xf32> to vector<1x128xf32>
    %185 = vector.extract_strided_slice %180 {offsets = [0, 256], sizes = [1, 128], strides = [1, 1]} : vector<1x384xf32> to vector<1x128xf32>
    %186 = arith.mulf %184, %142 : vector<1x128xf32>
    %187 = arith.mulf %183, %182 : vector<1x128xf32>
    %188 = arith.addf %186, %187 : vector<1x128xf32>
    %189 = math.tanh %188 : vector<1x128xf32>
    %190 = arith.mulf %185, %189 : vector<1x128xf32>
    %191 = vector.extract_strided_slice %6 {offsets = [4, 0], sizes = [1, 512], strides = [1, 1]} : vector<8x512xf32> to vector<1x512xf32>
    %192 = arith.truncf %165 : vector<1x128xf32> to vector<1x128xbf16>
    %c0_58 = arith.constant 0 : index
    %c0_59 = arith.constant 0 : index
    %193 = vector.load %arg3[%c0_58, %c0_59] : memref<128x512xbf16, #tpu.memory_space<vmem>>, vector<128x512xbf16>
    %cst_60 = arith.constant dense<0.000000e+00> : vector<1x512xf32>
    %194 = tpu.matmul %192, %193, %cst_60 {dimension_numbers = #tpu.dot_dimension_numbers<[1], [0], [0], [1], [0, 0, 1, 1], [], []>} : vector<1x128xbf16>, vector<128x512xbf16>, vector<1x512xf32> -> vector<1x512xf32>
    %195 = arith.addf %191, %194 : vector<1x512xf32>
    %196 = vector.extract_strided_slice %195 {offsets = [0, 0], sizes = [1, 384], strides = [1, 1]} : vector<1x512xf32> to vector<1x384xf32>
    %197 = arith.negf %196 : vector<1x384xf32>
    %198 = math.exp %197 : vector<1x384xf32>
    %cst_61 = arith.constant 1.000000e+00 : f32
    %199 = vector.broadcast %cst_61 : f32 to vector<1x384xf32>
    %200 = arith.addf %199, %198 : vector<1x384xf32>
    %201 = arith.divf %199, %200 : vector<1x384xf32>
    %202 = vector.extract_strided_slice %195 {offsets = [0, 384], sizes = [1, 128], strides = [1, 1]} : vector<1x512xf32> to vector<1x128xf32>
    %203 = math.tanh %202 : vector<1x128xf32>
    %204 = vector.extract_strided_slice %201 {offsets = [0, 0], sizes = [1, 128], strides = [1, 1]} : vector<1x384xf32> to vector<1x128xf32>
    %205 = vector.extract_strided_slice %201 {offsets = [0, 128], sizes = [1, 128], strides = [1, 1]} : vector<1x384xf32> to vector<1x128xf32>
    %206 = vector.extract_strided_slice %201 {offsets = [0, 256], sizes = [1, 128], strides = [1, 1]} : vector<1x384xf32> to vector<1x128xf32>
    %207 = arith.mulf %205, %163 : vector<1x128xf32>
    %208 = arith.mulf %204, %203 : vector<1x128xf32>
    %209 = arith.addf %207, %208 : vector<1x128xf32>
    %210 = math.tanh %209 : vector<1x128xf32>
    %211 = arith.mulf %206, %210 : vector<1x128xf32>
    %212 = arith.truncf %211 : vector<1x128xf32> to vector<1x128xbf16>
    %c0_62 = arith.constant 0 : index
    %c0_63 = arith.constant 0 : index
    %213 = vector.load %arg5[%c0_62, %c0_63] : memref<128x512xbf16, #tpu.memory_space<vmem>>, vector<128x512xbf16>
    %cst_64 = arith.constant dense<0.000000e+00> : vector<1x512xf32>
    %214 = tpu.matmul %212, %213, %cst_64 {dimension_numbers = #tpu.dot_dimension_numbers<[1], [0], [0], [1], [0, 0, 1, 1], [], []>} : vector<1x128xbf16>, vector<128x512xbf16>, vector<1x512xf32> -> vector<1x512xf32>
    %215 = arith.truncf %190 : vector<1x128xf32> to vector<1x128xbf16>
    %c0_65 = arith.constant 0 : index
    %c0_66 = arith.constant 0 : index
    %216 = vector.load %arg6[%c0_65, %c0_66] : memref<128x512xbf16, #tpu.memory_space<vmem>>, vector<128x512xbf16>
    %cst_67 = arith.constant dense<0.000000e+00> : vector<1x512xf32>
    %217 = tpu.matmul %215, %216, %cst_67 {dimension_numbers = #tpu.dot_dimension_numbers<[1], [0], [0], [1], [0, 0, 1, 1], [], []>} : vector<1x128xbf16>, vector<128x512xbf16>, vector<1x512xf32> -> vector<1x512xf32>
    %218 = arith.addf %214, %217 : vector<1x512xf32>
    %c0_68 = arith.constant 0 : index
    %c0_69 = arith.constant 0 : index
    %219 = vector.load %arg7[%c0_68, %c0_69] : memref<1x512xf32, #tpu.memory_space<vmem>>, vector<1x512xf32>
    %220 = arith.addf %218, %219 : vector<1x512xf32>
    %221 = vector.extract_strided_slice %220 {offsets = [0, 0], sizes = [1, 384], strides = [1, 1]} : vector<1x512xf32> to vector<1x384xf32>
    %222 = arith.negf %221 : vector<1x384xf32>
    %223 = math.exp %222 : vector<1x384xf32>
    %cst_70 = arith.constant 1.000000e+00 : f32
    %224 = vector.broadcast %cst_70 : f32 to vector<1x384xf32>
    %225 = arith.addf %224, %223 : vector<1x384xf32>
    %226 = arith.divf %224, %225 : vector<1x384xf32>
    %227 = vector.extract_strided_slice %220 {offsets = [0, 384], sizes = [1, 128], strides = [1, 1]} : vector<1x512xf32> to vector<1x128xf32>
    %228 = math.tanh %227 : vector<1x128xf32>
    %229 = vector.extract_strided_slice %226 {offsets = [0, 0], sizes = [1, 128], strides = [1, 1]} : vector<1x384xf32> to vector<1x128xf32>
    %230 = vector.extract_strided_slice %226 {offsets = [0, 128], sizes = [1, 128], strides = [1, 1]} : vector<1x384xf32> to vector<1x128xf32>
    %231 = vector.extract_strided_slice %226 {offsets = [0, 256], sizes = [1, 128], strides = [1, 1]} : vector<1x384xf32> to vector<1x128xf32>
    %232 = arith.mulf %230, %188 : vector<1x128xf32>
    %233 = arith.mulf %229, %228 : vector<1x128xf32>
    %234 = arith.addf %232, %233 : vector<1x128xf32>
    %235 = math.tanh %234 : vector<1x128xf32>
    %236 = arith.mulf %231, %235 : vector<1x128xf32>
    %237 = vector.extract_strided_slice %6 {offsets = [5, 0], sizes = [1, 512], strides = [1, 1]} : vector<8x512xf32> to vector<1x512xf32>
    %238 = arith.truncf %211 : vector<1x128xf32> to vector<1x128xbf16>
    %c0_71 = arith.constant 0 : index
    %c0_72 = arith.constant 0 : index
    %239 = vector.load %arg3[%c0_71, %c0_72] : memref<128x512xbf16, #tpu.memory_space<vmem>>, vector<128x512xbf16>
    %cst_73 = arith.constant dense<0.000000e+00> : vector<1x512xf32>
    %240 = tpu.matmul %238, %239, %cst_73 {dimension_numbers = #tpu.dot_dimension_numbers<[1], [0], [0], [1], [0, 0, 1, 1], [], []>} : vector<1x128xbf16>, vector<128x512xbf16>, vector<1x512xf32> -> vector<1x512xf32>
    %241 = arith.addf %237, %240 : vector<1x512xf32>
    %242 = vector.extract_strided_slice %241 {offsets = [0, 0], sizes = [1, 384], strides = [1, 1]} : vector<1x512xf32> to vector<1x384xf32>
    %243 = arith.negf %242 : vector<1x384xf32>
    %244 = math.exp %243 : vector<1x384xf32>
    %cst_74 = arith.constant 1.000000e+00 : f32
    %245 = vector.broadcast %cst_74 : f32 to vector<1x384xf32>
    %246 = arith.addf %245, %244 : vector<1x384xf32>
    %247 = arith.divf %245, %246 : vector<1x384xf32>
    %248 = vector.extract_strided_slice %241 {offsets = [0, 384], sizes = [1, 128], strides = [1, 1]} : vector<1x512xf32> to vector<1x128xf32>
    %249 = math.tanh %248 : vector<1x128xf32>
    %250 = vector.extract_strided_slice %247 {offsets = [0, 0], sizes = [1, 128], strides = [1, 1]} : vector<1x384xf32> to vector<1x128xf32>
    %251 = vector.extract_strided_slice %247 {offsets = [0, 128], sizes = [1, 128], strides = [1, 1]} : vector<1x384xf32> to vector<1x128xf32>
    %252 = vector.extract_strided_slice %247 {offsets = [0, 256], sizes = [1, 128], strides = [1, 1]} : vector<1x384xf32> to vector<1x128xf32>
    %253 = arith.mulf %251, %209 : vector<1x128xf32>
    %254 = arith.mulf %250, %249 : vector<1x128xf32>
    %255 = arith.addf %253, %254 : vector<1x128xf32>
    %256 = math.tanh %255 : vector<1x128xf32>
    %257 = arith.mulf %252, %256 : vector<1x128xf32>
    %258 = arith.truncf %257 : vector<1x128xf32> to vector<1x128xbf16>
    %c0_75 = arith.constant 0 : index
    %c0_76 = arith.constant 0 : index
    %259 = vector.load %arg5[%c0_75, %c0_76] : memref<128x512xbf16, #tpu.memory_space<vmem>>, vector<128x512xbf16>
    %cst_77 = arith.constant dense<0.000000e+00> : vector<1x512xf32>
    %260 = tpu.matmul %258, %259, %cst_77 {dimension_numbers = #tpu.dot_dimension_numbers<[1], [0], [0], [1], [0, 0, 1, 1], [], []>} : vector<1x128xbf16>, vector<128x512xbf16>, vector<1x512xf32> -> vector<1x512xf32>
    %261 = arith.truncf %236 : vector<1x128xf32> to vector<1x128xbf16>
    %c0_78 = arith.constant 0 : index
    %c0_79 = arith.constant 0 : index
    %262 = vector.load %arg6[%c0_78, %c0_79] : memref<128x512xbf16, #tpu.memory_space<vmem>>, vector<128x512xbf16>
    %cst_80 = arith.constant dense<0.000000e+00> : vector<1x512xf32>
    %263 = tpu.matmul %261, %262, %cst_80 {dimension_numbers = #tpu.dot_dimension_numbers<[1], [0], [0], [1], [0, 0, 1, 1], [], []>} : vector<1x128xbf16>, vector<128x512xbf16>, vector<1x512xf32> -> vector<1x512xf32>
    %264 = arith.addf %260, %263 : vector<1x512xf32>
    %c0_81 = arith.constant 0 : index
    %c0_82 = arith.constant 0 : index
    %265 = vector.load %arg7[%c0_81, %c0_82] : memref<1x512xf32, #tpu.memory_space<vmem>>, vector<1x512xf32>
    %266 = arith.addf %264, %265 : vector<1x512xf32>
    %267 = vector.extract_strided_slice %266 {offsets = [0, 0], sizes = [1, 384], strides = [1, 1]} : vector<1x512xf32> to vector<1x384xf32>
    %268 = arith.negf %267 : vector<1x384xf32>
    %269 = math.exp %268 : vector<1x384xf32>
    %cst_83 = arith.constant 1.000000e+00 : f32
    %270 = vector.broadcast %cst_83 : f32 to vector<1x384xf32>
    %271 = arith.addf %270, %269 : vector<1x384xf32>
    %272 = arith.divf %270, %271 : vector<1x384xf32>
    %273 = vector.extract_strided_slice %266 {offsets = [0, 384], sizes = [1, 128], strides = [1, 1]} : vector<1x512xf32> to vector<1x128xf32>
    %274 = math.tanh %273 : vector<1x128xf32>
    %275 = vector.extract_strided_slice %272 {offsets = [0, 0], sizes = [1, 128], strides = [1, 1]} : vector<1x384xf32> to vector<1x128xf32>
    %276 = vector.extract_strided_slice %272 {offsets = [0, 128], sizes = [1, 128], strides = [1, 1]} : vector<1x384xf32> to vector<1x128xf32>
    %277 = vector.extract_strided_slice %272 {offsets = [0, 256], sizes = [1, 128], strides = [1, 1]} : vector<1x384xf32> to vector<1x128xf32>
    %278 = arith.mulf %276, %234 : vector<1x128xf32>
    %279 = arith.mulf %275, %274 : vector<1x128xf32>
    %280 = arith.addf %278, %279 : vector<1x128xf32>
    %281 = math.tanh %280 : vector<1x128xf32>
    %282 = arith.mulf %277, %281 : vector<1x128xf32>
    %283 = vector.extract_strided_slice %6 {offsets = [6, 0], sizes = [1, 512], strides = [1, 1]} : vector<8x512xf32> to vector<1x512xf32>
    %284 = arith.truncf %257 : vector<1x128xf32> to vector<1x128xbf16>
    %c0_84 = arith.constant 0 : index
    %c0_85 = arith.constant 0 : index
    %285 = vector.load %arg3[%c0_84, %c0_85] : memref<128x512xbf16, #tpu.memory_space<vmem>>, vector<128x512xbf16>
    %cst_86 = arith.constant dense<0.000000e+00> : vector<1x512xf32>
    %286 = tpu.matmul %284, %285, %cst_86 {dimension_numbers = #tpu.dot_dimension_numbers<[1], [0], [0], [1], [0, 0, 1, 1], [], []>} : vector<1x128xbf16>, vector<128x512xbf16>, vector<1x512xf32> -> vector<1x512xf32>
    %287 = arith.addf %283, %286 : vector<1x512xf32>
    %288 = vector.extract_strided_slice %287 {offsets = [0, 0], sizes = [1, 384], strides = [1, 1]} : vector<1x512xf32> to vector<1x384xf32>
    %289 = arith.negf %288 : vector<1x384xf32>
    %290 = math.exp %289 : vector<1x384xf32>
    %cst_87 = arith.constant 1.000000e+00 : f32
    %291 = vector.broadcast %cst_87 : f32 to vector<1x384xf32>
    %292 = arith.addf %291, %290 : vector<1x384xf32>
    %293 = arith.divf %291, %292 : vector<1x384xf32>
    %294 = vector.extract_strided_slice %287 {offsets = [0, 384], sizes = [1, 128], strides = [1, 1]} : vector<1x512xf32> to vector<1x128xf32>
    %295 = math.tanh %294 : vector<1x128xf32>
    %296 = vector.extract_strided_slice %293 {offsets = [0, 0], sizes = [1, 128], strides = [1, 1]} : vector<1x384xf32> to vector<1x128xf32>
    %297 = vector.extract_strided_slice %293 {offsets = [0, 128], sizes = [1, 128], strides = [1, 1]} : vector<1x384xf32> to vector<1x128xf32>
    %298 = vector.extract_strided_slice %293 {offsets = [0, 256], sizes = [1, 128], strides = [1, 1]} : vector<1x384xf32> to vector<1x128xf32>
    %299 = arith.mulf %297, %255 : vector<1x128xf32>
    %300 = arith.mulf %296, %295 : vector<1x128xf32>
    %301 = arith.addf %299, %300 : vector<1x128xf32>
    %302 = math.tanh %301 : vector<1x128xf32>
    %303 = arith.mulf %298, %302 : vector<1x128xf32>
    %304 = arith.truncf %303 : vector<1x128xf32> to vector<1x128xbf16>
    %c0_88 = arith.constant 0 : index
    %c0_89 = arith.constant 0 : index
    %305 = vector.load %arg5[%c0_88, %c0_89] : memref<128x512xbf16, #tpu.memory_space<vmem>>, vector<128x512xbf16>
    %cst_90 = arith.constant dense<0.000000e+00> : vector<1x512xf32>
    %306 = tpu.matmul %304, %305, %cst_90 {dimension_numbers = #tpu.dot_dimension_numbers<[1], [0], [0], [1], [0, 0, 1, 1], [], []>} : vector<1x128xbf16>, vector<128x512xbf16>, vector<1x512xf32> -> vector<1x512xf32>
    %307 = arith.truncf %282 : vector<1x128xf32> to vector<1x128xbf16>
    %c0_91 = arith.constant 0 : index
    %c0_92 = arith.constant 0 : index
    %308 = vector.load %arg6[%c0_91, %c0_92] : memref<128x512xbf16, #tpu.memory_space<vmem>>, vector<128x512xbf16>
    %cst_93 = arith.constant dense<0.000000e+00> : vector<1x512xf32>
    %309 = tpu.matmul %307, %308, %cst_93 {dimension_numbers = #tpu.dot_dimension_numbers<[1], [0], [0], [1], [0, 0, 1, 1], [], []>} : vector<1x128xbf16>, vector<128x512xbf16>, vector<1x512xf32> -> vector<1x512xf32>
    %310 = arith.addf %306, %309 : vector<1x512xf32>
    %c0_94 = arith.constant 0 : index
    %c0_95 = arith.constant 0 : index
    %311 = vector.load %arg7[%c0_94, %c0_95] : memref<1x512xf32, #tpu.memory_space<vmem>>, vector<1x512xf32>
    %312 = arith.addf %310, %311 : vector<1x512xf32>
    %313 = vector.extract_strided_slice %312 {offsets = [0, 0], sizes = [1, 384], strides = [1, 1]} : vector<1x512xf32> to vector<1x384xf32>
    %314 = arith.negf %313 : vector<1x384xf32>
    %315 = math.exp %314 : vector<1x384xf32>
    %cst_96 = arith.constant 1.000000e+00 : f32
    %316 = vector.broadcast %cst_96 : f32 to vector<1x384xf32>
    %317 = arith.addf %316, %315 : vector<1x384xf32>
    %318 = arith.divf %316, %317 : vector<1x384xf32>
    %319 = vector.extract_strided_slice %312 {offsets = [0, 384], sizes = [1, 128], strides = [1, 1]} : vector<1x512xf32> to vector<1x128xf32>
    %320 = math.tanh %319 : vector<1x128xf32>
    %321 = vector.extract_strided_slice %318 {offsets = [0, 0], sizes = [1, 128], strides = [1, 1]} : vector<1x384xf32> to vector<1x128xf32>
    %322 = vector.extract_strided_slice %318 {offsets = [0, 128], sizes = [1, 128], strides = [1, 1]} : vector<1x384xf32> to vector<1x128xf32>
    %323 = vector.extract_strided_slice %318 {offsets = [0, 256], sizes = [1, 128], strides = [1, 1]} : vector<1x384xf32> to vector<1x128xf32>
    %324 = arith.mulf %322, %280 : vector<1x128xf32>
    %325 = arith.mulf %321, %320 : vector<1x128xf32>
    %326 = arith.addf %324, %325 : vector<1x128xf32>
    %327 = math.tanh %326 : vector<1x128xf32>
    %328 = arith.mulf %323, %327 : vector<1x128xf32>
    %329 = vector.extract_strided_slice %6 {offsets = [7, 0], sizes = [1, 512], strides = [1, 1]} : vector<8x512xf32> to vector<1x512xf32>
    %330 = arith.truncf %303 : vector<1x128xf32> to vector<1x128xbf16>
    %c0_97 = arith.constant 0 : index
    %c0_98 = arith.constant 0 : index
    %331 = vector.load %arg3[%c0_97, %c0_98] : memref<128x512xbf16, #tpu.memory_space<vmem>>, vector<128x512xbf16>
    %cst_99 = arith.constant dense<0.000000e+00> : vector<1x512xf32>
    %332 = tpu.matmul %330, %331, %cst_99 {dimension_numbers = #tpu.dot_dimension_numbers<[1], [0], [0], [1], [0, 0, 1, 1], [], []>} : vector<1x128xbf16>, vector<128x512xbf16>, vector<1x512xf32> -> vector<1x512xf32>
    %333 = arith.addf %329, %332 : vector<1x512xf32>
    %334 = vector.extract_strided_slice %333 {offsets = [0, 0], sizes = [1, 384], strides = [1, 1]} : vector<1x512xf32> to vector<1x384xf32>
    %335 = arith.negf %334 : vector<1x384xf32>
    %336 = math.exp %335 : vector<1x384xf32>
    %cst_100 = arith.constant 1.000000e+00 : f32
    %337 = vector.broadcast %cst_100 : f32 to vector<1x384xf32>
    %338 = arith.addf %337, %336 : vector<1x384xf32>
    %339 = arith.divf %337, %338 : vector<1x384xf32>
    %340 = vector.extract_strided_slice %333 {offsets = [0, 384], sizes = [1, 128], strides = [1, 1]} : vector<1x512xf32> to vector<1x128xf32>
    %341 = math.tanh %340 : vector<1x128xf32>
    %342 = vector.extract_strided_slice %339 {offsets = [0, 0], sizes = [1, 128], strides = [1, 1]} : vector<1x384xf32> to vector<1x128xf32>
    %343 = vector.extract_strided_slice %339 {offsets = [0, 128], sizes = [1, 128], strides = [1, 1]} : vector<1x384xf32> to vector<1x128xf32>
    %344 = vector.extract_strided_slice %339 {offsets = [0, 256], sizes = [1, 128], strides = [1, 1]} : vector<1x384xf32> to vector<1x128xf32>
    %345 = arith.mulf %343, %301 : vector<1x128xf32>
    %346 = arith.mulf %342, %341 : vector<1x128xf32>
    %347 = arith.addf %345, %346 : vector<1x128xf32>
    %348 = math.tanh %347 : vector<1x128xf32>
    %349 = arith.mulf %344, %348 : vector<1x128xf32>
    %350 = arith.truncf %349 : vector<1x128xf32> to vector<1x128xbf16>
    %c0_101 = arith.constant 0 : index
    %c0_102 = arith.constant 0 : index
    %351 = vector.load %arg5[%c0_101, %c0_102] : memref<128x512xbf16, #tpu.memory_space<vmem>>, vector<128x512xbf16>
    %cst_103 = arith.constant dense<0.000000e+00> : vector<1x512xf32>
    %352 = tpu.matmul %350, %351, %cst_103 {dimension_numbers = #tpu.dot_dimension_numbers<[1], [0], [0], [1], [0, 0, 1, 1], [], []>} : vector<1x128xbf16>, vector<128x512xbf16>, vector<1x512xf32> -> vector<1x512xf32>
    %353 = arith.truncf %328 : vector<1x128xf32> to vector<1x128xbf16>
    %c0_104 = arith.constant 0 : index
    %c0_105 = arith.constant 0 : index
    %354 = vector.load %arg6[%c0_104, %c0_105] : memref<128x512xbf16, #tpu.memory_space<vmem>>, vector<128x512xbf16>
    %cst_106 = arith.constant dense<0.000000e+00> : vector<1x512xf32>
    %355 = tpu.matmul %353, %354, %cst_106 {dimension_numbers = #tpu.dot_dimension_numbers<[1], [0], [0], [1], [0, 0, 1, 1], [], []>} : vector<1x128xbf16>, vector<128x512xbf16>, vector<1x512xf32> -> vector<1x512xf32>
    %356 = arith.addf %352, %355 : vector<1x512xf32>
    %c0_107 = arith.constant 0 : index
    %c0_108 = arith.constant 0 : index
    %357 = vector.load %arg7[%c0_107, %c0_108] : memref<1x512xf32, #tpu.memory_space<vmem>>, vector<1x512xf32>
    %358 = arith.addf %356, %357 : vector<1x512xf32>
    %359 = vector.extract_strided_slice %358 {offsets = [0, 0], sizes = [1, 384], strides = [1, 1]} : vector<1x512xf32> to vector<1x384xf32>
    %360 = arith.negf %359 : vector<1x384xf32>
    %361 = math.exp %360 : vector<1x384xf32>
    %cst_109 = arith.constant 1.000000e+00 : f32
    %362 = vector.broadcast %cst_109 : f32 to vector<1x384xf32>
    %363 = arith.addf %362, %361 : vector<1x384xf32>
    %364 = arith.divf %362, %363 : vector<1x384xf32>
    %365 = vector.extract_strided_slice %358 {offsets = [0, 384], sizes = [1, 128], strides = [1, 1]} : vector<1x512xf32> to vector<1x128xf32>
    %366 = math.tanh %365 : vector<1x128xf32>
    %367 = vector.extract_strided_slice %364 {offsets = [0, 0], sizes = [1, 128], strides = [1, 1]} : vector<1x384xf32> to vector<1x128xf32>
    %368 = vector.extract_strided_slice %364 {offsets = [0, 128], sizes = [1, 128], strides = [1, 1]} : vector<1x384xf32> to vector<1x128xf32>
    %369 = vector.extract_strided_slice %364 {offsets = [0, 256], sizes = [1, 128], strides = [1, 1]} : vector<1x384xf32> to vector<1x128xf32>
    %370 = arith.mulf %368, %326 : vector<1x128xf32>
    %371 = arith.mulf %367, %366 : vector<1x128xf32>
    %372 = arith.addf %370, %371 : vector<1x128xf32>
    %373 = math.tanh %372 : vector<1x128xf32>
    %374 = arith.mulf %369, %373 : vector<1x128xf32>
    %375 = arith.truncf %374 : vector<1x128xf32> to vector<1x128xbf16>
    %c0_110 = arith.constant 0 : index
    %c0_111 = arith.constant 0 : index
    %376 = vector.load %arg8[%c0_110, %c0_111] : memref<128x512xbf16, #tpu.memory_space<vmem>>, vector<128x512xbf16>
    %cst_112 = arith.constant dense<0.000000e+00> : vector<1x512xf32>
    %377 = tpu.matmul %375, %376, %cst_112 {dimension_numbers = #tpu.dot_dimension_numbers<[1], [0], [0], [1], [0, 0, 1, 1], [], []>} : vector<1x128xbf16>, vector<128x512xbf16>, vector<1x512xf32> -> vector<1x512xf32>
    %c0_113 = arith.constant 0 : index
    %c0_114 = arith.constant 0 : index
    %378 = vector.load %arg10[%c0_113, %c0_114] : memref<1x512xf32, #tpu.memory_space<vmem>>, vector<1x512xf32>
    %379 = arith.addf %377, %378 : vector<1x512xf32>
    %380 = arith.truncf %0 : vector<1x128xf32> to vector<1x128xbf16>
    %c0_115 = arith.constant 0 : index
    %c0_116 = arith.constant 0 : index
    %381 = vector.load %arg9[%c0_115, %c0_116] : memref<128x512xbf16, #tpu.memory_space<vmem>>, vector<128x512xbf16>
    %cst_117 = arith.constant dense<0.000000e+00> : vector<1x512xf32>
    %382 = tpu.matmul %380, %381, %cst_117 {dimension_numbers = #tpu.dot_dimension_numbers<[1], [0], [0], [1], [0, 0, 1, 1], [], []>} : vector<1x128xbf16>, vector<128x512xbf16>, vector<1x512xf32> -> vector<1x512xf32>
    %383 = arith.addf %379, %382 : vector<1x512xf32>
    %384 = vector.extract_strided_slice %383 {offsets = [0, 0], sizes = [1, 384], strides = [1, 1]} : vector<1x512xf32> to vector<1x384xf32>
    %385 = arith.negf %384 : vector<1x384xf32>
    %386 = math.exp %385 : vector<1x384xf32>
    %cst_118 = arith.constant 1.000000e+00 : f32
    %387 = vector.broadcast %cst_118 : f32 to vector<1x384xf32>
    %388 = arith.addf %387, %386 : vector<1x384xf32>
    %389 = arith.divf %387, %388 : vector<1x384xf32>
    %390 = vector.extract_strided_slice %383 {offsets = [0, 384], sizes = [1, 128], strides = [1, 1]} : vector<1x512xf32> to vector<1x128xf32>
    %391 = math.tanh %390 : vector<1x128xf32>
    %392 = vector.extract_strided_slice %389 {offsets = [0, 0], sizes = [1, 128], strides = [1, 1]} : vector<1x384xf32> to vector<1x128xf32>
    %393 = vector.extract_strided_slice %389 {offsets = [0, 128], sizes = [1, 128], strides = [1, 1]} : vector<1x384xf32> to vector<1x128xf32>
    %394 = vector.extract_strided_slice %389 {offsets = [0, 256], sizes = [1, 128], strides = [1, 1]} : vector<1x384xf32> to vector<1x128xf32>
    %395 = arith.mulf %393, %0 : vector<1x128xf32>
    %396 = arith.mulf %392, %391 : vector<1x128xf32>
    %397 = arith.addf %395, %396 : vector<1x128xf32>
    %398 = math.tanh %397 : vector<1x128xf32>
    %399 = arith.mulf %394, %398 : vector<1x128xf32>
    %400 = arith.truncf %399 : vector<1x128xf32> to vector<1x128xbf16>
    %c0_119 = arith.constant 0 : index
    %c0_120 = arith.constant 0 : index
    %401 = vector.load %arg11[%c0_119, %c0_120] : memref<128x512xbf16, #tpu.memory_space<vmem>>, vector<128x512xbf16>
    %cst_121 = arith.constant dense<0.000000e+00> : vector<1x512xf32>
    %402 = tpu.matmul %400, %401, %cst_121 {dimension_numbers = #tpu.dot_dimension_numbers<[1], [0], [0], [1], [0, 0, 1, 1], [], []>} : vector<1x128xbf16>, vector<128x512xbf16>, vector<1x512xf32> -> vector<1x512xf32>
    %403 = arith.truncf %0 : vector<1x128xf32> to vector<1x128xbf16>
    %c0_122 = arith.constant 0 : index
    %c0_123 = arith.constant 0 : index
    %404 = vector.load %arg12[%c0_122, %c0_123] : memref<128x512xbf16, #tpu.memory_space<vmem>>, vector<128x512xbf16>
    %cst_124 = arith.constant dense<0.000000e+00> : vector<1x512xf32>
    %405 = tpu.matmul %403, %404, %cst_124 {dimension_numbers = #tpu.dot_dimension_numbers<[1], [0], [0], [1], [0, 0, 1, 1], [], []>} : vector<1x128xbf16>, vector<128x512xbf16>, vector<1x512xf32> -> vector<1x512xf32>
    %406 = arith.addf %402, %405 : vector<1x512xf32>
    %c0_125 = arith.constant 0 : index
    %c0_126 = arith.constant 0 : index
    %407 = vector.load %arg13[%c0_125, %c0_126] : memref<1x512xf32, #tpu.memory_space<vmem>>, vector<1x512xf32>
    %408 = arith.addf %406, %407 : vector<1x512xf32>
    %409 = vector.extract_strided_slice %408 {offsets = [0, 0], sizes = [1, 384], strides = [1, 1]} : vector<1x512xf32> to vector<1x384xf32>
    %410 = arith.negf %409 : vector<1x384xf32>
    %411 = math.exp %410 : vector<1x384xf32>
    %cst_127 = arith.constant 1.000000e+00 : f32
    %412 = vector.broadcast %cst_127 : f32 to vector<1x384xf32>
    %413 = arith.addf %412, %411 : vector<1x384xf32>
    %414 = arith.divf %412, %413 : vector<1x384xf32>
    %415 = vector.extract_strided_slice %408 {offsets = [0, 384], sizes = [1, 128], strides = [1, 1]} : vector<1x512xf32> to vector<1x128xf32>
    %416 = math.tanh %415 : vector<1x128xf32>
    %417 = vector.extract_strided_slice %414 {offsets = [0, 0], sizes = [1, 128], strides = [1, 1]} : vector<1x384xf32> to vector<1x128xf32>
    %418 = vector.extract_strided_slice %414 {offsets = [0, 128], sizes = [1, 128], strides = [1, 1]} : vector<1x384xf32> to vector<1x128xf32>
    %419 = vector.extract_strided_slice %414 {offsets = [0, 256], sizes = [1, 128], strides = [1, 1]} : vector<1x384xf32> to vector<1x128xf32>
    %420 = arith.mulf %418, %0 : vector<1x128xf32>
    %421 = arith.mulf %417, %416 : vector<1x128xf32>
    %422 = arith.addf %420, %421 : vector<1x128xf32>
    %423 = math.tanh %422 : vector<1x128xf32>
    %424 = arith.mulf %419, %423 : vector<1x128xf32>
    %425 = arith.truncf %399 : vector<1x128xf32> to vector<1x128xbf16>
    %c0_128 = arith.constant 0 : index
    %c0_129 = arith.constant 0 : index
    %426 = vector.load %arg9[%c0_128, %c0_129] : memref<128x512xbf16, #tpu.memory_space<vmem>>, vector<128x512xbf16>
    %cst_130 = arith.constant dense<0.000000e+00> : vector<1x512xf32>
    %427 = tpu.matmul %425, %426, %cst_130 {dimension_numbers = #tpu.dot_dimension_numbers<[1], [0], [0], [1], [0, 0, 1, 1], [], []>} : vector<1x128xbf16>, vector<128x512xbf16>, vector<1x512xf32> -> vector<1x512xf32>
    %428 = arith.addf %379, %427 : vector<1x512xf32>
    %429 = vector.extract_strided_slice %428 {offsets = [0, 0], sizes = [1, 384], strides = [1, 1]} : vector<1x512xf32> to vector<1x384xf32>
    %430 = arith.negf %429 : vector<1x384xf32>
    %431 = math.exp %430 : vector<1x384xf32>
    %cst_131 = arith.constant 1.000000e+00 : f32
    %432 = vector.broadcast %cst_131 : f32 to vector<1x384xf32>
    %433 = arith.addf %432, %431 : vector<1x384xf32>
    %434 = arith.divf %432, %433 : vector<1x384xf32>
    %435 = vector.extract_strided_slice %428 {offsets = [0, 384], sizes = [1, 128], strides = [1, 1]} : vector<1x512xf32> to vector<1x128xf32>
    %436 = math.tanh %435 : vector<1x128xf32>
    %437 = vector.extract_strided_slice %434 {offsets = [0, 0], sizes = [1, 128], strides = [1, 1]} : vector<1x384xf32> to vector<1x128xf32>
    %438 = vector.extract_strided_slice %434 {offsets = [0, 128], sizes = [1, 128], strides = [1, 1]} : vector<1x384xf32> to vector<1x128xf32>
    %439 = vector.extract_strided_slice %434 {offsets = [0, 256], sizes = [1, 128], strides = [1, 1]} : vector<1x384xf32> to vector<1x128xf32>
    %440 = arith.mulf %438, %397 : vector<1x128xf32>
    %441 = arith.mulf %437, %436 : vector<1x128xf32>
    %442 = arith.addf %440, %441 : vector<1x128xf32>
    %443 = math.tanh %442 : vector<1x128xf32>
    %444 = arith.mulf %439, %443 : vector<1x128xf32>
    %445 = arith.truncf %444 : vector<1x128xf32> to vector<1x128xbf16>
    %c0_132 = arith.constant 0 : index
    %c0_133 = arith.constant 0 : index
    %446 = vector.load %arg11[%c0_132, %c0_133] : memref<128x512xbf16, #tpu.memory_space<vmem>>, vector<128x512xbf16>
    %cst_134 = arith.constant dense<0.000000e+00> : vector<1x512xf32>
    %447 = tpu.matmul %445, %446, %cst_134 {dimension_numbers = #tpu.dot_dimension_numbers<[1], [0], [0], [1], [0, 0, 1, 1], [], []>} : vector<1x128xbf16>, vector<128x512xbf16>, vector<1x512xf32> -> vector<1x512xf32>
    %448 = arith.truncf %424 : vector<1x128xf32> to vector<1x128xbf16>
    %c0_135 = arith.constant 0 : index
    %c0_136 = arith.constant 0 : index
    %449 = vector.load %arg12[%c0_135, %c0_136] : memref<128x512xbf16, #tpu.memory_space<vmem>>, vector<128x512xbf16>
    %cst_137 = arith.constant dense<0.000000e+00> : vector<1x512xf32>
    %450 = tpu.matmul %448, %449, %cst_137 {dimension_numbers = #tpu.dot_dimension_numbers<[1], [0], [0], [1], [0, 0, 1, 1], [], []>} : vector<1x128xbf16>, vector<128x512xbf16>, vector<1x512xf32> -> vector<1x512xf32>
    %451 = arith.addf %447, %450 : vector<1x512xf32>
    %c0_138 = arith.constant 0 : index
    %c0_139 = arith.constant 0 : index
    %452 = vector.load %arg13[%c0_138, %c0_139] : memref<1x512xf32, #tpu.memory_space<vmem>>, vector<1x512xf32>
    %453 = arith.addf %451, %452 : vector<1x512xf32>
    %454 = vector.extract_strided_slice %453 {offsets = [0, 0], sizes = [1, 384], strides = [1, 1]} : vector<1x512xf32> to vector<1x384xf32>
    %455 = arith.negf %454 : vector<1x384xf32>
    %456 = math.exp %455 : vector<1x384xf32>
    %cst_140 = arith.constant 1.000000e+00 : f32
    %457 = vector.broadcast %cst_140 : f32 to vector<1x384xf32>
    %458 = arith.addf %457, %456 : vector<1x384xf32>
    %459 = arith.divf %457, %458 : vector<1x384xf32>
    %460 = vector.extract_strided_slice %453 {offsets = [0, 384], sizes = [1, 128], strides = [1, 1]} : vector<1x512xf32> to vector<1x128xf32>
    %461 = math.tanh %460 : vector<1x128xf32>
    %462 = vector.extract_strided_slice %459 {offsets = [0, 0], sizes = [1, 128], strides = [1, 1]} : vector<1x384xf32> to vector<1x128xf32>
    %463 = vector.extract_strided_slice %459 {offsets = [0, 128], sizes = [1, 128], strides = [1, 1]} : vector<1x384xf32> to vector<1x128xf32>
    %464 = vector.extract_strided_slice %459 {offsets = [0, 256], sizes = [1, 128], strides = [1, 1]} : vector<1x384xf32> to vector<1x128xf32>
    %465 = arith.mulf %463, %422 : vector<1x128xf32>
    %466 = arith.mulf %462, %461 : vector<1x128xf32>
    %467 = arith.addf %465, %466 : vector<1x128xf32>
    %468 = math.tanh %467 : vector<1x128xf32>
    %469 = arith.mulf %464, %468 : vector<1x128xf32>
    %470 = arith.truncf %444 : vector<1x128xf32> to vector<1x128xbf16>
    %c0_141 = arith.constant 0 : index
    %c0_142 = arith.constant 0 : index
    %471 = vector.load %arg9[%c0_141, %c0_142] : memref<128x512xbf16, #tpu.memory_space<vmem>>, vector<128x512xbf16>
    %cst_143 = arith.constant dense<0.000000e+00> : vector<1x512xf32>
    %472 = tpu.matmul %470, %471, %cst_143 {dimension_numbers = #tpu.dot_dimension_numbers<[1], [0], [0], [1], [0, 0, 1, 1], [], []>} : vector<1x128xbf16>, vector<128x512xbf16>, vector<1x512xf32> -> vector<1x512xf32>
    %473 = arith.addf %379, %472 : vector<1x512xf32>
    %474 = vector.extract_strided_slice %473 {offsets = [0, 0], sizes = [1, 384], strides = [1, 1]} : vector<1x512xf32> to vector<1x384xf32>
    %475 = arith.negf %474 : vector<1x384xf32>
    %476 = math.exp %475 : vector<1x384xf32>
    %cst_144 = arith.constant 1.000000e+00 : f32
    %477 = vector.broadcast %cst_144 : f32 to vector<1x384xf32>
    %478 = arith.addf %477, %476 : vector<1x384xf32>
    %479 = arith.divf %477, %478 : vector<1x384xf32>
    %480 = vector.extract_strided_slice %473 {offsets = [0, 384], sizes = [1, 128], strides = [1, 1]} : vector<1x512xf32> to vector<1x128xf32>
    %481 = math.tanh %480 : vector<1x128xf32>
    %482 = vector.extract_strided_slice %479 {offsets = [0, 0], sizes = [1, 128], strides = [1, 1]} : vector<1x384xf32> to vector<1x128xf32>
    %483 = vector.extract_strided_slice %479 {offsets = [0, 128], sizes = [1, 128], strides = [1, 1]} : vector<1x384xf32> to vector<1x128xf32>
    %484 = vector.extract_strided_slice %479 {offsets = [0, 256], sizes = [1, 128], strides = [1, 1]} : vector<1x384xf32> to vector<1x128xf32>
    %485 = arith.mulf %483, %442 : vector<1x128xf32>
    %486 = arith.mulf %482, %481 : vector<1x128xf32>
    %487 = arith.addf %485, %486 : vector<1x128xf32>
    %488 = math.tanh %487 : vector<1x128xf32>
    %489 = arith.mulf %484, %488 : vector<1x128xf32>
    %490 = arith.truncf %489 : vector<1x128xf32> to vector<1x128xbf16>
    %c0_145 = arith.constant 0 : index
    %c0_146 = arith.constant 0 : index
    %491 = vector.load %arg11[%c0_145, %c0_146] : memref<128x512xbf16, #tpu.memory_space<vmem>>, vector<128x512xbf16>
    %cst_147 = arith.constant dense<0.000000e+00> : vector<1x512xf32>
    %492 = tpu.matmul %490, %491, %cst_147 {dimension_numbers = #tpu.dot_dimension_numbers<[1], [0], [0], [1], [0, 0, 1, 1], [], []>} : vector<1x128xbf16>, vector<128x512xbf16>, vector<1x512xf32> -> vector<1x512xf32>
    %493 = arith.truncf %469 : vector<1x128xf32> to vector<1x128xbf16>
    %c0_148 = arith.constant 0 : index
    %c0_149 = arith.constant 0 : index
    %494 = vector.load %arg12[%c0_148, %c0_149] : memref<128x512xbf16, #tpu.memory_space<vmem>>, vector<128x512xbf16>
    %cst_150 = arith.constant dense<0.000000e+00> : vector<1x512xf32>
    %495 = tpu.matmul %493, %494, %cst_150 {dimension_numbers = #tpu.dot_dimension_numbers<[1], [0], [0], [1], [0, 0, 1, 1], [], []>} : vector<1x128xbf16>, vector<128x512xbf16>, vector<1x512xf32> -> vector<1x512xf32>
    %496 = arith.addf %492, %495 : vector<1x512xf32>
    %c0_151 = arith.constant 0 : index
    %c0_152 = arith.constant 0 : index
    %497 = vector.load %arg13[%c0_151, %c0_152] : memref<1x512xf32, #tpu.memory_space<vmem>>, vector<1x512xf32>
    %498 = arith.addf %496, %497 : vector<1x512xf32>
    %499 = vector.extract_strided_slice %498 {offsets = [0, 0], sizes = [1, 384], strides = [1, 1]} : vector<1x512xf32> to vector<1x384xf32>
    %500 = arith.negf %499 : vector<1x384xf32>
    %501 = math.exp %500 : vector<1x384xf32>
    %cst_153 = arith.constant 1.000000e+00 : f32
    %502 = vector.broadcast %cst_153 : f32 to vector<1x384xf32>
    %503 = arith.addf %502, %501 : vector<1x384xf32>
    %504 = arith.divf %502, %503 : vector<1x384xf32>
    %505 = vector.extract_strided_slice %498 {offsets = [0, 384], sizes = [1, 128], strides = [1, 1]} : vector<1x512xf32> to vector<1x128xf32>
    %506 = math.tanh %505 : vector<1x128xf32>
    %507 = vector.extract_strided_slice %504 {offsets = [0, 0], sizes = [1, 128], strides = [1, 1]} : vector<1x384xf32> to vector<1x128xf32>
    %508 = vector.extract_strided_slice %504 {offsets = [0, 128], sizes = [1, 128], strides = [1, 1]} : vector<1x384xf32> to vector<1x128xf32>
    %509 = vector.extract_strided_slice %504 {offsets = [0, 256], sizes = [1, 128], strides = [1, 1]} : vector<1x384xf32> to vector<1x128xf32>
    %510 = arith.mulf %508, %467 : vector<1x128xf32>
    %511 = arith.mulf %507, %506 : vector<1x128xf32>
    %512 = arith.addf %510, %511 : vector<1x128xf32>
    %513 = math.tanh %512 : vector<1x128xf32>
    %514 = arith.mulf %509, %513 : vector<1x128xf32>
    %515 = arith.truncf %489 : vector<1x128xf32> to vector<1x128xbf16>
    %c0_154 = arith.constant 0 : index
    %c0_155 = arith.constant 0 : index
    %516 = vector.load %arg9[%c0_154, %c0_155] : memref<128x512xbf16, #tpu.memory_space<vmem>>, vector<128x512xbf16>
    %cst_156 = arith.constant dense<0.000000e+00> : vector<1x512xf32>
    %517 = tpu.matmul %515, %516, %cst_156 {dimension_numbers = #tpu.dot_dimension_numbers<[1], [0], [0], [1], [0, 0, 1, 1], [], []>} : vector<1x128xbf16>, vector<128x512xbf16>, vector<1x512xf32> -> vector<1x512xf32>
    %518 = arith.addf %379, %517 : vector<1x512xf32>
    %519 = vector.extract_strided_slice %518 {offsets = [0, 0], sizes = [1, 384], strides = [1, 1]} : vector<1x512xf32> to vector<1x384xf32>
    %520 = arith.negf %519 : vector<1x384xf32>
    %521 = math.exp %520 : vector<1x384xf32>
    %cst_157 = arith.constant 1.000000e+00 : f32
    %522 = vector.broadcast %cst_157 : f32 to vector<1x384xf32>
    %523 = arith.addf %522, %521 : vector<1x384xf32>
    %524 = arith.divf %522, %523 : vector<1x384xf32>
    %525 = vector.extract_strided_slice %518 {offsets = [0, 384], sizes = [1, 128], strides = [1, 1]} : vector<1x512xf32> to vector<1x128xf32>
    %526 = math.tanh %525 : vector<1x128xf32>
    %527 = vector.extract_strided_slice %524 {offsets = [0, 0], sizes = [1, 128], strides = [1, 1]} : vector<1x384xf32> to vector<1x128xf32>
    %528 = vector.extract_strided_slice %524 {offsets = [0, 128], sizes = [1, 128], strides = [1, 1]} : vector<1x384xf32> to vector<1x128xf32>
    %529 = vector.extract_strided_slice %524 {offsets = [0, 256], sizes = [1, 128], strides = [1, 1]} : vector<1x384xf32> to vector<1x128xf32>
    %530 = arith.mulf %528, %487 : vector<1x128xf32>
    %531 = arith.mulf %527, %526 : vector<1x128xf32>
    %532 = arith.addf %530, %531 : vector<1x128xf32>
    %533 = math.tanh %532 : vector<1x128xf32>
    %534 = arith.mulf %529, %533 : vector<1x128xf32>
    %535 = arith.truncf %534 : vector<1x128xf32> to vector<1x128xbf16>
    %c0_158 = arith.constant 0 : index
    %c0_159 = arith.constant 0 : index
    %536 = vector.load %arg11[%c0_158, %c0_159] : memref<128x512xbf16, #tpu.memory_space<vmem>>, vector<128x512xbf16>
    %cst_160 = arith.constant dense<0.000000e+00> : vector<1x512xf32>
    %537 = tpu.matmul %535, %536, %cst_160 {dimension_numbers = #tpu.dot_dimension_numbers<[1], [0], [0], [1], [0, 0, 1, 1], [], []>} : vector<1x128xbf16>, vector<128x512xbf16>, vector<1x512xf32> -> vector<1x512xf32>
    %538 = arith.truncf %514 : vector<1x128xf32> to vector<1x128xbf16>
    %c0_161 = arith.constant 0 : index
    %c0_162 = arith.constant 0 : index
    %539 = vector.load %arg12[%c0_161, %c0_162] : memref<128x512xbf16, #tpu.memory_space<vmem>>, vector<128x512xbf16>
    %cst_163 = arith.constant dense<0.000000e+00> : vector<1x512xf32>
    %540 = tpu.matmul %538, %539, %cst_163 {dimension_numbers = #tpu.dot_dimension_numbers<[1], [0], [0], [1], [0, 0, 1, 1], [], []>} : vector<1x128xbf16>, vector<128x512xbf16>, vector<1x512xf32> -> vector<1x512xf32>
    %541 = arith.addf %537, %540 : vector<1x512xf32>
    %c0_164 = arith.constant 0 : index
    %c0_165 = arith.constant 0 : index
    %542 = vector.load %arg13[%c0_164, %c0_165] : memref<1x512xf32, #tpu.memory_space<vmem>>, vector<1x512xf32>
    %543 = arith.addf %541, %542 : vector<1x512xf32>
    %544 = vector.extract_strided_slice %543 {offsets = [0, 0], sizes = [1, 384], strides = [1, 1]} : vector<1x512xf32> to vector<1x384xf32>
    %545 = arith.negf %544 : vector<1x384xf32>
    %546 = math.exp %545 : vector<1x384xf32>
    %cst_166 = arith.constant 1.000000e+00 : f32
    %547 = vector.broadcast %cst_166 : f32 to vector<1x384xf32>
    %548 = arith.addf %547, %546 : vector<1x384xf32>
    %549 = arith.divf %547, %548 : vector<1x384xf32>
    %550 = vector.extract_strided_slice %543 {offsets = [0, 384], sizes = [1, 128], strides = [1, 1]} : vector<1x512xf32> to vector<1x128xf32>
    %551 = math.tanh %550 : vector<1x128xf32>
    %552 = vector.extract_strided_slice %549 {offsets = [0, 0], sizes = [1, 128], strides = [1, 1]} : vector<1x384xf32> to vector<1x128xf32>
    %553 = vector.extract_strided_slice %549 {offsets = [0, 128], sizes = [1, 128], strides = [1, 1]} : vector<1x384xf32> to vector<1x128xf32>
    %554 = vector.extract_strided_slice %549 {offsets = [0, 256], sizes = [1, 128], strides = [1, 1]} : vector<1x384xf32> to vector<1x128xf32>
    %555 = arith.mulf %553, %512 : vector<1x128xf32>
    %556 = arith.mulf %552, %551 : vector<1x128xf32>
    %557 = arith.addf %555, %556 : vector<1x128xf32>
    %558 = math.tanh %557 : vector<1x128xf32>
    %559 = arith.mulf %554, %558 : vector<1x128xf32>
    %560 = arith.truncf %534 : vector<1x128xf32> to vector<1x128xbf16>
    %c0_167 = arith.constant 0 : index
    %c0_168 = arith.constant 0 : index
    %561 = vector.load %arg9[%c0_167, %c0_168] : memref<128x512xbf16, #tpu.memory_space<vmem>>, vector<128x512xbf16>
    %cst_169 = arith.constant dense<0.000000e+00> : vector<1x512xf32>
    %562 = tpu.matmul %560, %561, %cst_169 {dimension_numbers = #tpu.dot_dimension_numbers<[1], [0], [0], [1], [0, 0, 1, 1], [], []>} : vector<1x128xbf16>, vector<128x512xbf16>, vector<1x512xf32> -> vector<1x512xf32>
    %563 = arith.addf %379, %562 : vector<1x512xf32>
    %564 = vector.extract_strided_slice %563 {offsets = [0, 0], sizes = [1, 384], strides = [1, 1]} : vector<1x512xf32> to vector<1x384xf32>
    %565 = arith.negf %564 : vector<1x384xf32>
    %566 = math.exp %565 : vector<1x384xf32>
    %cst_170 = arith.constant 1.000000e+00 : f32
    %567 = vector.broadcast %cst_170 : f32 to vector<1x384xf32>
    %568 = arith.addf %567, %566 : vector<1x384xf32>
    %569 = arith.divf %567, %568 : vector<1x384xf32>
    %570 = vector.extract_strided_slice %563 {offsets = [0, 384], sizes = [1, 128], strides = [1, 1]} : vector<1x512xf32> to vector<1x128xf32>
    %571 = math.tanh %570 : vector<1x128xf32>
    %572 = vector.extract_strided_slice %569 {offsets = [0, 0], sizes = [1, 128], strides = [1, 1]} : vector<1x384xf32> to vector<1x128xf32>
    %573 = vector.extract_strided_slice %569 {offsets = [0, 128], sizes = [1, 128], strides = [1, 1]} : vector<1x384xf32> to vector<1x128xf32>
    %574 = vector.extract_strided_slice %569 {offsets = [0, 256], sizes = [1, 128], strides = [1, 1]} : vector<1x384xf32> to vector<1x128xf32>
    %575 = arith.mulf %573, %532 : vector<1x128xf32>
    %576 = arith.mulf %572, %571 : vector<1x128xf32>
    %577 = arith.addf %575, %576 : vector<1x128xf32>
    %578 = math.tanh %577 : vector<1x128xf32>
    %579 = arith.mulf %574, %578 : vector<1x128xf32>
    %580 = arith.truncf %579 : vector<1x128xf32> to vector<1x128xbf16>
    %c0_171 = arith.constant 0 : index
    %c0_172 = arith.constant 0 : index
    %581 = vector.load %arg11[%c0_171, %c0_172] : memref<128x512xbf16, #tpu.memory_space<vmem>>, vector<128x512xbf16>
    %cst_173 = arith.constant dense<0.000000e+00> : vector<1x512xf32>
    %582 = tpu.matmul %580, %581, %cst_173 {dimension_numbers = #tpu.dot_dimension_numbers<[1], [0], [0], [1], [0, 0, 1, 1], [], []>} : vector<1x128xbf16>, vector<128x512xbf16>, vector<1x512xf32> -> vector<1x512xf32>
    %583 = arith.truncf %559 : vector<1x128xf32> to vector<1x128xbf16>
    %c0_174 = arith.constant 0 : index
    %c0_175 = arith.constant 0 : index
    %584 = vector.load %arg12[%c0_174, %c0_175] : memref<128x512xbf16, #tpu.memory_space<vmem>>, vector<128x512xbf16>
    %cst_176 = arith.constant dense<0.000000e+00> : vector<1x512xf32>
    %585 = tpu.matmul %583, %584, %cst_176 {dimension_numbers = #tpu.dot_dimension_numbers<[1], [0], [0], [1], [0, 0, 1, 1], [], []>} : vector<1x128xbf16>, vector<128x512xbf16>, vector<1x512xf32> -> vector<1x512xf32>
    %586 = arith.addf %582, %585 : vector<1x512xf32>
    %c0_177 = arith.constant 0 : index
    %c0_178 = arith.constant 0 : index
    %587 = vector.load %arg13[%c0_177, %c0_178] : memref<1x512xf32, #tpu.memory_space<vmem>>, vector<1x512xf32>
    %588 = arith.addf %586, %587 : vector<1x512xf32>
    %589 = vector.extract_strided_slice %588 {offsets = [0, 0], sizes = [1, 384], strides = [1, 1]} : vector<1x512xf32> to vector<1x384xf32>
    %590 = arith.negf %589 : vector<1x384xf32>
    %591 = math.exp %590 : vector<1x384xf32>
    %cst_179 = arith.constant 1.000000e+00 : f32
    %592 = vector.broadcast %cst_179 : f32 to vector<1x384xf32>
    %593 = arith.addf %592, %591 : vector<1x384xf32>
    %594 = arith.divf %592, %593 : vector<1x384xf32>
    %595 = vector.extract_strided_slice %588 {offsets = [0, 384], sizes = [1, 128], strides = [1, 1]} : vector<1x512xf32> to vector<1x128xf32>
    %596 = math.tanh %595 : vector<1x128xf32>
    %597 = vector.extract_strided_slice %594 {offsets = [0, 0], sizes = [1, 128], strides = [1, 1]} : vector<1x384xf32> to vector<1x128xf32>
    %598 = vector.extract_strided_slice %594 {offsets = [0, 128], sizes = [1, 128], strides = [1, 1]} : vector<1x384xf32> to vector<1x128xf32>
    %599 = vector.extract_strided_slice %594 {offsets = [0, 256], sizes = [1, 128], strides = [1, 1]} : vector<1x384xf32> to vector<1x128xf32>
    %600 = arith.mulf %598, %557 : vector<1x128xf32>
    %601 = arith.mulf %597, %596 : vector<1x128xf32>
    %602 = arith.addf %600, %601 : vector<1x128xf32>
    %603 = math.tanh %602 : vector<1x128xf32>
    %604 = arith.mulf %599, %603 : vector<1x128xf32>
    %605 = arith.truncf %579 : vector<1x128xf32> to vector<1x128xbf16>
    %c0_180 = arith.constant 0 : index
    %c0_181 = arith.constant 0 : index
    %606 = vector.load %arg9[%c0_180, %c0_181] : memref<128x512xbf16, #tpu.memory_space<vmem>>, vector<128x512xbf16>
    %cst_182 = arith.constant dense<0.000000e+00> : vector<1x512xf32>
    %607 = tpu.matmul %605, %606, %cst_182 {dimension_numbers = #tpu.dot_dimension_numbers<[1], [0], [0], [1], [0, 0, 1, 1], [], []>} : vector<1x128xbf16>, vector<128x512xbf16>, vector<1x512xf32> -> vector<1x512xf32>
    %608 = arith.addf %379, %607 : vector<1x512xf32>
    %609 = vector.extract_strided_slice %608 {offsets = [0, 0], sizes = [1, 384], strides = [1, 1]} : vector<1x512xf32> to vector<1x384xf32>
    %610 = arith.negf %609 : vector<1x384xf32>
    %611 = math.exp %610 : vector<1x384xf32>
    %cst_183 = arith.constant 1.000000e+00 : f32
    %612 = vector.broadcast %cst_183 : f32 to vector<1x384xf32>
    %613 = arith.addf %612, %611 : vector<1x384xf32>
    %614 = arith.divf %612, %613 : vector<1x384xf32>
    %615 = vector.extract_strided_slice %608 {offsets = [0, 384], sizes = [1, 128], strides = [1, 1]} : vector<1x512xf32> to vector<1x128xf32>
    %616 = math.tanh %615 : vector<1x128xf32>
    %617 = vector.extract_strided_slice %614 {offsets = [0, 0], sizes = [1, 128], strides = [1, 1]} : vector<1x384xf32> to vector<1x128xf32>
    %618 = vector.extract_strided_slice %614 {offsets = [0, 128], sizes = [1, 128], strides = [1, 1]} : vector<1x384xf32> to vector<1x128xf32>
    %619 = vector.extract_strided_slice %614 {offsets = [0, 256], sizes = [1, 128], strides = [1, 1]} : vector<1x384xf32> to vector<1x128xf32>
    %620 = arith.mulf %618, %577 : vector<1x128xf32>
    %621 = arith.mulf %617, %616 : vector<1x128xf32>
    %622 = arith.addf %620, %621 : vector<1x128xf32>
    %623 = math.tanh %622 : vector<1x128xf32>
    %624 = arith.mulf %619, %623 : vector<1x128xf32>
    %625 = arith.truncf %624 : vector<1x128xf32> to vector<1x128xbf16>
    %c0_184 = arith.constant 0 : index
    %c0_185 = arith.constant 0 : index
    %626 = vector.load %arg11[%c0_184, %c0_185] : memref<128x512xbf16, #tpu.memory_space<vmem>>, vector<128x512xbf16>
    %cst_186 = arith.constant dense<0.000000e+00> : vector<1x512xf32>
    %627 = tpu.matmul %625, %626, %cst_186 {dimension_numbers = #tpu.dot_dimension_numbers<[1], [0], [0], [1], [0, 0, 1, 1], [], []>} : vector<1x128xbf16>, vector<128x512xbf16>, vector<1x512xf32> -> vector<1x512xf32>
    %628 = arith.truncf %604 : vector<1x128xf32> to vector<1x128xbf16>
    %c0_187 = arith.constant 0 : index
    %c0_188 = arith.constant 0 : index
    %629 = vector.load %arg12[%c0_187, %c0_188] : memref<128x512xbf16, #tpu.memory_space<vmem>>, vector<128x512xbf16>
    %cst_189 = arith.constant dense<0.000000e+00> : vector<1x512xf32>
    %630 = tpu.matmul %628, %629, %cst_189 {dimension_numbers = #tpu.dot_dimension_numbers<[1], [0], [0], [1], [0, 0, 1, 1], [], []>} : vector<1x128xbf16>, vector<128x512xbf16>, vector<1x512xf32> -> vector<1x512xf32>
    %631 = arith.addf %627, %630 : vector<1x512xf32>
    %c0_190 = arith.constant 0 : index
    %c0_191 = arith.constant 0 : index
    %632 = vector.load %arg13[%c0_190, %c0_191] : memref<1x512xf32, #tpu.memory_space<vmem>>, vector<1x512xf32>
    %633 = arith.addf %631, %632 : vector<1x512xf32>
    %634 = vector.extract_strided_slice %633 {offsets = [0, 0], sizes = [1, 384], strides = [1, 1]} : vector<1x512xf32> to vector<1x384xf32>
    %635 = arith.negf %634 : vector<1x384xf32>
    %636 = math.exp %635 : vector<1x384xf32>
    %cst_192 = arith.constant 1.000000e+00 : f32
    %637 = vector.broadcast %cst_192 : f32 to vector<1x384xf32>
    %638 = arith.addf %637, %636 : vector<1x384xf32>
    %639 = arith.divf %637, %638 : vector<1x384xf32>
    %640 = vector.extract_strided_slice %633 {offsets = [0, 384], sizes = [1, 128], strides = [1, 1]} : vector<1x512xf32> to vector<1x128xf32>
    %641 = math.tanh %640 : vector<1x128xf32>
    %642 = vector.extract_strided_slice %639 {offsets = [0, 0], sizes = [1, 128], strides = [1, 1]} : vector<1x384xf32> to vector<1x128xf32>
    %643 = vector.extract_strided_slice %639 {offsets = [0, 128], sizes = [1, 128], strides = [1, 1]} : vector<1x384xf32> to vector<1x128xf32>
    %644 = vector.extract_strided_slice %639 {offsets = [0, 256], sizes = [1, 128], strides = [1, 1]} : vector<1x384xf32> to vector<1x128xf32>
    %645 = arith.mulf %643, %602 : vector<1x128xf32>
    %646 = arith.mulf %642, %641 : vector<1x128xf32>
    %647 = arith.addf %645, %646 : vector<1x128xf32>
    %648 = math.tanh %647 : vector<1x128xf32>
    %649 = arith.mulf %644, %648 : vector<1x128xf32>
    %650 = arith.truncf %624 : vector<1x128xf32> to vector<1x128xbf16>
    %c0_193 = arith.constant 0 : index
    %c0_194 = arith.constant 0 : index
    %651 = vector.load %arg9[%c0_193, %c0_194] : memref<128x512xbf16, #tpu.memory_space<vmem>>, vector<128x512xbf16>
    %cst_195 = arith.constant dense<0.000000e+00> : vector<1x512xf32>
    %652 = tpu.matmul %650, %651, %cst_195 {dimension_numbers = #tpu.dot_dimension_numbers<[1], [0], [0], [1], [0, 0, 1, 1], [], []>} : vector<1x128xbf16>, vector<128x512xbf16>, vector<1x512xf32> -> vector<1x512xf32>
    %653 = arith.addf %379, %652 : vector<1x512xf32>
    %654 = vector.extract_strided_slice %653 {offsets = [0, 0], sizes = [1, 384], strides = [1, 1]} : vector<1x512xf32> to vector<1x384xf32>
    %655 = arith.negf %654 : vector<1x384xf32>
    %656 = math.exp %655 : vector<1x384xf32>
    %cst_196 = arith.constant 1.000000e+00 : f32
    %657 = vector.broadcast %cst_196 : f32 to vector<1x384xf32>
    %658 = arith.addf %657, %656 : vector<1x384xf32>
    %659 = arith.divf %657, %658 : vector<1x384xf32>
    %660 = vector.extract_strided_slice %653 {offsets = [0, 384], sizes = [1, 128], strides = [1, 1]} : vector<1x512xf32> to vector<1x128xf32>
    %661 = math.tanh %660 : vector<1x128xf32>
    %662 = vector.extract_strided_slice %659 {offsets = [0, 0], sizes = [1, 128], strides = [1, 1]} : vector<1x384xf32> to vector<1x128xf32>
    %663 = vector.extract_strided_slice %659 {offsets = [0, 128], sizes = [1, 128], strides = [1, 1]} : vector<1x384xf32> to vector<1x128xf32>
    %664 = vector.extract_strided_slice %659 {offsets = [0, 256], sizes = [1, 128], strides = [1, 1]} : vector<1x384xf32> to vector<1x128xf32>
    %665 = arith.mulf %663, %622 : vector<1x128xf32>
    %666 = arith.mulf %662, %661 : vector<1x128xf32>
    %667 = arith.addf %665, %666 : vector<1x128xf32>
    %668 = math.tanh %667 : vector<1x128xf32>
    %669 = arith.mulf %664, %668 : vector<1x128xf32>
    %670 = arith.truncf %669 : vector<1x128xf32> to vector<1x128xbf16>
    %c0_197 = arith.constant 0 : index
    %c0_198 = arith.constant 0 : index
    %671 = vector.load %arg11[%c0_197, %c0_198] : memref<128x512xbf16, #tpu.memory_space<vmem>>, vector<128x512xbf16>
    %cst_199 = arith.constant dense<0.000000e+00> : vector<1x512xf32>
    %672 = tpu.matmul %670, %671, %cst_199 {dimension_numbers = #tpu.dot_dimension_numbers<[1], [0], [0], [1], [0, 0, 1, 1], [], []>} : vector<1x128xbf16>, vector<128x512xbf16>, vector<1x512xf32> -> vector<1x512xf32>
    %673 = arith.truncf %649 : vector<1x128xf32> to vector<1x128xbf16>
    %c0_200 = arith.constant 0 : index
    %c0_201 = arith.constant 0 : index
    %674 = vector.load %arg12[%c0_200, %c0_201] : memref<128x512xbf16, #tpu.memory_space<vmem>>, vector<128x512xbf16>
    %cst_202 = arith.constant dense<0.000000e+00> : vector<1x512xf32>
    %675 = tpu.matmul %673, %674, %cst_202 {dimension_numbers = #tpu.dot_dimension_numbers<[1], [0], [0], [1], [0, 0, 1, 1], [], []>} : vector<1x128xbf16>, vector<128x512xbf16>, vector<1x512xf32> -> vector<1x512xf32>
    %676 = arith.addf %672, %675 : vector<1x512xf32>
    %c0_203 = arith.constant 0 : index
    %c0_204 = arith.constant 0 : index
    %677 = vector.load %arg13[%c0_203, %c0_204] : memref<1x512xf32, #tpu.memory_space<vmem>>, vector<1x512xf32>
    %678 = arith.addf %676, %677 : vector<1x512xf32>
    %679 = vector.extract_strided_slice %678 {offsets = [0, 0], sizes = [1, 384], strides = [1, 1]} : vector<1x512xf32> to vector<1x384xf32>
    %680 = arith.negf %679 : vector<1x384xf32>
    %681 = math.exp %680 : vector<1x384xf32>
    %cst_205 = arith.constant 1.000000e+00 : f32
    %682 = vector.broadcast %cst_205 : f32 to vector<1x384xf32>
    %683 = arith.addf %682, %681 : vector<1x384xf32>
    %684 = arith.divf %682, %683 : vector<1x384xf32>
    %685 = vector.extract_strided_slice %678 {offsets = [0, 384], sizes = [1, 128], strides = [1, 1]} : vector<1x512xf32> to vector<1x128xf32>
    %686 = math.tanh %685 : vector<1x128xf32>
    %687 = vector.extract_strided_slice %684 {offsets = [0, 0], sizes = [1, 128], strides = [1, 1]} : vector<1x384xf32> to vector<1x128xf32>
    %688 = vector.extract_strided_slice %684 {offsets = [0, 128], sizes = [1, 128], strides = [1, 1]} : vector<1x384xf32> to vector<1x128xf32>
    %689 = vector.extract_strided_slice %684 {offsets = [0, 256], sizes = [1, 128], strides = [1, 1]} : vector<1x384xf32> to vector<1x128xf32>
    %690 = arith.mulf %688, %647 : vector<1x128xf32>
    %691 = arith.mulf %687, %686 : vector<1x128xf32>
    %692 = arith.addf %690, %691 : vector<1x128xf32>
    %693 = math.tanh %692 : vector<1x128xf32>
    %694 = arith.mulf %689, %693 : vector<1x128xf32>
    %695 = arith.truncf %669 : vector<1x128xf32> to vector<1x128xbf16>
    %c0_206 = arith.constant 0 : index
    %c0_207 = arith.constant 0 : index
    %696 = vector.load %arg9[%c0_206, %c0_207] : memref<128x512xbf16, #tpu.memory_space<vmem>>, vector<128x512xbf16>
    %cst_208 = arith.constant dense<0.000000e+00> : vector<1x512xf32>
    %697 = tpu.matmul %695, %696, %cst_208 {dimension_numbers = #tpu.dot_dimension_numbers<[1], [0], [0], [1], [0, 0, 1, 1], [], []>} : vector<1x128xbf16>, vector<128x512xbf16>, vector<1x512xf32> -> vector<1x512xf32>
    %698 = arith.addf %379, %697 : vector<1x512xf32>
    %699 = vector.extract_strided_slice %698 {offsets = [0, 0], sizes = [1, 384], strides = [1, 1]} : vector<1x512xf32> to vector<1x384xf32>
    %700 = arith.negf %699 : vector<1x384xf32>
    %701 = math.exp %700 : vector<1x384xf32>
    %cst_209 = arith.constant 1.000000e+00 : f32
    %702 = vector.broadcast %cst_209 : f32 to vector<1x384xf32>
    %703 = arith.addf %702, %701 : vector<1x384xf32>
    %704 = arith.divf %702, %703 : vector<1x384xf32>
    %705 = vector.extract_strided_slice %698 {offsets = [0, 384], sizes = [1, 128], strides = [1, 1]} : vector<1x512xf32> to vector<1x128xf32>
    %706 = math.tanh %705 : vector<1x128xf32>
    %707 = vector.extract_strided_slice %704 {offsets = [0, 0], sizes = [1, 128], strides = [1, 1]} : vector<1x384xf32> to vector<1x128xf32>
    %708 = vector.extract_strided_slice %704 {offsets = [0, 128], sizes = [1, 128], strides = [1, 1]} : vector<1x384xf32> to vector<1x128xf32>
    %709 = vector.extract_strided_slice %704 {offsets = [0, 256], sizes = [1, 128], strides = [1, 1]} : vector<1x384xf32> to vector<1x128xf32>
    %710 = arith.mulf %708, %667 : vector<1x128xf32>
    %711 = arith.mulf %707, %706 : vector<1x128xf32>
    %712 = arith.addf %710, %711 : vector<1x128xf32>
    %713 = math.tanh %712 : vector<1x128xf32>
    %714 = arith.mulf %709, %713 : vector<1x128xf32>
    %715 = arith.truncf %714 : vector<1x128xf32> to vector<1x128xbf16>
    %c0_210 = arith.constant 0 : index
    %c0_211 = arith.constant 0 : index
    %716 = vector.load %arg11[%c0_210, %c0_211] : memref<128x512xbf16, #tpu.memory_space<vmem>>, vector<128x512xbf16>
    %cst_212 = arith.constant dense<0.000000e+00> : vector<1x512xf32>
    %717 = tpu.matmul %715, %716, %cst_212 {dimension_numbers = #tpu.dot_dimension_numbers<[1], [0], [0], [1], [0, 0, 1, 1], [], []>} : vector<1x128xbf16>, vector<128x512xbf16>, vector<1x512xf32> -> vector<1x512xf32>
    %718 = arith.truncf %694 : vector<1x128xf32> to vector<1x128xbf16>
    %c0_213 = arith.constant 0 : index
    %c0_214 = arith.constant 0 : index
    %719 = vector.load %arg12[%c0_213, %c0_214] : memref<128x512xbf16, #tpu.memory_space<vmem>>, vector<128x512xbf16>
    %cst_215 = arith.constant dense<0.000000e+00> : vector<1x512xf32>
    %720 = tpu.matmul %718, %719, %cst_215 {dimension_numbers = #tpu.dot_dimension_numbers<[1], [0], [0], [1], [0, 0, 1, 1], [], []>} : vector<1x128xbf16>, vector<128x512xbf16>, vector<1x512xf32> -> vector<1x512xf32>
    %721 = arith.addf %717, %720 : vector<1x512xf32>
    %c0_216 = arith.constant 0 : index
    %c0_217 = arith.constant 0 : index
    %722 = vector.load %arg13[%c0_216, %c0_217] : memref<1x512xf32, #tpu.memory_space<vmem>>, vector<1x512xf32>
    %723 = arith.addf %721, %722 : vector<1x512xf32>
    %724 = vector.extract_strided_slice %723 {offsets = [0, 0], sizes = [1, 384], strides = [1, 1]} : vector<1x512xf32> to vector<1x384xf32>
    %725 = arith.negf %724 : vector<1x384xf32>
    %726 = math.exp %725 : vector<1x384xf32>
    %cst_218 = arith.constant 1.000000e+00 : f32
    %727 = vector.broadcast %cst_218 : f32 to vector<1x384xf32>
    %728 = arith.addf %727, %726 : vector<1x384xf32>
    %729 = arith.divf %727, %728 : vector<1x384xf32>
    %730 = vector.extract_strided_slice %723 {offsets = [0, 384], sizes = [1, 128], strides = [1, 1]} : vector<1x512xf32> to vector<1x128xf32>
    %731 = math.tanh %730 : vector<1x128xf32>
    %732 = vector.extract_strided_slice %729 {offsets = [0, 0], sizes = [1, 128], strides = [1, 1]} : vector<1x384xf32> to vector<1x128xf32>
    %733 = vector.extract_strided_slice %729 {offsets = [0, 128], sizes = [1, 128], strides = [1, 1]} : vector<1x384xf32> to vector<1x128xf32>
    %734 = vector.extract_strided_slice %729 {offsets = [0, 256], sizes = [1, 128], strides = [1, 1]} : vector<1x384xf32> to vector<1x128xf32>
    %735 = arith.mulf %733, %692 : vector<1x128xf32>
    %736 = arith.mulf %732, %731 : vector<1x128xf32>
    %737 = arith.addf %735, %736 : vector<1x128xf32>
    %738 = math.tanh %737 : vector<1x128xf32>
    %739 = arith.mulf %734, %738 : vector<1x128xf32>
    %740 = tpu.concatenate %424, %469, %514, %559, %604, %649, %694, %739 in 0 : vector<1x128xf32>, vector<1x128xf32>, vector<1x128xf32>, vector<1x128xf32>, vector<1x128xf32>, vector<1x128xf32>, vector<1x128xf32>, vector<1x128xf32> -> vector<8x128xf32>
    %741 = arith.truncf %740 : vector<8x128xf32> to vector<8x128xbf16>
    %c0_219 = arith.constant 0 : index
    %c0_220 = arith.constant 0 : index
    %742 = vector.load %arg14[%c0_219, %c0_220] : memref<128x128xbf16, #tpu.memory_space<vmem>>, vector<128x128xbf16>
    %cst_221 = arith.constant dense<0.000000e+00> : vector<8x128xf32>
    %743 = tpu.matmul %741, %742, %cst_221 {dimension_numbers = #tpu.dot_dimension_numbers<[1], [0], [0], [1], [0, 0, 1, 1], [], []>} : vector<8x128xbf16>, vector<128x128xbf16>, vector<8x128xf32> -> vector<8x128xf32>
    %c0_222 = arith.constant 0 : index
    %c0_223 = arith.constant 0 : index
    %744 = vector.load %arg15[%c0_222, %c0_223] : memref<1x128xf32, #tpu.memory_space<vmem>>, vector<1x128xf32>
    %745 = vector.broadcast %744 : vector<1x128xf32> to vector<8x128xf32>
    %746 = arith.addf %743, %745 : vector<8x128xf32>
    %c0_224 = arith.constant 0 : index
    %c0_225 = arith.constant 0 : index
    %747 = vector.load %arg16[%c0_224, %c0_225] : memref<8x128xf32, #tpu.memory_space<vmem>>, vector<8x128xf32>
    tpu.vector_store %arg16[%c0_224, %c0_225], %746 {strides = array<i32>} : memref<8x128xf32, #tpu.memory_space<vmem>>, vector<8x128xf32>,
    return
  }
  func.func @transform_0(%arg0: i32) -> (i32, i32) {
    %c0_i32 = arith.constant 0 : i32
    %c0_i32_0 = arith.constant 0 : i32
    %c0_i32_1 = arith.constant 0 : i32
    return %c0_i32, %c0_i32_0 : i32, i32
  }
  func.func @transform_1(%arg0: i32) -> (i32, i32) {
    %c0_i32 = arith.constant 0 : i32
    %c0_i32_0 = arith.constant 0 : i32
    %c0_i32_1 = arith.constant 0 : i32
    return %c0_i32, %c0_i32_0 : i32, i32
  }
  func.func @transform_2(%arg0: i32) -> (i32, i32) {
    %c0_i32 = arith.constant 0 : i32
    %c0_i32_0 = arith.constant 0 : i32
    %c0_i32_1 = arith.constant 0 : i32
    return %c0_i32, %c0_i32_0 : i32, i32
  }
  func.func @transform_3(%arg0: i32) -> (i32, i32) {
    %c0_i32 = arith.constant 0 : i32
    %c0_i32_0 = arith.constant 0 : i32
    %c0_i32_1 = arith.constant 0 : i32
    return %c0_i32, %c0_i32_0 : i32, i32
  }
  func.func @transform_4(%arg0: i32) -> (i32, i32) {
    %c0_i32 = arith.constant 0 : i32
    %c0_i32_0 = arith.constant 0 : i32
    %c0_i32_1 = arith.constant 0 : i32
    return %c0_i32, %c0_i32_0 : i32, i32
  }
  func.func @transform_5(%arg0: i32) -> (i32, i32) {
    %c0_i32 = arith.constant 0 : i32
    %c0_i32_0 = arith.constant 0 : i32
    %c0_i32_1 = arith.constant 0 : i32
    return %c0_i32, %c0_i32_0 : i32, i32
  }
  func.func @transform_6(%arg0: i32) -> (i32, i32) {
    %c0_i32 = arith.constant 0 : i32
    %c0_i32_0 = arith.constant 0 : i32
    %c0_i32_1 = arith.constant 0 : i32
    return %c0_i32, %c0_i32_0 : i32, i32
  }
  func.func @transform_7(%arg0: i32) -> (i32, i32) {
    %c0_i32 = arith.constant 0 : i32
    %c0_i32_0 = arith.constant 0 : i32
    %c0_i32_1 = arith.constant 0 : i32
    return %c0_i32, %c0_i32_0 : i32, i32
  }
  func.func @transform_8(%arg0: i32) -> (i32, i32) {
    %c0_i32 = arith.constant 0 : i32
    %c0_i32_0 = arith.constant 0 : i32
    %c0_i32_1 = arith.constant 0 : i32
    return %c0_i32, %c0_i32_0 : i32, i32
  }
  func.func @transform_9(%arg0: i32) -> (i32, i32) {
    %c0_i32 = arith.constant 0 : i32
    %c0_i32_0 = arith.constant 0 : i32
    %c0_i32_1 = arith.constant 0 : i32
    return %c0_i32, %c0_i32_0 : i32, i32
  }
  func.func @transform_10(%arg0: i32) -> (i32, i32) {
    %c0_i32 = arith.constant 0 : i32
    %c0_i32_0 = arith.constant 0 : i32
    %c0_i32_1 = arith.constant 0 : i32
    return %c0_i32, %c0_i32_0 : i32, i32
  }
  func.func @transform_11(%arg0: i32) -> (i32, i32) {
    %c0_i32 = arith.constant 0 : i32
    %c0_i32_0 = arith.constant 0 : i32
    %c0_i32_1 = arith.constant 0 : i32
    return %c0_i32, %c0_i32_0 : i32, i32
  }
  func.func @transform_12(%arg0: i32) -> (i32, i32) {
    %c0_i32 = arith.constant 0 : i32
    %c0_i32_0 = arith.constant 0 : i32
    %c0_i32_1 = arith.constant 0 : i32
    return %c0_i32, %c0_i32_0 : i32, i32
  }
  func.func @transform_13(%arg0: i32) -> (i32, i32) {
    %c0_i32 = arith.constant 0 : i32
    %c0_i32_0 = arith.constant 0 : i32
    %c0_i32_1 = arith.constant 0 : i32
    return %c0_i32, %c0_i32_0 : i32, i32
  }
  func.func @transform_14(%arg0: i32) -> (i32, i32) {
    %c0_i32 = arith.constant 0 : i32
    %c0_i32_0 = arith.constant 0 : i32
    %c0_i32_1 = arith.constant 0 : i32
    return %c0_i32, %c0_i32_0 : i32, i32
  }
  func.func @transform_15(%arg0: i32) -> (i32, i32) {
    %c0_i32 = arith.constant 0 : i32
    %c0_i32_0 = arith.constant 0 : i32
    %c0_i32_1 = arith.constant 0 : i32
    return %c0_i32, %c0_i32_0 : i32, i32
  }
}

</mosaic_0001>

<llo_original>
// kernel: rae_forward.1
$region0: #{rae_forward.1}
  #allocation0 [shape = 'u32[]', space=smem, size = 0x4, offset = 0x4, fixed_abs, tag = 'smem constant byte address 0x4 - core index']
  #allocation1 [shape = 'u32[144,128]{1,0:T(1,128)}', space=vmem, size = 0x12000, scoped, tag = 'internal scratch']
  %s0 = inlined_call_operand.vmem [shape: bf16[8,128], index: 0, kind: input, shape index: {}]
  %s1 = inlined_call_operand.hbm [shape: bf16[128,512], index: 1, kind: input, shape index: {}]
  %s2 = inlined_call_operand.hbm [shape: bf16[128,512], index: 2, kind: input, shape index: {}]
  %s3 = inlined_call_operand.vmem [shape: f32[1,512], index: 3, kind: input, shape index: {}]
  %s4 = inlined_call_operand.hbm [shape: bf16[128,512], index: 4, kind: input, shape index: {}]
  %s5 = inlined_call_operand.hbm [shape: bf16[128,512], index: 5, kind: input, shape index: {}]
  %s6 = inlined_call_operand.vmem [shape: f32[1,512], index: 6, kind: input, shape index: {}]
  %s7 = inlined_call_operand.hbm [shape: bf16[128,512], index: 7, kind: input, shape index: {}]
  %s8 = inlined_call_operand.hbm [shape: bf16[128,512], index: 8, kind: input, shape index: {}]
  %s9 = inlined_call_operand.vmem [shape: f32[1,512], index: 9, kind: input, shape index: {}]
  %s10 = inlined_call_operand.hbm [shape: bf16[128,512], index: 10, kind: input, shape index: {}]
  %s11 = inlined_call_operand.hbm [shape: bf16[128,512], index: 11, kind: input, shape index: {}]
  %s12 = inlined_call_operand.vmem [shape: f32[1,512], index: 12, kind: input, shape index: {}]
  %s13 = inlined_call_operand.hbm [shape: bf16[128,128], index: 13, kind: input, shape index: {}]
  %s14 = inlined_call_operand.vmem [shape: f32[1,128], index: 14, kind: input, shape index: {}]
  %s15 = inlined_call_operand.vmem [shape: f32[8,128], index: 15, kind: output, shape index: {}]
  %s16 = sld [smem:[#allocation0]]
  $region106: #{rae_forward.1} parent=0
    _
  %s18 = ssub.s32 1, %s16
  %s19 = scalar_select 0, %s18, %s16
  $region1: #{rae_forward.1} parent=0
    #allocation2 [shape = 'u8[131072]{0}', space=vmem, size = 0x20000, scoped, tag = 'input window, operand 1, single buffered']
    #allocation3 [shape = 's32[1]{0}', space=sflag, size = 0x4, scoped, tag = 'scoped memory for rae_forward.1']
    #allocation4 [shape = 'u8[131072]{0}', space=vmem, size = 0x20000, scoped, tag = 'input window, operand 2, single buffered']
    #allocation5 [shape = 's32[1]{0}', space=sflag, size = 0x4, scoped, tag = 'scoped memory for rae_forward.1']
    #allocation6 [shape = 'u8[131072]{0}', space=vmem, size = 0x20000, scoped, tag = 'input window, operand 4, single buffered']
    #allocation7 [shape = 'u8[131072]{0}', space=vmem, size = 0x20000, scoped, tag = 'input window, operand 5, single buffered']
    #allocation8 [shape = 's32[1]{0}', space=sflag, size = 0x4, scoped, tag = 'scoped memory for rae_forward.1']
    #allocation9 [shape = 'u8[131072]{0}', space=vmem, size = 0x20000, scoped, tag = 'input window, operand 7, single buffered']
    #allocation10 [shape = 'u8[131072]{0}', space=vmem, size = 0x20000, scoped, tag = 'input window, operand 8, single buffered']
    #allocation11 [shape = 's32[1]{0}', space=sflag, size = 0x4, scoped, tag = 'scoped memory for rae_forward.1']
    #allocation12 [shape = 'u8[131072]{0}', space=vmem, size = 0x20000, scoped, tag = 'input window, operand 10, single buffered']
    #allocation13 [shape = 'u8[131072]{0}', space=vmem, size = 0x20000, scoped, tag = 'input window, operand 11, single buffered']
    #allocation14 [shape = 's32[1]{0}', space=sflag, size = 0x4, scoped, tag = 'scoped memory for rae_forward.1']
    #allocation15 [shape = 'u8[32768]{0}', space=vmem, size = 0x8000, scoped, tag = 'input window, operand 13, single buffered']
    %20 = vsyncpa [#allocation3], 0
    %21 = vsyncpa [#allocation5], 0
    %22 = vsyncpa [#allocation8], 0
    %23 = vsyncpa [#allocation11], 0
    %24 = vsyncpa [#allocation14], 0
    // Predicated region
    $region2: #{rae_forward.1} parent=1 // pred_check
      _
    $region3: #{rae_forward.1} parent=1 // pred_check_branch
      %26 = sbr.rel (0) target = $region5
    $region4: #{rae_forward.1} parent=1 // pred_region
      _
    $region5: #{rae_forward.1} parent=1 // pred_fallthru
      _
    // Predicated region
    $region6: #{rae_forward.1} parent=1 // pred_check
      _
    $region7: #{rae_forward.1} parent=1 // pred_check_branch
      %28 = sbr.rel (0) target = $region9
    $region8: #{rae_forward.1} parent=1 // pred_region
      %s30 = ssub.s32 4096, 4096
      %31 = vsyncadd [#allocation3], %s30
      %s32 = sshll.u32 [#allocation2], 4
      %s33 = int_to_ptr.vmem [resolvable:$true] %s32
      %38 = dma.hbm_to_vmem [thread:$0]  %s1, 4096, %s33, [#allocation3], 256, 256, 16
    $region9: #{rae_forward.1} parent=1 // pred_fallthru
      _
    // Predicated region
    $region10: #{rae_forward.1} parent=1 // pred_check
      _
    $region11: #{rae_forward.1} parent=1 // pred_check_branch
      %40 = sbr.rel (0) target = $region13
    $region12: #{rae_forward.1} parent=1 // pred_region
      %s42 = ssub.s32 4096, 4096
      %43 = vsyncadd [#allocation5], %s42
      %s44 = sshll.u32 [#allocation4], 4
      %s45 = int_to_ptr.vmem [resolvable:$true] %s44
      %50 = dma.hbm_to_vmem [thread:$0]  %s2, 4096, %s45, [#allocation5], 256, 256, 16
    $region13: #{rae_forward.1} parent=1 // pred_fallthru
      _
    // Predicated region
    $region14: #{rae_forward.1} parent=1 // pred_check
      _
    $region15: #{rae_forward.1} parent=1 // pred_check_branch
      %52 = sbr.rel (0) target = $region17
    $region16: #{rae_forward.1} parent=1 // pred_region
      _
    $region17: #{rae_forward.1} parent=1 // pred_fallthru
      _
    // Predicated region
    $region18: #{rae_forward.1} parent=1 // pred_check
      _
    $region19: #{rae_forward.1} parent=1 // pred_check_branch
      %54 = sbr.rel (0) target = $region21
    $region20: #{rae_forward.1} parent=1 // pred_region
      %s56 = ssub.s32 4096, 4096
      %57 = vsyncadd [#allocation5], %s56
      %s58 = sshll.u32 [#allocation6], 4
      %s59 = int_to_ptr.vmem [resolvable:$true] %s58
      %64 = dma.hbm_to_vmem [thread:$0]  %s4, 4096, %s59, [#allocation5], 256, 256, 16
    $region21: #{rae_forward.1} parent=1 // pred_fallthru
      _
    // Predicated region
    $region22: #{rae_forward.1} parent=1 // pred_check
      _
    $region23: #{rae_forward.1} parent=1 // pred_check_branch
      %66 = sbr.rel (0) target = $region25
    $region24: #{rae_forward.1} parent=1 // pred_region
      %s68 = ssub.s32 4096, 4096
      %69 = vsyncadd [#allocation8], %s68
      %s70 = sshll.u32 [#allocation7], 4
      %s71 = int_to_ptr.vmem [resolvable:$true] %s70
      %76 = dma.hbm_to_vmem [thread:$0]  %s5, 4096, %s71, [#allocation8], 256, 256, 16
    $region25: #{rae_forward.1} parent=1 // pred_fallthru
      _
    // Predicated region
    $region26: #{rae_forward.1} parent=1 // pred_check
      _
    $region27: #{rae_forward.1} parent=1 // pred_check_branch
      %78 = sbr.rel (0) target = $region29
    $region28: #{rae_forward.1} parent=1 // pred_region
      _
    $region29: #{rae_forward.1} parent=1 // pred_fallthru
      _
    // Predicated region
    $region30: #{rae_forward.1} parent=1 // pred_check
      _
    $region31: #{rae_forward.1} parent=1 // pred_check_branch
      %80 = sbr.rel (0) target = $region33
    $region32: #{rae_forward.1} parent=1 // pred_region
      %s82 = ssub.s32 4096, 4096
      %83 = vsyncadd [#allocation8], %s82
      %s84 = sshll.u32 [#allocation9], 4
      %s85 = int_to_ptr.vmem [resolvable:$true] %s84
      %90 = dma.hbm_to_vmem [thread:$0]  %s7, 4096, %s85, [#allocation8], 256, 256, 16
    $region33: #{rae_forward.1} parent=1 // pred_fallthru
      _
    // Predicated region
    $region34: #{rae_forward.1} parent=1 // pred_check
      _
    $region35: #{rae_forward.1} parent=1 // pred_check_branch
      %92 = sbr.rel (0) target = $region37
    $region36: #{rae_forward.1} parent=1 // pred_region
      %s94 = ssub.s32 4096, 4096
      %95 = vsyncadd [#allocation11], %s94
      %s96 = sshll.u32 [#allocation10], 4
      %s97 = int_to_ptr.vmem [resolvable:$true] %s96
      %102 = dma.hbm_to_vmem [thread:$0]  %s8, 4096, %s97, [#allocation11], 256, 256, 16
    $region37: #{rae_forward.1} parent=1 // pred_fallthru
      _
    // Predicated region
    $region38: #{rae_forward.1} parent=1 // pred_check
      _
    $region39: #{rae_forward.1} parent=1 // pred_check_branch
      %104 = sbr.rel (0) target = $region41
    $region40: #{rae_forward.1} parent=1 // pred_region
      _
    $region41: #{rae_forward.1} parent=1 // pred_fallthru
      _
    // Predicated region
    $region42: #{rae_forward.1} parent=1 // pred_check
      _
    $region43: #{rae_forward.1} parent=1 // pred_check_branch
      %106 = sbr.rel (0) target = $region45
    $region44: #{rae_forward.1} parent=1 // pred_region
      %s108 = ssub.s32 4096, 4096
      %109 = vsyncadd [#allocation11], %s108
      %s110 = sshll.u32 [#allocation12], 4
      %s111 = int_to_ptr.vmem [resolvable:$true] %s110
      %116 = dma.hbm_to_vmem [thread:$0]  %s10, 4096, %s111, [#allocation11], 256, 256, 16
    $region45: #{rae_forward.1} parent=1 // pred_fallthru
      _
    // Predicated region
    $region46: #{rae_forward.1} parent=1 // pred_check
      _
    $region47: #{rae_forward.1} parent=1 // pred_check_branch
      %118 = sbr.rel (0) target = $region49
    $region48: #{rae_forward.1} parent=1 // pred_region
      %s120 = ssub.s32 4096, 4096
      %121 = vsyncadd [#allocation14], %s120
      %s122 = sshll.u32 [#allocation13], 4
      %s123 = int_to_ptr.vmem [resolvable:$true] %s122
      %128 = dma.hbm_to_vmem [thread:$0]  %s11, 4096, %s123, [#allocation14], 256, 256, 16
    $region49: #{rae_forward.1} parent=1 // pred_fallthru
      _
    // Predicated region
    $region50: #{rae_forward.1} parent=1 // pred_check
      _
    $region51: #{rae_forward.1} parent=1 // pred_check_branch
      %130 = sbr.rel (0) target = $region53
    $region52: #{rae_forward.1} parent=1 // pred_region
      _
    $region53: #{rae_forward.1} parent=1 // pred_fallthru
      _
    // Predicated region
    $region54: #{rae_forward.1} parent=1 // pred_check
      _
    $region55: #{rae_forward.1} parent=1 // pred_check_branch
      %132 = sbr.rel (0) target = $region57
    $region56: #{rae_forward.1} parent=1 // pred_region
      %s134 = ssub.s32 1024, 1024
      %135 = vsyncadd [#allocation14], %s134
      %s136 = sshll.u32 [#allocation15], 4
      %s137 = int_to_ptr.vmem [resolvable:$true] %s136
      %142 = dma.hbm_to_vmem [thread:$0]  %s13, 1024, %s137, [#allocation14], 64, 64, 4
    $region57: #{rae_forward.1} parent=1 // pred_fallthru
      _
    // Predicated region
    $region58: #{rae_forward.1} parent=1 // pred_check
      _
    $region59: #{rae_forward.1} parent=1 // pred_check_branch
      %144 = sbr.rel (0) target = $region61
    $region60: #{rae_forward.1} parent=1 // pred_region
      _
    $region61: #{rae_forward.1} parent=1 // pred_fallthru
      _
    // Predicated region
    $region62: #{rae_forward.1} parent=1 // pred_check
      _
    $region63: #{rae_forward.1} parent=1 // pred_check_branch
      %146 = sbr.rel (0) target = $region65
    $region64: #{rae_forward.1} parent=1 // pred_region
      %147 = dma.done [#allocation3], 4096
    $region65: #{rae_forward.1} parent=1 // pred_fallthru
      _
    // Predicated region
    $region66: #{rae_forward.1} parent=1 // pred_check
      _
    $region67: #{rae_forward.1} parent=1 // pred_check_branch
      %149 = sbr.rel (0) target = $region69
    $region68: #{rae_forward.1} parent=1 // pred_region
      %150 = dma.done [#allocation5], 4096
    $region69: #{rae_forward.1} parent=1 // pred_fallthru
      _
    // Predicated region
    $region70: #{rae_forward.1} parent=1 // pred_check
      _
    $region71: #{rae_forward.1} parent=1 // pred_check_branch
      %152 = sbr.rel (0) target = $region73
    $region72: #{rae_forward.1} parent=1 // pred_region
      %153 = dma.done [#allocation5], 4096
    $region73: #{rae_forward.1} parent=1 // pred_fallthru
      _
    // Predicated region
    $region74: #{rae_forward.1} parent=1 // pred_check
      _
    $region75: #{rae_forward.1} parent=1 // pred_check_branch
      %155 = sbr.rel (0) target = $region77
    $region76: #{rae_forward.1} parent=1 // pred_region
      %156 = dma.done [#allocation8], 4096
    $region77: #{rae_forward.1} parent=1 // pred_fallthru
      _
    // Predicated region
    $region78: #{rae_forward.1} parent=1 // pred_check
      _
    $region79: #{rae_forward.1} parent=1 // pred_check_branch
      %158 = sbr.rel (0) target = $region81
    $region80: #{rae_forward.1} parent=1 // pred_region
      %159 = dma.done [#allocation8], 4096
    $region81: #{rae_forward.1} parent=1 // pred_fallthru
      _
    // Predicated region
    $region82: #{rae_forward.1} parent=1 // pred_check
      _
    $region83: #{rae_forward.1} parent=1 // pred_check_branch
      %161 = sbr.rel (0) target = $region85
    $region84: #{rae_forward.1} parent=1 // pred_region
      %162 = dma.done [#allocation11], 4096
    $region85: #{rae_forward.1} parent=1 // pred_fallthru
      _
    // Predicated region
    $region86: #{rae_forward.1} parent=1 // pred_check
      _
    $region87: #{rae_forward.1} parent=1 // pred_check_branch
      %164 = sbr.rel (0) target = $region89
    $region88: #{rae_forward.1} parent=1 // pred_region
      %165 = dma.done [#allocation11], 4096
    $region89: #{rae_forward.1} parent=1 // pred_fallthru
      _
    // Predicated region
    $region90: #{rae_forward.1} parent=1 // pred_check
      _
    $region91: #{rae_forward.1} parent=1 // pred_check_branch
      %167 = sbr.rel (0) target = $region93
    $region92: #{rae_forward.1} parent=1 // pred_region
      %168 = dma.done [#allocation14], 4096
    $region93: #{rae_forward.1} parent=1 // pred_fallthru
      _
    // Predicated region
    $region94: #{rae_forward.1} parent=1 // pred_check
      _
    $region95: #{rae_forward.1} parent=1 // pred_check_branch
      %170 = sbr.rel (0) target = $region97
    $region96: #{rae_forward.1} parent=1 // pred_region
      %171 = dma.done [#allocation14], 1024
    $region97: #{rae_forward.1} parent=1 // pred_fallthru
      _
    %v173 = vld [vmem:[%s0] sm:$0xf]
    %v174 = vld [vmem:[#allocation2] sm:$0xff]
    %v175 = vld [vmem:[#allocation2 + $0x8] sm:$0xff]
    %v176 = vld [vmem:[#allocation2 + $0x10] sm:$0xff]
    %v177 = vld [vmem:[#allocation2 + $0x18] sm:$0xff]
    %v178 = vld [vmem:[#allocation2 + $0x20] sm:$0xff]
    %v179 = vld [vmem:[#allocation2 + $0x28] sm:$0xff]
    %v180 = vld [vmem:[#allocation2 + $0x30] sm:$0xff]
    %v181 = vld [vmem:[#allocation2 + $0x38] sm:$0xff]
    %v182 = vld [vmem:[#allocation2 + $0x40] sm:$0xff]
    %v183 = vld [vmem:[#allocation2 + $0x48] sm:$0xff]
    %v184 = vld [vmem:[#allocation2 + $0x50] sm:$0xff]
    %v185 = vld [vmem:[#allocation2 + $0x58] sm:$0xff]
    %v186 = vld [vmem:[#allocation2 + $0x60] sm:$0xff]
    %v187 = vld [vmem:[#allocation2 + $0x68] sm:$0xff]
    %v188 = vld [vmem:[#allocation2 + $0x70] sm:$0xff]
    %v189 = vld [vmem:[#allocation2 + $0x78] sm:$0xff]
    %v190 = vld [vmem:[#allocation2 + $0x80] sm:$0xff]
    %v191 = vld [vmem:[#allocation2 + $0x88] sm:$0xff]
    %v192 = vld [vmem:[#allocation2 + $0x90] sm:$0xff]
    %v193 = vld [vmem:[#allocation2 + $0x98] sm:$0xff]
    %v194 = vld [vmem:[#allocation2 + $0xa0] sm:$0xff]
    %v195 = vld [vmem:[#allocation2 + $0xa8] sm:$0xff]
    %v196 = vld [vmem:[#allocation2 + $0xb0] sm:$0xff]
    %v197 = vld [vmem:[#allocation2 + $0xb8] sm:$0xff]
    %v198 = vld [vmem:[#allocation2 + $0xc0] sm:$0xff]
    %v199 = vld [vmem:[#allocation2 + $0xc8] sm:$0xff]
    %v200 = vld [vmem:[#allocation2 + $0xd0] sm:$0xff]
    %v201 = vld [vmem:[#allocation2 + $0xd8] sm:$0xff]
    %v202 = vld [vmem:[#allocation2 + $0xe0] sm:$0xff]
    %v203 = vld [vmem:[#allocation2 + $0xe8] sm:$0xff]
    %v204 = vld [vmem:[#allocation2 + $0xf0] sm:$0xff]
    %v205 = vld [vmem:[#allocation2 + $0xf8] sm:$0xff]
    %v206 = vld [vmem:[%s3] sm:$0xf]
    %v208 = vlaneseq
    %v209 = vshrl.u32 %v208, 7
    %v210 = vsub.s32 0, %v209
    %v211 = vrot.slane %v206, %v210
    %v212 = vlaneseq
    %v213 = vshrl.u32 %v212, 7
    %v214 = vsub.s32 1, %v213
    %v215 = vrot.slane %v206, %v214
    %v216 = vlaneseq
    %v217 = vshrl.u32 %v216, 7
    %v218 = vsub.s32 2, %v217
    %v219 = vrot.slane %v206, %v218
    %v220 = vlaneseq
    %v221 = vshrl.u32 %v220, 7
    %v222 = vsub.s32 3, %v221
    %v223 = vrot.slane %v206, %v222
    %v260 = vunpack.c.l.b16 %v174
    %v261 = vunpack.c.h.b16 %v174
    %v262 = vunpack.c.l.b16 %v175
    %v263 = vunpack.c.h.b16 %v175
    %v264 = vunpack.c.l.b16 %v176
    %v265 = vunpack.c.h.b16 %v176
    %v266 = vunpack.c.l.b16 %v177
    %v267 = vunpack.c.h.b16 %v177
    %v268 = vunpack.c.l.b16 %v178
    %v269 = vunpack.c.h.b16 %v178
    %v270 = vunpack.c.l.b16 %v179
    %v271 = vunpack.c.h.b16 %v179
    %v272 = vunpack.c.l.b16 %v180
    %v273 = vunpack.c.h.b16 %v180
    %v274 = vunpack.c.l.b16 %v181
    %v275 = vunpack.c.h.b16 %v181
    %v276 = vunpack.c.l.b16 %v182
    %v277 = vunpack.c.h.b16 %v182
    %v278 = vunpack.c.l.b16 %v183
    %v279 = vunpack.c.h.b16 %v183
    %v280 = vunpack.c.l.b16 %v184
    %v281 = vunpack.c.h.b16 %v184
    %v282 = vunpack.c.l.b16 %v185
    %v283 = vunpack.c.h.b16 %v185
    %v284 = vunpack.c.l.b16 %v186
    %v285 = vunpack.c.h.b16 %v186
    %v286 = vunpack.c.l.b16 %v187
    %v287 = vunpack.c.h.b16 %v187
    %v288 = vunpack.c.l.b16 %v188
    %v289 = vunpack.c.h.b16 %v188
    %v290 = vunpack.c.l.b16 %v189
    %v291 = vunpack.c.h.b16 %v189
    %v292 = vunpack.c.l.b16 %v190
    %v293 = vunpack.c.h.b16 %v190
    %v294 = vunpack.c.l.b16 %v191
    %v295 = vunpack.c.h.b16 %v191
    %v296 = vunpack.c.l.b16 %v192
    %v297 = vunpack.c.h.b16 %v192
    %v298 = vunpack.c.l.b16 %v193
    %v299 = vunpack.c.h.b16 %v193
    %v300 = vunpack.c.l.b16 %v194
    %v301 = vunpack.c.h.b16 %v194
    %v302 = vunpack.c.l.b16 %v195
    %v303 = vunpack.c.h.b16 %v195
    %v304 = vunpack.c.l.b16 %v196
    %v305 = vunpack.c.h.b16 %v196
    %v306 = vunpack.c.l.b16 %v197
    %v307 = vunpack.c.h.b16 %v197
    %v308 = vunpack.c.l.b16 %v198
    %v309 = vunpack.c.h.b16 %v198
    %v310 = vunpack.c.l.b16 %v199
    %v311 = vunpack.c.h.b16 %v199
    %v312 = vunpack.c.l.b16 %v200
    %v313 = vunpack.c.h.b16 %v200
    %v314 = vunpack.c.l.b16 %v201
    %v315 = vunpack.c.h.b16 %v201
    %v316 = vunpack.c.l.b16 %v202
    %v317 = vunpack.c.h.b16 %v202
    %v318 = vunpack.c.l.b16 %v203
    %v319 = vunpack.c.h.b16 %v203
    %v320 = vunpack.c.l.b16 %v204
    %v321 = vunpack.c.h.b16 %v204
    %v322 = vunpack.c.l.b16 %v205
    %v323 = vunpack.c.h.b16 %v205
    %v324 = vpack.c.b16 %v264, %v260
    %v325 = vpack.c.b16 %v265, %v261
    %v326 = vpack.c.b16 %v266, %v262
    %v327 = vpack.c.b16 %v267, %v263
    %v328 = vpack.c.b16 %v272, %v268
    %v329 = vpack.c.b16 %v273, %v269
    %v330 = vpack.c.b16 %v274, %v270
    %v331 = vpack.c.b16 %v275, %v271
    %v332 = vpack.c.b16 %v280, %v276
    %v333 = vpack.c.b16 %v281, %v277
    %v334 = vpack.c.b16 %v282, %v278
    %v335 = vpack.c.b16 %v283, %v279
    %v336 = vpack.c.b16 %v288, %v284
    %v337 = vpack.c.b16 %v289, %v285
    %v338 = vpack.c.b16 %v290, %v286
    %v339 = vpack.c.b16 %v291, %v287
    %v340 = vpack.c.b16 %v296, %v292
    %v341 = vpack.c.b16 %v297, %v293
    %v342 = vpack.c.b16 %v298, %v294
    %v343 = vpack.c.b16 %v299, %v295
    %v344 = vpack.c.b16 %v304, %v300
    %v345 = vpack.c.b16 %v305, %v301
    %v346 = vpack.c.b16 %v306, %v302
    %v347 = vpack.c.b16 %v307, %v303
    %v348 = vpack.c.b16 %v312, %v308
    %v349 = vpack.c.b16 %v313, %v309
    %v350 = vpack.c.b16 %v314, %v310
    %v351 = vpack.c.b16 %v315, %v311
    %v352 = vpack.c.b16 %v320, %v316
    %v353 = vpack.c.b16 %v321, %v317
    %v354 = vpack.c.b16 %v322, %v318
    %v355 = vpack.c.b16 %v323, %v319
    %388 = vmatprep.subr.bf16.mxu0 %v325
    %389 = vmatpush1.bf16.msra.mxu0 %v324
    %390 = vmatprep.subr.bf16.mxu0 %v329
    %391 = vmatpush1.bf16.msra.mxu0 %v328
    %392 = vmatprep.subr.bf16.mxu0 %v333
    %393 = vmatpush1.bf16.msra.mxu0 %v332
    %394 = vmatprep.subr.bf16.mxu0 %v337
    %395 = vmatpush1.bf16.msra.mxu0 %v336
    %396 = vmatprep.subr.bf16.mxu0 %v341
    %397 = vmatpush1.bf16.msra.mxu0 %v340
    %398 = vmatprep.subr.bf16.mxu0 %v345
    %399 = vmatpush1.bf16.msra.mxu0 %v344
    %400 = vmatprep.subr.bf16.mxu0 %v349
    %401 = vmatpush1.bf16.msra.mxu0 %v348
    %402 = vmatprep.subr.bf16.mxu0 %v353
    %403 = vmatpush1.bf16.msra.mxu0 %v352
    %404 = vmatprep.subr.bf16.mxu0 0
    %405 = vmatpush1.bf16.msra.mxu0 0
    %406 = vmatprep.subr.bf16.mxu0 0
    %407 = vmatpush1.bf16.msra.mxu0 0
    %408 = vmatprep.subr.bf16.mxu0 0
    %409 = vmatpush1.bf16.msra.mxu0 0
    %410 = vmatprep.subr.bf16.mxu0 0
    %411 = vmatpush1.bf16.msra.mxu0 0
    %412 = vmatprep.subr.bf16.mxu0 0
    %413 = vmatpush1.bf16.msra.mxu0 0
    %414 = vmatprep.subr.bf16.mxu0 0
    %415 = vmatpush1.bf16.msra.mxu0 0
    %416 = vmatprep.subr.bf16.mxu0 0
    %417 = vmatpush1.bf16.msra.mxu0 0
    %418 = vmatprep.subr.bf16.mxu0 0
    %419 = vmatpush1.bf16.msra.mxu0 0
    %420 = vmatprep.mubr.bf16.mxu0 0
    %421 = vmatmul.mubr.bf16.gmra.mrb[0].mxu0 %v173
    %v422 = vpop.f32.mrb[0].mxu0
    %v423 = vadd.f32 %v211, %v422
    %v424 = vpop.f32.mrb[0].mxu0
    %v425 = vadd.f32 %v215, %v424
    %v426 = vpop.f32.mrb[0].mxu0
    %v427 = vpop.f32.mrb[0].mxu0
    %428 = vdwg.mxu0
    %429 = vmatprep.subr.bf16.mxu0 %v327
    %430 = vmatpush1.bf16.msra.mxu0 %v326
    %431 = vmatprep.subr.bf16.mxu0 %v331
    %432 = vmatpush1.bf16.msra.mxu0 %v330
    %433 = vmatprep.subr.bf16.mxu0 %v335
    %434 = vmatpush1.bf16.msra.mxu0 %v334
    %435 = vmatprep.subr.bf16.mxu0 %v339
    %436 = vmatpush1.bf16.msra.mxu0 %v338
    %437 = vmatprep.subr.bf16.mxu0 %v343
    %438 = vmatpush1.bf16.msra.mxu0 %v342
    %439 = vmatprep.subr.bf16.mxu0 %v347
    %440 = vmatpush1.bf16.msra.mxu0 %v346
    %441 = vmatprep.subr.bf16.mxu0 %v351
    %442 = vmatpush1.bf16.msra.mxu0 %v350
    %443 = vmatprep.subr.bf16.mxu0 %v355
    %444 = vmatpush1.bf16.msra.mxu0 %v354
    %445 = vmatprep.subr.bf16.mxu0 0
    %446 = vmatpush1.bf16.msra.mxu0 0
    %447 = vmatprep.subr.bf16.mxu0 0
    %448 = vmatpush1.bf16.msra.mxu0 0
    %449 = vmatprep.subr.bf16.mxu0 0
    %450 = vmatpush1.bf16.msra.mxu0 0
    %451 = vmatprep.subr.bf16.mxu0 0
    %452 = vmatpush1.bf16.msra.mxu0 0
    %453 = vmatprep.subr.bf16.mxu0 0
    %454 = vmatpush1.bf16.msra.mxu0 0
    %455 = vmatprep.subr.bf16.mxu0 0
    %456 = vmatpush1.bf16.msra.mxu0 0
    %457 = vmatprep.subr.bf16.mxu0 0
    %458 = vmatpush1.bf16.msra.mxu0 0
    %459 = vmatprep.subr.bf16.mxu0 0
    %460 = vmatpush1.bf16.msra.mxu0 0
    %461 = vmatprep.mubr.bf16.mxu0 0
    %462 = vmatmul.mubr.bf16.gmra.mrb[0].mxu0 %v173
    %v463 = vpop.f32.mrb[0].mxu0
    %v464 = vadd.f32 %v219, %v463
    %v465 = vpop.f32.mrb[0].mxu0
    %v466 = vadd.f32 %v223, %v465
    %v467 = vpop.f32.mrb[0].mxu0
    %v468 = vpop.f32.mrb[0].mxu0
    %469 = vdwg.mxu0
    %v470 = vld [vmem:[#allocation4] sm:$0xff]
    %v471 = vld [vmem:[#allocation4 + $0x8] sm:$0xff]
    %v472 = vld [vmem:[#allocation4 + $0x10] sm:$0xff]
    %v473 = vld [vmem:[#allocation4 + $0x18] sm:$0xff]
    %v474 = vld [vmem:[#allocation4 + $0x20] sm:$0xff]
    %v475 = vld [vmem:[#allocation4 + $0x28] sm:$0xff]
    %v476 = vld [vmem:[#allocation4 + $0x30] sm:$0xff]
    %v477 = vld [vmem:[#allocation4 + $0x38] sm:$0xff]
    %v478 = vld [vmem:[#allocation4 + $0x40] sm:$0xff]
    %v479 = vld [vmem:[#allocation4 + $0x48] sm:$0xff]
    %v480 = vld [vmem:[#allocation4 + $0x50] sm:$0xff]
    %v481 = vld [vmem:[#allocation4 + $0x58] sm:$0xff]
    %v482 = vld [vmem:[#allocation4 + $0x60] sm:$0xff]
    %v483 = vld [vmem:[#allocation4 + $0x68] sm:$0xff]
    %v484 = vld [vmem:[#allocation4 + $0x70] sm:$0xff]
    %v485 = vld [vmem:[#allocation4 + $0x78] sm:$0xff]
    %v486 = vld [vmem:[#allocation4 + $0x80] sm:$0xff]
    %v487 = vld [vmem:[#allocation4 + $0x88] sm:$0xff]
    %v488 = vld [vmem:[#allocation4 + $0x90] sm:$0xff]
    %v489 = vld [vmem:[#allocation4 + $0x98] sm:$0xff]
    %v490 = vld [vmem:[#allocation4 + $0xa0] sm:$0xff]
    %v491 = vld [vmem:[#allocation4 + $0xa8] sm:$0xff]
    %v492 = vld [vmem:[#allocation4 + $0xb0] sm:$0xff]
    %v493 = vld [vmem:[#allocation4 + $0xb8] sm:$0xff]
    %v494 = vld [vmem:[#allocation4 + $0xc0] sm:$0xff]
    %v495 = vld [vmem:[#allocation4 + $0xc8] sm:$0xff]
    %v496 = vld [vmem:[#allocation4 + $0xd0] sm:$0xff]
    %v497 = vld [vmem:[#allocation4 + $0xd8] sm:$0xff]
    %v498 = vld [vmem:[#allocation4 + $0xe0] sm:$0xff]
    %v499 = vld [vmem:[#allocation4 + $0xe8] sm:$0xff]
    %v500 = vld [vmem:[#allocation4 + $0xf0] sm:$0xff]
    %v501 = vld [vmem:[#allocation4 + $0xf8] sm:$0xff]
    %v534 = vunpack.c.l.b16 %v470
    %v535 = vunpack.c.h.b16 %v470
    %v536 = vunpack.c.l.b16 %v471
    %v537 = vunpack.c.h.b16 %v471
    %v538 = vunpack.c.l.b16 %v472
    %v539 = vunpack.c.h.b16 %v472
    %v540 = vunpack.c.l.b16 %v473
    %v541 = vunpack.c.h.b16 %v473
    %v542 = vunpack.c.l.b16 %v474
    %v543 = vunpack.c.h.b16 %v474
    %v544 = vunpack.c.l.b16 %v475
    %v545 = vunpack.c.h.b16 %v475
    %v546 = vunpack.c.l.b16 %v476
    %v547 = vunpack.c.h.b16 %v476
    %v548 = vunpack.c.l.b16 %v477
    %v549 = vunpack.c.h.b16 %v477
    %v550 = vunpack.c.l.b16 %v478
    %v551 = vunpack.c.h.b16 %v478
    %v552 = vunpack.c.l.b16 %v479
    %v553 = vunpack.c.h.b16 %v479
    %v554 = vunpack.c.l.b16 %v480
    %v555 = vunpack.c.h.b16 %v480
    %v556 = vunpack.c.l.b16 %v481
    %v557 = vunpack.c.h.b16 %v481
    %v558 = vunpack.c.l.b16 %v482
    %v559 = vunpack.c.h.b16 %v482
    %v560 = vunpack.c.l.b16 %v483
    %v561 = vunpack.c.h.b16 %v483
    %v562 = vunpack.c.l.b16 %v484
    %v563 = vunpack.c.h.b16 %v484
    %v564 = vunpack.c.l.b16 %v485
    %v565 = vunpack.c.h.b16 %v485
    %v566 = vunpack.c.l.b16 %v486
    %v567 = vunpack.c.h.b16 %v486
    %v568 = vunpack.c.l.b16 %v487
    %v569 = vunpack.c.h.b16 %v487
    %v570 = vunpack.c.l.b16 %v488
    %v571 = vunpack.c.h.b16 %v488
    %v572 = vunpack.c.l.b16 %v489
    %v573 = vunpack.c.h.b16 %v489
    %v574 = vunpack.c.l.b16 %v490
    %v575 = vunpack.c.h.b16 %v490
    %v576 = vunpack.c.l.b16 %v491
    %v577 = vunpack.c.h.b16 %v491
    %v578 = vunpack.c.l.b16 %v492
    %v579 = vunpack.c.h.b16 %v492
    %v580 = vunpack.c.l.b16 %v493
    %v581 = vunpack.c.h.b16 %v493
    %v582 = vunpack.c.l.b16 %v494
    %v583 = vunpack.c.h.b16 %v494
    %v584 = vunpack.c.l.b16 %v495
    %v585 = vunpack.c.h.b16 %v495
    %v586 = vunpack.c.l.b16 %v496
    %v587 = vunpack.c.h.b16 %v496
    %v588 = vunpack.c.l.b16 %v497
    %v589 = vunpack.c.h.b16 %v497
    %v590 = vunpack.c.l.b16 %v498
    %v591 = vunpack.c.h.b16 %v498
    %v592 = vunpack.c.l.b16 %v499
    %v593 = vunpack.c.h.b16 %v499
    %v594 = vunpack.c.l.b16 %v500
    %v595 = vunpack.c.h.b16 %v500
    %v596 = vunpack.c.l.b16 %v501
    %v597 = vunpack.c.h.b16 %v501
    %v598 = vpack.c.b16 %v538, %v534
    %v599 = vpack.c.b16 %v539, %v535
    %v600 = vpack.c.b16 %v540, %v536
    %v601 = vpack.c.b16 %v541, %v537
    %v602 = vpack.c.b16 %v546, %v542
    %v603 = vpack.c.b16 %v547, %v543
    %v604 = vpack.c.b16 %v548, %v544
    %v605 = vpack.c.b16 %v549, %v545
    %v606 = vpack.c.b16 %v554, %v550
    %v607 = vpack.c.b16 %v555, %v551
    %v608 = vpack.c.b16 %v556, %v552
    %v609 = vpack.c.b16 %v557, %v553
    %v610 = vpack.c.b16 %v562, %v558
    %v611 = vpack.c.b16 %v563, %v559
    %v612 = vpack.c.b16 %v564, %v560
    %v613 = vpack.c.b16 %v565, %v561
    %v614 = vpack.c.b16 %v570, %v566
    %v615 = vpack.c.b16 %v571, %v567
    %v616 = vpack.c.b16 %v572, %v568
    %v617 = vpack.c.b16 %v573, %v569
    %v618 = vpack.c.b16 %v578, %v574
    %v619 = vpack.c.b16 %v579, %v575
    %v620 = vpack.c.b16 %v580, %v576
    %v621 = vpack.c.b16 %v581, %v577
    %v622 = vpack.c.b16 %v586, %v582
    %v623 = vpack.c.b16 %v587, %v583
    %v624 = vpack.c.b16 %v588, %v584
    %v625 = vpack.c.b16 %v589, %v585
    %v626 = vpack.c.b16 %v594, %v590
    %v627 = vpack.c.b16 %v595, %v591
    %v628 = vpack.c.b16 %v596, %v592
    %v629 = vpack.c.b16 %v597, %v593
    %662 = vmatprep.subr.bf16.mxu0 %v599
    %663 = vmatpush1.bf16.msra.mxu0 %v598
    %664 = vmatprep.subr.bf16.mxu0 %v603
    %665 = vmatpush1.bf16.msra.mxu0 %v602
    %666 = vmatprep.subr.bf16.mxu0 %v607
    %667 = vmatpush1.bf16.msra.mxu0 %v606
    %668 = vmatprep.subr.bf16.mxu0 %v611
    %669 = vmatpush1.bf16.msra.mxu0 %v610
    %670 = vmatprep.subr.bf16.mxu0 %v615
    %671 = vmatpush1.bf16.msra.mxu0 %v614
    %672 = vmatprep.subr.bf16.mxu0 %v619
    %673 = vmatpush1.bf16.msra.mxu0 %v618
    %674 = vmatprep.subr.bf16.mxu0 %v623
    %675 = vmatpush1.bf16.msra.mxu0 %v622
    %676 = vmatprep.subr.bf16.mxu0 %v627
    %677 = vmatpush1.bf16.msra.mxu0 %v626
    %678 = vmatprep.subr.bf16.mxu0 0
    %679 = vmatpush1.bf16.msra.mxu0 0
    %680 = vmatprep.subr.bf16.mxu0 0
    %681 = vmatpush1.bf16.msra.mxu0 0
    %682 = vmatprep.subr.bf16.mxu0 0
    %683 = vmatpush1.bf16.msra.mxu0 0
    %684 = vmatprep.subr.bf16.mxu0 0
    %685 = vmatpush1.bf16.msra.mxu0 0
    %686 = vmatprep.subr.bf16.mxu0 0
    %687 = vmatpush1.bf16.msra.mxu0 0
    %688 = vmatprep.subr.bf16.mxu0 0
    %689 = vmatpush1.bf16.msra.mxu0 0
    %690 = vmatprep.subr.bf16.mxu0 0
    %691 = vmatpush1.bf16.msra.mxu0 0
    %692 = vmatprep.subr.bf16.mxu0 0
    %693 = vmatpush1.bf16.msra.mxu0 0
    %694 = vmatprep.mubr.bf16.mxu0 0
    %695 = vmatmul.mubr.bf16.gmra.mrb[0].mxu0 0
    %v696 = vpop.f32.mrb[0].mxu0
    %v697 = vadd.f32 0.0, %v696
    %v698 = vpop.f32.mrb[0].mxu0
    %v699 = vadd.f32 0.0, %v698
    %v700 = vpop.f32.mrb[0].mxu0
    %v701 = vpop.f32.mrb[0].mxu0
    %702 = vdwg.mxu0
    %703 = vmatprep.subr.bf16.mxu0 %v601
    %704 = vmatpush1.bf16.msra.mxu0 %v600
    %705 = vmatprep.subr.bf16.mxu0 %v605
    %706 = vmatpush1.bf16.msra.mxu0 %v604
    %707 = vmatprep.subr.bf16.mxu0 %v609
    %708 = vmatpush1.bf16.msra.mxu0 %v608
    %709 = vmatprep.subr.bf16.mxu0 %v613
    %710 = vmatpush1.bf16.msra.mxu0 %v612
    %711 = vmatprep.subr.bf16.mxu0 %v617
    %712 = vmatpush1.bf16.msra.mxu0 %v616
    %713 = vmatprep.subr.bf16.mxu0 %v621
    %714 = vmatpush1.bf16.msra.mxu0 %v620
    %715 = vmatprep.subr.bf16.mxu0 %v625
    %716 = vmatpush1.bf16.msra.mxu0 %v624
    %717 = vmatprep.subr.bf16.mxu0 %v629
    %718 = vmatpush1.bf16.msra.mxu0 %v628
    %719 = vmatprep.subr.bf16.mxu0 0
    %720 = vmatpush1.bf16.msra.mxu0 0
    %721 = vmatprep.subr.bf16.mxu0 0
    %722 = vmatpush1.bf16.msra.mxu0 0
    %723 = vmatprep.subr.bf16.mxu0 0
    %724 = vmatpush1.bf16.msra.mxu0 0
    %725 = vmatprep.subr.bf16.mxu0 0
    %726 = vmatpush1.bf16.msra.mxu0 0
    %727 = vmatprep.subr.bf16.mxu0 0
    %728 = vmatpush1.bf16.msra.mxu0 0
    %729 = vmatprep.subr.bf16.mxu0 0
    %730 = vmatpush1.bf16.msra.mxu0 0
    %731 = vmatprep.subr.bf16.mxu0 0
    %732 = vmatpush1.bf16.msra.mxu0 0
    %733 = vmatprep.subr.bf16.mxu0 0
    %734 = vmatpush1.bf16.msra.mxu0 0
    %735 = vmatprep.mubr.bf16.mxu0 0
    %736 = vmatmul.mubr.bf16.gmra.mrb[0].mxu0 0
    %v737 = vpop.f32.mrb[0].mxu0
    %v738 = vadd.f32 0.0, %v737
    %v739 = vpop.f32.mrb[0].mxu0
    %v740 = vadd.f32 0.0, %v739
    %v741 = vpop.f32.mrb[0].mxu0
    %v742 = vpop.f32.mrb[0].mxu0
    %743 = vdwg.mxu0
    %v744 = vadd.f32 %v423, %v697
    %v745 = vadd.f32 %v425, %v699
    %v746 = vadd.f32 %v464, %v738
    %v747 = vadd.f32 %v466, %v740
    %v748 = vxor.u32 %v744, 2147483648
    %v749 = vxor.u32 %v745, 2147483648
    %v750 = vxor.u32 %v746, 2147483648
    %v751 = vmul.f32 %v748, 1.442695
    %v752 = vpow.pop %v751
    %v753 = vmul.f32 %v749, 1.442695
    %v754 = vpow.pop %v753
    %v755 = vmul.f32 %v750, 1.442695
    %v756 = vpow.pop %v755
    %v757 = vadd.f32 %v752, 1.0
    %v758 = vadd.f32 %v754, 1.0
    %v759 = vadd.f32 %v756, 1.0
    %v760 = vrcp.pop %v757
    %v761 = vmul.f32 1.0, %v760
    %v762 = vrcp.pop %v758
    %v763 = vmul.f32 1.0, %v762
    %v764 = vrcp.pop %v759
    %v765 = vmul.f32 1.0, %v764
    %v766 = vtanh.pop %v747
    %v767 = vmul.f32 %v763, 0.0
    %v768 = vmul.f32 %v761, %v766
    %v769 = vadd.f32 %v767, %v768
    %v770 = vtanh.pop %v769
    %v771 = vmul.f32 %v765, %v770
    %v772 = vpack.c.bf16 %v771, %v771
    %v773 = vld [vmem:[#allocation6] sm:$0xff]
    %v774 = vld [vmem:[#allocation6 + $0x8] sm:$0xff]
    %v775 = vld [vmem:[#allocation6 + $0x10] sm:$0xff]
    %v776 = vld [vmem:[#allocation6 + $0x18] sm:$0xff]
    %v777 = vld [vmem:[#allocation6 + $0x20] sm:$0xff]
    %v778 = vld [vmem:[#allocation6 + $0x28] sm:$0xff]
    %v779 = vld [vmem:[#allocation6 + $0x30] sm:$0xff]
    %v780 = vld [vmem:[#allocation6 + $0x38] sm:$0xff]
    %v781 = vld [vmem:[#allocation6 + $0x40] sm:$0xff]
    %v782 = vld [vmem:[#allocation6 + $0x48] sm:$0xff]
    %v783 = vld [vmem:[#allocation6 + $0x50] sm:$0xff]
    %v784 = vld [vmem:[#allocation6 + $0x58] sm:$0xff]
    %v785 = vld [vmem:[#allocation6 + $0x60] sm:$0xff]
    %v786 = vld [vmem:[#allocation6 + $0x68] sm:$0xff]
    %v787 = vld [vmem:[#allocation6 + $0x70] sm:$0xff]
    %v788 = vld [vmem:[#allocation6 + $0x78] sm:$0xff]
    %v789 = vld [vmem:[#allocation6 + $0x80] sm:$0xff]
    %v790 = vld [vmem:[#allocation6 + $0x88] sm:$0xff]
    %v791 = vld [vmem:[#allocation6 + $0x90] sm:$0xff]
    %v792 = vld [vmem:[#allocation6 + $0x98] sm:$0xff]
    %v793 = vld [vmem:[#allocation6 + $0xa0] sm:$0xff]
    %v794 = vld [vmem:[#allocation6 + $0xa8] sm:$0xff]
    %v795 = vld [vmem:[#allocation6 + $0xb0] sm:$0xff]
    %v796 = vld [vmem:[#allocation6 + $0xb8] sm:$0xff]
    %v797 = vld [vmem:[#allocation6 + $0xc0] sm:$0xff]
    %v798 = vld [vmem:[#allocation6 + $0xc8] sm:$0xff]
    %v799 = vld [vmem:[#allocation6 + $0xd0] sm:$0xff]
    %v800 = vld [vmem:[#allocation6 + $0xd8] sm:$0xff]
    %v801 = vld [vmem:[#allocation6 + $0xe0] sm:$0xff]
    %v802 = vld [vmem:[#allocation6 + $0xe8] sm:$0xff]
    %v803 = vld [vmem:[#allocation6 + $0xf0] sm:$0xff]
    %v804 = vld [vmem:[#allocation6 + $0xf8] sm:$0xff]
    %v805 = vld [vmem:[#allocation7] sm:$0xff]
    %v806 = vld [vmem:[#allocation7 + $0x8] sm:$0xff]
    %v807 = vld [vmem:[#allocation7 + $0x10] sm:$0xff]
    %v808 = vld [vmem:[#allocation7 + $0x18] sm:$0xff]
    %v809 = vld [vmem:[#allocation7 + $0x20] sm:$0xff]
    %v810 = vld [vmem:[#allocation7 + $0x28] sm:$0xff]
    %v811 = vld [vmem:[#allocation7 + $0x30] sm:$0xff]
    %v812 = vld [vmem:[#allocation7 + $0x38] sm:$0xff]
    %v813 = vld [vmem:[#allocation7 + $0x40] sm:$0xff]
    %v814 = vld [vmem:[#allocation7 + $0x48] sm:$0xff]
    %v815 = vld [vmem:[#allocation7 + $0x50] sm:$0xff]
    %v816 = vld [vmem:[#allocation7 + $0x58] sm:$0xff]
    %v817 = vld [vmem:[#allocation7 + $0x60] sm:$0xff]
    %v818 = vld [vmem:[#allocation7 + $0x68] sm:$0xff]
    %v819 = vld [vmem:[#allocation7 + $0x70] sm:$0xff]
    %v820 = vld [vmem:[#allocation7 + $0x78] sm:$0xff]
    %v821 = vld [vmem:[#allocation7 + $0x80] sm:$0xff]
    %v822 = vld [vmem:[#allocation7 + $0x88] sm:$0xff]
    %v823 = vld [vmem:[#allocation7 + $0x90] sm:$0xff]
    %v824 = vld [vmem:[#allocation7 + $0x98] sm:$0xff]
    %v825 = vld [vmem:[#allocation7 + $0xa0] sm:$0xff]
    %v826 = vld [vmem:[#allocation7 + $0xa8] sm:$0xff]
    %v827 = vld [vmem:[#allocation7 + $0xb0] sm:$0xff]
    %v828 = vld [vmem:[#allocation7 + $0xb8] sm:$0xff]
    %v829 = vld [vmem:[#allocation7 + $0xc0] sm:$0xff]
    %v830 = vld [vmem:[#allocation7 + $0xc8] sm:$0xff]
    %v831 = vld [vmem:[#allocation7 + $0xd0] sm:$0xff]
    %v832 = vld [vmem:[#allocation7 + $0xd8] sm:$0xff]
    %v833 = vld [vmem:[#allocation7 + $0xe0] sm:$0xff]
    %v834 = vld [vmem:[#allocation7 + $0xe8] sm:$0xff]
    %v835 = vld [vmem:[#allocation7 + $0xf0] sm:$0xff]
    %v836 = vld [vmem:[#allocation7 + $0xf8] sm:$0xff]
    %v869 = vunpack.c.l.b16 %v805
    %v870 = vunpack.c.h.b16 %v805
    %v871 = vunpack.c.l.b16 %v806
    %v872 = vunpack.c.h.b16 %v806
    %v873 = vunpack.c.l.b16 %v807
    %v874 = vunpack.c.h.b16 %v807
    %v875 = vunpack.c.l.b16 %v808
    %v876 = vunpack.c.h.b16 %v808
    %v877 = vunpack.c.l.b16 %v809
    %v878 = vunpack.c.h.b16 %v809
    %v879 = vunpack.c.l.b16 %v810
    %v880 = vunpack.c.h.b16 %v810
    %v881 = vunpack.c.l.b16 %v811
    %v882 = vunpack.c.h.b16 %v811
    %v883 = vunpack.c.l.b16 %v812
    %v884 = vunpack.c.h.b16 %v812
    %v885 = vunpack.c.l.b16 %v813
    %v886 = vunpack.c.h.b16 %v813
    %v887 = vunpack.c.l.b16 %v814
    %v888 = vunpack.c.h.b16 %v814
    %v889 = vunpack.c.l.b16 %v815
    %v890 = vunpack.c.h.b16 %v815
    %v891 = vunpack.c.l.b16 %v816
    %v892 = vunpack.c.h.b16 %v816
    %v893 = vunpack.c.l.b16 %v817
    %v894 = vunpack.c.h.b16 %v817
    %v895 = vunpack.c.l.b16 %v818
    %v896 = vunpack.c.h.b16 %v818
    %v897 = vunpack.c.l.b16 %v819
    %v898 = vunpack.c.h.b16 %v819
    %v899 = vunpack.c.l.b16 %v820
    %v900 = vunpack.c.h.b16 %v820
    %v901 = vunpack.c.l.b16 %v821
    %v902 = vunpack.c.h.b16 %v821
    %v903 = vunpack.c.l.b16 %v822
    %v904 = vunpack.c.h.b16 %v822
    %v905 = vunpack.c.l.b16 %v823
    %v906 = vunpack.c.h.b16 %v823
    %v907 = vunpack.c.l.b16 %v824
    %v908 = vunpack.c.h.b16 %v824
    %v909 = vunpack.c.l.b16 %v825
    %v910 = vunpack.c.h.b16 %v825
    %v911 = vunpack.c.l.b16 %v826
    %v912 = vunpack.c.h.b16 %v826
    %v913 = vunpack.c.l.b16 %v827
    %v914 = vunpack.c.h.b16 %v827
    %v915 = vunpack.c.l.b16 %v828
    %v916 = vunpack.c.h.b16 %v828
    %v917 = vunpack.c.l.b16 %v829
    %v918 = vunpack.c.h.b16 %v829
    %v919 = vunpack.c.l.b16 %v830
    %v920 = vunpack.c.h.b16 %v830
    %v921 = vunpack.c.l.b16 %v831
    %v922 = vunpack.c.h.b16 %v831
    %v923 = vunpack.c.l.b16 %v832
    %v924 = vunpack.c.h.b16 %v832
    %v925 = vunpack.c.l.b16 %v833
    %v926 = vunpack.c.h.b16 %v833
    %v927 = vunpack.c.l.b16 %v834
    %v928 = vunpack.c.h.b16 %v834
    %v929 = vunpack.c.l.b16 %v835
    %v930 = vunpack.c.h.b16 %v835
    %v931 = vunpack.c.l.b16 %v836
    %v932 = vunpack.c.h.b16 %v836
    %v933 = vpack.c.b16 %v873, %v869
    %v934 = vpack.c.b16 %v874, %v870
    %v935 = vpack.c.b16 %v875, %v871
    %v936 = vpack.c.b16 %v876, %v872
    %v937 = vpack.c.b16 %v881, %v877
    %v938 = vpack.c.b16 %v882, %v878
    %v939 = vpack.c.b16 %v883, %v879
    %v940 = vpack.c.b16 %v884, %v880
    %v941 = vpack.c.b16 %v889, %v885
    %v942 = vpack.c.b16 %v890, %v886
    %v943 = vpack.c.b16 %v891, %v887
    %v944 = vpack.c.b16 %v892, %v888
    %v945 = vpack.c.b16 %v897, %v893
    %v946 = vpack.c.b16 %v898, %v894
    %v947 = vpack.c.b16 %v899, %v895
    %v948 = vpack.c.b16 %v900, %v896
    %v949 = vpack.c.b16 %v905, %v901
    %v950 = vpack.c.b16 %v906, %v902
    %v951 = vpack.c.b16 %v907, %v903
    %v952 = vpack.c.b16 %v908, %v904
    %v953 = vpack.c.b16 %v913, %v909
    %v954 = vpack.c.b16 %v914, %v910
    %v955 = vpack.c.b16 %v915, %v911
    %v956 = vpack.c.b16 %v916, %v912
    %v957 = vpack.c.b16 %v921, %v917
    %v958 = vpack.c.b16 %v922, %v918
    %v959 = vpack.c.b16 %v923, %v919
    %v960 = vpack.c.b16 %v924, %v920
    %v961 = vpack.c.b16 %v929, %v925
    %v962 = vpack.c.b16 %v930, %v926
    %v963 = vpack.c.b16 %v931, %v927
    %v964 = vpack.c.b16 %v932, %v928
    %997 = vmatprep.subr.bf16.mxu0 %v934
    %998 = vmatpush1.bf16.msra.mxu0 %v933
    %999 = vmatprep.subr.bf16.mxu0 %v938
    %1000 = vmatpush1.bf16.msra.mxu0 %v937
    %1001 = vmatprep.subr.bf16.mxu0 %v942
    %1002 = vmatpush1.bf16.msra.mxu0 %v941
    %1003 = vmatprep.subr.bf16.mxu0 %v946
    %1004 = vmatpush1.bf16.msra.mxu0 %v945
    %1005 = vmatprep.subr.bf16.mxu0 %v950
    %1006 = vmatpush1.bf16.msra.mxu0 %v949
    %1007 = vmatprep.subr.bf16.mxu0 %v954
    %1008 = vmatpush1.bf16.msra.mxu0 %v953
    %1009 = vmatprep.subr.bf16.mxu0 %v958
    %1010 = vmatpush1.bf16.msra.mxu0 %v957
    %1011 = vmatprep.subr.bf16.mxu0 %v962
    %1012 = vmatpush1.bf16.msra.mxu0 %v961
    %1013 = vmatprep.subr.bf16.mxu0 0
    %1014 = vmatpush1.bf16.msra.mxu0 0
    %1015 = vmatprep.subr.bf16.mxu0 0
    %1016 = vmatpush1.bf16.msra.mxu0 0
    %1017 = vmatprep.subr.bf16.mxu0 0
    %1018 = vmatpush1.bf16.msra.mxu0 0
    %1019 = vmatprep.subr.bf16.mxu0 0
    %1020 = vmatpush1.bf16.msra.mxu0 0
    %1021 = vmatprep.subr.bf16.mxu0 0
    %1022 = vmatpush1.bf16.msra.mxu0 0
    %1023 = vmatprep.subr.bf16.mxu0 0
    %1024 = vmatpush1.bf16.msra.mxu0 0
    %1025 = vmatprep.subr.bf16.mxu0 0
    %1026 = vmatpush1.bf16.msra.mxu0 0
    %1027 = vmatprep.subr.bf16.mxu0 0
    %1028 = vmatpush1.bf16.msra.mxu0 0
    %1029 = vmatprep.mubr.bf16.mxu0 0
    %1030 = vmatmul.mubr.bf16.gmra.mrb[0].mxu0 0
    %v1031 = vpop.f32.mrb[0].mxu0
    %v1032 = vadd.f32 0.0, %v1031
    %v1033 = vpop.f32.mrb[0].mxu0
    %v1034 = vadd.f32 0.0, %v1033
    %v1035 = vpop.f32.mrb[0].mxu0
    %v1036 = vpop.f32.mrb[0].mxu0
    %1037 = vdwg.mxu0
    %1038 = vmatprep.subr.bf16.mxu0 %v936
    %1039 = vmatpush1.bf16.msra.mxu0 %v935
    %1040 = vmatprep.subr.bf16.mxu0 %v940
    %1041 = vmatpush1.bf16.msra.mxu0 %v939
    %1042 = vmatprep.subr.bf16.mxu0 %v944
    %1043 = vmatpush1.bf16.msra.mxu0 %v943
    %1044 = vmatprep.subr.bf16.mxu0 %v948
    %1045 = vmatpush1.bf16.msra.mxu0 %v947
    %1046 = vmatprep.subr.bf16.mxu0 %v952
    %1047 = vmatpush1.bf16.msra.mxu0 %v951
    %1048 = vmatprep.subr.bf16.mxu0 %v956
    %1049 = vmatpush1.bf16.msra.mxu0 %v955
    %1050 = vmatprep.subr.bf16.mxu0 %v960
    %1051 = vmatpush1.bf16.msra.mxu0 %v959
    %1052 = vmatprep.subr.bf16.mxu0 %v964
    %1053 = vmatpush1.bf16.msra.mxu0 %v963
    %1054 = vmatprep.subr.bf16.mxu0 0
    %1055 = vmatpush1.bf16.msra.mxu0 0
    %1056 = vmatprep.subr.bf16.mxu0 0
    %1057 = vmatpush1.bf16.msra.mxu0 0
    %1058 = vmatprep.subr.bf16.mxu0 0
    %1059 = vmatpush1.bf16.msra.mxu0 0
    %1060 = vmatprep.subr.bf16.mxu0 0
    %1061 = vmatpush1.bf16.msra.mxu0 0
    %1062 = vmatprep.subr.bf16.mxu0 0
    %1063 = vmatpush1.bf16.msra.mxu0 0
    %1064 = vmatprep.subr.bf16.mxu0 0
    %1065 = vmatpush1.bf16.msra.mxu0 0
    %1066 = vmatprep.subr.bf16.mxu0 0
    %1067 = vmatpush1.bf16.msra.mxu0 0
    %1068 = vmatprep.subr.bf16.mxu0 0
    %1069 = vmatpush1.bf16.msra.mxu0 0
    %1070 = vmatprep.mubr.bf16.mxu0 0
    %1071 = vmatmul.mubr.bf16.gmra.mrb[0].mxu0 0
    %v1072 = vpop.f32.mrb[0].mxu0
    %v1073 = vadd.f32 0.0, %v1072
    %v1074 = vpop.f32.mrb[0].mxu0
    %v1075 = vadd.f32 0.0, %v1074
    %v1076 = vpop.f32.mrb[0].mxu0
    %v1077 = vpop.f32.mrb[0].mxu0
    %1078 = vdwg.mxu0
    %v1111 = vunpack.c.l.b16 %v773
    %v1112 = vunpack.c.h.b16 %v773
    %v1113 = vunpack.c.l.b16 %v774
    %v1114 = vunpack.c.h.b16 %v774
    %v1115 = vunpack.c.l.b16 %v775
    %v1116 = vunpack.c.h.b16 %v775
    %v1117 = vunpack.c.l.b16 %v776
    %v1118 = vunpack.c.h.b16 %v776
    %v1119 = vunpack.c.l.b16 %v777
    %v1120 = vunpack.c.h.b16 %v777
    %v1121 = vunpack.c.l.b16 %v778
    %v1122 = vunpack.c.h.b16 %v778
    %v1123 = vunpack.c.l.b16 %v779
    %v1124 = vunpack.c.h.b16 %v779
    %v1125 = vunpack.c.l.b16 %v780
    %v1126 = vunpack.c.h.b16 %v780
    %v1127 = vunpack.c.l.b16 %v781
    %v1128 = vunpack.c.h.b16 %v781
    %v1129 = vunpack.c.l.b16 %v782
    %v1130 = vunpack.c.h.b16 %v782
    %v1131 = vunpack.c.l.b16 %v783
    %v1132 = vunpack.c.h.b16 %v783
    %v1133 = vunpack.c.l.b16 %v784
    %v1134 = vunpack.c.h.b16 %v784
    %v1135 = vunpack.c.l.b16 %v785
    %v1136 = vunpack.c.h.b16 %v785
    %v1137 = vunpack.c.l.b16 %v786
    %v1138 = vunpack.c.h.b16 %v786
    %v1139 = vunpack.c.l.b16 %v787
    %v1140 = vunpack.c.h.b16 %v787
    %v1141 = vunpack.c.l.b16 %v788
    %v1142 = vunpack.c.h.b16 %v788
    %v1143 = vunpack.c.l.b16 %v789
    %v1144 = vunpack.c.h.b16 %v789
    %v1145 = vunpack.c.l.b16 %v790
    %v1146 = vunpack.c.h.b16 %v790
    %v1147 = vunpack.c.l.b16 %v791
    %v1148 = vunpack.c.h.b16 %v791
    %v1149 = vunpack.c.l.b16 %v792
    %v1150 = vunpack.c.h.b16 %v792
    %v1151 = vunpack.c.l.b16 %v793
    %v1152 = vunpack.c.h.b16 %v793
    %v1153 = vunpack.c.l.b16 %v794
    %v1154 = vunpack.c.h.b16 %v794
    %v1155 = vunpack.c.l.b16 %v795
    %v1156 = vunpack.c.h.b16 %v795
    %v1157 = vunpack.c.l.b16 %v796
    %v1158 = vunpack.c.h.b16 %v796
    %v1159 = vunpack.c.l.b16 %v797
    %v1160 = vunpack.c.h.b16 %v797
    %v1161 = vunpack.c.l.b16 %v798
    %v1162 = vunpack.c.h.b16 %v798
    %v1163 = vunpack.c.l.b16 %v799
    %v1164 = vunpack.c.h.b16 %v799
    %v1165 = vunpack.c.l.b16 %v800
    %v1166 = vunpack.c.h.b16 %v800
    %v1167 = vunpack.c.l.b16 %v801
    %v1168 = vunpack.c.h.b16 %v801
    %v1169 = vunpack.c.l.b16 %v802
    %v1170 = vunpack.c.h.b16 %v802
    %v1171 = vunpack.c.l.b16 %v803
    %v1172 = vunpack.c.h.b16 %v803
    %v1173 = vunpack.c.l.b16 %v804
    %v1174 = vunpack.c.h.b16 %v804
    %v1175 = vpack.c.b16 %v1115, %v1111
    %v1176 = vpack.c.b16 %v1116, %v1112
    %v1177 = vpack.c.b16 %v1117, %v1113
    %v1178 = vpack.c.b16 %v1118, %v1114
    %v1179 = vpack.c.b16 %v1123, %v1119
    %v1180 = vpack.c.b16 %v1124, %v1120
    %v1181 = vpack.c.b16 %v1125, %v1121
    %v1182 = vpack.c.b16 %v1126, %v1122
    %v1183 = vpack.c.b16 %v1131, %v1127
    %v1184 = vpack.c.b16 %v1132, %v1128
    %v1185 = vpack.c.b16 %v1133, %v1129
    %v1186 = vpack.c.b16 %v1134, %v1130
    %v1187 = vpack.c.b16 %v1139, %v1135
    %v1188 = vpack.c.b16 %v1140, %v1136
    %v1189 = vpack.c.b16 %v1141, %v1137
    %v1190 = vpack.c.b16 %v1142, %v1138
    %v1191 = vpack.c.b16 %v1147, %v1143
    %v1192 = vpack.c.b16 %v1148, %v1144
    %v1193 = vpack.c.b16 %v1149, %v1145
    %v1194 = vpack.c.b16 %v1150, %v1146
    %v1195 = vpack.c.b16 %v1155, %v1151
    %v1196 = vpack.c.b16 %v1156, %v1152
    %v1197 = vpack.c.b16 %v1157, %v1153
    %v1198 = vpack.c.b16 %v1158, %v1154
    %v1199 = vpack.c.b16 %v1163, %v1159
    %v1200 = vpack.c.b16 %v1164, %v1160
    %v1201 = vpack.c.b16 %v1165, %v1161
    %v1202 = vpack.c.b16 %v1166, %v1162
    %v1203 = vpack.c.b16 %v1171, %v1167
    %v1204 = vpack.c.b16 %v1172, %v1168
    %v1205 = vpack.c.b16 %v1173, %v1169
    %v1206 = vpack.c.b16 %v1174, %v1170
    %1239 = vmatprep.subr.bf16.mxu0 %v1176
    %1240 = vmatpush1.bf16.msra.mxu0 %v1175
    %1241 = vmatprep.subr.bf16.mxu0 %v1180
    %1242 = vmatpush1.bf16.msra.mxu0 %v1179
    %1243 = vmatprep.subr.bf16.mxu0 %v1184
    %1244 = vmatpush1.bf16.msra.mxu0 %v1183
    %1245 = vmatprep.subr.bf16.mxu0 %v1188
    %1246 = vmatpush1.bf16.msra.mxu0 %v1187
    %1247 = vmatprep.subr.bf16.mxu0 %v1192
    %1248 = vmatpush1.bf16.msra.mxu0 %v1191
    %1249 = vmatprep.subr.bf16.mxu0 %v1196
    %1250 = vmatpush1.bf16.msra.mxu0 %v1195
    %1251 = vmatprep.subr.bf16.mxu0 %v1200
    %1252 = vmatpush1.bf16.msra.mxu0 %v1199
    %1253 = vmatprep.subr.bf16.mxu0 %v1204
    %1254 = vmatpush1.bf16.msra.mxu0 %v1203
    %1255 = vmatprep.subr.bf16.mxu0 0
    %1256 = vmatpush1.bf16.msra.mxu0 0
    %1257 = vmatprep.subr.bf16.mxu0 0
    %1258 = vmatpush1.bf16.msra.mxu0 0
    %1259 = vmatprep.subr.bf16.mxu0 0
    %1260 = vmatpush1.bf16.msra.mxu0 0
    %1261 = vmatprep.subr.bf16.mxu0 0
    %1262 = vmatpush1.bf16.msra.mxu0 0
    %1263 = vmatprep.subr.bf16.mxu0 0
    %1264 = vmatpush1.bf16.msra.mxu0 0
    %1265 = vmatprep.subr.bf16.mxu0 0
    %1266 = vmatpush1.bf16.msra.mxu0 0
    %1267 = vmatprep.subr.bf16.mxu0 0
    %1268 = vmatpush1.bf16.msra.mxu0 0
    %1269 = vmatprep.subr.bf16.mxu0 0
    %1270 = vmatpush1.bf16.msra.mxu0 0
    %1271 = vmatprep.mubr.bf16.mxu0 0
    %1272 = vmatmul.mubr.bf16.gmra.mrb[0].mxu0 %v772
    %v1273 = vpop.f32.mrb[0].mxu0
    %v1274 = vadd.f32 %v1032, %v1273
    %v1275 = vpop.f32.mrb[0].mxu0
    %v1276 = vadd.f32 %v1034, %v1275
    %v1277 = vpop.f32.mrb[0].mxu0
    %v1278 = vpop.f32.mrb[0].mxu0
    %1279 = vdwg.mxu0
    %1280 = vmatprep.subr.bf16.mxu0 %v1178
    %1281 = vmatpush1.bf16.msra.mxu0 %v1177
    %1282 = vmatprep.subr.bf16.mxu0 %v1182
    %1283 = vmatpush1.bf16.msra.mxu0 %v1181
    %1284 = vmatprep.subr.bf16.mxu0 %v1186
    %1285 = vmatpush1.bf16.msra.mxu0 %v1185
    %1286 = vmatprep.subr.bf16.mxu0 %v1190
    %1287 = vmatpush1.bf16.msra.mxu0 %v1189
    %1288 = vmatprep.subr.bf16.mxu0 %v1194
    %1289 = vmatpush1.bf16.msra.mxu0 %v1193
    %1290 = vmatprep.subr.bf16.mxu0 %v1198
    %1291 = vmatpush1.bf16.msra.mxu0 %v1197
    %1292 = vmatprep.subr.bf16.mxu0 %v1202
    %1293 = vmatpush1.bf16.msra.mxu0 %v1201
    %1294 = vmatprep.subr.bf16.mxu0 %v1206
    %1295 = vmatpush1.bf16.msra.mxu0 %v1205
    %1296 = vmatprep.subr.bf16.mxu0 0
    %1297 = vmatpush1.bf16.msra.mxu0 0
    %1298 = vmatprep.subr.bf16.mxu0 0
    %1299 = vmatpush1.bf16.msra.mxu0 0
    %1300 = vmatprep.subr.bf16.mxu0 0
    %1301 = vmatpush1.bf16.msra.mxu0 0
    %1302 = vmatprep.subr.bf16.mxu0 0
    %1303 = vmatpush1.bf16.msra.mxu0 0
    %1304 = vmatprep.subr.bf16.mxu0 0
    %1305 = vmatpush1.bf16.msra.mxu0 0
    %1306 = vmatprep.subr.bf16.mxu0 0
    %1307 = vmatpush1.bf16.msra.mxu0 0
    %1308 = vmatprep.subr.bf16.mxu0 0
    %1309 = vmatpush1.bf16.msra.mxu0 0
    %1310 = vmatprep.subr.bf16.mxu0 0
    %1311 = vmatpush1.bf16.msra.mxu0 0
    %1312 = vmatprep.mubr.bf16.mxu0 0
    %1313 = vmatmul.mubr.bf16.gmra.mrb[0].mxu0 %v772
    %v1314 = vpop.f32.mrb[0].mxu0
    %v1315 = vadd.f32 %v1073, %v1314
    %v1316 = vpop.f32.mrb[0].mxu0
    %v1317 = vadd.f32 %v1075, %v1316
    %v1318 = vpop.f32.mrb[0].mxu0
    %v1319 = vpop.f32.mrb[0].mxu0
    %1320 = vdwg.mxu0
    %v1321 = vld [vmem:[%s6] sm:$0xf]
    %v1323 = vlaneseq
    %v1324 = vshrl.u32 %v1323, 7
    %v1325 = vsub.s32 0, %v1324
    %v1326 = vrot.slane %v1321, %v1325
    %v1327 = vlaneseq
    %v1328 = vshrl.u32 %v1327, 7
    %v1329 = vsub.s32 1, %v1328
    %v1330 = vrot.slane %v1321, %v1329
    %v1331 = vlaneseq
    %v1332 = vshrl.u32 %v1331, 7
    %v1333 = vsub.s32 2, %v1332
    %v1334 = vrot.slane %v1321, %v1333
    %v1335 = vlaneseq
    %v1336 = vshrl.u32 %v1335, 7
    %v1337 = vsub.s32 3, %v1336
    %v1338 = vrot.slane %v1321, %v1337
    %v1343 = vadd.f32 %v1274, %v1326
    %v1344 = vadd.f32 %v1276, %v1330
    %v1345 = vadd.f32 %v1315, %v1334
    %v1346 = vadd.f32 %v1317, %v1338
    %v1347 = vxor.u32 %v1343, 2147483648
    %v1348 = vxor.u32 %v1344, 2147483648
    %v1349 = vxor.u32 %v1345, 2147483648
    %v1350 = vmul.f32 %v1347, 1.442695
    %v1351 = vpow.pop %v1350
    %v1352 = vmul.f32 %v1348, 1.442695
    %v1353 = vpow.pop %v1352
    %v1354 = vmul.f32 %v1349, 1.442695
    %v1355 = vpow.pop %v1354
    %v1356 = vadd.f32 %v1351, 1.0
    %v1357 = vadd.f32 %v1353, 1.0
    %v1358 = vadd.f32 %v1355, 1.0
    %v1359 = vrcp.pop %v1356
    %v1360 = vmul.f32 1.0, %v1359
    %v1361 = vrcp.pop %v1357
    %v1362 = vmul.f32 1.0, %v1361
    %v1363 = vrcp.pop %v1358
    %v1364 = vmul.f32 1.0, %v1363
    %v1365 = vtanh.pop %v1346
    %v1366 = vmul.f32 %v1362, 0.0
    %v1367 = vmul.f32 %v1360, %v1365
    %v1368 = vadd.f32 %v1366, %v1367
    %v1369 = vtanh.pop %v1368
    %v1370 = vmul.f32 %v1364, %v1369
    %1371 = vmatprep.subr.bf16.mxu0 %v599
    %1372 = vmatpush1.bf16.msra.mxu0 %v598
    %1373 = vmatprep.subr.bf16.mxu0 %v603
    %1374 = vmatpush1.bf16.msra.mxu0 %v602
    %1375 = vmatprep.subr.bf16.mxu0 %v607
    %1376 = vmatpush1.bf16.msra.mxu0 %v606
    %1377 = vmatprep.subr.bf16.mxu0 %v611
    %1378 = vmatpush1.bf16.msra.mxu0 %v610
    %1379 = vmatprep.subr.bf16.mxu0 %v615
    %1380 = vmatpush1.bf16.msra.mxu0 %v614
    %1381 = vmatprep.subr.bf16.mxu0 %v619
    %1382 = vmatpush1.bf16.msra.mxu0 %v618
    %1383 = vmatprep.subr.bf16.mxu0 %v623
    %1384 = vmatpush1.bf16.msra.mxu0 %v622
    %1385 = vmatprep.subr.bf16.mxu0 %v627
    %1386 = vmatpush1.bf16.msra.mxu0 %v626
    %1387 = vmatprep.subr.bf16.mxu0 0
    %1388 = vmatpush1.bf16.msra.mxu0 0
    %1389 = vmatprep.subr.bf16.mxu0 0
    %1390 = vmatpush1.bf16.msra.mxu0 0
    %1391 = vmatprep.subr.bf16.mxu0 0
    %1392 = vmatpush1.bf16.msra.mxu0 0
    %1393 = vmatprep.subr.bf16.mxu0 0
    %1394 = vmatpush1.bf16.msra.mxu0 0
    %1395 = vmatprep.subr.bf16.mxu0 0
    %1396 = vmatpush1.bf16.msra.mxu0 0
    %1397 = vmatprep.subr.bf16.mxu0 0
    %1398 = vmatpush1.bf16.msra.mxu0 0
    %1399 = vmatprep.subr.bf16.mxu0 0
    %1400 = vmatpush1.bf16.msra.mxu0 0
    %1401 = vmatprep.subr.bf16.mxu0 0
    %1402 = vmatpush1.bf16.msra.mxu0 0
    %1403 = vmatprep.mubr.bf16.mxu0 0
    %1404 = vmatmul.mubr.bf16.gmra.mrb[0].mxu0 %v772
    %v1405 = vpop.f32.mrb[0].mxu0
    %v1406 = vadd.f32 0.0, %v1405
    %v1407 = vpop.f32.mrb[0].mxu0
    %v1408 = vadd.f32 0.0, %v1407
    %v1409 = vpop.f32.mrb[0].mxu0
    %v1410 = vpop.f32.mrb[0].mxu0
    %1411 = vdwg.mxu0
    %1412 = vmatprep.subr.bf16.mxu0 %v601
    %1413 = vmatpush1.bf16.msra.mxu0 %v600
    %1414 = vmatprep.subr.bf16.mxu0 %v605
    %1415 = vmatpush1.bf16.msra.mxu0 %v604
    %1416 = vmatprep.subr.bf16.mxu0 %v609
    %1417 = vmatpush1.bf16.msra.mxu0 %v608
    %1418 = vmatprep.subr.bf16.mxu0 %v613
    %1419 = vmatpush1.bf16.msra.mxu0 %v612
    %1420 = vmatprep.subr.bf16.mxu0 %v617
    %1421 = vmatpush1.bf16.msra.mxu0 %v616
    %1422 = vmatprep.subr.bf16.mxu0 %v621
    %1423 = vmatpush1.bf16.msra.mxu0 %v620
    %1424 = vmatprep.subr.bf16.mxu0 %v625
    %1425 = vmatpush1.bf16.msra.mxu0 %v624
    %1426 = vmatprep.subr.bf16.mxu0 %v629
    %1427 = vmatpush1.bf16.msra.mxu0 %v628
    %1428 = vmatprep.subr.bf16.mxu0 0
    %1429 = vmatpush1.bf16.msra.mxu0 0
    %1430 = vmatprep.subr.bf16.mxu0 0
    %1431 = vmatpush1.bf16.msra.mxu0 0
    %1432 = vmatprep.subr.bf16.mxu0 0
    %1433 = vmatpush1.bf16.msra.mxu0 0
    %1434 = vmatprep.subr.bf16.mxu0 0
    %1435 = vmatpush1.bf16.msra.mxu0 0
    %1436 = vmatprep.subr.bf16.mxu0 0
    %1437 = vmatpush1.bf16.msra.mxu0 0
    %1438 = vmatprep.subr.bf16.mxu0 0
    %1439 = vmatpush1.bf16.msra.mxu0 0
    %1440 = vmatprep.subr.bf16.mxu0 0
    %1441 = vmatpush1.bf16.msra.mxu0 0
    %1442 = vmatprep.subr.bf16.mxu0 0
    %1443 = vmatpush1.bf16.msra.mxu0 0
    %1444 = vmatprep.mubr.bf16.mxu0 0
    %1445 = vmatmul.mubr.bf16.gmra.mrb[0].mxu0 %v772
    %v1446 = vpop.f32.mrb[0].mxu0
    %v1447 = vadd.f32 0.0, %v1446
    %v1448 = vpop.f32.mrb[0].mxu0
    %v1449 = vadd.f32 0.0, %v1448
    %v1450 = vpop.f32.mrb[0].mxu0
    %v1451 = vpop.f32.mrb[0].mxu0
    %1452 = vdwg.mxu0
    %v1457 = vrot.slane %v1406, 7
    %v1458 = vrot.slane %v1408, 7
    %v1459 = vrot.slane %v1447, 7
    %v1460 = vrot.slane %v1449, 7
    %v1465 = vadd.f32 %v423, %v1457
    %v1466 = vadd.f32 %v425, %v1458
    %v1467 = vadd.f32 %v464, %v1459
    %v1468 = vadd.f32 %v466, %v1460
    %v1469 = vxor.u32 %v1465, 2147483648
    %v1470 = vxor.u32 %v1466, 2147483648
    %v1471 = vxor.u32 %v1467, 2147483648
    %v1472 = vmul.f32 %v1469, 1.442695
    %v1473 = vpow.pop %v1472
    %v1474 = vmul.f32 %v1470, 1.442695
    %v1475 = vpow.pop %v1474
    %v1476 = vmul.f32 %v1471, 1.442695
    %v1477 = vpow.pop %v1476
    %v1478 = vadd.f32 %v1473, 1.0
    %v1479 = vadd.f32 %v1475, 1.0
    %v1480 = vadd.f32 %v1477, 1.0
    %v1481 = vrcp.pop %v1478
    %v1482 = vmul.f32 1.0, %v1481
    %v1483 = vrcp.pop %v1479
    %v1484 = vmul.f32 1.0, %v1483
    %v1485 = vrcp.pop %v1480
    %v1486 = vmul.f32 1.0, %v1485
    %v1487 = vtanh.pop %v1468
    %v1489 = vrot.slane %v769, 7
    %v1491 = vmul.f32 %v1484, %v1489
    %v1492 = vmul.f32 %v1482, %v1487
    %v1493 = vadd.f32 %v1491, %v1492
    %v1494 = vtanh.pop %v1493
    %v1495 = vmul.f32 %v1486, %v1494
    %v1496 = vpack.c.bf16 %v1495, %v1495
    %v1497 = vpack.c.bf16 %v1370, %v1370
    %1498 = vmatprep.subr.bf16.mxu0 %v934
    %1499 = vmatpush1.bf16.msra.mxu0 %v933
    %1500 = vmatprep.subr.bf16.mxu0 %v938
    %1501 = vmatpush1.bf16.msra.mxu0 %v937
    %1502 = vmatprep.subr.bf16.mxu0 %v942
    %1503 = vmatpush1.bf16.msra.mxu0 %v941
    %1504 = vmatprep.subr.bf16.mxu0 %v946
    %1505 = vmatpush1.bf16.msra.mxu0 %v945
    %1506 = vmatprep.subr.bf16.mxu0 %v950
    %1507 = vmatpush1.bf16.msra.mxu0 %v949
    %1508 = vmatprep.subr.bf16.mxu0 %v954
    %1509 = vmatpush1.bf16.msra.mxu0 %v953
    %1510 = vmatprep.subr.bf16.mxu0 %v958
    %1511 = vmatpush1.bf16.msra.mxu0 %v957
    %1512 = vmatprep.subr.bf16.mxu0 %v962
    %1513 = vmatpush1.bf16.msra.mxu0 %v961
    %1514 = vmatprep.subr.bf16.mxu0 0
    %1515 = vmatpush1.bf16.msra.mxu0 0
    %1516 = vmatprep.subr.bf16.mxu0 0
    %1517 = vmatpush1.bf16.msra.mxu0 0
    %1518 = vmatprep.subr.bf16.mxu0 0
    %1519 = vmatpush1.bf16.msra.mxu0 0
    %1520 = vmatprep.subr.bf16.mxu0 0
    %1521 = vmatpush1.bf16.msra.mxu0 0
    %1522 = vmatprep.subr.bf16.mxu0 0
    %1523 = vmatpush1.bf16.msra.mxu0 0
    %1524 = vmatprep.subr.bf16.mxu0 0
    %1525 = vmatpush1.bf16.msra.mxu0 0
    %1526 = vmatprep.subr.bf16.mxu0 0
    %1527 = vmatpush1.bf16.msra.mxu0 0
    %1528 = vmatprep.subr.bf16.mxu0 0
    %1529 = vmatpush1.bf16.msra.mxu0 0
    %1530 = vmatprep.mubr.bf16.mxu0 0
    %1531 = vmatmul.mubr.bf16.gmra.mrb[0].mxu0 %v1497
    %v1532 = vpop.f32.mrb[0].mxu0
    %v1533 = vadd.f32 0.0, %v1532
    %v1534 = vpop.f32.mrb[0].mxu0
    %v1535 = vadd.f32 0.0, %v1534
    %v1536 = vpop.f32.mrb[0].mxu0
    %v1537 = vpop.f32.mrb[0].mxu0
    %1538 = vdwg.mxu0
    %1539 = vmatprep.subr.bf16.mxu0 %v936
    %1540 = vmatpush1.bf16.msra.mxu0 %v935
    %1541 = vmatprep.subr.bf16.mxu0 %v940
    %1542 = vmatpush1.bf16.msra.mxu0 %v939
    %1543 = vmatprep.subr.bf16.mxu0 %v944
    %1544 = vmatpush1.bf16.msra.mxu0 %v943
    %1545 = vmatprep.subr.bf16.mxu0 %v948
    %1546 = vmatpush1.bf16.msra.mxu0 %v947
    %1547 = vmatprep.subr.bf16.mxu0 %v952
    %1548 = vmatpush1.bf16.msra.mxu0 %v951
    %1549 = vmatprep.subr.bf16.mxu0 %v956
    %1550 = vmatpush1.bf16.msra.mxu0 %v955
    %1551 = vmatprep.subr.bf16.mxu0 %v960
    %1552 = vmatpush1.bf16.msra.mxu0 %v959
    %1553 = vmatprep.subr.bf16.mxu0 %v964
    %1554 = vmatpush1.bf16.msra.mxu0 %v963
    %1555 = vmatprep.subr.bf16.mxu0 0
    %1556 = vmatpush1.bf16.msra.mxu0 0
    %1557 = vmatprep.subr.bf16.mxu0 0
    %1558 = vmatpush1.bf16.msra.mxu0 0
    %1559 = vmatprep.subr.bf16.mxu0 0
    %1560 = vmatpush1.bf16.msra.mxu0 0
    %1561 = vmatprep.subr.bf16.mxu0 0
    %1562 = vmatpush1.bf16.msra.mxu0 0
    %1563 = vmatprep.subr.bf16.mxu0 0
    %1564 = vmatpush1.bf16.msra.mxu0 0
    %1565 = vmatprep.subr.bf16.mxu0 0
    %1566 = vmatpush1.bf16.msra.mxu0 0
    %1567 = vmatprep.subr.bf16.mxu0 0
    %1568 = vmatpush1.bf16.msra.mxu0 0
    %1569 = vmatprep.subr.bf16.mxu0 0
    %1570 = vmatpush1.bf16.msra.mxu0 0
    %1571 = vmatprep.mubr.bf16.mxu0 0
    %1572 = vmatmul.mubr.bf16.gmra.mrb[0].mxu0 %v1497
    %v1573 = vpop.f32.mrb[0].mxu0
    %v1574 = vadd.f32 0.0, %v1573
    %v1575 = vpop.f32.mrb[0].mxu0
    %v1576 = vadd.f32 0.0, %v1575
    %v1577 = vpop.f32.mrb[0].mxu0
    %v1578 = vpop.f32.mrb[0].mxu0
    %1579 = vdwg.mxu0
    %v1581 = vshrl.u32 %v1496, 16
    %1584 = vmatprep.subr.bf16.mxu0 %v1176
    %1585 = vmatpush1.bf16.msra.mxu0 %v1175
    %1586 = vmatprep.subr.bf16.mxu0 %v1180
    %1587 = vmatpush1.bf16.msra.mxu0 %v1179
    %1588 = vmatprep.subr.bf16.mxu0 %v1184
    %1589 = vmatpush1.bf16.msra.mxu0 %v1183
    %1590 = vmatprep.subr.bf16.mxu0 %v1188
    %1591 = vmatpush1.bf16.msra.mxu0 %v1187
    %1592 = vmatprep.subr.bf16.mxu0 %v1192
    %1593 = vmatpush1.bf16.msra.mxu0 %v1191
    %1594 = vmatprep.subr.bf16.mxu0 %v1196
    %1595 = vmatpush1.bf16.msra.mxu0 %v1195
    %1596 = vmatprep.subr.bf16.mxu0 %v1200
    %1597 = vmatpush1.bf16.msra.mxu0 %v1199
    %1598 = vmatprep.subr.bf16.mxu0 %v1204
    %1599 = vmatpush1.bf16.msra.mxu0 %v1203
    %1600 = vmatprep.subr.bf16.mxu0 0
    %1601 = vmatpush1.bf16.msra.mxu0 0
    %1602 = vmatprep.subr.bf16.mxu0 0
    %1603 = vmatpush1.bf16.msra.mxu0 0
    %1604 = vmatprep.subr.bf16.mxu0 0
    %1605 = vmatpush1.bf16.msra.mxu0 0
    %1606 = vmatprep.subr.bf16.mxu0 0
    %1607 = vmatpush1.bf16.msra.mxu0 0
    %1608 = vmatprep.subr.bf16.mxu0 0
    %1609 = vmatpush1.bf16.msra.mxu0 0
    %1610 = vmatprep.subr.bf16.mxu0 0
    %1611 = vmatpush1.bf16.msra.mxu0 0
    %1612 = vmatprep.subr.bf16.mxu0 0
    %1613 = vmatpush1.bf16.msra.mxu0 0
    %1614 = vmatprep.subr.bf16.mxu0 0
    %1615 = vmatpush1.bf16.msra.mxu0 0
    %1616 = vmatprep.mubr.bf16.mxu0 0
    %1617 = vmatmul.mubr.bf16.gmra.mrb[0].mxu0 %v1581
    %v1618 = vpop.f32.mrb[0].mxu0
    %v1619 = vadd.f32 %v1533, %v1618
    %v1620 = vpop.f32.mrb[0].mxu0
    %v1621 = vadd.f32 %v1535, %v1620
    %v1622 = vpop.f32.mrb[0].mxu0
    %v1623 = vpop.f32.mrb[0].mxu0
    %1624 = vdwg.mxu0
    %1625 = vmatprep.subr.bf16.mxu0 %v1178
    %1626 = vmatpush1.bf16.msra.mxu0 %v1177
    %1627 = vmatprep.subr.bf16.mxu0 %v1182
    %1628 = vmatpush1.bf16.msra.mxu0 %v1181
    %1629 = vmatprep.subr.bf16.mxu0 %v1186
    %1630 = vmatpush1.bf16.msra.mxu0 %v1185
    %1631 = vmatprep.subr.bf16.mxu0 %v1190
    %1632 = vmatpush1.bf16.msra.mxu0 %v1189
    %1633 = vmatprep.subr.bf16.mxu0 %v1194
    %1634 = vmatpush1.bf16.msra.mxu0 %v1193
    %1635 = vmatprep.subr.bf16.mxu0 %v1198
    %1636 = vmatpush1.bf16.msra.mxu0 %v1197
    %1637 = vmatprep.subr.bf16.mxu0 %v1202
    %1638 = vmatpush1.bf16.msra.mxu0 %v1201
    %1639 = vmatprep.subr.bf16.mxu0 %v1206
    %1640 = vmatpush1.bf16.msra.mxu0 %v1205
    %1641 = vmatprep.subr.bf16.mxu0 0
    %1642 = vmatpush1.bf16.msra.mxu0 0
    %1643 = vmatprep.subr.bf16.mxu0 0
    %1644 = vmatpush1.bf16.msra.mxu0 0
    %1645 = vmatprep.subr.bf16.mxu0 0
    %1646 = vmatpush1.bf16.msra.mxu0 0
    %1647 = vmatprep.subr.bf16.mxu0 0
    %1648 = vmatpush1.bf16.msra.mxu0 0
    %1649 = vmatprep.subr.bf16.mxu0 0
    %1650 = vmatpush1.bf16.msra.mxu0 0
    %1651 = vmatprep.subr.bf16.mxu0 0
    %1652 = vmatpush1.bf16.msra.mxu0 0
    %1653 = vmatprep.subr.bf16.mxu0 0
    %1654 = vmatpush1.bf16.msra.mxu0 0
    %1655 = vmatprep.subr.bf16.mxu0 0
    %1656 = vmatpush1.bf16.msra.mxu0 0
    %1657 = vmatprep.mubr.bf16.mxu0 0
    %1658 = vmatmul.mubr.bf16.gmra.mrb[0].mxu0 %v1581
    %v1659 = vpop.f32.mrb[0].mxu0
    %v1660 = vadd.f32 %v1574, %v1659
    %v1661 = vpop.f32.mrb[0].mxu0
    %v1662 = vadd.f32 %v1576, %v1661
    %v1663 = vpop.f32.mrb[0].mxu0
    %v1664 = vpop.f32.mrb[0].mxu0
    %1665 = vdwg.mxu0
    %v1666 = vadd.f32 %v1619, %v1326
    %v1667 = vadd.f32 %v1621, %v1330
    %v1668 = vadd.f32 %v1660, %v1334
    %v1669 = vadd.f32 %v1662, %v1338
    %v1670 = vxor.u32 %v1666, 2147483648
    %v1671 = vxor.u32 %v1667, 2147483648
    %v1672 = vxor.u32 %v1668, 2147483648
    %v1673 = vmul.f32 %v1670, 1.442695
    %v1674 = vpow.pop %v1673
    %v1675 = vmul.f32 %v1671, 1.442695
    %v1676 = vpow.pop %v1675
    %v1677 = vmul.f32 %v1672, 1.442695
    %v1678 = vpow.pop %v1677
    %v1679 = vadd.f32 %v1674, 1.0
    %v1680 = vadd.f32 %v1676, 1.0
    %v1681 = vadd.f32 %v1678, 1.0
    %v1682 = vrcp.pop %v1679
    %v1683 = vmul.f32 1.0, %v1682
    %v1684 = vrcp.pop %v1680
    %v1685 = vmul.f32 1.0, %v1684
    %v1686 = vrcp.pop %v1681
    %v1687 = vmul.f32 1.0, %v1686
    %v1688 = vtanh.pop %v1669
    %v1689 = vmul.f32 %v1685, %v1368
    %v1690 = vmul.f32 %v1683, %v1688
    %v1691 = vadd.f32 %v1689, %v1690
    %v1692 = vtanh.pop %v1691
    %v1693 = vmul.f32 %v1687, %v1692
    %1694 = vmatprep.subr.bf16.mxu0 %v599
    %1695 = vmatpush1.bf16.msra.mxu0 %v598
    %1696 = vmatprep.subr.bf16.mxu0 %v603
    %1697 = vmatpush1.bf16.msra.mxu0 %v602
    %1698 = vmatprep.subr.bf16.mxu0 %v607
    %1699 = vmatpush1.bf16.msra.mxu0 %v606
    %1700 = vmatprep.subr.bf16.mxu0 %v611
    %1701 = vmatpush1.bf16.msra.mxu0 %v610
    %1702 = vmatprep.subr.bf16.mxu0 %v615
    %1703 = vmatpush1.bf16.msra.mxu0 %v614
    %1704 = vmatprep.subr.bf16.mxu0 %v619
    %1705 = vmatpush1.bf16.msra.mxu0 %v618
    %1706 = vmatprep.subr.bf16.mxu0 %v623
    %1707 = vmatpush1.bf16.msra.mxu0 %v622
    %1708 = vmatprep.subr.bf16.mxu0 %v627
    %1709 = vmatpush1.bf16.msra.mxu0 %v626
    %1710 = vmatprep.subr.bf16.mxu0 0
    %1711 = vmatpush1.bf16.msra.mxu0 0
    %1712 = vmatprep.subr.bf16.mxu0 0
    %1713 = vmatpush1.bf16.msra.mxu0 0
    %1714 = vmatprep.subr.bf16.mxu0 0
    %1715 = vmatpush1.bf16.msra.mxu0 0
    %1716 = vmatprep.subr.bf16.mxu0 0
    %1717 = vmatpush1.bf16.msra.mxu0 0
    %1718 = vmatprep.subr.bf16.mxu0 0
    %1719 = vmatpush1.bf16.msra.mxu0 0
    %1720 = vmatprep.subr.bf16.mxu0 0
    %1721 = vmatpush1.bf16.msra.mxu0 0
    %1722 = vmatprep.subr.bf16.mxu0 0
    %1723 = vmatpush1.bf16.msra.mxu0 0
    %1724 = vmatprep.subr.bf16.mxu0 0
    %1725 = vmatpush1.bf16.msra.mxu0 0
    %1726 = vmatprep.mubr.bf16.mxu0 0
    %1727 = vmatmul.mubr.bf16.gmra.mrb[0].mxu0 %v1581
    %v1728 = vpop.f32.mrb[0].mxu0
    %v1729 = vadd.f32 0.0, %v1728
    %v1730 = vpop.f32.mrb[0].mxu0
    %v1731 = vadd.f32 0.0, %v1730
    %v1732 = vpop.f32.mrb[0].mxu0
    %v1733 = vpop.f32.mrb[0].mxu0
    %1734 = vdwg.mxu0
    %1735 = vmatprep.subr.bf16.mxu0 %v601
    %1736 = vmatpush1.bf16.msra.mxu0 %v600
    %1737 = vmatprep.subr.bf16.mxu0 %v605
    %1738 = vmatpush1.bf16.msra.mxu0 %v604
    %1739 = vmatprep.subr.bf16.mxu0 %v609
    %1740 = vmatpush1.bf16.msra.mxu0 %v608
    %1741 = vmatprep.subr.bf16.mxu0 %v613
    %1742 = vmatpush1.bf16.msra.mxu0 %v612
    %1743 = vmatprep.subr.bf16.mxu0 %v617
    %1744 = vmatpush1.bf16.msra.mxu0 %v616
    %1745 = vmatprep.subr.bf16.mxu0 %v621
    %1746 = vmatpush1.bf16.msra.mxu0 %v620
    %1747 = vmatprep.subr.bf16.mxu0 %v625
    %1748 = vmatpush1.bf16.msra.mxu0 %v624
    %1749 = vmatprep.subr.bf16.mxu0 %v629
    %1750 = vmatpush1.bf16.msra.mxu0 %v628
    %1751 = vmatprep.subr.bf16.mxu0 0
    %1752 = vmatpush1.bf16.msra.mxu0 0
    %1753 = vmatprep.subr.bf16.mxu0 0
    %1754 = vmatpush1.bf16.msra.mxu0 0
    %1755 = vmatprep.subr.bf16.mxu0 0
    %1756 = vmatpush1.bf16.msra.mxu0 0
    %1757 = vmatprep.subr.bf16.mxu0 0
    %1758 = vmatpush1.bf16.msra.mxu0 0
    %1759 = vmatprep.subr.bf16.mxu0 0
    %1760 = vmatpush1.bf16.msra.mxu0 0
    %1761 = vmatprep.subr.bf16.mxu0 0
    %1762 = vmatpush1.bf16.msra.mxu0 0
    %1763 = vmatprep.subr.bf16.mxu0 0
    %1764 = vmatpush1.bf16.msra.mxu0 0
    %1765 = vmatprep.subr.bf16.mxu0 0
    %1766 = vmatpush1.bf16.msra.mxu0 0
    %1767 = vmatprep.mubr.bf16.mxu0 0
    %1768 = vmatmul.mubr.bf16.gmra.mrb[0].mxu0 %v1581
    %v1769 = vpop.f32.mrb[0].mxu0
    %v1770 = vadd.f32 0.0, %v1769
    %v1771 = vpop.f32.mrb[0].mxu0
    %v1772 = vadd.f32 0.0, %v1771
    %v1773 = vpop.f32.mrb[0].mxu0
    %v1774 = vpop.f32.mrb[0].mxu0
    %1775 = vdwg.mxu0
    %v1780 = vrot.slane %v1729, 6
    %v1781 = vrot.slane %v1731, 6
    %v1782 = vrot.slane %v1770, 6
    %v1783 = vrot.slane %v1772, 6
    %v1788 = vadd.f32 %v423, %v1780
    %v1789 = vadd.f32 %v425, %v1781
    %v1790 = vadd.f32 %v464, %v1782
    %v1791 = vadd.f32 %v466, %v1783
    %v1792 = vxor.u32 %v1788, 2147483648
    %v1793 = vxor.u32 %v1789, 2147483648
    %v1794 = vxor.u32 %v1790, 2147483648
    %v1795 = vmul.f32 %v1792, 1.442695
    %v1796 = vpow.pop %v1795
    %v1797 = vmul.f32 %v1793, 1.442695
    %v1798 = vpow.pop %v1797
    %v1799 = vmul.f32 %v1794, 1.442695
    %v1800 = vpow.pop %v1799
    %v1801 = vadd.f32 %v1796, 1.0
    %v1802 = vadd.f32 %v1798, 1.0
    %v1803 = vadd.f32 %v1800, 1.0
    %v1804 = vrcp.pop %v1801
    %v1805 = vmul.f32 1.0, %v1804
    %v1806 = vrcp.pop %v1802
    %v1807 = vmul.f32 1.0, %v1806
    %v1808 = vrcp.pop %v1803
    %v1809 = vmul.f32 1.0, %v1808
    %v1810 = vtanh.pop %v1791
    %v1812 = vrot.slane %v1493, 7
    %v1814 = vmul.f32 %v1807, %v1812
    %v1815 = vmul.f32 %v1805, %v1810
    %v1816 = vadd.f32 %v1814, %v1815
    %v1817 = vtanh.pop %v1816
    %v1818 = vmul.f32 %v1809, %v1817
    %v1819 = vpack.c.bf16 %v1818, %v1818
    %v1820 = vpack.c.bf16 %v1693, %v1693
    %1821 = vmatprep.subr.bf16.mxu0 %v934
    %1822 = vmatpush1.bf16.msra.mxu0 %v933
    %1823 = vmatprep.subr.bf16.mxu0 %v938
    %1824 = vmatpush1.bf16.msra.mxu0 %v937
    %1825 = vmatprep.subr.bf16.mxu0 %v942
    %1826 = vmatpush1.bf16.msra.mxu0 %v941
    %1827 = vmatprep.subr.bf16.mxu0 %v946
    %1828 = vmatpush1.bf16.msra.mxu0 %v945
    %1829 = vmatprep.subr.bf16.mxu0 %v950
    %1830 = vmatpush1.bf16.msra.mxu0 %v949
    %1831 = vmatprep.subr.bf16.mxu0 %v954
    %1832 = vmatpush1.bf16.msra.mxu0 %v953
    %1833 = vmatprep.subr.bf16.mxu0 %v958
    %1834 = vmatpush1.bf16.msra.mxu0 %v957
    %1835 = vmatprep.subr.bf16.mxu0 %v962
    %1836 = vmatpush1.bf16.msra.mxu0 %v961
    %1837 = vmatprep.subr.bf16.mxu0 0
    %1838 = vmatpush1.bf16.msra.mxu0 0
    %1839 = vmatprep.subr.bf16.mxu0 0
    %1840 = vmatpush1.bf16.msra.mxu0 0
    %1841 = vmatprep.subr.bf16.mxu0 0
    %1842 = vmatpush1.bf16.msra.mxu0 0
    %1843 = vmatprep.subr.bf16.mxu0 0
    %1844 = vmatpush1.bf16.msra.mxu0 0
    %1845 = vmatprep.subr.bf16.mxu0 0
    %1846 = vmatpush1.bf16.msra.mxu0 0
    %1847 = vmatprep.subr.bf16.mxu0 0
    %1848 = vmatpush1.bf16.msra.mxu0 0
    %1849 = vmatprep.subr.bf16.mxu0 0
    %1850 = vmatpush1.bf16.msra.mxu0 0
    %1851 = vmatprep.subr.bf16.mxu0 0
    %1852 = vmatpush1.bf16.msra.mxu0 0
    %1853 = vmatprep.mubr.bf16.mxu0 0
    %1854 = vmatmul.mubr.bf16.gmra.mrb[0].mxu0 %v1820
    %v1855 = vpop.f32.mrb[0].mxu0
    %v1856 = vadd.f32 0.0, %v1855
    %v1857 = vpop.f32.mrb[0].mxu0
    %v1858 = vadd.f32 0.0, %v1857
    %v1859 = vpop.f32.mrb[0].mxu0
    %v1860 = vpop.f32.mrb[0].mxu0
    %1861 = vdwg.mxu0
    %1862 = vmatprep.subr.bf16.mxu0 %v936
    %1863 = vmatpush1.bf16.msra.mxu0 %v935
    %1864 = vmatprep.subr.bf16.mxu0 %v940
    %1865 = vmatpush1.bf16.msra.mxu0 %v939
    %1866 = vmatprep.subr.bf16.mxu0 %v944
    %1867 = vmatpush1.bf16.msra.mxu0 %v943
    %1868 = vmatprep.subr.bf16.mxu0 %v948
    %1869 = vmatpush1.bf16.msra.mxu0 %v947
    %1870 = vmatprep.subr.bf16.mxu0 %v952
    %1871 = vmatpush1.bf16.msra.mxu0 %v951
    %1872 = vmatprep.subr.bf16.mxu0 %v956
    %1873 = vmatpush1.bf16.msra.mxu0 %v955
    %1874 = vmatprep.subr.bf16.mxu0 %v960
    %1875 = vmatpush1.bf16.msra.mxu0 %v959
    %1876 = vmatprep.subr.bf16.mxu0 %v964
    %1877 = vmatpush1.bf16.msra.mxu0 %v963
    %1878 = vmatprep.subr.bf16.mxu0 0
    %1879 = vmatpush1.bf16.msra.mxu0 0
    %1880 = vmatprep.subr.bf16.mxu0 0
    %1881 = vmatpush1.bf16.msra.mxu0 0
    %1882 = vmatprep.subr.bf16.mxu0 0
    %1883 = vmatpush1.bf16.msra.mxu0 0
    %1884 = vmatprep.subr.bf16.mxu0 0
    %1885 = vmatpush1.bf16.msra.mxu0 0
    %1886 = vmatprep.subr.bf16.mxu0 0
    %1887 = vmatpush1.bf16.msra.mxu0 0
    %1888 = vmatprep.subr.bf16.mxu0 0
    %1889 = vmatpush1.bf16.msra.mxu0 0
    %1890 = vmatprep.subr.bf16.mxu0 0
    %1891 = vmatpush1.bf16.msra.mxu0 0
    %1892 = vmatprep.subr.bf16.mxu0 0
    %1893 = vmatpush1.bf16.msra.mxu0 0
    %1894 = vmatprep.mubr.bf16.mxu0 0
    %1895 = vmatmul.mubr.bf16.gmra.mrb[0].mxu0 %v1820
    %v1896 = vpop.f32.mrb[0].mxu0
    %v1897 = vadd.f32 0.0, %v1896
    %v1898 = vpop.f32.mrb[0].mxu0
    %v1899 = vadd.f32 0.0, %v1898
    %v1900 = vpop.f32.mrb[0].mxu0
    %v1901 = vpop.f32.mrb[0].mxu0
    %1902 = vdwg.mxu0
    %v1904 = vrot.slane %v1819, 1
    %1906 = vmatprep.subr.bf16.mxu0 %v1176
    %1907 = vmatpush1.bf16.msra.mxu0 %v1175
    %1908 = vmatprep.subr.bf16.mxu0 %v1180
    %1909 = vmatpush1.bf16.msra.mxu0 %v1179
    %1910 = vmatprep.subr.bf16.mxu0 %v1184
    %1911 = vmatpush1.bf16.msra.mxu0 %v1183
    %1912 = vmatprep.subr.bf16.mxu0 %v1188
    %1913 = vmatpush1.bf16.msra.mxu0 %v1187
    %1914 = vmatprep.subr.bf16.mxu0 %v1192
    %1915 = vmatpush1.bf16.msra.mxu0 %v1191
    %1916 = vmatprep.subr.bf16.mxu0 %v1196
    %1917 = vmatpush1.bf16.msra.mxu0 %v1195
    %1918 = vmatprep.subr.bf16.mxu0 %v1200
    %1919 = vmatpush1.bf16.msra.mxu0 %v1199
    %1920 = vmatprep.subr.bf16.mxu0 %v1204
    %1921 = vmatpush1.bf16.msra.mxu0 %v1203
    %1922 = vmatprep.subr.bf16.mxu0 0
    %1923 = vmatpush1.bf16.msra.mxu0 0
    %1924 = vmatprep.subr.bf16.mxu0 0
    %1925 = vmatpush1.bf16.msra.mxu0 0
    %1926 = vmatprep.subr.bf16.mxu0 0
    %1927 = vmatpush1.bf16.msra.mxu0 0
    %1928 = vmatprep.subr.bf16.mxu0 0
    %1929 = vmatpush1.bf16.msra.mxu0 0
    %1930 = vmatprep.subr.bf16.mxu0 0
    %1931 = vmatpush1.bf16.msra.mxu0 0
    %1932 = vmatprep.subr.bf16.mxu0 0
    %1933 = vmatpush1.bf16.msra.mxu0 0
    %1934 = vmatprep.subr.bf16.mxu0 0
    %1935 = vmatpush1.bf16.msra.mxu0 0
    %1936 = vmatprep.subr.bf16.mxu0 0
    %1937 = vmatpush1.bf16.msra.mxu0 0
    %1938 = vmatprep.mubr.bf16.mxu0 0
    %1939 = vmatmul.mubr.bf16.gmra.mrb[0].mxu0 %v1904
    %v1940 = vpop.f32.mrb[0].mxu0
    %v1941 = vadd.f32 %v1856, %v1940
    %v1942 = vpop.f32.mrb[0].mxu0
    %v1943 = vadd.f32 %v1858, %v1942
    %v1944 = vpop.f32.mrb[0].mxu0
    %v1945 = vpop.f32.mrb[0].mxu0
    %1946 = vdwg.mxu0
    %1947 = vmatprep.subr.bf16.mxu0 %v1178
    %1948 = vmatpush1.bf16.msra.mxu0 %v1177
    %1949 = vmatprep.subr.bf16.mxu0 %v1182
    %1950 = vmatpush1.bf16.msra.mxu0 %v1181
    %1951 = vmatprep.subr.bf16.mxu0 %v1186
    %1952 = vmatpush1.bf16.msra.mxu0 %v1185
    %1953 = vmatprep.subr.bf16.mxu0 %v1190
    %1954 = vmatpush1.bf16.msra.mxu0 %v1189
    %1955 = vmatprep.subr.bf16.mxu0 %v1194
    %1956 = vmatpush1.bf16.msra.mxu0 %v1193
    %1957 = vmatprep.subr.bf16.mxu0 %v1198
    %1958 = vmatpush1.bf16.msra.mxu0 %v1197
    %1959 = vmatprep.subr.bf16.mxu0 %v1202
    %1960 = vmatpush1.bf16.msra.mxu0 %v1201
    %1961 = vmatprep.subr.bf16.mxu0 %v1206
    %1962 = vmatpush1.bf16.msra.mxu0 %v1205
    %1963 = vmatprep.subr.bf16.mxu0 0
    %1964 = vmatpush1.bf16.msra.mxu0 0
    %1965 = vmatprep.subr.bf16.mxu0 0
    %1966 = vmatpush1.bf16.msra.mxu0 0
    %1967 = vmatprep.subr.bf16.mxu0 0
    %1968 = vmatpush1.bf16.msra.mxu0 0
    %1969 = vmatprep.subr.bf16.mxu0 0
    %1970 = vmatpush1.bf16.msra.mxu0 0
    %1971 = vmatprep.subr.bf16.mxu0 0
    %1972 = vmatpush1.bf16.msra.mxu0 0
    %1973 = vmatprep.subr.bf16.mxu0 0
    %1974 = vmatpush1.bf16.msra.mxu0 0
    %1975 = vmatprep.subr.bf16.mxu0 0
    %1976 = vmatpush1.bf16.msra.mxu0 0
    %1977 = vmatprep.subr.bf16.mxu0 0
    %1978 = vmatpush1.bf16.msra.mxu0 0
    %1979 = vmatprep.mubr.bf16.mxu0 0
    %1980 = vmatmul.mubr.bf16.gmra.mrb[0].mxu0 %v1904
    %v1981 = vpop.f32.mrb[0].mxu0
    %v1982 = vadd.f32 %v1897, %v1981
    %v1983 = vpop.f32.mrb[0].mxu0
    %v1984 = vadd.f32 %v1899, %v1983
    %v1985 = vpop.f32.mrb[0].mxu0
    %v1986 = vpop.f32.mrb[0].mxu0
    %1987 = vdwg.mxu0
    %v1988 = vadd.f32 %v1941, %v1326
    %v1989 = vadd.f32 %v1943, %v1330
    %v1990 = vadd.f32 %v1982, %v1334
    %v1991 = vadd.f32 %v1984, %v1338
    %v1992 = vxor.u32 %v1988, 2147483648
    %v1993 = vxor.u32 %v1989, 2147483648
    %v1994 = vxor.u32 %v1990, 2147483648
    %v1995 = vmul.f32 %v1992, 1.442695
    %v1996 = vpow.pop %v1995
    %v1997 = vmul.f32 %v1993, 1.442695
    %v1998 = vpow.pop %v1997
    %v1999 = vmul.f32 %v1994, 1.442695
    %v2000 = vpow.pop %v1999
    %v2001 = vadd.f32 %v1996, 1.0
    %v2002 = vadd.f32 %v1998, 1.0
    %v2003 = vadd.f32 %v2000, 1.0
    %v2004 = vrcp.pop %v2001
    %v2005 = vmul.f32 1.0, %v2004
    %v2006 = vrcp.pop %v2002
    %v2007 = vmul.f32 1.0, %v2006
    %v2008 = vrcp.pop %v2003
    %v2009 = vmul.f32 1.0, %v2008
    %v2010 = vtanh.pop %v1991
    %v2011 = vmul.f32 %v2007, %v1691
    %v2012 = vmul.f32 %v2005, %v2010
    %v2013 = vadd.f32 %v2011, %v2012
    %v2014 = vtanh.pop %v2013
    %v2015 = vmul.f32 %v2009, %v2014
    %2016 = vmatprep.subr.bf16.mxu0 %v599
    %2017 = vmatpush1.bf16.msra.mxu0 %v598
    %2018 = vmatprep.subr.bf16.mxu0 %v603
    %2019 = vmatpush1.bf16.msra.mxu0 %v602
    %2020 = vmatprep.subr.bf16.mxu0 %v607
    %2021 = vmatpush1.bf16.msra.mxu0 %v606
    %2022 = vmatprep.subr.bf16.mxu0 %v611
    %2023 = vmatpush1.bf16.msra.mxu0 %v610
    %2024 = vmatprep.subr.bf16.mxu0 %v615
    %2025 = vmatpush1.bf16.msra.mxu0 %v614
    %2026 = vmatprep.subr.bf16.mxu0 %v619
    %2027 = vmatpush1.bf16.msra.mxu0 %v618
    %2028 = vmatprep.subr.bf16.mxu0 %v623
    %2029 = vmatpush1.bf16.msra.mxu0 %v622
    %2030 = vmatprep.subr.bf16.mxu0 %v627
    %2031 = vmatpush1.bf16.msra.mxu0 %v626
    %2032 = vmatprep.subr.bf16.mxu0 0
    %2033 = vmatpush1.bf16.msra.mxu0 0
    %2034 = vmatprep.subr.bf16.mxu0 0
    %2035 = vmatpush1.bf16.msra.mxu0 0
    %2036 = vmatprep.subr.bf16.mxu0 0
    %2037 = vmatpush1.bf16.msra.mxu0 0
    %2038 = vmatprep.subr.bf16.mxu0 0
    %2039 = vmatpush1.bf16.msra.mxu0 0
    %2040 = vmatprep.subr.bf16.mxu0 0
    %2041 = vmatpush1.bf16.msra.mxu0 0
    %2042 = vmatprep.subr.bf16.mxu0 0
    %2043 = vmatpush1.bf16.msra.mxu0 0
    %2044 = vmatprep.subr.bf16.mxu0 0
    %2045 = vmatpush1.bf16.msra.mxu0 0
    %2046 = vmatprep.subr.bf16.mxu0 0
    %2047 = vmatpush1.bf16.msra.mxu0 0
    %2048 = vmatprep.mubr.bf16.mxu0 0
    %2049 = vmatmul.mubr.bf16.gmra.mrb[0].mxu0 %v1904
    %v2050 = vpop.f32.mrb[0].mxu0
    %v2051 = vadd.f32 0.0, %v2050
    %v2052 = vpop.f32.mrb[0].mxu0
    %v2053 = vadd.f32 0.0, %v2052
    %v2054 = vpop.f32.mrb[0].mxu0
    %v2055 = vpop.f32.mrb[0].mxu0
    %2056 = vdwg.mxu0
    %2057 = vmatprep.subr.bf16.mxu0 %v601
    %2058 = vmatpush1.bf16.msra.mxu0 %v600
    %2059 = vmatprep.subr.bf16.mxu0 %v605
    %2060 = vmatpush1.bf16.msra.mxu0 %v604
    %2061 = vmatprep.subr.bf16.mxu0 %v609
    %2062 = vmatpush1.bf16.msra.mxu0 %v608
    %2063 = vmatprep.subr.bf16.mxu0 %v613
    %2064 = vmatpush1.bf16.msra.mxu0 %v612
    %2065 = vmatprep.subr.bf16.mxu0 %v617
    %2066 = vmatpush1.bf16.msra.mxu0 %v616
    %2067 = vmatprep.subr.bf16.mxu0 %v621
    %2068 = vmatpush1.bf16.msra.mxu0 %v620
    %2069 = vmatprep.subr.bf16.mxu0 %v625
    %2070 = vmatpush1.bf16.msra.mxu0 %v624
    %2071 = vmatprep.subr.bf16.mxu0 %v629
    %2072 = vmatpush1.bf16.msra.mxu0 %v628
    %2073 = vmatprep.subr.bf16.mxu0 0
    %2074 = vmatpush1.bf16.msra.mxu0 0
    %2075 = vmatprep.subr.bf16.mxu0 0
    %2076 = vmatpush1.bf16.msra.mxu0 0
    %2077 = vmatprep.subr.bf16.mxu0 0
    %2078 = vmatpush1.bf16.msra.mxu0 0
    %2079 = vmatprep.subr.bf16.mxu0 0
    %2080 = vmatpush1.bf16.msra.mxu0 0
    %2081 = vmatprep.subr.bf16.mxu0 0
    %2082 = vmatpush1.bf16.msra.mxu0 0
    %2083 = vmatprep.subr.bf16.mxu0 0
    %2084 = vmatpush1.bf16.msra.mxu0 0
    %2085 = vmatprep.subr.bf16.mxu0 0
    %2086 = vmatpush1.bf16.msra.mxu0 0
    %2087 = vmatprep.subr.bf16.mxu0 0
    %2088 = vmatpush1.bf16.msra.mxu0 0
    %2089 = vmatprep.mubr.bf16.mxu0 0
    %2090 = vmatmul.mubr.bf16.gmra.mrb[0].mxu0 %v1904
    %v2091 = vpop.f32.mrb[0].mxu0
    %v2092 = vadd.f32 0.0, %v2091
    %v2093 = vpop.f32.mrb[0].mxu0
    %v2094 = vadd.f32 0.0, %v2093
    %v2095 = vpop.f32.mrb[0].mxu0
    %v2096 = vpop.f32.mrb[0].mxu0
    %2097 = vdwg.mxu0
    %v2102 = vrot.slane %v2051, 5
    %v2103 = vrot.slane %v2053, 5
    %v2104 = vrot.slane %v2092, 5
    %v2105 = vrot.slane %v2094, 5
    %v2110 = vadd.f32 %v423, %v2102
    %v2111 = vadd.f32 %v425, %v2103
    %v2112 = vadd.f32 %v464, %v2104
    %v2113 = vadd.f32 %v466, %v2105
    %v2114 = vxor.u32 %v2110, 2147483648
    %v2115 = vxor.u32 %v2111, 2147483648
    %v2116 = vxor.u32 %v2112, 2147483648
    %v2117 = vmul.f32 %v2114, 1.442695
    %v2118 = vpow.pop %v2117
    %v2119 = vmul.f32 %v2115, 1.442695
    %v2120 = vpow.pop %v2119
    %v2121 = vmul.f32 %v2116, 1.442695
    %v2122 = vpow.pop %v2121
    %v2123 = vadd.f32 %v2118, 1.0
    %v2124 = vadd.f32 %v2120, 1.0
    %v2125 = vadd.f32 %v2122, 1.0
    %v2126 = vrcp.pop %v2123
    %v2127 = vmul.f32 1.0, %v2126
    %v2128 = vrcp.pop %v2124
    %v2129 = vmul.f32 1.0, %v2128
    %v2130 = vrcp.pop %v2125
    %v2131 = vmul.f32 1.0, %v2130
    %v2132 = vtanh.pop %v2113
    %v2134 = vrot.slane %v1816, 7
    %v2136 = vmul.f32 %v2129, %v2134
    %v2137 = vmul.f32 %v2127, %v2132
    %v2138 = vadd.f32 %v2136, %v2137
    %v2139 = vtanh.pop %v2138
    %v2140 = vmul.f32 %v2131, %v2139
    %v2141 = vpack.c.bf16 %v2140, %v2140
    %v2142 = vpack.c.bf16 %v2015, %v2015
    %2143 = vmatprep.subr.bf16.mxu0 %v934
    %2144 = vmatpush1.bf16.msra.mxu0 %v933
    %2145 = vmatprep.subr.bf16.mxu0 %v938
    %2146 = vmatpush1.bf16.msra.mxu0 %v937
    %2147 = vmatprep.subr.bf16.mxu0 %v942
    %2148 = vmatpush1.bf16.msra.mxu0 %v941
    %2149 = vmatprep.subr.bf16.mxu0 %v946
    %2150 = vmatpush1.bf16.msra.mxu0 %v945
    %2151 = vmatprep.subr.bf16.mxu0 %v950
    %2152 = vmatpush1.bf16.msra.mxu0 %v949
    %2153 = vmatprep.subr.bf16.mxu0 %v954
    %2154 = vmatpush1.bf16.msra.mxu0 %v953
    %2155 = vmatprep.subr.bf16.mxu0 %v958
    %2156 = vmatpush1.bf16.msra.mxu0 %v957
    %2157 = vmatprep.subr.bf16.mxu0 %v962
    %2158 = vmatpush1.bf16.msra.mxu0 %v961
    %2159 = vmatprep.subr.bf16.mxu0 0
    %2160 = vmatpush1.bf16.msra.mxu0 0
    %2161 = vmatprep.subr.bf16.mxu0 0
    %2162 = vmatpush1.bf16.msra.mxu0 0
    %2163 = vmatprep.subr.bf16.mxu0 0
    %2164 = vmatpush1.bf16.msra.mxu0 0
    %2165 = vmatprep.subr.bf16.mxu0 0
    %2166 = vmatpush1.bf16.msra.mxu0 0
    %2167 = vmatprep.subr.bf16.mxu0 0
    %2168 = vmatpush1.bf16.msra.mxu0 0
    %2169 = vmatprep.subr.bf16.mxu0 0
    %2170 = vmatpush1.bf16.msra.mxu0 0
    %2171 = vmatprep.subr.bf16.mxu0 0
    %2172 = vmatpush1.bf16.msra.mxu0 0
    %2173 = vmatprep.subr.bf16.mxu0 0
    %2174 = vmatpush1.bf16.msra.mxu0 0
    %2175 = vmatprep.mubr.bf16.mxu0 0
    %2176 = vmatmul.mubr.bf16.gmra.mrb[0].mxu0 %v2142
    %v2177 = vpop.f32.mrb[0].mxu0
    %v2178 = vadd.f32 0.0, %v2177
    %v2179 = vpop.f32.mrb[0].mxu0
    %v2180 = vadd.f32 0.0, %v2179
    %v2181 = vpop.f32.mrb[0].mxu0
    %v2182 = vpop.f32.mrb[0].mxu0
    %2183 = vdwg.mxu0
    %2184 = vmatprep.subr.bf16.mxu0 %v936
    %2185 = vmatpush1.bf16.msra.mxu0 %v935
    %2186 = vmatprep.subr.bf16.mxu0 %v940
    %2187 = vmatpush1.bf16.msra.mxu0 %v939
    %2188 = vmatprep.subr.bf16.mxu0 %v944
    %2189 = vmatpush1.bf16.msra.mxu0 %v943
    %2190 = vmatprep.subr.bf16.mxu0 %v948
    %2191 = vmatpush1.bf16.msra.mxu0 %v947
    %2192 = vmatprep.subr.bf16.mxu0 %v952
    %2193 = vmatpush1.bf16.msra.mxu0 %v951
    %2194 = vmatprep.subr.bf16.mxu0 %v956
    %2195 = vmatpush1.bf16.msra.mxu0 %v955
    %2196 = vmatprep.subr.bf16.mxu0 %v960
    %2197 = vmatpush1.bf16.msra.mxu0 %v959
    %2198 = vmatprep.subr.bf16.mxu0 %v964
    %2199 = vmatpush1.bf16.msra.mxu0 %v963
    %2200 = vmatprep.subr.bf16.mxu0 0
    %2201 = vmatpush1.bf16.msra.mxu0 0
    %2202 = vmatprep.subr.bf16.mxu0 0
    %2203 = vmatpush1.bf16.msra.mxu0 0
    %2204 = vmatprep.subr.bf16.mxu0 0
    %2205 = vmatpush1.bf16.msra.mxu0 0
    %2206 = vmatprep.subr.bf16.mxu0 0
    %2207 = vmatpush1.bf16.msra.mxu0 0
    %2208 = vmatprep.subr.bf16.mxu0 0
    %2209 = vmatpush1.bf16.msra.mxu0 0
    %2210 = vmatprep.subr.bf16.mxu0 0
    %2211 = vmatpush1.bf16.msra.mxu0 0
    %2212 = vmatprep.subr.bf16.mxu0 0
    %2213 = vmatpush1.bf16.msra.mxu0 0
    %2214 = vmatprep.subr.bf16.mxu0 0
    %2215 = vmatpush1.bf16.msra.mxu0 0
    %2216 = vmatprep.mubr.bf16.mxu0 0
    %2217 = vmatmul.mubr.bf16.gmra.mrb[0].mxu0 %v2142
    %v2218 = vpop.f32.mrb[0].mxu0
    %v2219 = vadd.f32 0.0, %v2218
    %v2220 = vpop.f32.mrb[0].mxu0
    %v2221 = vadd.f32 0.0, %v2220
    %v2222 = vpop.f32.mrb[0].mxu0
    %v2223 = vpop.f32.mrb[0].mxu0
    %2224 = vdwg.mxu0
    %v2226 = vshrl.u32 %v2141, 16
    %v2228 = vrot.slane %v2226, 1
    %2230 = vmatprep.subr.bf16.mxu0 %v1176
    %2231 = vmatpush1.bf16.msra.mxu0 %v1175
    %2232 = vmatprep.subr.bf16.mxu0 %v1180
    %2233 = vmatpush1.bf16.msra.mxu0 %v1179
    %2234 = vmatprep.subr.bf16.mxu0 %v1184
    %2235 = vmatpush1.bf16.msra.mxu0 %v1183
    %2236 = vmatprep.subr.bf16.mxu0 %v1188
    %2237 = vmatpush1.bf16.msra.mxu0 %v1187
    %2238 = vmatprep.subr.bf16.mxu0 %v1192
    %2239 = vmatpush1.bf16.msra.mxu0 %v1191
    %2240 = vmatprep.subr.bf16.mxu0 %v1196
    %2241 = vmatpush1.bf16.msra.mxu0 %v1195
    %2242 = vmatprep.subr.bf16.mxu0 %v1200
    %2243 = vmatpush1.bf16.msra.mxu0 %v1199
    %2244 = vmatprep.subr.bf16.mxu0 %v1204
    %2245 = vmatpush1.bf16.msra.mxu0 %v1203
    %2246 = vmatprep.subr.bf16.mxu0 0
    %2247 = vmatpush1.bf16.msra.mxu0 0
    %2248 = vmatprep.subr.bf16.mxu0 0
    %2249 = vmatpush1.bf16.msra.mxu0 0
    %2250 = vmatprep.subr.bf16.mxu0 0
    %2251 = vmatpush1.bf16.msra.mxu0 0
    %2252 = vmatprep.subr.bf16.mxu0 0
    %2253 = vmatpush1.bf16.msra.mxu0 0
    %2254 = vmatprep.subr.bf16.mxu0 0
    %2255 = vmatpush1.bf16.msra.mxu0 0
    %2256 = vmatprep.subr.bf16.mxu0 0
    %2257 = vmatpush1.bf16.msra.mxu0 0
    %2258 = vmatprep.subr.bf16.mxu0 0
    %2259 = vmatpush1.bf16.msra.mxu0 0
    %2260 = vmatprep.subr.bf16.mxu0 0
    %2261 = vmatpush1.bf16.msra.mxu0 0
    %2262 = vmatprep.mubr.bf16.mxu0 0
    %2263 = vmatmul.mubr.bf16.gmra.mrb[0].mxu0 %v2228
    %v2264 = vpop.f32.mrb[0].mxu0
    %v2265 = vadd.f32 %v2178, %v2264
    %v2266 = vpop.f32.mrb[0].mxu0
    %v2267 = vadd.f32 %v2180, %v2266
    %v2268 = vpop.f32.mrb[0].mxu0
    %v2269 = vpop.f32.mrb[0].mxu0
    %2270 = vdwg.mxu0
    %2271 = vmatprep.subr.bf16.mxu0 %v1178
    %2272 = vmatpush1.bf16.msra.mxu0 %v1177
    %2273 = vmatprep.subr.bf16.mxu0 %v1182
    %2274 = vmatpush1.bf16.msra.mxu0 %v1181
    %2275 = vmatprep.subr.bf16.mxu0 %v1186
    %2276 = vmatpush1.bf16.msra.mxu0 %v1185
    %2277 = vmatprep.subr.bf16.mxu0 %v1190
    %2278 = vmatpush1.bf16.msra.mxu0 %v1189
    %2279 = vmatprep.subr.bf16.mxu0 %v1194
    %2280 = vmatpush1.bf16.msra.mxu0 %v1193
    %2281 = vmatprep.subr.bf16.mxu0 %v1198
    %2282 = vmatpush1.bf16.msra.mxu0 %v1197
    %2283 = vmatprep.subr.bf16.mxu0 %v1202
    %2284 = vmatpush1.bf16.msra.mxu0 %v1201
    %2285 = vmatprep.subr.bf16.mxu0 %v1206
    %2286 = vmatpush1.bf16.msra.mxu0 %v1205
    %2287 = vmatprep.subr.bf16.mxu0 0
    %2288 = vmatpush1.bf16.msra.mxu0 0
    %2289 = vmatprep.subr.bf16.mxu0 0
    %2290 = vmatpush1.bf16.msra.mxu0 0
    %2291 = vmatprep.subr.bf16.mxu0 0
    %2292 = vmatpush1.bf16.msra.mxu0 0
    %2293 = vmatprep.subr.bf16.mxu0 0
    %2294 = vmatpush1.bf16.msra.mxu0 0
    %2295 = vmatprep.subr.bf16.mxu0 0
    %2296 = vmatpush1.bf16.msra.mxu0 0
    %2297 = vmatprep.subr.bf16.mxu0 0
    %2298 = vmatpush1.bf16.msra.mxu0 0
    %2299 = vmatprep.subr.bf16.mxu0 0
    %2300 = vmatpush1.bf16.msra.mxu0 0
    %2301 = vmatprep.subr.bf16.mxu0 0
    %2302 = vmatpush1.bf16.msra.mxu0 0
    %2303 = vmatprep.mubr.bf16.mxu0 0
    %2304 = vmatmul.mubr.bf16.gmra.mrb[0].mxu0 %v2228
    %v2305 = vpop.f32.mrb[0].mxu0
    %v2306 = vadd.f32 %v2219, %v2305
    %v2307 = vpop.f32.mrb[0].mxu0
    %v2308 = vadd.f32 %v2221, %v2307
    %v2309 = vpop.f32.mrb[0].mxu0
    %v2310 = vpop.f32.mrb[0].mxu0
    %2311 = vdwg.mxu0
    %v2312 = vadd.f32 %v2265, %v1326
    %v2313 = vadd.f32 %v2267, %v1330
    %v2314 = vadd.f32 %v2306, %v1334
    %v2315 = vadd.f32 %v2308, %v1338
    %v2316 = vxor.u32 %v2312, 2147483648
    %v2317 = vxor.u32 %v2313, 2147483648
    %v2318 = vxor.u32 %v2314, 2147483648
    %v2319 = vmul.f32 %v2316, 1.442695
    %v2320 = vpow.pop %v2319
    %v2321 = vmul.f32 %v2317, 1.442695
    %v2322 = vpow.pop %v2321
    %v2323 = vmul.f32 %v2318, 1.442695
    %v2324 = vpow.pop %v2323
    %v2325 = vadd.f32 %v2320, 1.0
    %v2326 = vadd.f32 %v2322, 1.0
    %v2327 = vadd.f32 %v2324, 1.0
    %v2328 = vrcp.pop %v2325
    %v2329 = vmul.f32 1.0, %v2328
    %v2330 = vrcp.pop %v2326
    %v2331 = vmul.f32 1.0, %v2330
    %v2332 = vrcp.pop %v2327
    %v2333 = vmul.f32 1.0, %v2332
    %v2334 = vtanh.pop %v2315
    %v2335 = vmul.f32 %v2331, %v2013
    %v2336 = vmul.f32 %v2329, %v2334
    %v2337 = vadd.f32 %v2335, %v2336
    %v2338 = vtanh.pop %v2337
    %v2339 = vmul.f32 %v2333, %v2338
    %2340 = vmatprep.subr.bf16.mxu0 %v599
    %2341 = vmatpush1.bf16.msra.mxu0 %v598
    %2342 = vmatprep.subr.bf16.mxu0 %v603
    %2343 = vmatpush1.bf16.msra.mxu0 %v602
    %2344 = vmatprep.subr.bf16.mxu0 %v607
    %2345 = vmatpush1.bf16.msra.mxu0 %v606
    %2346 = vmatprep.subr.bf16.mxu0 %v611
    %2347 = vmatpush1.bf16.msra.mxu0 %v610
    %2348 = vmatprep.subr.bf16.mxu0 %v615
    %2349 = vmatpush1.bf16.msra.mxu0 %v614
    %2350 = vmatprep.subr.bf16.mxu0 %v619
    %2351 = vmatpush1.bf16.msra.mxu0 %v618
    %2352 = vmatprep.subr.bf16.mxu0 %v623
    %2353 = vmatpush1.bf16.msra.mxu0 %v622
    %2354 = vmatprep.subr.bf16.mxu0 %v627
    %2355 = vmatpush1.bf16.msra.mxu0 %v626
    %2356 = vmatprep.subr.bf16.mxu0 0
    %2357 = vmatpush1.bf16.msra.mxu0 0
    %2358 = vmatprep.subr.bf16.mxu0 0
    %2359 = vmatpush1.bf16.msra.mxu0 0
    %2360 = vmatprep.subr.bf16.mxu0 0
    %2361 = vmatpush1.bf16.msra.mxu0 0
    %2362 = vmatprep.subr.bf16.mxu0 0
    %2363 = vmatpush1.bf16.msra.mxu0 0
    %2364 = vmatprep.subr.bf16.mxu0 0
    %2365 = vmatpush1.bf16.msra.mxu0 0
    %2366 = vmatprep.subr.bf16.mxu0 0
    %2367 = vmatpush1.bf16.msra.mxu0 0
    %2368 = vmatprep.subr.bf16.mxu0 0
    %2369 = vmatpush1.bf16.msra.mxu0 0
    %2370 = vmatprep.subr.bf16.mxu0 0
    %2371 = vmatpush1.bf16.msra.mxu0 0
    %2372 = vmatprep.mubr.bf16.mxu0 0
    %2373 = vmatmul.mubr.bf16.gmra.mrb[0].mxu0 %v2228
    %v2374 = vpop.f32.mrb[0].mxu0
    %v2375 = vadd.f32 0.0, %v2374
    %v2376 = vpop.f32.mrb[0].mxu0
    %v2377 = vadd.f32 0.0, %v2376
    %v2378 = vpop.f32.mrb[0].mxu0
    %v2379 = vpop.f32.mrb[0].mxu0
    %2380 = vdwg.mxu0
    %2381 = vmatprep.subr.bf16.mxu0 %v601
    %2382 = vmatpush1.bf16.msra.mxu0 %v600
    %2383 = vmatprep.subr.bf16.mxu0 %v605
    %2384 = vmatpush1.bf16.msra.mxu0 %v604
    %2385 = vmatprep.subr.bf16.mxu0 %v609
    %2386 = vmatpush1.bf16.msra.mxu0 %v608
    %2387 = vmatprep.subr.bf16.mxu0 %v613
    %2388 = vmatpush1.bf16.msra.mxu0 %v612
    %2389 = vmatprep.subr.bf16.mxu0 %v617
    %2390 = vmatpush1.bf16.msra.mxu0 %v616
    %2391 = vmatprep.subr.bf16.mxu0 %v621
    %2392 = vmatpush1.bf16.msra.mxu0 %v620
    %2393 = vmatprep.subr.bf16.mxu0 %v625
    %2394 = vmatpush1.bf16.msra.mxu0 %v624
    %2395 = vmatprep.subr.bf16.mxu0 %v629
    %2396 = vmatpush1.bf16.msra.mxu0 %v628
    %2397 = vmatprep.subr.bf16.mxu0 0
    %2398 = vmatpush1.bf16.msra.mxu0 0
    %2399 = vmatprep.subr.bf16.mxu0 0
    %2400 = vmatpush1.bf16.msra.mxu0 0
    %2401 = vmatprep.subr.bf16.mxu0 0
    %2402 = vmatpush1.bf16.msra.mxu0 0
    %2403 = vmatprep.subr.bf16.mxu0 0
    %2404 = vmatpush1.bf16.msra.mxu0 0
    %2405 = vmatprep.subr.bf16.mxu0 0
    %2406 = vmatpush1.bf16.msra.mxu0 0
    %2407 = vmatprep.subr.bf16.mxu0 0
    %2408 = vmatpush1.bf16.msra.mxu0 0
    %2409 = vmatprep.subr.bf16.mxu0 0
    %2410 = vmatpush1.bf16.msra.mxu0 0
    %2411 = vmatprep.subr.bf16.mxu0 0
    %2412 = vmatpush1.bf16.msra.mxu0 0
    %2413 = vmatprep.mubr.bf16.mxu0 0
    %2414 = vmatmul.mubr.bf16.gmra.mrb[0].mxu0 %v2228
    %v2415 = vpop.f32.mrb[0].mxu0
    %v2416 = vadd.f32 0.0, %v2415
    %v2417 = vpop.f32.mrb[0].mxu0
    %v2418 = vadd.f32 0.0, %v2417
    %v2419 = vpop.f32.mrb[0].mxu0
    %v2420 = vpop.f32.mrb[0].mxu0
    %2421 = vdwg.mxu0
    %v2426 = vrot.slane %v2375, 4
    %v2427 = vrot.slane %v2377, 4
    %v2428 = vrot.slane %v2416, 4
    %v2429 = vrot.slane %v2418, 4
    %v2434 = vadd.f32 %v423, %v2426
    %v2435 = vadd.f32 %v425, %v2427
    %v2436 = vadd.f32 %v464, %v2428
    %v2437 = vadd.f32 %v466, %v2429
    %v2438 = vxor.u32 %v2434, 2147483648
    %v2439 = vxor.u32 %v2435, 2147483648
    %v2440 = vxor.u32 %v2436, 2147483648
    %v2441 = vmul.f32 %v2438, 1.442695
    %v2442 = vpow.pop %v2441
    %v2443 = vmul.f32 %v2439, 1.442695
    %v2444 = vpow.pop %v2443
    %v2445 = vmul.f32 %v2440, 1.442695
    %v2446 = vpow.pop %v2445
    %v2447 = vadd.f32 %v2442, 1.0
    %v2448 = vadd.f32 %v2444, 1.0
    %v2449 = vadd.f32 %v2446, 1.0
    %v2450 = vrcp.pop %v2447
    %v2451 = vmul.f32 1.0, %v2450
    %v2452 = vrcp.pop %v2448
    %v2453 = vmul.f32 1.0, %v2452
    %v2454 = vrcp.pop %v2449
    %v2455 = vmul.f32 1.0, %v2454
    %v2456 = vtanh.pop %v2437
    %v2458 = vrot.slane %v2138, 7
    %v2460 = vmul.f32 %v2453, %v2458
    %v2461 = vmul.f32 %v2451, %v2456
    %v2462 = vadd.f32 %v2460, %v2461
    %v2463 = vtanh.pop %v2462
    %v2464 = vmul.f32 %v2455, %v2463
    %v2465 = vpack.c.bf16 %v2464, %v2464
    %v2466 = vpack.c.bf16 %v2339, %v2339
    %2467 = vmatprep.subr.bf16.mxu0 %v934
    %2468 = vmatpush1.bf16.msra.mxu0 %v933
    %2469 = vmatprep.subr.bf16.mxu0 %v938
    %2470 = vmatpush1.bf16.msra.mxu0 %v937
    %2471 = vmatprep.subr.bf16.mxu0 %v942
    %2472 = vmatpush1.bf16.msra.mxu0 %v941
    %2473 = vmatprep.subr.bf16.mxu0 %v946
    %2474 = vmatpush1.bf16.msra.mxu0 %v945
    %2475 = vmatprep.subr.bf16.mxu0 %v950
    %2476 = vmatpush1.bf16.msra.mxu0 %v949
    %2477 = vmatprep.subr.bf16.mxu0 %v954
    %2478 = vmatpush1.bf16.msra.mxu0 %v953
    %2479 = vmatprep.subr.bf16.mxu0 %v958
    %2480 = vmatpush1.bf16.msra.mxu0 %v957
    %2481 = vmatprep.subr.bf16.mxu0 %v962
    %2482 = vmatpush1.bf16.msra.mxu0 %v961
    %2483 = vmatprep.subr.bf16.mxu0 0
    %2484 = vmatpush1.bf16.msra.mxu0 0
    %2485 = vmatprep.subr.bf16.mxu0 0
    %2486 = vmatpush1.bf16.msra.mxu0 0
    %2487 = vmatprep.subr.bf16.mxu0 0
    %2488 = vmatpush1.bf16.msra.mxu0 0
    %2489 = vmatprep.subr.bf16.mxu0 0
    %2490 = vmatpush1.bf16.msra.mxu0 0
    %2491 = vmatprep.subr.bf16.mxu0 0
    %2492 = vmatpush1.bf16.msra.mxu0 0
    %2493 = vmatprep.subr.bf16.mxu0 0
    %2494 = vmatpush1.bf16.msra.mxu0 0
    %2495 = vmatprep.subr.bf16.mxu0 0
    %2496 = vmatpush1.bf16.msra.mxu0 0
    %2497 = vmatprep.subr.bf16.mxu0 0
    %2498 = vmatpush1.bf16.msra.mxu0 0
    %2499 = vmatprep.mubr.bf16.mxu0 0
    %2500 = vmatmul.mubr.bf16.gmra.mrb[0].mxu0 %v2466
    %v2501 = vpop.f32.mrb[0].mxu0
    %v2502 = vadd.f32 0.0, %v2501
    %v2503 = vpop.f32.mrb[0].mxu0
    %v2504 = vadd.f32 0.0, %v2503
    %v2505 = vpop.f32.mrb[0].mxu0
    %v2506 = vpop.f32.mrb[0].mxu0
    %2507 = vdwg.mxu0
    %2508 = vmatprep.subr.bf16.mxu0 %v936
    %2509 = vmatpush1.bf16.msra.mxu0 %v935
    %2510 = vmatprep.subr.bf16.mxu0 %v940
    %2511 = vmatpush1.bf16.msra.mxu0 %v939
    %2512 = vmatprep.subr.bf16.mxu0 %v944
    %2513 = vmatpush1.bf16.msra.mxu0 %v943
    %2514 = vmatprep.subr.bf16.mxu0 %v948
    %2515 = vmatpush1.bf16.msra.mxu0 %v947
    %2516 = vmatprep.subr.bf16.mxu0 %v952
    %2517 = vmatpush1.bf16.msra.mxu0 %v951
    %2518 = vmatprep.subr.bf16.mxu0 %v956
    %2519 = vmatpush1.bf16.msra.mxu0 %v955
    %2520 = vmatprep.subr.bf16.mxu0 %v960
    %2521 = vmatpush1.bf16.msra.mxu0 %v959
    %2522 = vmatprep.subr.bf16.mxu0 %v964
    %2523 = vmatpush1.bf16.msra.mxu0 %v963
    %2524 = vmatprep.subr.bf16.mxu0 0
    %2525 = vmatpush1.bf16.msra.mxu0 0
    %2526 = vmatprep.subr.bf16.mxu0 0
    %2527 = vmatpush1.bf16.msra.mxu0 0
    %2528 = vmatprep.subr.bf16.mxu0 0
    %2529 = vmatpush1.bf16.msra.mxu0 0
    %2530 = vmatprep.subr.bf16.mxu0 0
    %2531 = vmatpush1.bf16.msra.mxu0 0
    %2532 = vmatprep.subr.bf16.mxu0 0
    %2533 = vmatpush1.bf16.msra.mxu0 0
    %2534 = vmatprep.subr.bf16.mxu0 0
    %2535 = vmatpush1.bf16.msra.mxu0 0
    %2536 = vmatprep.subr.bf16.mxu0 0
    %2537 = vmatpush1.bf16.msra.mxu0 0
    %2538 = vmatprep.subr.bf16.mxu0 0
    %2539 = vmatpush1.bf16.msra.mxu0 0
    %2540 = vmatprep.mubr.bf16.mxu0 0
    %2541 = vmatmul.mubr.bf16.gmra.mrb[0].mxu0 %v2466
    %v2542 = vpop.f32.mrb[0].mxu0
    %v2543 = vadd.f32 0.0, %v2542
    %v2544 = vpop.f32.mrb[0].mxu0
    %v2545 = vadd.f32 0.0, %v2544
    %v2546 = vpop.f32.mrb[0].mxu0
    %v2547 = vpop.f32.mrb[0].mxu0
    %2548 = vdwg.mxu0
    %v2550 = vrot.slane %v2465, 2
    %2552 = vmatprep.subr.bf16.mxu0 %v1176
    %2553 = vmatpush1.bf16.msra.mxu0 %v1175
    %2554 = vmatprep.subr.bf16.mxu0 %v1180
    %2555 = vmatpush1.bf16.msra.mxu0 %v1179
    %2556 = vmatprep.subr.bf16.mxu0 %v1184
    %2557 = vmatpush1.bf16.msra.mxu0 %v1183
    %2558 = vmatprep.subr.bf16.mxu0 %v1188
    %2559 = vmatpush1.bf16.msra.mxu0 %v1187
    %2560 = vmatprep.subr.bf16.mxu0 %v1192
    %2561 = vmatpush1.bf16.msra.mxu0 %v1191
    %2562 = vmatprep.subr.bf16.mxu0 %v1196
    %2563 = vmatpush1.bf16.msra.mxu0 %v1195
    %2564 = vmatprep.subr.bf16.mxu0 %v1200
    %2565 = vmatpush1.bf16.msra.mxu0 %v1199
    %2566 = vmatprep.subr.bf16.mxu0 %v1204
    %2567 = vmatpush1.bf16.msra.mxu0 %v1203
    %2568 = vmatprep.subr.bf16.mxu0 0
    %2569 = vmatpush1.bf16.msra.mxu0 0
    %2570 = vmatprep.subr.bf16.mxu0 0
    %2571 = vmatpush1.bf16.msra.mxu0 0
    %2572 = vmatprep.subr.bf16.mxu0 0
    %2573 = vmatpush1.bf16.msra.mxu0 0
    %2574 = vmatprep.subr.bf16.mxu0 0
    %2575 = vmatpush1.bf16.msra.mxu0 0
    %2576 = vmatprep.subr.bf16.mxu0 0
    %2577 = vmatpush1.bf16.msra.mxu0 0
    %2578 = vmatprep.subr.bf16.mxu0 0
    %2579 = vmatpush1.bf16.msra.mxu0 0
    %2580 = vmatprep.subr.bf16.mxu0 0
    %2581 = vmatpush1.bf16.msra.mxu0 0
    %2582 = vmatprep.subr.bf16.mxu0 0
    %2583 = vmatpush1.bf16.msra.mxu0 0
    %2584 = vmatprep.mubr.bf16.mxu0 0
    %2585 = vmatmul.mubr.bf16.gmra.mrb[0].mxu0 %v2550
    %v2586 = vpop.f32.mrb[0].mxu0
    %v2587 = vadd.f32 %v2502, %v2586
    %v2588 = vpop.f32.mrb[0].mxu0
    %v2589 = vadd.f32 %v2504, %v2588
    %v2590 = vpop.f32.mrb[0].mxu0
    %v2591 = vpop.f32.mrb[0].mxu0
    %2592 = vdwg.mxu0
    %2593 = vmatprep.subr.bf16.mxu0 %v1178
    %2594 = vmatpush1.bf16.msra.mxu0 %v1177
    %2595 = vmatprep.subr.bf16.mxu0 %v1182
    %2596 = vmatpush1.bf16.msra.mxu0 %v1181
    %2597 = vmatprep.subr.bf16.mxu0 %v1186
    %2598 = vmatpush1.bf16.msra.mxu0 %v1185
    %2599 = vmatprep.subr.bf16.mxu0 %v1190
    %2600 = vmatpush1.bf16.msra.mxu0 %v1189
    %2601 = vmatprep.subr.bf16.mxu0 %v1194
    %2602 = vmatpush1.bf16.msra.mxu0 %v1193
    %2603 = vmatprep.subr.bf16.mxu0 %v1198
    %2604 = vmatpush1.bf16.msra.mxu0 %v1197
    %2605 = vmatprep.subr.bf16.mxu0 %v1202
    %2606 = vmatpush1.bf16.msra.mxu0 %v1201
    %2607 = vmatprep.subr.bf16.mxu0 %v1206
    %2608 = vmatpush1.bf16.msra.mxu0 %v1205
    %2609 = vmatprep.subr.bf16.mxu0 0
    %2610 = vmatpush1.bf16.msra.mxu0 0
    %2611 = vmatprep.subr.bf16.mxu0 0
    %2612 = vmatpush1.bf16.msra.mxu0 0
    %2613 = vmatprep.subr.bf16.mxu0 0
    %2614 = vmatpush1.bf16.msra.mxu0 0
    %2615 = vmatprep.subr.bf16.mxu0 0
    %2616 = vmatpush1.bf16.msra.mxu0 0
    %2617 = vmatprep.subr.bf16.mxu0 0
    %2618 = vmatpush1.bf16.msra.mxu0 0
    %2619 = vmatprep.subr.bf16.mxu0 0
    %2620 = vmatpush1.bf16.msra.mxu0 0
    %2621 = vmatprep.subr.bf16.mxu0 0
    %2622 = vmatpush1.bf16.msra.mxu0 0
    %2623 = vmatprep.subr.bf16.mxu0 0
    %2624 = vmatpush1.bf16.msra.mxu0 0
    %2625 = vmatprep.mubr.bf16.mxu0 0
    %2626 = vmatmul.mubr.bf16.gmra.mrb[0].mxu0 %v2550
    %v2627 = vpop.f32.mrb[0].mxu0
    %v2628 = vadd.f32 %v2543, %v2627
    %v2629 = vpop.f32.mrb[0].mxu0
    %v2630 = vadd.f32 %v2545, %v2629
    %v2631 = vpop.f32.mrb[0].mxu0
    %v2632 = vpop.f32.mrb[0].mxu0
    %2633 = vdwg.mxu0
    %v2634 = vadd.f32 %v2587, %v1326
    %v2635 = vadd.f32 %v2589, %v1330
    %v2636 = vadd.f32 %v2628, %v1334
    %v2637 = vadd.f32 %v2630, %v1338
    %v2638 = vxor.u32 %v2634, 2147483648
    %v2639 = vxor.u32 %v2635, 2147483648
    %v2640 = vxor.u32 %v2636, 2147483648
    %v2641 = vmul.f32 %v2638, 1.442695
    %v2642 = vpow.pop %v2641
    %v2643 = vmul.f32 %v2639, 1.442695
    %v2644 = vpow.pop %v2643
    %v2645 = vmul.f32 %v2640, 1.442695
    %v2646 = vpow.pop %v2645
    %v2647 = vadd.f32 %v2642, 1.0
    %v2648 = vadd.f32 %v2644, 1.0
    %v2649 = vadd.f32 %v2646, 1.0
    %v2650 = vrcp.pop %v2647
    %v2651 = vmul.f32 1.0, %v2650
    %v2652 = vrcp.pop %v2648
    %v2653 = vmul.f32 1.0, %v2652
    %v2654 = vrcp.pop %v2649
    %v2655 = vmul.f32 1.0, %v2654
    %v2656 = vtanh.pop %v2637
    %v2657 = vmul.f32 %v2653, %v2337
    %v2658 = vmul.f32 %v2651, %v2656
    %v2659 = vadd.f32 %v2657, %v2658
    %v2660 = vtanh.pop %v2659
    %v2661 = vmul.f32 %v2655, %v2660
    %2662 = vmatprep.subr.bf16.mxu0 %v599
    %2663 = vmatpush1.bf16.msra.mxu0 %v598
    %2664 = vmatprep.subr.bf16.mxu0 %v603
    %2665 = vmatpush1.bf16.msra.mxu0 %v602
    %2666 = vmatprep.subr.bf16.mxu0 %v607
    %2667 = vmatpush1.bf16.msra.mxu0 %v606
    %2668 = vmatprep.subr.bf16.mxu0 %v611
    %2669 = vmatpush1.bf16.msra.mxu0 %v610
    %2670 = vmatprep.subr.bf16.mxu0 %v615
    %2671 = vmatpush1.bf16.msra.mxu0 %v614
    %2672 = vmatprep.subr.bf16.mxu0 %v619
    %2673 = vmatpush1.bf16.msra.mxu0 %v618
    %2674 = vmatprep.subr.bf16.mxu0 %v623
    %2675 = vmatpush1.bf16.msra.mxu0 %v622
    %2676 = vmatprep.subr.bf16.mxu0 %v627
    %2677 = vmatpush1.bf16.msra.mxu0 %v626
    %2678 = vmatprep.subr.bf16.mxu0 0
    %2679 = vmatpush1.bf16.msra.mxu0 0
    %2680 = vmatprep.subr.bf16.mxu0 0
    %2681 = vmatpush1.bf16.msra.mxu0 0
    %2682 = vmatprep.subr.bf16.mxu0 0
    %2683 = vmatpush1.bf16.msra.mxu0 0
    %2684 = vmatprep.subr.bf16.mxu0 0
    %2685 = vmatpush1.bf16.msra.mxu0 0
    %2686 = vmatprep.subr.bf16.mxu0 0
    %2687 = vmatpush1.bf16.msra.mxu0 0
    %2688 = vmatprep.subr.bf16.mxu0 0
    %2689 = vmatpush1.bf16.msra.mxu0 0
    %2690 = vmatprep.subr.bf16.mxu0 0
    %2691 = vmatpush1.bf16.msra.mxu0 0
    %2692 = vmatprep.subr.bf16.mxu0 0
    %2693 = vmatpush1.bf16.msra.mxu0 0
    %2694 = vmatprep.mubr.bf16.mxu0 0
    %2695 = vmatmul.mubr.bf16.gmra.mrb[0].mxu0 %v2550
    %v2696 = vpop.f32.mrb[0].mxu0
    %v2697 = vadd.f32 0.0, %v2696
    %v2698 = vpop.f32.mrb[0].mxu0
    %v2699 = vadd.f32 0.0, %v2698
    %v2700 = vpop.f32.mrb[0].mxu0
    %v2701 = vpop.f32.mrb[0].mxu0
    %2702 = vdwg.mxu0
    %2703 = vmatprep.subr.bf16.mxu0 %v601
    %2704 = vmatpush1.bf16.msra.mxu0 %v600
    %2705 = vmatprep.subr.bf16.mxu0 %v605
    %2706 = vmatpush1.bf16.msra.mxu0 %v604
    %2707 = vmatprep.subr.bf16.mxu0 %v609
    %2708 = vmatpush1.bf16.msra.mxu0 %v608
    %2709 = vmatprep.subr.bf16.mxu0 %v613
    %2710 = vmatpush1.bf16.msra.mxu0 %v612
    %2711 = vmatprep.subr.bf16.mxu0 %v617
    %2712 = vmatpush1.bf16.msra.mxu0 %v616
    %2713 = vmatprep.subr.bf16.mxu0 %v621
    %2714 = vmatpush1.bf16.msra.mxu0 %v620
    %2715 = vmatprep.subr.bf16.mxu0 %v625
    %2716 = vmatpush1.bf16.msra.mxu0 %v624
    %2717 = vmatprep.subr.bf16.mxu0 %v629
    %2718 = vmatpush1.bf16.msra.mxu0 %v628
    %2719 = vmatprep.subr.bf16.mxu0 0
    %2720 = vmatpush1.bf16.msra.mxu0 0
    %2721 = vmatprep.subr.bf16.mxu0 0
    %2722 = vmatpush1.bf16.msra.mxu0 0
    %2723 = vmatprep.subr.bf16.mxu0 0
    %2724 = vmatpush1.bf16.msra.mxu0 0
    %2725 = vmatprep.subr.bf16.mxu0 0
    %2726 = vmatpush1.bf16.msra.mxu0 0
    %2727 = vmatprep.subr.bf16.mxu0 0
    %2728 = vmatpush1.bf16.msra.mxu0 0
    %2729 = vmatprep.subr.bf16.mxu0 0
    %2730 = vmatpush1.bf16.msra.mxu0 0
    %2731 = vmatprep.subr.bf16.mxu0 0
    %2732 = vmatpush1.bf16.msra.mxu0 0
    %2733 = vmatprep.subr.bf16.mxu0 0
    %2734 = vmatpush1.bf16.msra.mxu0 0
    %2735 = vmatprep.mubr.bf16.mxu0 0
    %2736 = vmatmul.mubr.bf16.gmra.mrb[0].mxu0 %v2550
    %v2737 = vpop.f32.mrb[0].mxu0
    %v2738 = vadd.f32 0.0, %v2737
    %v2739 = vpop.f32.mrb[0].mxu0
    %v2740 = vadd.f32 0.0, %v2739
    %v2741 = vpop.f32.mrb[0].mxu0
    %v2742 = vpop.f32.mrb[0].mxu0
    %2743 = vdwg.mxu0
    %v2748 = vrot.slane %v2697, 3
    %v2749 = vrot.slane %v2699, 3
    %v2750 = vrot.slane %v2738, 3
    %v2751 = vrot.slane %v2740, 3
    %v2756 = vadd.f32 %v423, %v2748
    %v2757 = vadd.f32 %v425, %v2749
    %v2758 = vadd.f32 %v464, %v2750
    %v2759 = vadd.f32 %v466, %v2751
    %v2760 = vxor.u32 %v2756, 2147483648
    %v2761 = vxor.u32 %v2757, 2147483648
    %v2762 = vxor.u32 %v2758, 2147483648
    %v2763 = vmul.f32 %v2760, 1.442695
    %v2764 = vpow.pop %v2763
    %v2765 = vmul.f32 %v2761, 1.442695
    %v2766 = vpow.pop %v2765
    %v2767 = vmul.f32 %v2762, 1.442695
    %v2768 = vpow.pop %v2767
    %v2769 = vadd.f32 %v2764, 1.0
    %v2770 = vadd.f32 %v2766, 1.0
    %v2771 = vadd.f32 %v2768, 1.0
    %v2772 = vrcp.pop %v2769
    %v2773 = vmul.f32 1.0, %v2772
    %v2774 = vrcp.pop %v2770
    %v2775 = vmul.f32 1.0, %v2774
    %v2776 = vrcp.pop %v2771
    %v2777 = vmul.f32 1.0, %v2776
    %v2778 = vtanh.pop %v2759
    %v2780 = vrot.slane %v2462, 7
    %v2782 = vmul.f32 %v2775, %v2780
    %v2783 = vmul.f32 %v2773, %v2778
    %v2784 = vadd.f32 %v2782, %v2783
    %v2785 = vtanh.pop %v2784
    %v2786 = vmul.f32 %v2777, %v2785
    %v2787 = vpack.c.bf16 %v2786, %v2786
    %v2788 = vpack.c.bf16 %v2661, %v2661
    %2789 = vmatprep.subr.bf16.mxu0 %v934
    %2790 = vmatpush1.bf16.msra.mxu0 %v933
    %2791 = vmatprep.subr.bf16.mxu0 %v938
    %2792 = vmatpush1.bf16.msra.mxu0 %v937
    %2793 = vmatprep.subr.bf16.mxu0 %v942
    %2794 = vmatpush1.bf16.msra.mxu0 %v941
    %2795 = vmatprep.subr.bf16.mxu0 %v946
    %2796 = vmatpush1.bf16.msra.mxu0 %v945
    %2797 = vmatprep.subr.bf16.mxu0 %v950
    %2798 = vmatpush1.bf16.msra.mxu0 %v949
    %2799 = vmatprep.subr.bf16.mxu0 %v954
    %2800 = vmatpush1.bf16.msra.mxu0 %v953
    %2801 = vmatprep.subr.bf16.mxu0 %v958
    %2802 = vmatpush1.bf16.msra.mxu0 %v957
    %2803 = vmatprep.subr.bf16.mxu0 %v962
    %2804 = vmatpush1.bf16.msra.mxu0 %v961
    %2805 = vmatprep.subr.bf16.mxu0 0
    %2806 = vmatpush1.bf16.msra.mxu0 0
    %2807 = vmatprep.subr.bf16.mxu0 0
    %2808 = vmatpush1.bf16.msra.mxu0 0
    %2809 = vmatprep.subr.bf16.mxu0 0
    %2810 = vmatpush1.bf16.msra.mxu0 0
    %2811 = vmatprep.subr.bf16.mxu0 0
    %2812 = vmatpush1.bf16.msra.mxu0 0
    %2813 = vmatprep.subr.bf16.mxu0 0
    %2814 = vmatpush1.bf16.msra.mxu0 0
    %2815 = vmatprep.subr.bf16.mxu0 0
    %2816 = vmatpush1.bf16.msra.mxu0 0
    %2817 = vmatprep.subr.bf16.mxu0 0
    %2818 = vmatpush1.bf16.msra.mxu0 0
    %2819 = vmatprep.subr.bf16.mxu0 0
    %2820 = vmatpush1.bf16.msra.mxu0 0
    %2821 = vmatprep.mubr.bf16.mxu0 0
    %2822 = vmatmul.mubr.bf16.gmra.mrb[0].mxu0 %v2788
    %v2823 = vpop.f32.mrb[0].mxu0
    %v2824 = vadd.f32 0.0, %v2823
    %v2825 = vpop.f32.mrb[0].mxu0
    %v2826 = vadd.f32 0.0, %v2825
    %v2827 = vpop.f32.mrb[0].mxu0
    %v2828 = vpop.f32.mrb[0].mxu0
    %2829 = vdwg.mxu0
    %2830 = vmatprep.subr.bf16.mxu0 %v936
    %2831 = vmatpush1.bf16.msra.mxu0 %v935
    %2832 = vmatprep.subr.bf16.mxu0 %v940
    %2833 = vmatpush1.bf16.msra.mxu0 %v939
    %2834 = vmatprep.subr.bf16.mxu0 %v944
    %2835 = vmatpush1.bf16.msra.mxu0 %v943
    %2836 = vmatprep.subr.bf16.mxu0 %v948
    %2837 = vmatpush1.bf16.msra.mxu0 %v947
    %2838 = vmatprep.subr.bf16.mxu0 %v952
    %2839 = vmatpush1.bf16.msra.mxu0 %v951
    %2840 = vmatprep.subr.bf16.mxu0 %v956
    %2841 = vmatpush1.bf16.msra.mxu0 %v955
    %2842 = vmatprep.subr.bf16.mxu0 %v960
    %2843 = vmatpush1.bf16.msra.mxu0 %v959
    %2844 = vmatprep.subr.bf16.mxu0 %v964
    %2845 = vmatpush1.bf16.msra.mxu0 %v963
    %2846 = vmatprep.subr.bf16.mxu0 0
    %2847 = vmatpush1.bf16.msra.mxu0 0
    %2848 = vmatprep.subr.bf16.mxu0 0
    %2849 = vmatpush1.bf16.msra.mxu0 0
    %2850 = vmatprep.subr.bf16.mxu0 0
    %2851 = vmatpush1.bf16.msra.mxu0 0
    %2852 = vmatprep.subr.bf16.mxu0 0
    %2853 = vmatpush1.bf16.msra.mxu0 0
    %2854 = vmatprep.subr.bf16.mxu0 0
    %2855 = vmatpush1.bf16.msra.mxu0 0
    %2856 = vmatprep.subr.bf16.mxu0 0
    %2857 = vmatpush1.bf16.msra.mxu0 0
    %2858 = vmatprep.subr.bf16.mxu0 0
    %2859 = vmatpush1.bf16.msra.mxu0 0
    %2860 = vmatprep.subr.bf16.mxu0 0
    %2861 = vmatpush1.bf16.msra.mxu0 0
    %2862 = vmatprep.mubr.bf16.mxu0 0
    %2863 = vmatmul.mubr.bf16.gmra.mrb[0].mxu0 %v2788
    %v2864 = vpop.f32.mrb[0].mxu0
    %v2865 = vadd.f32 0.0, %v2864
    %v2866 = vpop.f32.mrb[0].mxu0
    %v2867 = vadd.f32 0.0, %v2866
    %v2868 = vpop.f32.mrb[0].mxu0
    %v2869 = vpop.f32.mrb[0].mxu0
    %2870 = vdwg.mxu0
    %v2872 = vshrl.u32 %v2787, 16
    %v2874 = vrot.slane %v2872, 2
    %2876 = vmatprep.subr.bf16.mxu0 %v1176
    %2877 = vmatpush1.bf16.msra.mxu0 %v1175
    %2878 = vmatprep.subr.bf16.mxu0 %v1180
    %2879 = vmatpush1.bf16.msra.mxu0 %v1179
    %2880 = vmatprep.subr.bf16.mxu0 %v1184
    %2881 = vmatpush1.bf16.msra.mxu0 %v1183
    %2882 = vmatprep.subr.bf16.mxu0 %v1188
    %2883 = vmatpush1.bf16.msra.mxu0 %v1187
    %2884 = vmatprep.subr.bf16.mxu0 %v1192
    %2885 = vmatpush1.bf16.msra.mxu0 %v1191
    %2886 = vmatprep.subr.bf16.mxu0 %v1196
    %2887 = vmatpush1.bf16.msra.mxu0 %v1195
    %2888 = vmatprep.subr.bf16.mxu0 %v1200
    %2889 = vmatpush1.bf16.msra.mxu0 %v1199
    %2890 = vmatprep.subr.bf16.mxu0 %v1204
    %2891 = vmatpush1.bf16.msra.mxu0 %v1203
    %2892 = vmatprep.subr.bf16.mxu0 0
    %2893 = vmatpush1.bf16.msra.mxu0 0
    %2894 = vmatprep.subr.bf16.mxu0 0
    %2895 = vmatpush1.bf16.msra.mxu0 0
    %2896 = vmatprep.subr.bf16.mxu0 0
    %2897 = vmatpush1.bf16.msra.mxu0 0
    %2898 = vmatprep.subr.bf16.mxu0 0
    %2899 = vmatpush1.bf16.msra.mxu0 0
    %2900 = vmatprep.subr.bf16.mxu0 0
    %2901 = vmatpush1.bf16.msra.mxu0 0
    %2902 = vmatprep.subr.bf16.mxu0 0
    %2903 = vmatpush1.bf16.msra.mxu0 0
    %2904 = vmatprep.subr.bf16.mxu0 0
    %2905 = vmatpush1.bf16.msra.mxu0 0
    %2906 = vmatprep.subr.bf16.mxu0 0
    %2907 = vmatpush1.bf16.msra.mxu0 0
    %2908 = vmatprep.mubr.bf16.mxu0 0
    %2909 = vmatmul.mubr.bf16.gmra.mrb[0].mxu0 %v2874
    %v2910 = vpop.f32.mrb[0].mxu0
    %v2911 = vadd.f32 %v2824, %v2910
    %v2912 = vpop.f32.mrb[0].mxu0
    %v2913 = vadd.f32 %v2826, %v2912
    %v2914 = vpop.f32.mrb[0].mxu0
    %v2915 = vpop.f32.mrb[0].mxu0
    %2916 = vdwg.mxu0
    %2917 = vmatprep.subr.bf16.mxu0 %v1178
    %2918 = vmatpush1.bf16.msra.mxu0 %v1177
    %2919 = vmatprep.subr.bf16.mxu0 %v1182
    %2920 = vmatpush1.bf16.msra.mxu0 %v1181
    %2921 = vmatprep.subr.bf16.mxu0 %v1186
    %2922 = vmatpush1.bf16.msra.mxu0 %v1185
    %2923 = vmatprep.subr.bf16.mxu0 %v1190
    %2924 = vmatpush1.bf16.msra.mxu0 %v1189
    %2925 = vmatprep.subr.bf16.mxu0 %v1194
    %2926 = vmatpush1.bf16.msra.mxu0 %v1193
    %2927 = vmatprep.subr.bf16.mxu0 %v1198
    %2928 = vmatpush1.bf16.msra.mxu0 %v1197
    %2929 = vmatprep.subr.bf16.mxu0 %v1202
    %2930 = vmatpush1.bf16.msra.mxu0 %v1201
    %2931 = vmatprep.subr.bf16.mxu0 %v1206
    %2932 = vmatpush1.bf16.msra.mxu0 %v1205
    %2933 = vmatprep.subr.bf16.mxu0 0
    %2934 = vmatpush1.bf16.msra.mxu0 0
    %2935 = vmatprep.subr.bf16.mxu0 0
    %2936 = vmatpush1.bf16.msra.mxu0 0
    %2937 = vmatprep.subr.bf16.mxu0 0
    %2938 = vmatpush1.bf16.msra.mxu0 0
    %2939 = vmatprep.subr.bf16.mxu0 0
    %2940 = vmatpush1.bf16.msra.mxu0 0
    %2941 = vmatprep.subr.bf16.mxu0 0
    %2942 = vmatpush1.bf16.msra.mxu0 0
    %2943 = vmatprep.subr.bf16.mxu0 0
    %2944 = vmatpush1.bf16.msra.mxu0 0
    %2945 = vmatprep.subr.bf16.mxu0 0
    %2946 = vmatpush1.bf16.msra.mxu0 0
    %2947 = vmatprep.subr.bf16.mxu0 0
    %2948 = vmatpush1.bf16.msra.mxu0 0
    %2949 = vmatprep.mubr.bf16.mxu0 0
    %2950 = vmatmul.mubr.bf16.gmra.mrb[0].mxu0 %v2874
    %v2951 = vpop.f32.mrb[0].mxu0
    %v2952 = vadd.f32 %v2865, %v2951
    %v2953 = vpop.f32.mrb[0].mxu0
    %v2954 = vadd.f32 %v2867, %v2953
    %v2955 = vpop.f32.mrb[0].mxu0
    %v2956 = vpop.f32.mrb[0].mxu0
    %2957 = vdwg.mxu0
    %v2958 = vadd.f32 %v2911, %v1326
    %v2959 = vadd.f32 %v2913, %v1330
    %v2960 = vadd.f32 %v2952, %v1334
    %v2961 = vadd.f32 %v2954, %v1338
    %v2962 = vxor.u32 %v2958, 2147483648
    %v2963 = vxor.u32 %v2959, 2147483648
    %v2964 = vxor.u32 %v2960, 2147483648
    %v2965 = vmul.f32 %v2962, 1.442695
    %v2966 = vpow.pop %v2965
    %v2967 = vmul.f32 %v2963, 1.442695
    %v2968 = vpow.pop %v2967
    %v2969 = vmul.f32 %v2964, 1.442695
    %v2970 = vpow.pop %v2969
    %v2971 = vadd.f32 %v2966, 1.0
    %v2972 = vadd.f32 %v2968, 1.0
    %v2973 = vadd.f32 %v2970, 1.0
    %v2974 = vrcp.pop %v2971
    %v2975 = vmul.f32 1.0, %v2974
    %v2976 = vrcp.pop %v2972
    %v2977 = vmul.f32 1.0, %v2976
    %v2978 = vrcp.pop %v2973
    %v2979 = vmul.f32 1.0, %v2978
    %v2980 = vtanh.pop %v2961
    %v2981 = vmul.f32 %v2977, %v2659
    %v2982 = vmul.f32 %v2975, %v2980
    %v2983 = vadd.f32 %v2981, %v2982
    %v2984 = vtanh.pop %v2983
    %v2985 = vmul.f32 %v2979, %v2984
    %2986 = vmatprep.subr.bf16.mxu0 %v599
    %2987 = vmatpush1.bf16.msra.mxu0 %v598
    %2988 = vmatprep.subr.bf16.mxu0 %v603
    %2989 = vmatpush1.bf16.msra.mxu0 %v602
    %2990 = vmatprep.subr.bf16.mxu0 %v607
    %2991 = vmatpush1.bf16.msra.mxu0 %v606
    %2992 = vmatprep.subr.bf16.mxu0 %v611
    %2993 = vmatpush1.bf16.msra.mxu0 %v610
    %2994 = vmatprep.subr.bf16.mxu0 %v615
    %2995 = vmatpush1.bf16.msra.mxu0 %v614
    %2996 = vmatprep.subr.bf16.mxu0 %v619
    %2997 = vmatpush1.bf16.msra.mxu0 %v618
    %2998 = vmatprep.subr.bf16.mxu0 %v623
    %2999 = vmatpush1.bf16.msra.mxu0 %v622
    %3000 = vmatprep.subr.bf16.mxu0 %v627
    %3001 = vmatpush1.bf16.msra.mxu0 %v626
    %3002 = vmatprep.subr.bf16.mxu0 0
    %3003 = vmatpush1.bf16.msra.mxu0 0
    %3004 = vmatprep.subr.bf16.mxu0 0
    %3005 = vmatpush1.bf16.msra.mxu0 0
    %3006 = vmatprep.subr.bf16.mxu0 0
    %3007 = vmatpush1.bf16.msra.mxu0 0
    %3008 = vmatprep.subr.bf16.mxu0 0
    %3009 = vmatpush1.bf16.msra.mxu0 0
    %3010 = vmatprep.subr.bf16.mxu0 0
    %3011 = vmatpush1.bf16.msra.mxu0 0
    %3012 = vmatprep.subr.bf16.mxu0 0
    %3013 = vmatpush1.bf16.msra.mxu0 0
    %3014 = vmatprep.subr.bf16.mxu0 0
    %3015 = vmatpush1.bf16.msra.mxu0 0
    %3016 = vmatprep.subr.bf16.mxu0 0
    %3017 = vmatpush1.bf16.msra.mxu0 0
    %3018 = vmatprep.mubr.bf16.mxu0 0
    %3019 = vmatmul.mubr.bf16.gmra.mrb[0].mxu0 %v2874
    %v3020 = vpop.f32.mrb[0].mxu0
    %v3021 = vadd.f32 0.0, %v3020
    %v3022 = vpop.f32.mrb[0].mxu0
    %v3023 = vadd.f32 0.0, %v3022
    %v3024 = vpop.f32.mrb[0].mxu0
    %v3025 = vpop.f32.mrb[0].mxu0
    %3026 = vdwg.mxu0
    %3027 = vmatprep.subr.bf16.mxu0 %v601
    %3028 = vmatpush1.bf16.msra.mxu0 %v600
    %3029 = vmatprep.subr.bf16.mxu0 %v605
    %3030 = vmatpush1.bf16.msra.mxu0 %v604
    %3031 = vmatprep.subr.bf16.mxu0 %v609
    %3032 = vmatpush1.bf16.msra.mxu0 %v608
    %3033 = vmatprep.subr.bf16.mxu0 %v613
    %3034 = vmatpush1.bf16.msra.mxu0 %v612
    %3035 = vmatprep.subr.bf16.mxu0 %v617
    %3036 = vmatpush1.bf16.msra.mxu0 %v616
    %3037 = vmatprep.subr.bf16.mxu0 %v621
    %3038 = vmatpush1.bf16.msra.mxu0 %v620
    %3039 = vmatprep.subr.bf16.mxu0 %v625
    %3040 = vmatpush1.bf16.msra.mxu0 %v624
    %3041 = vmatprep.subr.bf16.mxu0 %v629
    %3042 = vmatpush1.bf16.msra.mxu0 %v628
    %3043 = vmatprep.subr.bf16.mxu0 0
    %3044 = vmatpush1.bf16.msra.mxu0 0
    %3045 = vmatprep.subr.bf16.mxu0 0
    %3046 = vmatpush1.bf16.msra.mxu0 0
    %3047 = vmatprep.subr.bf16.mxu0 0
    %3048 = vmatpush1.bf16.msra.mxu0 0
    %3049 = vmatprep.subr.bf16.mxu0 0
    %3050 = vmatpush1.bf16.msra.mxu0 0
    %3051 = vmatprep.subr.bf16.mxu0 0
    %3052 = vmatpush1.bf16.msra.mxu0 0
    %3053 = vmatprep.subr.bf16.mxu0 0
    %3054 = vmatpush1.bf16.msra.mxu0 0
    %3055 = vmatprep.subr.bf16.mxu0 0
    %3056 = vmatpush1.bf16.msra.mxu0 0
    %3057 = vmatprep.subr.bf16.mxu0 0
    %3058 = vmatpush1.bf16.msra.mxu0 0
    %3059 = vmatprep.mubr.bf16.mxu0 0
    %3060 = vmatmul.mubr.bf16.gmra.mrb[0].mxu0 %v2874
    %v3061 = vpop.f32.mrb[0].mxu0
    %v3062 = vadd.f32 0.0, %v3061
    %v3063 = vpop.f32.mrb[0].mxu0
    %v3064 = vadd.f32 0.0, %v3063
    %v3065 = vpop.f32.mrb[0].mxu0
    %v3066 = vpop.f32.mrb[0].mxu0
    %3067 = vdwg.mxu0
    %v3072 = vrot.slane %v3021, 2
    %v3073 = vrot.slane %v3023, 2
    %v3074 = vrot.slane %v3062, 2
    %v3075 = vrot.slane %v3064, 2
    %v3080 = vadd.f32 %v423, %v3072
    %v3081 = vadd.f32 %v425, %v3073
    %v3082 = vadd.f32 %v464, %v3074
    %v3083 = vadd.f32 %v466, %v3075
    %v3084 = vxor.u32 %v3080, 2147483648
    %v3085 = vxor.u32 %v3081, 2147483648
    %v3086 = vxor.u32 %v3082, 2147483648
    %v3087 = vmul.f32 %v3084, 1.442695
    %v3088 = vpow.pop %v3087
    %v3089 = vmul.f32 %v3085, 1.442695
    %v3090 = vpow.pop %v3089
    %v3091 = vmul.f32 %v3086, 1.442695
    %v3092 = vpow.pop %v3091
    %v3093 = vadd.f32 %v3088, 1.0
    %v3094 = vadd.f32 %v3090, 1.0
    %v3095 = vadd.f32 %v3092, 1.0
    %v3096 = vrcp.pop %v3093
    %v3097 = vmul.f32 1.0, %v3096
    %v3098 = vrcp.pop %v3094
    %v3099 = vmul.f32 1.0, %v3098
    %v3100 = vrcp.pop %v3095
    %v3101 = vmul.f32 1.0, %v3100
    %v3102 = vtanh.pop %v3083
    %v3104 = vrot.slane %v2784, 7
    %v3106 = vmul.f32 %v3099, %v3104
    %v3107 = vmul.f32 %v3097, %v3102
    %v3108 = vadd.f32 %v3106, %v3107
    %v3109 = vtanh.pop %v3108
    %v3110 = vmul.f32 %v3101, %v3109
    %v3111 = vpack.c.bf16 %v3110, %v3110
    %v3112 = vpack.c.bf16 %v2985, %v2985
    %3113 = vmatprep.subr.bf16.mxu0 %v934
    %3114 = vmatpush1.bf16.msra.mxu0 %v933
    %3115 = vmatprep.subr.bf16.mxu0 %v938
    %3116 = vmatpush1.bf16.msra.mxu0 %v937
    %3117 = vmatprep.subr.bf16.mxu0 %v942
    %3118 = vmatpush1.bf16.msra.mxu0 %v941
    %3119 = vmatprep.subr.bf16.mxu0 %v946
    %3120 = vmatpush1.bf16.msra.mxu0 %v945
    %3121 = vmatprep.subr.bf16.mxu0 %v950
    %3122 = vmatpush1.bf16.msra.mxu0 %v949
    %3123 = vmatprep.subr.bf16.mxu0 %v954
    %3124 = vmatpush1.bf16.msra.mxu0 %v953
    %3125 = vmatprep.subr.bf16.mxu0 %v958
    %3126 = vmatpush1.bf16.msra.mxu0 %v957
    %3127 = vmatprep.subr.bf16.mxu0 %v962
    %3128 = vmatpush1.bf16.msra.mxu0 %v961
    %3129 = vmatprep.subr.bf16.mxu0 0
    %3130 = vmatpush1.bf16.msra.mxu0 0
    %3131 = vmatprep.subr.bf16.mxu0 0
    %3132 = vmatpush1.bf16.msra.mxu0 0
    %3133 = vmatprep.subr.bf16.mxu0 0
    %3134 = vmatpush1.bf16.msra.mxu0 0
    %3135 = vmatprep.subr.bf16.mxu0 0
    %3136 = vmatpush1.bf16.msra.mxu0 0
    %3137 = vmatprep.subr.bf16.mxu0 0
    %3138 = vmatpush1.bf16.msra.mxu0 0
    %3139 = vmatprep.subr.bf16.mxu0 0
    %3140 = vmatpush1.bf16.msra.mxu0 0
    %3141 = vmatprep.subr.bf16.mxu0 0
    %3142 = vmatpush1.bf16.msra.mxu0 0
    %3143 = vmatprep.subr.bf16.mxu0 0
    %3144 = vmatpush1.bf16.msra.mxu0 0
    %3145 = vmatprep.mubr.bf16.mxu0 0
    %3146 = vmatmul.mubr.bf16.gmra.mrb[0].mxu0 %v3112
    %v3147 = vpop.f32.mrb[0].mxu0
    %v3148 = vadd.f32 0.0, %v3147
    %v3149 = vpop.f32.mrb[0].mxu0
    %v3150 = vadd.f32 0.0, %v3149
    %v3151 = vpop.f32.mrb[0].mxu0
    %v3152 = vpop.f32.mrb[0].mxu0
    %3153 = vdwg.mxu0
    %3154 = vmatprep.subr.bf16.mxu0 %v936
    %3155 = vmatpush1.bf16.msra.mxu0 %v935
    %3156 = vmatprep.subr.bf16.mxu0 %v940
    %3157 = vmatpush1.bf16.msra.mxu0 %v939
    %3158 = vmatprep.subr.bf16.mxu0 %v944
    %3159 = vmatpush1.bf16.msra.mxu0 %v943
    %3160 = vmatprep.subr.bf16.mxu0 %v948
    %3161 = vmatpush1.bf16.msra.mxu0 %v947
    %3162 = vmatprep.subr.bf16.mxu0 %v952
    %3163 = vmatpush1.bf16.msra.mxu0 %v951
    %3164 = vmatprep.subr.bf16.mxu0 %v956
    %3165 = vmatpush1.bf16.msra.mxu0 %v955
    %3166 = vmatprep.subr.bf16.mxu0 %v960
    %3167 = vmatpush1.bf16.msra.mxu0 %v959
    %3168 = vmatprep.subr.bf16.mxu0 %v964
    %3169 = vmatpush1.bf16.msra.mxu0 %v963
    %3170 = vmatprep.subr.bf16.mxu0 0
    %3171 = vmatpush1.bf16.msra.mxu0 0
    %3172 = vmatprep.subr.bf16.mxu0 0
    %3173 = vmatpush1.bf16.msra.mxu0 0
    %3174 = vmatprep.subr.bf16.mxu0 0
    %3175 = vmatpush1.bf16.msra.mxu0 0
    %3176 = vmatprep.subr.bf16.mxu0 0
    %3177 = vmatpush1.bf16.msra.mxu0 0
    %3178 = vmatprep.subr.bf16.mxu0 0
    %3179 = vmatpush1.bf16.msra.mxu0 0
    %3180 = vmatprep.subr.bf16.mxu0 0
    %3181 = vmatpush1.bf16.msra.mxu0 0
    %3182 = vmatprep.subr.bf16.mxu0 0
    %3183 = vmatpush1.bf16.msra.mxu0 0
    %3184 = vmatprep.subr.bf16.mxu0 0
    %3185 = vmatpush1.bf16.msra.mxu0 0
    %3186 = vmatprep.mubr.bf16.mxu0 0
    %3187 = vmatmul.mubr.bf16.gmra.mrb[0].mxu0 %v3112
    %v3188 = vpop.f32.mrb[0].mxu0
    %v3189 = vadd.f32 0.0, %v3188
    %v3190 = vpop.f32.mrb[0].mxu0
    %v3191 = vadd.f32 0.0, %v3190
    %v3192 = vpop.f32.mrb[0].mxu0
    %v3193 = vpop.f32.mrb[0].mxu0
    %3194 = vdwg.mxu0
    %v3196 = vrot.slane %v3111, 3
    %3198 = vmatprep.subr.bf16.mxu0 %v1176
    %3199 = vmatpush1.bf16.msra.mxu0 %v1175
    %3200 = vmatprep.subr.bf16.mxu0 %v1180
    %3201 = vmatpush1.bf16.msra.mxu0 %v1179
    %3202 = vmatprep.subr.bf16.mxu0 %v1184
    %3203 = vmatpush1.bf16.msra.mxu0 %v1183
    %3204 = vmatprep.subr.bf16.mxu0 %v1188
    %3205 = vmatpush1.bf16.msra.mxu0 %v1187
    %3206 = vmatprep.subr.bf16.mxu0 %v1192
    %3207 = vmatpush1.bf16.msra.mxu0 %v1191
    %3208 = vmatprep.subr.bf16.mxu0 %v1196
    %3209 = vmatpush1.bf16.msra.mxu0 %v1195
    %3210 = vmatprep.subr.bf16.mxu0 %v1200
    %3211 = vmatpush1.bf16.msra.mxu0 %v1199
    %3212 = vmatprep.subr.bf16.mxu0 %v1204
    %3213 = vmatpush1.bf16.msra.mxu0 %v1203
    %3214 = vmatprep.subr.bf16.mxu0 0
    %3215 = vmatpush1.bf16.msra.mxu0 0
    %3216 = vmatprep.subr.bf16.mxu0 0
    %3217 = vmatpush1.bf16.msra.mxu0 0
    %3218 = vmatprep.subr.bf16.mxu0 0
    %3219 = vmatpush1.bf16.msra.mxu0 0
    %3220 = vmatprep.subr.bf16.mxu0 0
    %3221 = vmatpush1.bf16.msra.mxu0 0
    %3222 = vmatprep.subr.bf16.mxu0 0
    %3223 = vmatpush1.bf16.msra.mxu0 0
    %3224 = vmatprep.subr.bf16.mxu0 0
    %3225 = vmatpush1.bf16.msra.mxu0 0
    %3226 = vmatprep.subr.bf16.mxu0 0
    %3227 = vmatpush1.bf16.msra.mxu0 0
    %3228 = vmatprep.subr.bf16.mxu0 0
    %3229 = vmatpush1.bf16.msra.mxu0 0
    %3230 = vmatprep.mubr.bf16.mxu0 0
    %3231 = vmatmul.mubr.bf16.gmra.mrb[0].mxu0 %v3196
    %v3232 = vpop.f32.mrb[0].mxu0
    %v3233 = vadd.f32 %v3148, %v3232
    %v3234 = vpop.f32.mrb[0].mxu0
    %v3235 = vadd.f32 %v3150, %v3234
    %v3236 = vpop.f32.mrb[0].mxu0
    %v3237 = vpop.f32.mrb[0].mxu0
    %3238 = vdwg.mxu0
    %3239 = vmatprep.subr.bf16.mxu0 %v1178
    %3240 = vmatpush1.bf16.msra.mxu0 %v1177
    %3241 = vmatprep.subr.bf16.mxu0 %v1182
    %3242 = vmatpush1.bf16.msra.mxu0 %v1181
    %3243 = vmatprep.subr.bf16.mxu0 %v1186
    %3244 = vmatpush1.bf16.msra.mxu0 %v1185
    %3245 = vmatprep.subr.bf16.mxu0 %v1190
    %3246 = vmatpush1.bf16.msra.mxu0 %v1189
    %3247 = vmatprep.subr.bf16.mxu0 %v1194
    %3248 = vmatpush1.bf16.msra.mxu0 %v1193
    %3249 = vmatprep.subr.bf16.mxu0 %v1198
    %3250 = vmatpush1.bf16.msra.mxu0 %v1197
    %3251 = vmatprep.subr.bf16.mxu0 %v1202
    %3252 = vmatpush1.bf16.msra.mxu0 %v1201
    %3253 = vmatprep.subr.bf16.mxu0 %v1206
    %3254 = vmatpush1.bf16.msra.mxu0 %v1205
    %3255 = vmatprep.subr.bf16.mxu0 0
    %3256 = vmatpush1.bf16.msra.mxu0 0
    %3257 = vmatprep.subr.bf16.mxu0 0
    %3258 = vmatpush1.bf16.msra.mxu0 0
    %3259 = vmatprep.subr.bf16.mxu0 0
    %3260 = vmatpush1.bf16.msra.mxu0 0
    %3261 = vmatprep.subr.bf16.mxu0 0
    %3262 = vmatpush1.bf16.msra.mxu0 0
    %3263 = vmatprep.subr.bf16.mxu0 0
    %3264 = vmatpush1.bf16.msra.mxu0 0
    %3265 = vmatprep.subr.bf16.mxu0 0
    %3266 = vmatpush1.bf16.msra.mxu0 0
    %3267 = vmatprep.subr.bf16.mxu0 0
    %3268 = vmatpush1.bf16.msra.mxu0 0
    %3269 = vmatprep.subr.bf16.mxu0 0
    %3270 = vmatpush1.bf16.msra.mxu0 0
    %3271 = vmatprep.mubr.bf16.mxu0 0
    %3272 = vmatmul.mubr.bf16.gmra.mrb[0].mxu0 %v3196
    %v3273 = vpop.f32.mrb[0].mxu0
    %v3274 = vadd.f32 %v3189, %v3273
    %v3275 = vpop.f32.mrb[0].mxu0
    %v3276 = vadd.f32 %v3191, %v3275
    %v3277 = vpop.f32.mrb[0].mxu0
    %v3278 = vpop.f32.mrb[0].mxu0
    %3279 = vdwg.mxu0
    %v3280 = vadd.f32 %v3233, %v1326
    %v3281 = vadd.f32 %v3235, %v1330
    %v3282 = vadd.f32 %v3274, %v1334
    %v3283 = vadd.f32 %v3276, %v1338
    %v3284 = vxor.u32 %v3280, 2147483648
    %v3285 = vxor.u32 %v3281, 2147483648
    %v3286 = vxor.u32 %v3282, 2147483648
    %v3287 = vmul.f32 %v3284, 1.442695
    %v3288 = vpow.pop %v3287
    %v3289 = vmul.f32 %v3285, 1.442695
    %v3290 = vpow.pop %v3289
    %v3291 = vmul.f32 %v3286, 1.442695
    %v3292 = vpow.pop %v3291
    %v3293 = vadd.f32 %v3288, 1.0
    %v3294 = vadd.f32 %v3290, 1.0
    %v3295 = vadd.f32 %v3292, 1.0
    %v3296 = vrcp.pop %v3293
    %v3297 = vmul.f32 1.0, %v3296
    %v3298 = vrcp.pop %v3294
    %v3299 = vmul.f32 1.0, %v3298
    %v3300 = vrcp.pop %v3295
    %v3301 = vmul.f32 1.0, %v3300
    %v3302 = vtanh.pop %v3283
    %v3303 = vmul.f32 %v3299, %v2983
    %v3304 = vmul.f32 %v3297, %v3302
    %v3305 = vadd.f32 %v3303, %v3304
    %v3306 = vtanh.pop %v3305
    %v3307 = vmul.f32 %v3301, %v3306
    %3308 = vmatprep.subr.bf16.mxu0 %v599
    %3309 = vmatpush1.bf16.msra.mxu0 %v598
    %3310 = vmatprep.subr.bf16.mxu0 %v603
    %3311 = vmatpush1.bf16.msra.mxu0 %v602
    %3312 = vmatprep.subr.bf16.mxu0 %v607
    %3313 = vmatpush1.bf16.msra.mxu0 %v606
    %3314 = vmatprep.subr.bf16.mxu0 %v611
    %3315 = vmatpush1.bf16.msra.mxu0 %v610
    %3316 = vmatprep.subr.bf16.mxu0 %v615
    %3317 = vmatpush1.bf16.msra.mxu0 %v614
    %3318 = vmatprep.subr.bf16.mxu0 %v619
    %3319 = vmatpush1.bf16.msra.mxu0 %v618
    %3320 = vmatprep.subr.bf16.mxu0 %v623
    %3321 = vmatpush1.bf16.msra.mxu0 %v622
    %3322 = vmatprep.subr.bf16.mxu0 %v627
    %3323 = vmatpush1.bf16.msra.mxu0 %v626
    %3324 = vmatprep.subr.bf16.mxu0 0
    %3325 = vmatpush1.bf16.msra.mxu0 0
    %3326 = vmatprep.subr.bf16.mxu0 0
    %3327 = vmatpush1.bf16.msra.mxu0 0
    %3328 = vmatprep.subr.bf16.mxu0 0
    %3329 = vmatpush1.bf16.msra.mxu0 0
    %3330 = vmatprep.subr.bf16.mxu0 0
    %3331 = vmatpush1.bf16.msra.mxu0 0
    %3332 = vmatprep.subr.bf16.mxu0 0
    %3333 = vmatpush1.bf16.msra.mxu0 0
    %3334 = vmatprep.subr.bf16.mxu0 0
    %3335 = vmatpush1.bf16.msra.mxu0 0
    %3336 = vmatprep.subr.bf16.mxu0 0
    %3337 = vmatpush1.bf16.msra.mxu0 0
    %3338 = vmatprep.subr.bf16.mxu0 0
    %3339 = vmatpush1.bf16.msra.mxu0 0
    %3340 = vmatprep.mubr.bf16.mxu0 0
    %3341 = vmatmul.mubr.bf16.gmra.mrb[0].mxu0 %v3196
    %v3342 = vpop.f32.mrb[0].mxu0
    %v3343 = vadd.f32 0.0, %v3342
    %v3344 = vpop.f32.mrb[0].mxu0
    %v3345 = vadd.f32 0.0, %v3344
    %v3346 = vpop.f32.mrb[0].mxu0
    %v3347 = vpop.f32.mrb[0].mxu0
    %3348 = vdwg.mxu0
    %3349 = vmatprep.subr.bf16.mxu0 %v601
    %3350 = vmatpush1.bf16.msra.mxu0 %v600
    %3351 = vmatprep.subr.bf16.mxu0 %v605
    %3352 = vmatpush1.bf16.msra.mxu0 %v604
    %3353 = vmatprep.subr.bf16.mxu0 %v609
    %3354 = vmatpush1.bf16.msra.mxu0 %v608
    %3355 = vmatprep.subr.bf16.mxu0 %v613
    %3356 = vmatpush1.bf16.msra.mxu0 %v612
    %3357 = vmatprep.subr.bf16.mxu0 %v617
    %3358 = vmatpush1.bf16.msra.mxu0 %v616
    %3359 = vmatprep.subr.bf16.mxu0 %v621
    %3360 = vmatpush1.bf16.msra.mxu0 %v620
    %3361 = vmatprep.subr.bf16.mxu0 %v625
    %3362 = vmatpush1.bf16.msra.mxu0 %v624
    %3363 = vmatprep.subr.bf16.mxu0 %v629
    %3364 = vmatpush1.bf16.msra.mxu0 %v628
    %3365 = vmatprep.subr.bf16.mxu0 0
    %3366 = vmatpush1.bf16.msra.mxu0 0
    %3367 = vmatprep.subr.bf16.mxu0 0
    %3368 = vmatpush1.bf16.msra.mxu0 0
    %3369 = vmatprep.subr.bf16.mxu0 0
    %3370 = vmatpush1.bf16.msra.mxu0 0
    %3371 = vmatprep.subr.bf16.mxu0 0
    %3372 = vmatpush1.bf16.msra.mxu0 0
    %3373 = vmatprep.subr.bf16.mxu0 0
    %3374 = vmatpush1.bf16.msra.mxu0 0
    %3375 = vmatprep.subr.bf16.mxu0 0
    %3376 = vmatpush1.bf16.msra.mxu0 0
    %3377 = vmatprep.subr.bf16.mxu0 0
    %3378 = vmatpush1.bf16.msra.mxu0 0
    %3379 = vmatprep.subr.bf16.mxu0 0
    %3380 = vmatpush1.bf16.msra.mxu0 0
    %3381 = vmatprep.mubr.bf16.mxu0 0
    %3382 = vmatmul.mubr.bf16.gmra.mrb[0].mxu0 %v3196
    %v3383 = vpop.f32.mrb[0].mxu0
    %v3384 = vadd.f32 0.0, %v3383
    %v3385 = vpop.f32.mrb[0].mxu0
    %v3386 = vadd.f32 0.0, %v3385
    %v3387 = vpop.f32.mrb[0].mxu0
    %v3388 = vpop.f32.mrb[0].mxu0
    %3389 = vdwg.mxu0
    %v3394 = vrot.slane %v3343, 1
    %v3395 = vrot.slane %v3345, 1
    %v3396 = vrot.slane %v3384, 1
    %v3397 = vrot.slane %v3386, 1
    %v3402 = vadd.f32 %v423, %v3394
    %v3403 = vadd.f32 %v425, %v3395
    %v3404 = vadd.f32 %v464, %v3396
    %v3405 = vadd.f32 %v466, %v3397
    %v3406 = vxor.u32 %v3402, 2147483648
    %v3407 = vxor.u32 %v3403, 2147483648
    %v3408 = vxor.u32 %v3404, 2147483648
    %v3409 = vmul.f32 %v3406, 1.442695
    %v3410 = vpow.pop %v3409
    %v3411 = vmul.f32 %v3407, 1.442695
    %v3412 = vpow.pop %v3411
    %v3413 = vmul.f32 %v3408, 1.442695
    %v3414 = vpow.pop %v3413
    %v3415 = vadd.f32 %v3410, 1.0
    %v3416 = vadd.f32 %v3412, 1.0
    %v3417 = vadd.f32 %v3414, 1.0
    %v3418 = vrcp.pop %v3415
    %v3419 = vmul.f32 1.0, %v3418
    %v3420 = vrcp.pop %v3416
    %v3421 = vmul.f32 1.0, %v3420
    %v3422 = vrcp.pop %v3417
    %v3423 = vmul.f32 1.0, %v3422
    %v3424 = vtanh.pop %v3405
    %v3426 = vrot.slane %v3108, 7
    %v3428 = vmul.f32 %v3421, %v3426
    %v3429 = vmul.f32 %v3419, %v3424
    %v3430 = vadd.f32 %v3428, %v3429
    %v3431 = vtanh.pop %v3430
    %v3432 = vmul.f32 %v3423, %v3431
    %v3433 = vpack.c.bf16 %v3432, %v3432
    %v3434 = vpack.c.bf16 %v3307, %v3307
    %3435 = vmatprep.subr.bf16.mxu0 %v934
    %3436 = vmatpush1.bf16.msra.mxu0 %v933
    %3437 = vmatprep.subr.bf16.mxu0 %v938
    %3438 = vmatpush1.bf16.msra.mxu0 %v937
    %3439 = vmatprep.subr.bf16.mxu0 %v942
    %3440 = vmatpush1.bf16.msra.mxu0 %v941
    %3441 = vmatprep.subr.bf16.mxu0 %v946
    %3442 = vmatpush1.bf16.msra.mxu0 %v945
    %3443 = vmatprep.subr.bf16.mxu0 %v950
    %3444 = vmatpush1.bf16.msra.mxu0 %v949
    %3445 = vmatprep.subr.bf16.mxu0 %v954
    %3446 = vmatpush1.bf16.msra.mxu0 %v953
    %3447 = vmatprep.subr.bf16.mxu0 %v958
    %3448 = vmatpush1.bf16.msra.mxu0 %v957
    %3449 = vmatprep.subr.bf16.mxu0 %v962
    %3450 = vmatpush1.bf16.msra.mxu0 %v961
    %3451 = vmatprep.subr.bf16.mxu0 0
    %3452 = vmatpush1.bf16.msra.mxu0 0
    %3453 = vmatprep.subr.bf16.mxu0 0
    %3454 = vmatpush1.bf16.msra.mxu0 0
    %3455 = vmatprep.subr.bf16.mxu0 0
    %3456 = vmatpush1.bf16.msra.mxu0 0
    %3457 = vmatprep.subr.bf16.mxu0 0
    %3458 = vmatpush1.bf16.msra.mxu0 0
    %3459 = vmatprep.subr.bf16.mxu0 0
    %3460 = vmatpush1.bf16.msra.mxu0 0
    %3461 = vmatprep.subr.bf16.mxu0 0
    %3462 = vmatpush1.bf16.msra.mxu0 0
    %3463 = vmatprep.subr.bf16.mxu0 0
    %3464 = vmatpush1.bf16.msra.mxu0 0
    %3465 = vmatprep.subr.bf16.mxu0 0
    %3466 = vmatpush1.bf16.msra.mxu0 0
    %3467 = vmatprep.mubr.bf16.mxu0 0
    %3468 = vmatmul.mubr.bf16.gmra.mrb[0].mxu0 %v3434
    %v3469 = vpop.f32.mrb[0].mxu0
    %v3470 = vadd.f32 0.0, %v3469
    %v3471 = vpop.f32.mrb[0].mxu0
    %v3472 = vadd.f32 0.0, %v3471
    %v3473 = vpop.f32.mrb[0].mxu0
    %v3474 = vpop.f32.mrb[0].mxu0
    %3475 = vdwg.mxu0
    %3476 = vmatprep.subr.bf16.mxu0 %v936
    %3477 = vmatpush1.bf16.msra.mxu0 %v935
    %3478 = vmatprep.subr.bf16.mxu0 %v940
    %3479 = vmatpush1.bf16.msra.mxu0 %v939
    %3480 = vmatprep.subr.bf16.mxu0 %v944
    %3481 = vmatpush1.bf16.msra.mxu0 %v943
    %3482 = vmatprep.subr.bf16.mxu0 %v948
    %3483 = vmatpush1.bf16.msra.mxu0 %v947
    %3484 = vmatprep.subr.bf16.mxu0 %v952
    %3485 = vmatpush1.bf16.msra.mxu0 %v951
    %3486 = vmatprep.subr.bf16.mxu0 %v956
    %3487 = vmatpush1.bf16.msra.mxu0 %v955
    %3488 = vmatprep.subr.bf16.mxu0 %v960
    %3489 = vmatpush1.bf16.msra.mxu0 %v959
    %3490 = vmatprep.subr.bf16.mxu0 %v964
    %3491 = vmatpush1.bf16.msra.mxu0 %v963
    %3492 = vmatprep.subr.bf16.mxu0 0
    %3493 = vmatpush1.bf16.msra.mxu0 0
    %3494 = vmatprep.subr.bf16.mxu0 0
    %3495 = vmatpush1.bf16.msra.mxu0 0
    %3496 = vmatprep.subr.bf16.mxu0 0
    %3497 = vmatpush1.bf16.msra.mxu0 0
    %3498 = vmatprep.subr.bf16.mxu0 0
    %3499 = vmatpush1.bf16.msra.mxu0 0
    %3500 = vmatprep.subr.bf16.mxu0 0
    %3501 = vmatpush1.bf16.msra.mxu0 0
    %3502 = vmatprep.subr.bf16.mxu0 0
    %3503 = vmatpush1.bf16.msra.mxu0 0
    %3504 = vmatprep.subr.bf16.mxu0 0
    %3505 = vmatpush1.bf16.msra.mxu0 0
    %3506 = vmatprep.subr.bf16.mxu0 0
    %3507 = vmatpush1.bf16.msra.mxu0 0
    %3508 = vmatprep.mubr.bf16.mxu0 0
    %3509 = vmatmul.mubr.bf16.gmra.mrb[0].mxu0 %v3434
    %v3510 = vpop.f32.mrb[0].mxu0
    %v3511 = vadd.f32 0.0, %v3510
    %v3512 = vpop.f32.mrb[0].mxu0
    %v3513 = vadd.f32 0.0, %v3512
    %v3514 = vpop.f32.mrb[0].mxu0
    %v3515 = vpop.f32.mrb[0].mxu0
    %3516 = vdwg.mxu0
    %v3518 = vshrl.u32 %v3433, 16
    %v3520 = vrot.slane %v3518, 3
    %3522 = vmatprep.subr.bf16.mxu0 %v1176
    %3523 = vmatpush1.bf16.msra.mxu0 %v1175
    %3524 = vmatprep.subr.bf16.mxu0 %v1180
    %3525 = vmatpush1.bf16.msra.mxu0 %v1179
    %3526 = vmatprep.subr.bf16.mxu0 %v1184
    %3527 = vmatpush1.bf16.msra.mxu0 %v1183
    %3528 = vmatprep.subr.bf16.mxu0 %v1188
    %3529 = vmatpush1.bf16.msra.mxu0 %v1187
    %3530 = vmatprep.subr.bf16.mxu0 %v1192
    %3531 = vmatpush1.bf16.msra.mxu0 %v1191
    %3532 = vmatprep.subr.bf16.mxu0 %v1196
    %3533 = vmatpush1.bf16.msra.mxu0 %v1195
    %3534 = vmatprep.subr.bf16.mxu0 %v1200
    %3535 = vmatpush1.bf16.msra.mxu0 %v1199
    %3536 = vmatprep.subr.bf16.mxu0 %v1204
    %3537 = vmatpush1.bf16.msra.mxu0 %v1203
    %3538 = vmatprep.subr.bf16.mxu0 0
    %3539 = vmatpush1.bf16.msra.mxu0 0
    %3540 = vmatprep.subr.bf16.mxu0 0
    %3541 = vmatpush1.bf16.msra.mxu0 0
    %3542 = vmatprep.subr.bf16.mxu0 0
    %3543 = vmatpush1.bf16.msra.mxu0 0
    %3544 = vmatprep.subr.bf16.mxu0 0
    %3545 = vmatpush1.bf16.msra.mxu0 0
    %3546 = vmatprep.subr.bf16.mxu0 0
    %3547 = vmatpush1.bf16.msra.mxu0 0
    %3548 = vmatprep.subr.bf16.mxu0 0
    %3549 = vmatpush1.bf16.msra.mxu0 0
    %3550 = vmatprep.subr.bf16.mxu0 0
    %3551 = vmatpush1.bf16.msra.mxu0 0
    %3552 = vmatprep.subr.bf16.mxu0 0
    %3553 = vmatpush1.bf16.msra.mxu0 0
    %3554 = vmatprep.mubr.bf16.mxu0 0
    %3555 = vmatmul.mubr.bf16.gmra.mrb[0].mxu0 %v3520
    %v3556 = vpop.f32.mrb[0].mxu0
    %v3557 = vadd.f32 %v3470, %v3556
    %v3558 = vpop.f32.mrb[0].mxu0
    %v3559 = vadd.f32 %v3472, %v3558
    %v3560 = vpop.f32.mrb[0].mxu0
    %v3561 = vpop.f32.mrb[0].mxu0
    %3562 = vdwg.mxu0
    %3563 = vmatprep.subr.bf16.mxu0 %v1178
    %3564 = vmatpush1.bf16.msra.mxu0 %v1177
    %3565 = vmatprep.subr.bf16.mxu0 %v1182
    %3566 = vmatpush1.bf16.msra.mxu0 %v1181
    %3567 = vmatprep.subr.bf16.mxu0 %v1186
    %3568 = vmatpush1.bf16.msra.mxu0 %v1185
    %3569 = vmatprep.subr.bf16.mxu0 %v1190
    %3570 = vmatpush1.bf16.msra.mxu0 %v1189
    %3571 = vmatprep.subr.bf16.mxu0 %v1194
    %3572 = vmatpush1.bf16.msra.mxu0 %v1193
    %3573 = vmatprep.subr.bf16.mxu0 %v1198
    %3574 = vmatpush1.bf16.msra.mxu0 %v1197
    %3575 = vmatprep.subr.bf16.mxu0 %v1202
    %3576 = vmatpush1.bf16.msra.mxu0 %v1201
    %3577 = vmatprep.subr.bf16.mxu0 %v1206
    %3578 = vmatpush1.bf16.msra.mxu0 %v1205
    %3579 = vmatprep.subr.bf16.mxu0 0
    %3580 = vmatpush1.bf16.msra.mxu0 0
    %3581 = vmatprep.subr.bf16.mxu0 0
    %3582 = vmatpush1.bf16.msra.mxu0 0
    %3583 = vmatprep.subr.bf16.mxu0 0
    %3584 = vmatpush1.bf16.msra.mxu0 0
    %3585 = vmatprep.subr.bf16.mxu0 0
    %3586 = vmatpush1.bf16.msra.mxu0 0
    %3587 = vmatprep.subr.bf16.mxu0 0
    %3588 = vmatpush1.bf16.msra.mxu0 0
    %3589 = vmatprep.subr.bf16.mxu0 0
    %3590 = vmatpush1.bf16.msra.mxu0 0
    %3591 = vmatprep.subr.bf16.mxu0 0
    %3592 = vmatpush1.bf16.msra.mxu0 0
    %3593 = vmatprep.subr.bf16.mxu0 0
    %3594 = vmatpush1.bf16.msra.mxu0 0
    %3595 = vmatprep.mubr.bf16.mxu0 0
    %3596 = vmatmul.mubr.bf16.gmra.mrb[0].mxu0 %v3520
    %v3597 = vpop.f32.mrb[0].mxu0
    %v3598 = vadd.f32 %v3511, %v3597
    %v3599 = vpop.f32.mrb[0].mxu0
    %v3600 = vadd.f32 %v3513, %v3599
    %v3601 = vpop.f32.mrb[0].mxu0
    %v3602 = vpop.f32.mrb[0].mxu0
    %3603 = vdwg.mxu0
    %v3604 = vadd.f32 %v3557, %v1326
    %v3605 = vadd.f32 %v3559, %v1330
    %v3606 = vadd.f32 %v3598, %v1334
    %v3607 = vadd.f32 %v3600, %v1338
    %v3608 = vxor.u32 %v3604, 2147483648
    %v3609 = vxor.u32 %v3605, 2147483648
    %v3610 = vxor.u32 %v3606, 2147483648
    %v3611 = vmul.f32 %v3608, 1.442695
    %v3612 = vpow.pop %v3611
    %v3613 = vmul.f32 %v3609, 1.442695
    %v3614 = vpow.pop %v3613
    %v3615 = vmul.f32 %v3610, 1.442695
    %v3616 = vpow.pop %v3615
    %v3617 = vadd.f32 %v3612, 1.0
    %v3618 = vadd.f32 %v3614, 1.0
    %v3619 = vadd.f32 %v3616, 1.0
    %v3620 = vrcp.pop %v3617
    %v3621 = vmul.f32 1.0, %v3620
    %v3622 = vrcp.pop %v3618
    %v3623 = vmul.f32 1.0, %v3622
    %v3624 = vrcp.pop %v3619
    %v3625 = vmul.f32 1.0, %v3624
    %v3626 = vtanh.pop %v3607
    %v3627 = vmul.f32 %v3623, %v3305
    %v3628 = vmul.f32 %v3621, %v3626
    %v3629 = vadd.f32 %v3627, %v3628
    %v3630 = vtanh.pop %v3629
    %v3631 = vmul.f32 %v3625, %v3630
    %v3632 = vpack.c.bf16 %v3631, %v3631
    %v3633 = vld [vmem:[#allocation9] sm:$0xff]
    %v3634 = vld [vmem:[#allocation9 + $0x8] sm:$0xff]
    %v3635 = vld [vmem:[#allocation9 + $0x10] sm:$0xff]
    %v3636 = vld [vmem:[#allocation9 + $0x18] sm:$0xff]
    %v3637 = vld [vmem:[#allocation9 + $0x20] sm:$0xff]
    %v3638 = vld [vmem:[#allocation9 + $0x28] sm:$0xff]
    %v3639 = vld [vmem:[#allocation9 + $0x30] sm:$0xff]
    %v3640 = vld [vmem:[#allocation9 + $0x38] sm:$0xff]
    %v3641 = vld [vmem:[#allocation9 + $0x40] sm:$0xff]
    %v3642 = vld [vmem:[#allocation9 + $0x48] sm:$0xff]
    %v3643 = vld [vmem:[#allocation9 + $0x50] sm:$0xff]
    %v3644 = vld [vmem:[#allocation9 + $0x58] sm:$0xff]
    %v3645 = vld [vmem:[#allocation9 + $0x60] sm:$0xff]
    %v3646 = vld [vmem:[#allocation9 + $0x68] sm:$0xff]
    %v3647 = vld [vmem:[#allocation9 + $0x70] sm:$0xff]
    %v3648 = vld [vmem:[#allocation9 + $0x78] sm:$0xff]
    %v3649 = vld [vmem:[#allocation9 + $0x80] sm:$0xff]
    %v3650 = vld [vmem:[#allocation9 + $0x88] sm:$0xff]
    %v3651 = vld [vmem:[#allocation9 + $0x90] sm:$0xff]
    %v3652 = vld [vmem:[#allocation9 + $0x98] sm:$0xff]
    %v3653 = vld [vmem:[#allocation9 + $0xa0] sm:$0xff]
    %v3654 = vld [vmem:[#allocation9 + $0xa8] sm:$0xff]
    %v3655 = vld [vmem:[#allocation9 + $0xb0] sm:$0xff]
    %v3656 = vld [vmem:[#allocation9 + $0xb8] sm:$0xff]
    %v3657 = vld [vmem:[#allocation9 + $0xc0] sm:$0xff]
    %v3658 = vld [vmem:[#allocation9 + $0xc8] sm:$0xff]
    %v3659 = vld [vmem:[#allocation9 + $0xd0] sm:$0xff]
    %v3660 = vld [vmem:[#allocation9 + $0xd8] sm:$0xff]
    %v3661 = vld [vmem:[#allocation9 + $0xe0] sm:$0xff]
    %v3662 = vld [vmem:[#allocation9 + $0xe8] sm:$0xff]
    %v3663 = vld [vmem:[#allocation9 + $0xf0] sm:$0xff]
    %v3664 = vld [vmem:[#allocation9 + $0xf8] sm:$0xff]
    %v3665 = vld [vmem:[%s9] sm:$0xf]
    %v3698 = vunpack.c.l.b16 %v3633
    %v3699 = vunpack.c.h.b16 %v3633
    %v3700 = vunpack.c.l.b16 %v3634
    %v3701 = vunpack.c.h.b16 %v3634
    %v3702 = vunpack.c.l.b16 %v3635
    %v3703 = vunpack.c.h.b16 %v3635
    %v3704 = vunpack.c.l.b16 %v3636
    %v3705 = vunpack.c.h.b16 %v3636
    %v3706 = vunpack.c.l.b16 %v3637
    %v3707 = vunpack.c.h.b16 %v3637
    %v3708 = vunpack.c.l.b16 %v3638
    %v3709 = vunpack.c.h.b16 %v3638
    %v3710 = vunpack.c.l.b16 %v3639
    %v3711 = vunpack.c.h.b16 %v3639
    %v3712 = vunpack.c.l.b16 %v3640
    %v3713 = vunpack.c.h.b16 %v3640
    %v3714 = vunpack.c.l.b16 %v3641
    %v3715 = vunpack.c.h.b16 %v3641
    %v3716 = vunpack.c.l.b16 %v3642
    %v3717 = vunpack.c.h.b16 %v3642
    %v3718 = vunpack.c.l.b16 %v3643
    %v3719 = vunpack.c.h.b16 %v3643
    %v3720 = vunpack.c.l.b16 %v3644
    %v3721 = vunpack.c.h.b16 %v3644
    %v3722 = vunpack.c.l.b16 %v3645
    %v3723 = vunpack.c.h.b16 %v3645
    %v3724 = vunpack.c.l.b16 %v3646
    %v3725 = vunpack.c.h.b16 %v3646
    %v3726 = vunpack.c.l.b16 %v3647
    %v3727 = vunpack.c.h.b16 %v3647
    %v3728 = vunpack.c.l.b16 %v3648
    %v3729 = vunpack.c.h.b16 %v3648
    %v3730 = vunpack.c.l.b16 %v3649
    %v3731 = vunpack.c.h.b16 %v3649
    %v3732 = vunpack.c.l.b16 %v3650
    %v3733 = vunpack.c.h.b16 %v3650
    %v3734 = vunpack.c.l.b16 %v3651
    %v3735 = vunpack.c.h.b16 %v3651
    %v3736 = vunpack.c.l.b16 %v3652
    %v3737 = vunpack.c.h.b16 %v3652
    %v3738 = vunpack.c.l.b16 %v3653
    %v3739 = vunpack.c.h.b16 %v3653
    %v3740 = vunpack.c.l.b16 %v3654
    %v3741 = vunpack.c.h.b16 %v3654
    %v3742 = vunpack.c.l.b16 %v3655
    %v3743 = vunpack.c.h.b16 %v3655
    %v3744 = vunpack.c.l.b16 %v3656
    %v3745 = vunpack.c.h.b16 %v3656
    %v3746 = vunpack.c.l.b16 %v3657
    %v3747 = vunpack.c.h.b16 %v3657
    %v3748 = vunpack.c.l.b16 %v3658
    %v3749 = vunpack.c.h.b16 %v3658
    %v3750 = vunpack.c.l.b16 %v3659
    %v3751 = vunpack.c.h.b16 %v3659
    %v3752 = vunpack.c.l.b16 %v3660
    %v3753 = vunpack.c.h.b16 %v3660
    %v3754 = vunpack.c.l.b16 %v3661
    %v3755 = vunpack.c.h.b16 %v3661
    %v3756 = vunpack.c.l.b16 %v3662
    %v3757 = vunpack.c.h.b16 %v3662
    %v3758 = vunpack.c.l.b16 %v3663
    %v3759 = vunpack.c.h.b16 %v3663
    %v3760 = vunpack.c.l.b16 %v3664
    %v3761 = vunpack.c.h.b16 %v3664
    %v3762 = vpack.c.b16 %v3702, %v3698
    %v3763 = vpack.c.b16 %v3703, %v3699
    %v3764 = vpack.c.b16 %v3704, %v3700
    %v3765 = vpack.c.b16 %v3705, %v3701
    %v3766 = vpack.c.b16 %v3710, %v3706
    %v3767 = vpack.c.b16 %v3711, %v3707
    %v3768 = vpack.c.b16 %v3712, %v3708
    %v3769 = vpack.c.b16 %v3713, %v3709
    %v3770 = vpack.c.b16 %v3718, %v3714
    %v3771 = vpack.c.b16 %v3719, %v3715
    %v3772 = vpack.c.b16 %v3720, %v3716
    %v3773 = vpack.c.b16 %v3721, %v3717
    %v3774 = vpack.c.b16 %v3726, %v3722
    %v3775 = vpack.c.b16 %v3727, %v3723
    %v3776 = vpack.c.b16 %v3728, %v3724
    %v3777 = vpack.c.b16 %v3729, %v3725
    %v3778 = vpack.c.b16 %v3734, %v3730
    %v3779 = vpack.c.b16 %v3735, %v3731
    %v3780 = vpack.c.b16 %v3736, %v3732
    %v3781 = vpack.c.b16 %v3737, %v3733
    %v3782 = vpack.c.b16 %v3742, %v3738
    %v3783 = vpack.c.b16 %v3743, %v3739
    %v3784 = vpack.c.b16 %v3744, %v3740
    %v3785 = vpack.c.b16 %v3745, %v3741
    %v3786 = vpack.c.b16 %v3750, %v3746
    %v3787 = vpack.c.b16 %v3751, %v3747
    %v3788 = vpack.c.b16 %v3752, %v3748
    %v3789 = vpack.c.b16 %v3753, %v3749
    %v3790 = vpack.c.b16 %v3758, %v3754
    %v3791 = vpack.c.b16 %v3759, %v3755
    %v3792 = vpack.c.b16 %v3760, %v3756
    %v3793 = vpack.c.b16 %v3761, %v3757
    %v3827 = vlaneseq
    %v3828 = vshrl.u32 %v3827, 7
    %v3829 = vsub.s32 0, %v3828
    %v3830 = vrot.slane %v3665, %v3829
    %v3831 = vlaneseq
    %v3832 = vshrl.u32 %v3831, 7
    %v3833 = vsub.s32 1, %v3832
    %v3834 = vrot.slane %v3665, %v3833
    %v3835 = vlaneseq
    %v3836 = vshrl.u32 %v3835, 7
    %v3837 = vsub.s32 2, %v3836
    %v3838 = vrot.slane %v3665, %v3837
    %v3839 = vlaneseq
    %v3840 = vshrl.u32 %v3839, 7
    %v3841 = vsub.s32 3, %v3840
    %v3842 = vrot.slane %v3665, %v3841
    %3847 = vmatprep.subr.bf16.mxu0 %v3763
    %3848 = vmatpush1.bf16.msra.mxu0 %v3762
    %3849 = vmatprep.subr.bf16.mxu0 %v3767
    %3850 = vmatpush1.bf16.msra.mxu0 %v3766
    %3851 = vmatprep.subr.bf16.mxu0 %v3771
    %3852 = vmatpush1.bf16.msra.mxu0 %v3770
    %3853 = vmatprep.subr.bf16.mxu0 %v3775
    %3854 = vmatpush1.bf16.msra.mxu0 %v3774
    %3855 = vmatprep.subr.bf16.mxu0 %v3779
    %3856 = vmatpush1.bf16.msra.mxu0 %v3778
    %3857 = vmatprep.subr.bf16.mxu0 %v3783
    %3858 = vmatpush1.bf16.msra.mxu0 %v3782
    %3859 = vmatprep.subr.bf16.mxu0 %v3787
    %3860 = vmatpush1.bf16.msra.mxu0 %v3786
    %3861 = vmatprep.subr.bf16.mxu0 %v3791
    %3862 = vmatpush1.bf16.msra.mxu0 %v3790
    %3863 = vmatprep.subr.bf16.mxu0 0
    %3864 = vmatpush1.bf16.msra.mxu0 0
    %3865 = vmatprep.subr.bf16.mxu0 0
    %3866 = vmatpush1.bf16.msra.mxu0 0
    %3867 = vmatprep.subr.bf16.mxu0 0
    %3868 = vmatpush1.bf16.msra.mxu0 0
    %3869 = vmatprep.subr.bf16.mxu0 0
    %3870 = vmatpush1.bf16.msra.mxu0 0
    %3871 = vmatprep.subr.bf16.mxu0 0
    %3872 = vmatpush1.bf16.msra.mxu0 0
    %3873 = vmatprep.subr.bf16.mxu0 0
    %3874 = vmatpush1.bf16.msra.mxu0 0
    %3875 = vmatprep.subr.bf16.mxu0 0
    %3876 = vmatpush1.bf16.msra.mxu0 0
    %3877 = vmatprep.subr.bf16.mxu0 0
    %3878 = vmatpush1.bf16.msra.mxu0 0
    %3879 = vmatprep.mubr.bf16.mxu0 0
    %3880 = vmatmul.mubr.bf16.gmra.mrb[0].mxu0 %v3632
    %v3881 = vpop.f32.mrb[0].mxu0
    %v3882 = vadd.f32 %v3830, %v3881
    %v3883 = vpop.f32.mrb[0].mxu0
    %v3884 = vadd.f32 %v3834, %v3883
    %v3885 = vpop.f32.mrb[0].mxu0
    %v3886 = vpop.f32.mrb[0].mxu0
    %3887 = vdwg.mxu0
    %3888 = vmatprep.subr.bf16.mxu0 %v3765
    %3889 = vmatpush1.bf16.msra.mxu0 %v3764
    %3890 = vmatprep.subr.bf16.mxu0 %v3769
    %3891 = vmatpush1.bf16.msra.mxu0 %v3768
    %3892 = vmatprep.subr.bf16.mxu0 %v3773
    %3893 = vmatpush1.bf16.msra.mxu0 %v3772
    %3894 = vmatprep.subr.bf16.mxu0 %v3777
    %3895 = vmatpush1.bf16.msra.mxu0 %v3776
    %3896 = vmatprep.subr.bf16.mxu0 %v3781
    %3897 = vmatpush1.bf16.msra.mxu0 %v3780
    %3898 = vmatprep.subr.bf16.mxu0 %v3785
    %3899 = vmatpush1.bf16.msra.mxu0 %v3784
    %3900 = vmatprep.subr.bf16.mxu0 %v3789
    %3901 = vmatpush1.bf16.msra.mxu0 %v3788
    %3902 = vmatprep.subr.bf16.mxu0 %v3793
    %3903 = vmatpush1.bf16.msra.mxu0 %v3792
    %3904 = vmatprep.subr.bf16.mxu0 0
    %3905 = vmatpush1.bf16.msra.mxu0 0
    %3906 = vmatprep.subr.bf16.mxu0 0
    %3907 = vmatpush1.bf16.msra.mxu0 0
    %3908 = vmatprep.subr.bf16.mxu0 0
    %3909 = vmatpush1.bf16.msra.mxu0 0
    %3910 = vmatprep.subr.bf16.mxu0 0
    %3911 = vmatpush1.bf16.msra.mxu0 0
    %3912 = vmatprep.subr.bf16.mxu0 0
    %3913 = vmatpush1.bf16.msra.mxu0 0
    %3914 = vmatprep.subr.bf16.mxu0 0
    %3915 = vmatpush1.bf16.msra.mxu0 0
    %3916 = vmatprep.subr.bf16.mxu0 0
    %3917 = vmatpush1.bf16.msra.mxu0 0
    %3918 = vmatprep.subr.bf16.mxu0 0
    %3919 = vmatpush1.bf16.msra.mxu0 0
    %3920 = vmatprep.mubr.bf16.mxu0 0
    %3921 = vmatmul.mubr.bf16.gmra.mrb[0].mxu0 %v3632
    %v3922 = vpop.f32.mrb[0].mxu0
    %v3923 = vadd.f32 %v3838, %v3922
    %v3924 = vpop.f32.mrb[0].mxu0
    %v3925 = vadd.f32 %v3842, %v3924
    %v3926 = vpop.f32.mrb[0].mxu0
    %v3927 = vpop.f32.mrb[0].mxu0
    %3928 = vdwg.mxu0
    %v3929 = vld [vmem:[#allocation10] sm:$0xff]
    %v3930 = vld [vmem:[#allocation10 + $0x8] sm:$0xff]
    %v3931 = vld [vmem:[#allocation10 + $0x10] sm:$0xff]
    %v3932 = vld [vmem:[#allocation10 + $0x18] sm:$0xff]
    %v3933 = vld [vmem:[#allocation10 + $0x20] sm:$0xff]
    %v3934 = vld [vmem:[#allocation10 + $0x28] sm:$0xff]
    %v3935 = vld [vmem:[#allocation10 + $0x30] sm:$0xff]
    %v3936 = vld [vmem:[#allocation10 + $0x38] sm:$0xff]
    %v3937 = vld [vmem:[#allocation10 + $0x40] sm:$0xff]
    %v3938 = vld [vmem:[#allocation10 + $0x48] sm:$0xff]
    %v3939 = vld [vmem:[#allocation10 + $0x50] sm:$0xff]
    %v3940 = vld [vmem:[#allocation10 + $0x58] sm:$0xff]
    %v3941 = vld [vmem:[#allocation10 + $0x60] sm:$0xff]
    %v3942 = vld [vmem:[#allocation10 + $0x68] sm:$0xff]
    %v3943 = vld [vmem:[#allocation10 + $0x70] sm:$0xff]
    %v3944 = vld [vmem:[#allocation10 + $0x78] sm:$0xff]
    %v3945 = vld [vmem:[#allocation10 + $0x80] sm:$0xff]
    %v3946 = vld [vmem:[#allocation10 + $0x88] sm:$0xff]
    %v3947 = vld [vmem:[#allocation10 + $0x90] sm:$0xff]
    %v3948 = vld [vmem:[#allocation10 + $0x98] sm:$0xff]
    %v3949 = vld [vmem:[#allocation10 + $0xa0] sm:$0xff]
    %v3950 = vld [vmem:[#allocation10 + $0xa8] sm:$0xff]
    %v3951 = vld [vmem:[#allocation10 + $0xb0] sm:$0xff]
    %v3952 = vld [vmem:[#allocation10 + $0xb8] sm:$0xff]
    %v3953 = vld [vmem:[#allocation10 + $0xc0] sm:$0xff]
    %v3954 = vld [vmem:[#allocation10 + $0xc8] sm:$0xff]
    %v3955 = vld [vmem:[#allocation10 + $0xd0] sm:$0xff]
    %v3956 = vld [vmem:[#allocation10 + $0xd8] sm:$0xff]
    %v3957 = vld [vmem:[#allocation10 + $0xe0] sm:$0xff]
    %v3958 = vld [vmem:[#allocation10 + $0xe8] sm:$0xff]
    %v3959 = vld [vmem:[#allocation10 + $0xf0] sm:$0xff]
    %v3960 = vld [vmem:[#allocation10 + $0xf8] sm:$0xff]
    %v3993 = vunpack.c.l.b16 %v3929
    %v3994 = vunpack.c.h.b16 %v3929
    %v3995 = vunpack.c.l.b16 %v3930
    %v3996 = vunpack.c.h.b16 %v3930
    %v3997 = vunpack.c.l.b16 %v3931
    %v3998 = vunpack.c.h.b16 %v3931
    %v3999 = vunpack.c.l.b16 %v3932
    %v4000 = vunpack.c.h.b16 %v3932
    %v4001 = vunpack.c.l.b16 %v3933
    %v4002 = vunpack.c.h.b16 %v3933
    %v4003 = vunpack.c.l.b16 %v3934
    %v4004 = vunpack.c.h.b16 %v3934
    %v4005 = vunpack.c.l.b16 %v3935
    %v4006 = vunpack.c.h.b16 %v3935
    %v4007 = vunpack.c.l.b16 %v3936
    %v4008 = vunpack.c.h.b16 %v3936
    %v4009 = vunpack.c.l.b16 %v3937
    %v4010 = vunpack.c.h.b16 %v3937
    %v4011 = vunpack.c.l.b16 %v3938
    %v4012 = vunpack.c.h.b16 %v3938
    %v4013 = vunpack.c.l.b16 %v3939
    %v4014 = vunpack.c.h.b16 %v3939
    %v4015 = vunpack.c.l.b16 %v3940
    %v4016 = vunpack.c.h.b16 %v3940
    %v4017 = vunpack.c.l.b16 %v3941
    %v4018 = vunpack.c.h.b16 %v3941
    %v4019 = vunpack.c.l.b16 %v3942
    %v4020 = vunpack.c.h.b16 %v3942
    %v4021 = vunpack.c.l.b16 %v3943
    %v4022 = vunpack.c.h.b16 %v3943
    %v4023 = vunpack.c.l.b16 %v3944
    %v4024 = vunpack.c.h.b16 %v3944
    %v4025 = vunpack.c.l.b16 %v3945
    %v4026 = vunpack.c.h.b16 %v3945
    %v4027 = vunpack.c.l.b16 %v3946
    %v4028 = vunpack.c.h.b16 %v3946
    %v4029 = vunpack.c.l.b16 %v3947
    %v4030 = vunpack.c.h.b16 %v3947
    %v4031 = vunpack.c.l.b16 %v3948
    %v4032 = vunpack.c.h.b16 %v3948
    %v4033 = vunpack.c.l.b16 %v3949
    %v4034 = vunpack.c.h.b16 %v3949
    %v4035 = vunpack.c.l.b16 %v3950
    %v4036 = vunpack.c.h.b16 %v3950
    %v4037 = vunpack.c.l.b16 %v3951
    %v4038 = vunpack.c.h.b16 %v3951
    %v4039 = vunpack.c.l.b16 %v3952
    %v4040 = vunpack.c.h.b16 %v3952
    %v4041 = vunpack.c.l.b16 %v3953
    %v4042 = vunpack.c.h.b16 %v3953
    %v4043 = vunpack.c.l.b16 %v3954
    %v4044 = vunpack.c.h.b16 %v3954
    %v4045 = vunpack.c.l.b16 %v3955
    %v4046 = vunpack.c.h.b16 %v3955
    %v4047 = vunpack.c.l.b16 %v3956
    %v4048 = vunpack.c.h.b16 %v3956
    %v4049 = vunpack.c.l.b16 %v3957
    %v4050 = vunpack.c.h.b16 %v3957
    %v4051 = vunpack.c.l.b16 %v3958
    %v4052 = vunpack.c.h.b16 %v3958
    %v4053 = vunpack.c.l.b16 %v3959
    %v4054 = vunpack.c.h.b16 %v3959
    %v4055 = vunpack.c.l.b16 %v3960
    %v4056 = vunpack.c.h.b16 %v3960
    %v4057 = vpack.c.b16 %v3997, %v3993
    %v4058 = vpack.c.b16 %v3998, %v3994
    %v4059 = vpack.c.b16 %v3999, %v3995
    %v4060 = vpack.c.b16 %v4000, %v3996
    %v4061 = vpack.c.b16 %v4005, %v4001
    %v4062 = vpack.c.b16 %v4006, %v4002
    %v4063 = vpack.c.b16 %v4007, %v4003
    %v4064 = vpack.c.b16 %v4008, %v4004
    %v4065 = vpack.c.b16 %v4013, %v4009
    %v4066 = vpack.c.b16 %v4014, %v4010
    %v4067 = vpack.c.b16 %v4015, %v4011
    %v4068 = vpack.c.b16 %v4016, %v4012
    %v4069 = vpack.c.b16 %v4021, %v4017
    %v4070 = vpack.c.b16 %v4022, %v4018
    %v4071 = vpack.c.b16 %v4023, %v4019
    %v4072 = vpack.c.b16 %v4024, %v4020
    %v4073 = vpack.c.b16 %v4029, %v4025
    %v4074 = vpack.c.b16 %v4030, %v4026
    %v4075 = vpack.c.b16 %v4031, %v4027
    %v4076 = vpack.c.b16 %v4032, %v4028
    %v4077 = vpack.c.b16 %v4037, %v4033
    %v4078 = vpack.c.b16 %v4038, %v4034
    %v4079 = vpack.c.b16 %v4039, %v4035
    %v4080 = vpack.c.b16 %v4040, %v4036
    %v4081 = vpack.c.b16 %v4045, %v4041
    %v4082 = vpack.c.b16 %v4046, %v4042
    %v4083 = vpack.c.b16 %v4047, %v4043
    %v4084 = vpack.c.b16 %v4048, %v4044
    %v4085 = vpack.c.b16 %v4053, %v4049
    %v4086 = vpack.c.b16 %v4054, %v4050
    %v4087 = vpack.c.b16 %v4055, %v4051
    %v4088 = vpack.c.b16 %v4056, %v4052
    %4121 = vmatprep.subr.bf16.mxu0 %v4058
    %4122 = vmatpush1.bf16.msra.mxu0 %v4057
    %4123 = vmatprep.subr.bf16.mxu0 %v4062
    %4124 = vmatpush1.bf16.msra.mxu0 %v4061
    %4125 = vmatprep.subr.bf16.mxu0 %v4066
    %4126 = vmatpush1.bf16.msra.mxu0 %v4065
    %4127 = vmatprep.subr.bf16.mxu0 %v4070
    %4128 = vmatpush1.bf16.msra.mxu0 %v4069
    %4129 = vmatprep.subr.bf16.mxu0 %v4074
    %4130 = vmatpush1.bf16.msra.mxu0 %v4073
    %4131 = vmatprep.subr.bf16.mxu0 %v4078
    %4132 = vmatpush1.bf16.msra.mxu0 %v4077
    %4133 = vmatprep.subr.bf16.mxu0 %v4082
    %4134 = vmatpush1.bf16.msra.mxu0 %v4081
    %4135 = vmatprep.subr.bf16.mxu0 %v4086
    %4136 = vmatpush1.bf16.msra.mxu0 %v4085
    %4137 = vmatprep.subr.bf16.mxu0 0
    %4138 = vmatpush1.bf16.msra.mxu0 0
    %4139 = vmatprep.subr.bf16.mxu0 0
    %4140 = vmatpush1.bf16.msra.mxu0 0
    %4141 = vmatprep.subr.bf16.mxu0 0
    %4142 = vmatpush1.bf16.msra.mxu0 0
    %4143 = vmatprep.subr.bf16.mxu0 0
    %4144 = vmatpush1.bf16.msra.mxu0 0
    %4145 = vmatprep.subr.bf16.mxu0 0
    %4146 = vmatpush1.bf16.msra.mxu0 0
    %4147 = vmatprep.subr.bf16.mxu0 0
    %4148 = vmatpush1.bf16.msra.mxu0 0
    %4149 = vmatprep.subr.bf16.mxu0 0
    %4150 = vmatpush1.bf16.msra.mxu0 0
    %4151 = vmatprep.subr.bf16.mxu0 0
    %4152 = vmatpush1.bf16.msra.mxu0 0
    %4153 = vmatprep.mubr.bf16.mxu0 0
    %4154 = vmatmul.mubr.bf16.gmra.mrb[0].mxu0 0
    %v4155 = vpop.f32.mrb[0].mxu0
    %v4156 = vadd.f32 0.0, %v4155
    %v4157 = vpop.f32.mrb[0].mxu0
    %v4158 = vadd.f32 0.0, %v4157
    %v4159 = vpop.f32.mrb[0].mxu0
    %v4160 = vpop.f32.mrb[0].mxu0
    %4161 = vdwg.mxu0
    %4162 = vmatprep.subr.bf16.mxu0 %v4060
    %4163 = vmatpush1.bf16.msra.mxu0 %v4059
    %4164 = vmatprep.subr.bf16.mxu0 %v4064
    %4165 = vmatpush1.bf16.msra.mxu0 %v4063
    %4166 = vmatprep.subr.bf16.mxu0 %v4068
    %4167 = vmatpush1.bf16.msra.mxu0 %v4067
    %4168 = vmatprep.subr.bf16.mxu0 %v4072
    %4169 = vmatpush1.bf16.msra.mxu0 %v4071
    %4170 = vmatprep.subr.bf16.mxu0 %v4076
    %4171 = vmatpush1.bf16.msra.mxu0 %v4075
    %4172 = vmatprep.subr.bf16.mxu0 %v4080
    %4173 = vmatpush1.bf16.msra.mxu0 %v4079
    %4174 = vmatprep.subr.bf16.mxu0 %v4084
    %4175 = vmatpush1.bf16.msra.mxu0 %v4083
    %4176 = vmatprep.subr.bf16.mxu0 %v4088
    %4177 = vmatpush1.bf16.msra.mxu0 %v4087
    %4178 = vmatprep.subr.bf16.mxu0 0
    %4179 = vmatpush1.bf16.msra.mxu0 0
    %4180 = vmatprep.subr.bf16.mxu0 0
    %4181 = vmatpush1.bf16.msra.mxu0 0
    %4182 = vmatprep.subr.bf16.mxu0 0
    %4183 = vmatpush1.bf16.msra.mxu0 0
    %4184 = vmatprep.subr.bf16.mxu0 0
    %4185 = vmatpush1.bf16.msra.mxu0 0
    %4186 = vmatprep.subr.bf16.mxu0 0
    %4187 = vmatpush1.bf16.msra.mxu0 0
    %4188 = vmatprep.subr.bf16.mxu0 0
    %4189 = vmatpush1.bf16.msra.mxu0 0
    %4190 = vmatprep.subr.bf16.mxu0 0
    %4191 = vmatpush1.bf16.msra.mxu0 0
    %4192 = vmatprep.subr.bf16.mxu0 0
    %4193 = vmatpush1.bf16.msra.mxu0 0
    %4194 = vmatprep.mubr.bf16.mxu0 0
    %4195 = vmatmul.mubr.bf16.gmra.mrb[0].mxu0 0
    %v4196 = vpop.f32.mrb[0].mxu0
    %v4197 = vadd.f32 0.0, %v4196
    %v4198 = vpop.f32.mrb[0].mxu0
    %v4199 = vadd.f32 0.0, %v4198
    %v4200 = vpop.f32.mrb[0].mxu0
    %v4201 = vpop.f32.mrb[0].mxu0
    %4202 = vdwg.mxu0
    %v4203 = vadd.f32 %v3882, %v4156
    %v4204 = vadd.f32 %v3884, %v4158
    %v4205 = vadd.f32 %v3923, %v4197
    %v4206 = vadd.f32 %v3925, %v4199
    %v4207 = vxor.u32 %v4203, 2147483648
    %v4208 = vxor.u32 %v4204, 2147483648
    %v4209 = vxor.u32 %v4205, 2147483648
    %v4210 = vmul.f32 %v4207, 1.442695
    %v4211 = vpow.pop %v4210
    %v4212 = vmul.f32 %v4208, 1.442695
    %v4213 = vpow.pop %v4212
    %v4214 = vmul.f32 %v4209, 1.442695
    %v4215 = vpow.pop %v4214
    %v4216 = vadd.f32 %v4211, 1.0
    %v4217 = vadd.f32 %v4213, 1.0
    %v4218 = vadd.f32 %v4215, 1.0
    %v4219 = vrcp.pop %v4216
    %v4220 = vmul.f32 1.0, %v4219
    %v4221 = vrcp.pop %v4217
    %v4222 = vmul.f32 1.0, %v4221
    %v4223 = vrcp.pop %v4218
    %v4224 = vmul.f32 1.0, %v4223
    %v4225 = vtanh.pop %v4206
    %v4226 = vmul.f32 %v4222, 0.0
    %v4227 = vmul.f32 %v4220, %v4225
    %v4228 = vadd.f32 %v4226, %v4227
    %v4229 = vtanh.pop %v4228
    %v4230 = vmul.f32 %v4224, %v4229
    %v4231 = vpack.c.bf16 %v4230, %v4230
    %v4232 = vld [vmem:[#allocation12] sm:$0xff]
    %v4233 = vld [vmem:[#allocation12 + $0x8] sm:$0xff]
    %v4234 = vld [vmem:[#allocation12 + $0x10] sm:$0xff]
    %v4235 = vld [vmem:[#allocation12 + $0x18] sm:$0xff]
    %v4236 = vld [vmem:[#allocation12 + $0x20] sm:$0xff]
    %v4237 = vld [vmem:[#allocation12 + $0x28] sm:$0xff]
    %v4238 = vld [vmem:[#allocation12 + $0x30] sm:$0xff]
    %v4239 = vld [vmem:[#allocation12 + $0x38] sm:$0xff]
    %v4240 = vld [vmem:[#allocation12 + $0x40] sm:$0xff]
    %v4241 = vld [vmem:[#allocation12 + $0x48] sm:$0xff]
    %v4242 = vld [vmem:[#allocation12 + $0x50] sm:$0xff]
    %v4243 = vld [vmem:[#allocation12 + $0x58] sm:$0xff]
    %v4244 = vld [vmem:[#allocation12 + $0x60] sm:$0xff]
    %v4245 = vld [vmem:[#allocation12 + $0x68] sm:$0xff]
    %v4246 = vld [vmem:[#allocation12 + $0x70] sm:$0xff]
    %v4247 = vld [vmem:[#allocation12 + $0x78] sm:$0xff]
    %v4248 = vld [vmem:[#allocation12 + $0x80] sm:$0xff]
    %v4249 = vld [vmem:[#allocation12 + $0x88] sm:$0xff]
    %v4250 = vld [vmem:[#allocation12 + $0x90] sm:$0xff]
    %v4251 = vld [vmem:[#allocation12 + $0x98] sm:$0xff]
    %v4252 = vld [vmem:[#allocation12 + $0xa0] sm:$0xff]
    %v4253 = vld [vmem:[#allocation12 + $0xa8] sm:$0xff]
    %v4254 = vld [vmem:[#allocation12 + $0xb0] sm:$0xff]
    %v4255 = vld [vmem:[#allocation12 + $0xb8] sm:$0xff]
    %v4256 = vld [vmem:[#allocation12 + $0xc0] sm:$0xff]
    %v4257 = vld [vmem:[#allocation12 + $0xc8] sm:$0xff]
    %v4258 = vld [vmem:[#allocation12 + $0xd0] sm:$0xff]
    %v4259 = vld [vmem:[#allocation12 + $0xd8] sm:$0xff]
    %v4260 = vld [vmem:[#allocation12 + $0xe0] sm:$0xff]
    %v4261 = vld [vmem:[#allocation12 + $0xe8] sm:$0xff]
    %v4262 = vld [vmem:[#allocation12 + $0xf0] sm:$0xff]
    %v4263 = vld [vmem:[#allocation12 + $0xf8] sm:$0xff]
    %v4264 = vld [vmem:[#allocation13] sm:$0xff]
    %v4265 = vld [vmem:[#allocation13 + $0x8] sm:$0xff]
    %v4266 = vld [vmem:[#allocation13 + $0x10] sm:$0xff]
    %v4267 = vld [vmem:[#allocation13 + $0x18] sm:$0xff]
    %v4268 = vld [vmem:[#allocation13 + $0x20] sm:$0xff]
    %v4269 = vld [vmem:[#allocation13 + $0x28] sm:$0xff]
    %v4270 = vld [vmem:[#allocation13 + $0x30] sm:$0xff]
    %v4271 = vld [vmem:[#allocation13 + $0x38] sm:$0xff]
    %v4272 = vld [vmem:[#allocation13 + $0x40] sm:$0xff]
    %v4273 = vld [vmem:[#allocation13 + $0x48] sm:$0xff]
    %v4274 = vld [vmem:[#allocation13 + $0x50] sm:$0xff]
    %v4275 = vld [vmem:[#allocation13 + $0x58] sm:$0xff]
    %v4276 = vld [vmem:[#allocation13 + $0x60] sm:$0xff]
    %v4277 = vld [vmem:[#allocation13 + $0x68] sm:$0xff]
    %v4278 = vld [vmem:[#allocation13 + $0x70] sm:$0xff]
    %v4279 = vld [vmem:[#allocation13 + $0x78] sm:$0xff]
    %v4280 = vld [vmem:[#allocation13 + $0x80] sm:$0xff]
    %v4281 = vld [vmem:[#allocation13 + $0x88] sm:$0xff]
    %v4282 = vld [vmem:[#allocation13 + $0x90] sm:$0xff]
    %v4283 = vld [vmem:[#allocation13 + $0x98] sm:$0xff]
    %v4284 = vld [vmem:[#allocation13 + $0xa0] sm:$0xff]
    %v4285 = vld [vmem:[#allocation13 + $0xa8] sm:$0xff]
    %v4286 = vld [vmem:[#allocation13 + $0xb0] sm:$0xff]
    %v4287 = vld [vmem:[#allocation13 + $0xb8] sm:$0xff]
    %v4288 = vld [vmem:[#allocation13 + $0xc0] sm:$0xff]
    %v4289 = vld [vmem:[#allocation13 + $0xc8] sm:$0xff]
    %v4290 = vld [vmem:[#allocation13 + $0xd0] sm:$0xff]
    %v4291 = vld [vmem:[#allocation13 + $0xd8] sm:$0xff]
    %v4292 = vld [vmem:[#allocation13 + $0xe0] sm:$0xff]
    %v4293 = vld [vmem:[#allocation13 + $0xe8] sm:$0xff]
    %v4294 = vld [vmem:[#allocation13 + $0xf0] sm:$0xff]
    %v4295 = vld [vmem:[#allocation13 + $0xf8] sm:$0xff]
    %v4328 = vunpack.c.l.b16 %v4264
    %v4329 = vunpack.c.h.b16 %v4264
    %v4330 = vunpack.c.l.b16 %v4265
    %v4331 = vunpack.c.h.b16 %v4265
    %v4332 = vunpack.c.l.b16 %v4266
    %v4333 = vunpack.c.h.b16 %v4266
    %v4334 = vunpack.c.l.b16 %v4267
    %v4335 = vunpack.c.h.b16 %v4267
    %v4336 = vunpack.c.l.b16 %v4268
    %v4337 = vunpack.c.h.b16 %v4268
    %v4338 = vunpack.c.l.b16 %v4269
    %v4339 = vunpack.c.h.b16 %v4269
    %v4340 = vunpack.c.l.b16 %v4270
    %v4341 = vunpack.c.h.b16 %v4270
    %v4342 = vunpack.c.l.b16 %v4271
    %v4343 = vunpack.c.h.b16 %v4271
    %v4344 = vunpack.c.l.b16 %v4272
    %v4345 = vunpack.c.h.b16 %v4272
    %v4346 = vunpack.c.l.b16 %v4273
    %v4347 = vunpack.c.h.b16 %v4273
    %v4348 = vunpack.c.l.b16 %v4274
    %v4349 = vunpack.c.h.b16 %v4274
    %v4350 = vunpack.c.l.b16 %v4275
    %v4351 = vunpack.c.h.b16 %v4275
    %v4352 = vunpack.c.l.b16 %v4276
    %v4353 = vunpack.c.h.b16 %v4276
    %v4354 = vunpack.c.l.b16 %v4277
    %v4355 = vunpack.c.h.b16 %v4277
    %v4356 = vunpack.c.l.b16 %v4278
    %v4357 = vunpack.c.h.b16 %v4278
    %v4358 = vunpack.c.l.b16 %v4279
    %v4359 = vunpack.c.h.b16 %v4279
    %v4360 = vunpack.c.l.b16 %v4280
    %v4361 = vunpack.c.h.b16 %v4280
    %v4362 = vunpack.c.l.b16 %v4281
    %v4363 = vunpack.c.h.b16 %v4281
    %v4364 = vunpack.c.l.b16 %v4282
    %v4365 = vunpack.c.h.b16 %v4282
    %v4366 = vunpack.c.l.b16 %v4283
    %v4367 = vunpack.c.h.b16 %v4283
    %v4368 = vunpack.c.l.b16 %v4284
    %v4369 = vunpack.c.h.b16 %v4284
    %v4370 = vunpack.c.l.b16 %v4285
    %v4371 = vunpack.c.h.b16 %v4285
    %v4372 = vunpack.c.l.b16 %v4286
    %v4373 = vunpack.c.h.b16 %v4286
    %v4374 = vunpack.c.l.b16 %v4287
    %v4375 = vunpack.c.h.b16 %v4287
    %v4376 = vunpack.c.l.b16 %v4288
    %v4377 = vunpack.c.h.b16 %v4288
    %v4378 = vunpack.c.l.b16 %v4289
    %v4379 = vunpack.c.h.b16 %v4289
    %v4380 = vunpack.c.l.b16 %v4290
    %v4381 = vunpack.c.h.b16 %v4290
    %v4382 = vunpack.c.l.b16 %v4291
    %v4383 = vunpack.c.h.b16 %v4291
    %v4384 = vunpack.c.l.b16 %v4292
    %v4385 = vunpack.c.h.b16 %v4292
    %v4386 = vunpack.c.l.b16 %v4293
    %v4387 = vunpack.c.h.b16 %v4293
    %v4388 = vunpack.c.l.b16 %v4294
    %v4389 = vunpack.c.h.b16 %v4294
    %v4390 = vunpack.c.l.b16 %v4295
    %v4391 = vunpack.c.h.b16 %v4295
    %v4392 = vpack.c.b16 %v4332, %v4328
    %v4393 = vpack.c.b16 %v4333, %v4329
    %v4394 = vpack.c.b16 %v4334, %v4330
    %v4395 = vpack.c.b16 %v4335, %v4331
    %v4396 = vpack.c.b16 %v4340, %v4336
    %v4397 = vpack.c.b16 %v4341, %v4337
    %v4398 = vpack.c.b16 %v4342, %v4338
    %v4399 = vpack.c.b16 %v4343, %v4339
    %v4400 = vpack.c.b16 %v4348, %v4344
    %v4401 = vpack.c.b16 %v4349, %v4345
    %v4402 = vpack.c.b16 %v4350, %v4346
    %v4403 = vpack.c.b16 %v4351, %v4347
    %v4404 = vpack.c.b16 %v4356, %v4352
    %v4405 = vpack.c.b16 %v4357, %v4353
    %v4406 = vpack.c.b16 %v4358, %v4354
    %v4407 = vpack.c.b16 %v4359, %v4355
    %v4408 = vpack.c.b16 %v4364, %v4360
    %v4409 = vpack.c.b16 %v4365, %v4361
    %v4410 = vpack.c.b16 %v4366, %v4362
    %v4411 = vpack.c.b16 %v4367, %v4363
    %v4412 = vpack.c.b16 %v4372, %v4368
    %v4413 = vpack.c.b16 %v4373, %v4369
    %v4414 = vpack.c.b16 %v4374, %v4370
    %v4415 = vpack.c.b16 %v4375, %v4371
    %v4416 = vpack.c.b16 %v4380, %v4376
    %v4417 = vpack.c.b16 %v4381, %v4377
    %v4418 = vpack.c.b16 %v4382, %v4378
    %v4419 = vpack.c.b16 %v4383, %v4379
    %v4420 = vpack.c.b16 %v4388, %v4384
    %v4421 = vpack.c.b16 %v4389, %v4385
    %v4422 = vpack.c.b16 %v4390, %v4386
    %v4423 = vpack.c.b16 %v4391, %v4387
    %4456 = vmatprep.subr.bf16.mxu0 %v4393
    %4457 = vmatpush1.bf16.msra.mxu0 %v4392
    %4458 = vmatprep.subr.bf16.mxu0 %v4397
    %4459 = vmatpush1.bf16.msra.mxu0 %v4396
    %4460 = vmatprep.subr.bf16.mxu0 %v4401
    %4461 = vmatpush1.bf16.msra.mxu0 %v4400
    %4462 = vmatprep.subr.bf16.mxu0 %v4405
    %4463 = vmatpush1.bf16.msra.mxu0 %v4404
    %4464 = vmatprep.subr.bf16.mxu0 %v4409
    %4465 = vmatpush1.bf16.msra.mxu0 %v4408
    %4466 = vmatprep.subr.bf16.mxu0 %v4413
    %4467 = vmatpush1.bf16.msra.mxu0 %v4412
    %4468 = vmatprep.subr.bf16.mxu0 %v4417
    %4469 = vmatpush1.bf16.msra.mxu0 %v4416
    %4470 = vmatprep.subr.bf16.mxu0 %v4421
    %4471 = vmatpush1.bf16.msra.mxu0 %v4420
    %4472 = vmatprep.subr.bf16.mxu0 0
    %4473 = vmatpush1.bf16.msra.mxu0 0
    %4474 = vmatprep.subr.bf16.mxu0 0
    %4475 = vmatpush1.bf16.msra.mxu0 0
    %4476 = vmatprep.subr.bf16.mxu0 0
    %4477 = vmatpush1.bf16.msra.mxu0 0
    %4478 = vmatprep.subr.bf16.mxu0 0
    %4479 = vmatpush1.bf16.msra.mxu0 0
    %4480 = vmatprep.subr.bf16.mxu0 0
    %4481 = vmatpush1.bf16.msra.mxu0 0
    %4482 = vmatprep.subr.bf16.mxu0 0
    %4483 = vmatpush1.bf16.msra.mxu0 0
    %4484 = vmatprep.subr.bf16.mxu0 0
    %4485 = vmatpush1.bf16.msra.mxu0 0
    %4486 = vmatprep.subr.bf16.mxu0 0
    %4487 = vmatpush1.bf16.msra.mxu0 0
    %4488 = vmatprep.mubr.bf16.mxu0 0
    %4489 = vmatmul.mubr.bf16.gmra.mrb[0].mxu0 0
    %v4490 = vpop.f32.mrb[0].mxu0
    %v4491 = vadd.f32 0.0, %v4490
    %v4492 = vpop.f32.mrb[0].mxu0
    %v4493 = vadd.f32 0.0, %v4492
    %v4494 = vpop.f32.mrb[0].mxu0
    %v4495 = vpop.f32.mrb[0].mxu0
    %4496 = vdwg.mxu0
    %4497 = vmatprep.subr.bf16.mxu0 %v4395
    %4498 = vmatpush1.bf16.msra.mxu0 %v4394
    %4499 = vmatprep.subr.bf16.mxu0 %v4399
    %4500 = vmatpush1.bf16.msra.mxu0 %v4398
    %4501 = vmatprep.subr.bf16.mxu0 %v4403
    %4502 = vmatpush1.bf16.msra.mxu0 %v4402
    %4503 = vmatprep.subr.bf16.mxu0 %v4407
    %4504 = vmatpush1.bf16.msra.mxu0 %v4406
    %4505 = vmatprep.subr.bf16.mxu0 %v4411
    %4506 = vmatpush1.bf16.msra.mxu0 %v4410
    %4507 = vmatprep.subr.bf16.mxu0 %v4415
    %4508 = vmatpush1.bf16.msra.mxu0 %v4414
    %4509 = vmatprep.subr.bf16.mxu0 %v4419
    %4510 = vmatpush1.bf16.msra.mxu0 %v4418
    %4511 = vmatprep.subr.bf16.mxu0 %v4423
    %4512 = vmatpush1.bf16.msra.mxu0 %v4422
    %4513 = vmatprep.subr.bf16.mxu0 0
    %4514 = vmatpush1.bf16.msra.mxu0 0
    %4515 = vmatprep.subr.bf16.mxu0 0
    %4516 = vmatpush1.bf16.msra.mxu0 0
    %4517 = vmatprep.subr.bf16.mxu0 0
    %4518 = vmatpush1.bf16.msra.mxu0 0
    %4519 = vmatprep.subr.bf16.mxu0 0
    %4520 = vmatpush1.bf16.msra.mxu0 0
    %4521 = vmatprep.subr.bf16.mxu0 0
    %4522 = vmatpush1.bf16.msra.mxu0 0
    %4523 = vmatprep.subr.bf16.mxu0 0
    %4524 = vmatpush1.bf16.msra.mxu0 0
    %4525 = vmatprep.subr.bf16.mxu0 0
    %4526 = vmatpush1.bf16.msra.mxu0 0
    %4527 = vmatprep.subr.bf16.mxu0 0
    %4528 = vmatpush1.bf16.msra.mxu0 0
    %4529 = vmatprep.mubr.bf16.mxu0 0
    %4530 = vmatmul.mubr.bf16.gmra.mrb[0].mxu0 0
    %v4531 = vpop.f32.mrb[0].mxu0
    %v4532 = vadd.f32 0.0, %v4531
    %v4533 = vpop.f32.mrb[0].mxu0
    %v4534 = vadd.f32 0.0, %v4533
    %v4535 = vpop.f32.mrb[0].mxu0
    %v4536 = vpop.f32.mrb[0].mxu0
    %4537 = vdwg.mxu0
    %v4570 = vunpack.c.l.b16 %v4232
    %v4571 = vunpack.c.h.b16 %v4232
    %v4572 = vunpack.c.l.b16 %v4233
    %v4573 = vunpack.c.h.b16 %v4233
    %v4574 = vunpack.c.l.b16 %v4234
    %v4575 = vunpack.c.h.b16 %v4234
    %v4576 = vunpack.c.l.b16 %v4235
    %v4577 = vunpack.c.h.b16 %v4235
    %v4578 = vunpack.c.l.b16 %v4236
    %v4579 = vunpack.c.h.b16 %v4236
    %v4580 = vunpack.c.l.b16 %v4237
    %v4581 = vunpack.c.h.b16 %v4237
    %v4582 = vunpack.c.l.b16 %v4238
    %v4583 = vunpack.c.h.b16 %v4238
    %v4584 = vunpack.c.l.b16 %v4239
    %v4585 = vunpack.c.h.b16 %v4239
    %v4586 = vunpack.c.l.b16 %v4240
    %v4587 = vunpack.c.h.b16 %v4240
    %v4588 = vunpack.c.l.b16 %v4241
    %v4589 = vunpack.c.h.b16 %v4241
    %v4590 = vunpack.c.l.b16 %v4242
    %v4591 = vunpack.c.h.b16 %v4242
    %v4592 = vunpack.c.l.b16 %v4243
    %v4593 = vunpack.c.h.b16 %v4243
    %v4594 = vunpack.c.l.b16 %v4244
    %v4595 = vunpack.c.h.b16 %v4244
    %v4596 = vunpack.c.l.b16 %v4245
    %v4597 = vunpack.c.h.b16 %v4245
    %v4598 = vunpack.c.l.b16 %v4246
    %v4599 = vunpack.c.h.b16 %v4246
    %v4600 = vunpack.c.l.b16 %v4247
    %v4601 = vunpack.c.h.b16 %v4247
    %v4602 = vunpack.c.l.b16 %v4248
    %v4603 = vunpack.c.h.b16 %v4248
    %v4604 = vunpack.c.l.b16 %v4249
    %v4605 = vunpack.c.h.b16 %v4249
    %v4606 = vunpack.c.l.b16 %v4250
    %v4607 = vunpack.c.h.b16 %v4250
    %v4608 = vunpack.c.l.b16 %v4251
    %v4609 = vunpack.c.h.b16 %v4251
    %v4610 = vunpack.c.l.b16 %v4252
    %v4611 = vunpack.c.h.b16 %v4252
    %v4612 = vunpack.c.l.b16 %v4253
    %v4613 = vunpack.c.h.b16 %v4253
    %v4614 = vunpack.c.l.b16 %v4254
    %v4615 = vunpack.c.h.b16 %v4254
    %v4616 = vunpack.c.l.b16 %v4255
    %v4617 = vunpack.c.h.b16 %v4255
    %v4618 = vunpack.c.l.b16 %v4256
    %v4619 = vunpack.c.h.b16 %v4256
    %v4620 = vunpack.c.l.b16 %v4257
    %v4621 = vunpack.c.h.b16 %v4257
    %v4622 = vunpack.c.l.b16 %v4258
    %v4623 = vunpack.c.h.b16 %v4258
    %v4624 = vunpack.c.l.b16 %v4259
    %v4625 = vunpack.c.h.b16 %v4259
    %v4626 = vunpack.c.l.b16 %v4260
    %v4627 = vunpack.c.h.b16 %v4260
    %v4628 = vunpack.c.l.b16 %v4261
    %v4629 = vunpack.c.h.b16 %v4261
    %v4630 = vunpack.c.l.b16 %v4262
    %v4631 = vunpack.c.h.b16 %v4262
    %v4632 = vunpack.c.l.b16 %v4263
    %v4633 = vunpack.c.h.b16 %v4263
    %v4634 = vpack.c.b16 %v4574, %v4570
    %v4635 = vpack.c.b16 %v4575, %v4571
    %v4636 = vpack.c.b16 %v4576, %v4572
    %v4637 = vpack.c.b16 %v4577, %v4573
    %v4638 = vpack.c.b16 %v4582, %v4578
    %v4639 = vpack.c.b16 %v4583, %v4579
    %v4640 = vpack.c.b16 %v4584, %v4580
    %v4641 = vpack.c.b16 %v4585, %v4581
    %v4642 = vpack.c.b16 %v4590, %v4586
    %v4643 = vpack.c.b16 %v4591, %v4587
    %v4644 = vpack.c.b16 %v4592, %v4588
    %v4645 = vpack.c.b16 %v4593, %v4589
    %v4646 = vpack.c.b16 %v4598, %v4594
    %v4647 = vpack.c.b16 %v4599, %v4595
    %v4648 = vpack.c.b16 %v4600, %v4596
    %v4649 = vpack.c.b16 %v4601, %v4597
    %v4650 = vpack.c.b16 %v4606, %v4602
    %v4651 = vpack.c.b16 %v4607, %v4603
    %v4652 = vpack.c.b16 %v4608, %v4604
    %v4653 = vpack.c.b16 %v4609, %v4605
    %v4654 = vpack.c.b16 %v4614, %v4610
    %v4655 = vpack.c.b16 %v4615, %v4611
    %v4656 = vpack.c.b16 %v4616, %v4612
    %v4657 = vpack.c.b16 %v4617, %v4613
    %v4658 = vpack.c.b16 %v4622, %v4618
    %v4659 = vpack.c.b16 %v4623, %v4619
    %v4660 = vpack.c.b16 %v4624, %v4620
    %v4661 = vpack.c.b16 %v4625, %v4621
    %v4662 = vpack.c.b16 %v4630, %v4626
    %v4663 = vpack.c.b16 %v4631, %v4627
    %v4664 = vpack.c.b16 %v4632, %v4628
    %v4665 = vpack.c.b16 %v4633, %v4629
    %4698 = vmatprep.subr.bf16.mxu0 %v4635
    %4699 = vmatpush1.bf16.msra.mxu0 %v4634
    %4700 = vmatprep.subr.bf16.mxu0 %v4639
    %4701 = vmatpush1.bf16.msra.mxu0 %v4638
    %4702 = vmatprep.subr.bf16.mxu0 %v4643
    %4703 = vmatpush1.bf16.msra.mxu0 %v4642
    %4704 = vmatprep.subr.bf16.mxu0 %v4647
    %4705 = vmatpush1.bf16.msra.mxu0 %v4646
    %4706 = vmatprep.subr.bf16.mxu0 %v4651
    %4707 = vmatpush1.bf16.msra.mxu0 %v4650
    %4708 = vmatprep.subr.bf16.mxu0 %v4655
    %4709 = vmatpush1.bf16.msra.mxu0 %v4654
    %4710 = vmatprep.subr.bf16.mxu0 %v4659
    %4711 = vmatpush1.bf16.msra.mxu0 %v4658
    %4712 = vmatprep.subr.bf16.mxu0 %v4663
    %4713 = vmatpush1.bf16.msra.mxu0 %v4662
    %4714 = vmatprep.subr.bf16.mxu0 0
    %4715 = vmatpush1.bf16.msra.mxu0 0
    %4716 = vmatprep.subr.bf16.mxu0 0
    %4717 = vmatpush1.bf16.msra.mxu0 0
    %4718 = vmatprep.subr.bf16.mxu0 0
    %4719 = vmatpush1.bf16.msra.mxu0 0
    %4720 = vmatprep.subr.bf16.mxu0 0
    %4721 = vmatpush1.bf16.msra.mxu0 0
    %4722 = vmatprep.subr.bf16.mxu0 0
    %4723 = vmatpush1.bf16.msra.mxu0 0
    %4724 = vmatprep.subr.bf16.mxu0 0
    %4725 = vmatpush1.bf16.msra.mxu0 0
    %4726 = vmatprep.subr.bf16.mxu0 0
    %4727 = vmatpush1.bf16.msra.mxu0 0
    %4728 = vmatprep.subr.bf16.mxu0 0
    %4729 = vmatpush1.bf16.msra.mxu0 0
    %4730 = vmatprep.mubr.bf16.mxu0 0
    %4731 = vmatmul.mubr.bf16.gmra.mrb[0].mxu0 %v4231
    %v4732 = vpop.f32.mrb[0].mxu0
    %v4733 = vadd.f32 %v4491, %v4732
    %v4734 = vpop.f32.mrb[0].mxu0
    %v4735 = vadd.f32 %v4493, %v4734
    %v4736 = vpop.f32.mrb[0].mxu0
    %v4737 = vpop.f32.mrb[0].mxu0
    %4738 = vdwg.mxu0
    %4739 = vmatprep.subr.bf16.mxu0 %v4637
    %4740 = vmatpush1.bf16.msra.mxu0 %v4636
    %4741 = vmatprep.subr.bf16.mxu0 %v4641
    %4742 = vmatpush1.bf16.msra.mxu0 %v4640
    %4743 = vmatprep.subr.bf16.mxu0 %v4645
    %4744 = vmatpush1.bf16.msra.mxu0 %v4644
    %4745 = vmatprep.subr.bf16.mxu0 %v4649
    %4746 = vmatpush1.bf16.msra.mxu0 %v4648
    %4747 = vmatprep.subr.bf16.mxu0 %v4653
    %4748 = vmatpush1.bf16.msra.mxu0 %v4652
    %4749 = vmatprep.subr.bf16.mxu0 %v4657
    %4750 = vmatpush1.bf16.msra.mxu0 %v4656
    %4751 = vmatprep.subr.bf16.mxu0 %v4661
    %4752 = vmatpush1.bf16.msra.mxu0 %v4660
    %4753 = vmatprep.subr.bf16.mxu0 %v4665
    %4754 = vmatpush1.bf16.msra.mxu0 %v4664
    %4755 = vmatprep.subr.bf16.mxu0 0
    %4756 = vmatpush1.bf16.msra.mxu0 0
    %4757 = vmatprep.subr.bf16.mxu0 0
    %4758 = vmatpush1.bf16.msra.mxu0 0
    %4759 = vmatprep.subr.bf16.mxu0 0
    %4760 = vmatpush1.bf16.msra.mxu0 0
    %4761 = vmatprep.subr.bf16.mxu0 0
    %4762 = vmatpush1.bf16.msra.mxu0 0
    %4763 = vmatprep.subr.bf16.mxu0 0
    %4764 = vmatpush1.bf16.msra.mxu0 0
    %4765 = vmatprep.subr.bf16.mxu0 0
    %4766 = vmatpush1.bf16.msra.mxu0 0
    %4767 = vmatprep.subr.bf16.mxu0 0
    %4768 = vmatpush1.bf16.msra.mxu0 0
    %4769 = vmatprep.subr.bf16.mxu0 0
    %4770 = vmatpush1.bf16.msra.mxu0 0
    %4771 = vmatprep.mubr.bf16.mxu0 0
    %4772 = vmatmul.mubr.bf16.gmra.mrb[0].mxu0 %v4231
    %v4773 = vpop.f32.mrb[0].mxu0
    %v4774 = vadd.f32 %v4532, %v4773
    %v4775 = vpop.f32.mrb[0].mxu0
    %v4776 = vadd.f32 %v4534, %v4775
    %v4777 = vpop.f32.mrb[0].mxu0
    %v4778 = vpop.f32.mrb[0].mxu0
    %4779 = vdwg.mxu0
    %v4780 = vld [vmem:[%s12] sm:$0xf]
    %v4782 = vlaneseq
    %v4783 = vshrl.u32 %v4782, 7
    %v4784 = vsub.s32 0, %v4783
    %v4785 = vrot.slane %v4780, %v4784
    %v4786 = vlaneseq
    %v4787 = vshrl.u32 %v4786, 7
    %v4788 = vsub.s32 1, %v4787
    %v4789 = vrot.slane %v4780, %v4788
    %v4790 = vlaneseq
    %v4791 = vshrl.u32 %v4790, 7
    %v4792 = vsub.s32 2, %v4791
    %v4793 = vrot.slane %v4780, %v4792
    %v4794 = vlaneseq
    %v4795 = vshrl.u32 %v4794, 7
    %v4796 = vsub.s32 3, %v4795
    %v4797 = vrot.slane %v4780, %v4796
    %v4802 = vadd.f32 %v4733, %v4785
    %v4803 = vadd.f32 %v4735, %v4789
    %v4804 = vadd.f32 %v4774, %v4793
    %v4805 = vadd.f32 %v4776, %v4797
    %v4806 = vxor.u32 %v4802, 2147483648
    %v4807 = vxor.u32 %v4803, 2147483648
    %v4808 = vxor.u32 %v4804, 2147483648
    %v4809 = vmul.f32 %v4806, 1.442695
    %v4810 = vpow.pop %v4809
    %v4811 = vmul.f32 %v4807, 1.442695
    %v4812 = vpow.pop %v4811
    %v4813 = vmul.f32 %v4808, 1.442695
    %v4814 = vpow.pop %v4813
    %v4815 = vadd.f32 %v4810, 1.0
    %v4816 = vadd.f32 %v4812, 1.0
    %v4817 = vadd.f32 %v4814, 1.0
    %v4818 = vrcp.pop %v4815
    %v4819 = vmul.f32 1.0, %v4818
    %v4820 = vrcp.pop %v4816
    %v4821 = vmul.f32 1.0, %v4820
    %v4822 = vrcp.pop %v4817
    %v4823 = vmul.f32 1.0, %v4822
    %v4824 = vtanh.pop %v4805
    %v4825 = vmul.f32 %v4821, 0.0
    %v4826 = vmul.f32 %v4819, %v4824
    %v4827 = vadd.f32 %v4825, %v4826
    %v4828 = vtanh.pop %v4827
    %v4829 = vmul.f32 %v4823, %v4828
    %4830 = vmatprep.subr.bf16.mxu0 %v4058
    %4831 = vmatpush1.bf16.msra.mxu0 %v4057
    %4832 = vmatprep.subr.bf16.mxu0 %v4062
    %4833 = vmatpush1.bf16.msra.mxu0 %v4061
    %4834 = vmatprep.subr.bf16.mxu0 %v4066
    %4835 = vmatpush1.bf16.msra.mxu0 %v4065
    %4836 = vmatprep.subr.bf16.mxu0 %v4070
    %4837 = vmatpush1.bf16.msra.mxu0 %v4069
    %4838 = vmatprep.subr.bf16.mxu0 %v4074
    %4839 = vmatpush1.bf16.msra.mxu0 %v4073
    %4840 = vmatprep.subr.bf16.mxu0 %v4078
    %4841 = vmatpush1.bf16.msra.mxu0 %v4077
    %4842 = vmatprep.subr.bf16.mxu0 %v4082
    %4843 = vmatpush1.bf16.msra.mxu0 %v4081
    %4844 = vmatprep.subr.bf16.mxu0 %v4086
    %4845 = vmatpush1.bf16.msra.mxu0 %v4085
    %4846 = vmatprep.subr.bf16.mxu0 0
    %4847 = vmatpush1.bf16.msra.mxu0 0
    %4848 = vmatprep.subr.bf16.mxu0 0
    %4849 = vmatpush1.bf16.msra.mxu0 0
    %4850 = vmatprep.subr.bf16.mxu0 0
    %4851 = vmatpush1.bf16.msra.mxu0 0
    %4852 = vmatprep.subr.bf16.mxu0 0
    %4853 = vmatpush1.bf16.msra.mxu0 0
    %4854 = vmatprep.subr.bf16.mxu0 0
    %4855 = vmatpush1.bf16.msra.mxu0 0
    %4856 = vmatprep.subr.bf16.mxu0 0
    %4857 = vmatpush1.bf16.msra.mxu0 0
    %4858 = vmatprep.subr.bf16.mxu0 0
    %4859 = vmatpush1.bf16.msra.mxu0 0
    %4860 = vmatprep.subr.bf16.mxu0 0
    %4861 = vmatpush1.bf16.msra.mxu0 0
    %4862 = vmatprep.mubr.bf16.mxu0 0
    %4863 = vmatmul.mubr.bf16.gmra.mrb[0].mxu0 %v4231
    %v4864 = vpop.f32.mrb[0].mxu0
    %v4865 = vadd.f32 0.0, %v4864
    %v4866 = vpop.f32.mrb[0].mxu0
    %v4867 = vadd.f32 0.0, %v4866
    %v4868 = vpop.f32.mrb[0].mxu0
    %v4869 = vpop.f32.mrb[0].mxu0
    %4870 = vdwg.mxu0
    %4871 = vmatprep.subr.bf16.mxu0 %v4060
    %4872 = vmatpush1.bf16.msra.mxu0 %v4059
    %4873 = vmatprep.subr.bf16.mxu0 %v4064
    %4874 = vmatpush1.bf16.msra.mxu0 %v4063
    %4875 = vmatprep.subr.bf16.mxu0 %v4068
    %4876 = vmatpush1.bf16.msra.mxu0 %v4067
    %4877 = vmatprep.subr.bf16.mxu0 %v4072
    %4878 = vmatpush1.bf16.msra.mxu0 %v4071
    %4879 = vmatprep.subr.bf16.mxu0 %v4076
    %4880 = vmatpush1.bf16.msra.mxu0 %v4075
    %4881 = vmatprep.subr.bf16.mxu0 %v4080
    %4882 = vmatpush1.bf16.msra.mxu0 %v4079
    %4883 = vmatprep.subr.bf16.mxu0 %v4084
    %4884 = vmatpush1.bf16.msra.mxu0 %v4083
    %4885 = vmatprep.subr.bf16.mxu0 %v4088
    %4886 = vmatpush1.bf16.msra.mxu0 %v4087
    %4887 = vmatprep.subr.bf16.mxu0 0
    %4888 = vmatpush1.bf16.msra.mxu0 0
    %4889 = vmatprep.subr.bf16.mxu0 0
    %4890 = vmatpush1.bf16.msra.mxu0 0
    %4891 = vmatprep.subr.bf16.mxu0 0
    %4892 = vmatpush1.bf16.msra.mxu0 0
    %4893 = vmatprep.subr.bf16.mxu0 0
    %4894 = vmatpush1.bf16.msra.mxu0 0
    %4895 = vmatprep.subr.bf16.mxu0 0
    %4896 = vmatpush1.bf16.msra.mxu0 0
    %4897 = vmatprep.subr.bf16.mxu0 0
    %4898 = vmatpush1.bf16.msra.mxu0 0
    %4899 = vmatprep.subr.bf16.mxu0 0
    %4900 = vmatpush1.bf16.msra.mxu0 0
    %4901 = vmatprep.subr.bf16.mxu0 0
    %4902 = vmatpush1.bf16.msra.mxu0 0
    %4903 = vmatprep.mubr.bf16.mxu0 0
    %4904 = vmatmul.mubr.bf16.gmra.mrb[0].mxu0 %v4231
    %v4905 = vpop.f32.mrb[0].mxu0
    %v4906 = vadd.f32 0.0, %v4905
    %v4907 = vpop.f32.mrb[0].mxu0
    %v4908 = vadd.f32 0.0, %v4907
    %v4909 = vpop.f32.mrb[0].mxu0
    %v4910 = vpop.f32.mrb[0].mxu0
    %4911 = vdwg.mxu0
    %v4912 = vadd.f32 %v3882, %v4865
    %v4913 = vadd.f32 %v3884, %v4867
    %v4914 = vadd.f32 %v3923, %v4906
    %v4915 = vadd.f32 %v3925, %v4908
    %v4916 = vxor.u32 %v4912, 2147483648
    %v4917 = vxor.u32 %v4913, 2147483648
    %v4918 = vxor.u32 %v4914, 2147483648
    %v4919 = vmul.f32 %v4916, 1.442695
    %v4920 = vpow.pop %v4919
    %v4921 = vmul.f32 %v4917, 1.442695
    %v4922 = vpow.pop %v4921
    %v4923 = vmul.f32 %v4918, 1.442695
    %v4924 = vpow.pop %v4923
    %v4925 = vadd.f32 %v4920, 1.0
    %v4926 = vadd.f32 %v4922, 1.0
    %v4927 = vadd.f32 %v4924, 1.0
    %v4928 = vrcp.pop %v4925
    %v4929 = vmul.f32 1.0, %v4928
    %v4930 = vrcp.pop %v4926
    %v4931 = vmul.f32 1.0, %v4930
    %v4932 = vrcp.pop %v4927
    %v4933 = vmul.f32 1.0, %v4932
    %v4934 = vtanh.pop %v4915
    %v4935 = vmul.f32 %v4931, %v4228
    %v4936 = vmul.f32 %v4929, %v4934
    %v4937 = vadd.f32 %v4935, %v4936
    %v4938 = vtanh.pop %v4937
    %v4939 = vmul.f32 %v4933, %v4938
    %v4940 = vpack.c.bf16 %v4939, %v4939
    %v4941 = vpack.c.bf16 %v4829, %v4829
    %4942 = vmatprep.subr.bf16.mxu0 %v4393
    %4943 = vmatpush1.bf16.msra.mxu0 %v4392
    %4944 = vmatprep.subr.bf16.mxu0 %v4397
    %4945 = vmatpush1.bf16.msra.mxu0 %v4396
    %4946 = vmatprep.subr.bf16.mxu0 %v4401
    %4947 = vmatpush1.bf16.msra.mxu0 %v4400
    %4948 = vmatprep.subr.bf16.mxu0 %v4405
    %4949 = vmatpush1.bf16.msra.mxu0 %v4404
    %4950 = vmatprep.subr.bf16.mxu0 %v4409
    %4951 = vmatpush1.bf16.msra.mxu0 %v4408
    %4952 = vmatprep.subr.bf16.mxu0 %v4413
    %4953 = vmatpush1.bf16.msra.mxu0 %v4412
    %4954 = vmatprep.subr.bf16.mxu0 %v4417
    %4955 = vmatpush1.bf16.msra.mxu0 %v4416
    %4956 = vmatprep.subr.bf16.mxu0 %v4421
    %4957 = vmatpush1.bf16.msra.mxu0 %v4420
    %4958 = vmatprep.subr.bf16.mxu0 0
    %4959 = vmatpush1.bf16.msra.mxu0 0
    %4960 = vmatprep.subr.bf16.mxu0 0
    %4961 = vmatpush1.bf16.msra.mxu0 0
    %4962 = vmatprep.subr.bf16.mxu0 0
    %4963 = vmatpush1.bf16.msra.mxu0 0
    %4964 = vmatprep.subr.bf16.mxu0 0
    %4965 = vmatpush1.bf16.msra.mxu0 0
    %4966 = vmatprep.subr.bf16.mxu0 0
    %4967 = vmatpush1.bf16.msra.mxu0 0
    %4968 = vmatprep.subr.bf16.mxu0 0
    %4969 = vmatpush1.bf16.msra.mxu0 0
    %4970 = vmatprep.subr.bf16.mxu0 0
    %4971 = vmatpush1.bf16.msra.mxu0 0
    %4972 = vmatprep.subr.bf16.mxu0 0
    %4973 = vmatpush1.bf16.msra.mxu0 0
    %4974 = vmatprep.mubr.bf16.mxu0 0
    %4975 = vmatmul.mubr.bf16.gmra.mrb[0].mxu0 %v4941
    %v4976 = vpop.f32.mrb[0].mxu0
    %v4977 = vadd.f32 0.0, %v4976
    %v4978 = vpop.f32.mrb[0].mxu0
    %v4979 = vadd.f32 0.0, %v4978
    %v4980 = vpop.f32.mrb[0].mxu0
    %v4981 = vpop.f32.mrb[0].mxu0
    %4982 = vdwg.mxu0
    %4983 = vmatprep.subr.bf16.mxu0 %v4395
    %4984 = vmatpush1.bf16.msra.mxu0 %v4394
    %4985 = vmatprep.subr.bf16.mxu0 %v4399
    %4986 = vmatpush1.bf16.msra.mxu0 %v4398
    %4987 = vmatprep.subr.bf16.mxu0 %v4403
    %4988 = vmatpush1.bf16.msra.mxu0 %v4402
    %4989 = vmatprep.subr.bf16.mxu0 %v4407
    %4990 = vmatpush1.bf16.msra.mxu0 %v4406
    %4991 = vmatprep.subr.bf16.mxu0 %v4411
    %4992 = vmatpush1.bf16.msra.mxu0 %v4410
    %4993 = vmatprep.subr.bf16.mxu0 %v4415
    %4994 = vmatpush1.bf16.msra.mxu0 %v4414
    %4995 = vmatprep.subr.bf16.mxu0 %v4419
    %4996 = vmatpush1.bf16.msra.mxu0 %v4418
    %4997 = vmatprep.subr.bf16.mxu0 %v4423
    %4998 = vmatpush1.bf16.msra.mxu0 %v4422
    %4999 = vmatprep.subr.bf16.mxu0 0
    %5000 = vmatpush1.bf16.msra.mxu0 0
    %5001 = vmatprep.subr.bf16.mxu0 0
    %5002 = vmatpush1.bf16.msra.mxu0 0
    %5003 = vmatprep.subr.bf16.mxu0 0
    %5004 = vmatpush1.bf16.msra.mxu0 0
    %5005 = vmatprep.subr.bf16.mxu0 0
    %5006 = vmatpush1.bf16.msra.mxu0 0
    %5007 = vmatprep.subr.bf16.mxu0 0
    %5008 = vmatpush1.bf16.msra.mxu0 0
    %5009 = vmatprep.subr.bf16.mxu0 0
    %5010 = vmatpush1.bf16.msra.mxu0 0
    %5011 = vmatprep.subr.bf16.mxu0 0
    %5012 = vmatpush1.bf16.msra.mxu0 0
    %5013 = vmatprep.subr.bf16.mxu0 0
    %5014 = vmatpush1.bf16.msra.mxu0 0
    %5015 = vmatprep.mubr.bf16.mxu0 0
    %5016 = vmatmul.mubr.bf16.gmra.mrb[0].mxu0 %v4941
    %v5017 = vpop.f32.mrb[0].mxu0
    %v5018 = vadd.f32 0.0, %v5017
    %v5019 = vpop.f32.mrb[0].mxu0
    %v5020 = vadd.f32 0.0, %v5019
    %v5021 = vpop.f32.mrb[0].mxu0
    %v5022 = vpop.f32.mrb[0].mxu0
    %5023 = vdwg.mxu0
    %5024 = vmatprep.subr.bf16.mxu0 %v4635
    %5025 = vmatpush1.bf16.msra.mxu0 %v4634
    %5026 = vmatprep.subr.bf16.mxu0 %v4639
    %5027 = vmatpush1.bf16.msra.mxu0 %v4638
    %5028 = vmatprep.subr.bf16.mxu0 %v4643
    %5029 = vmatpush1.bf16.msra.mxu0 %v4642
    %5030 = vmatprep.subr.bf16.mxu0 %v4647
    %5031 = vmatpush1.bf16.msra.mxu0 %v4646
    %5032 = vmatprep.subr.bf16.mxu0 %v4651
    %5033 = vmatpush1.bf16.msra.mxu0 %v4650
    %5034 = vmatprep.subr.bf16.mxu0 %v4655
    %5035 = vmatpush1.bf16.msra.mxu0 %v4654
    %5036 = vmatprep.subr.bf16.mxu0 %v4659
    %5037 = vmatpush1.bf16.msra.mxu0 %v4658
    %5038 = vmatprep.subr.bf16.mxu0 %v4663
    %5039 = vmatpush1.bf16.msra.mxu0 %v4662
    %5040 = vmatprep.subr.bf16.mxu0 0
    %5041 = vmatpush1.bf16.msra.mxu0 0
    %5042 = vmatprep.subr.bf16.mxu0 0
    %5043 = vmatpush1.bf16.msra.mxu0 0
    %5044 = vmatprep.subr.bf16.mxu0 0
    %5045 = vmatpush1.bf16.msra.mxu0 0
    %5046 = vmatprep.subr.bf16.mxu0 0
    %5047 = vmatpush1.bf16.msra.mxu0 0
    %5048 = vmatprep.subr.bf16.mxu0 0
    %5049 = vmatpush1.bf16.msra.mxu0 0
    %5050 = vmatprep.subr.bf16.mxu0 0
    %5051 = vmatpush1.bf16.msra.mxu0 0
    %5052 = vmatprep.subr.bf16.mxu0 0
    %5053 = vmatpush1.bf16.msra.mxu0 0
    %5054 = vmatprep.subr.bf16.mxu0 0
    %5055 = vmatpush1.bf16.msra.mxu0 0
    %5056 = vmatprep.mubr.bf16.mxu0 0
    %5057 = vmatmul.mubr.bf16.gmra.mrb[0].mxu0 %v4940
    %v5058 = vpop.f32.mrb[0].mxu0
    %v5059 = vadd.f32 %v4977, %v5058
    %v5060 = vpop.f32.mrb[0].mxu0
    %v5061 = vadd.f32 %v4979, %v5060
    %v5062 = vpop.f32.mrb[0].mxu0
    %v5063 = vpop.f32.mrb[0].mxu0
    %5064 = vdwg.mxu0
    %5065 = vmatprep.subr.bf16.mxu0 %v4637
    %5066 = vmatpush1.bf16.msra.mxu0 %v4636
    %5067 = vmatprep.subr.bf16.mxu0 %v4641
    %5068 = vmatpush1.bf16.msra.mxu0 %v4640
    %5069 = vmatprep.subr.bf16.mxu0 %v4645
    %5070 = vmatpush1.bf16.msra.mxu0 %v4644
    %5071 = vmatprep.subr.bf16.mxu0 %v4649
    %5072 = vmatpush1.bf16.msra.mxu0 %v4648
    %5073 = vmatprep.subr.bf16.mxu0 %v4653
    %5074 = vmatpush1.bf16.msra.mxu0 %v4652
    %5075 = vmatprep.subr.bf16.mxu0 %v4657
    %5076 = vmatpush1.bf16.msra.mxu0 %v4656
    %5077 = vmatprep.subr.bf16.mxu0 %v4661
    %5078 = vmatpush1.bf16.msra.mxu0 %v4660
    %5079 = vmatprep.subr.bf16.mxu0 %v4665
    %5080 = vmatpush1.bf16.msra.mxu0 %v4664
    %5081 = vmatprep.subr.bf16.mxu0 0
    %5082 = vmatpush1.bf16.msra.mxu0 0
    %5083 = vmatprep.subr.bf16.mxu0 0
    %5084 = vmatpush1.bf16.msra.mxu0 0
    %5085 = vmatprep.subr.bf16.mxu0 0
    %5086 = vmatpush1.bf16.msra.mxu0 0
    %5087 = vmatprep.subr.bf16.mxu0 0
    %5088 = vmatpush1.bf16.msra.mxu0 0
    %5089 = vmatprep.subr.bf16.mxu0 0
    %5090 = vmatpush1.bf16.msra.mxu0 0
    %5091 = vmatprep.subr.bf16.mxu0 0
    %5092 = vmatpush1.bf16.msra.mxu0 0
    %5093 = vmatprep.subr.bf16.mxu0 0
    %5094 = vmatpush1.bf16.msra.mxu0 0
    %5095 = vmatprep.subr.bf16.mxu0 0
    %5096 = vmatpush1.bf16.msra.mxu0 0
    %5097 = vmatprep.mubr.bf16.mxu0 0
    %5098 = vmatmul.mubr.bf16.gmra.mrb[0].mxu0 %v4940
    %v5099 = vpop.f32.mrb[0].mxu0
    %v5100 = vadd.f32 %v5018, %v5099
    %v5101 = vpop.f32.mrb[0].mxu0
    %v5102 = vadd.f32 %v5020, %v5101
    %v5103 = vpop.f32.mrb[0].mxu0
    %v5104 = vpop.f32.mrb[0].mxu0
    %5105 = vdwg.mxu0
    %v5106 = vadd.f32 %v5059, %v4785
    %v5107 = vadd.f32 %v5061, %v4789
    %v5108 = vadd.f32 %v5100, %v4793
    %v5109 = vadd.f32 %v5102, %v4797
    %v5110 = vxor.u32 %v5106, 2147483648
    %v5111 = vxor.u32 %v5107, 2147483648
    %v5112 = vxor.u32 %v5108, 2147483648
    %v5113 = vmul.f32 %v5110, 1.442695
    %v5114 = vpow.pop %v5113
    %v5115 = vmul.f32 %v5111, 1.442695
    %v5116 = vpow.pop %v5115
    %v5117 = vmul.f32 %v5112, 1.442695
    %v5118 = vpow.pop %v5117
    %v5119 = vadd.f32 %v5114, 1.0
    %v5120 = vadd.f32 %v5116, 1.0
    %v5121 = vadd.f32 %v5118, 1.0
    %v5122 = vrcp.pop %v5119
    %v5123 = vmul.f32 1.0, %v5122
    %v5124 = vrcp.pop %v5120
    %v5125 = vmul.f32 1.0, %v5124
    %v5126 = vrcp.pop %v5121
    %v5127 = vmul.f32 1.0, %v5126
    %v5128 = vtanh.pop %v5109
    %v5129 = vmul.f32 %v5125, %v4827
    %v5130 = vmul.f32 %v5123, %v5128
    %v5131 = vadd.f32 %v5129, %v5130
    %v5132 = vtanh.pop %v5131
    %v5133 = vmul.f32 %v5127, %v5132
    %5134 = vmatprep.subr.bf16.mxu0 %v4058
    %5135 = vmatpush1.bf16.msra.mxu0 %v4057
    %5136 = vmatprep.subr.bf16.mxu0 %v4062
    %5137 = vmatpush1.bf16.msra.mxu0 %v4061
    %5138 = vmatprep.subr.bf16.mxu0 %v4066
    %5139 = vmatpush1.bf16.msra.mxu0 %v4065
    %5140 = vmatprep.subr.bf16.mxu0 %v4070
    %5141 = vmatpush1.bf16.msra.mxu0 %v4069
    %5142 = vmatprep.subr.bf16.mxu0 %v4074
    %5143 = vmatpush1.bf16.msra.mxu0 %v4073
    %5144 = vmatprep.subr.bf16.mxu0 %v4078
    %5145 = vmatpush1.bf16.msra.mxu0 %v4077
    %5146 = vmatprep.subr.bf16.mxu0 %v4082
    %5147 = vmatpush1.bf16.msra.mxu0 %v4081
    %5148 = vmatprep.subr.bf16.mxu0 %v4086
    %5149 = vmatpush1.bf16.msra.mxu0 %v4085
    %5150 = vmatprep.subr.bf16.mxu0 0
    %5151 = vmatpush1.bf16.msra.mxu0 0
    %5152 = vmatprep.subr.bf16.mxu0 0
    %5153 = vmatpush1.bf16.msra.mxu0 0
    %5154 = vmatprep.subr.bf16.mxu0 0
    %5155 = vmatpush1.bf16.msra.mxu0 0
    %5156 = vmatprep.subr.bf16.mxu0 0
    %5157 = vmatpush1.bf16.msra.mxu0 0
    %5158 = vmatprep.subr.bf16.mxu0 0
    %5159 = vmatpush1.bf16.msra.mxu0 0
    %5160 = vmatprep.subr.bf16.mxu0 0
    %5161 = vmatpush1.bf16.msra.mxu0 0
    %5162 = vmatprep.subr.bf16.mxu0 0
    %5163 = vmatpush1.bf16.msra.mxu0 0
    %5164 = vmatprep.subr.bf16.mxu0 0
    %5165 = vmatpush1.bf16.msra.mxu0 0
    %5166 = vmatprep.mubr.bf16.mxu0 0
    %5167 = vmatmul.mubr.bf16.gmra.mrb[0].mxu0 %v4940
    %v5168 = vpop.f32.mrb[0].mxu0
    %v5169 = vadd.f32 0.0, %v5168
    %v5170 = vpop.f32.mrb[0].mxu0
    %v5171 = vadd.f32 0.0, %v5170
    %v5172 = vpop.f32.mrb[0].mxu0
    %v5173 = vpop.f32.mrb[0].mxu0
    %5174 = vdwg.mxu0
    %5175 = vmatprep.subr.bf16.mxu0 %v4060
    %5176 = vmatpush1.bf16.msra.mxu0 %v4059
    %5177 = vmatprep.subr.bf16.mxu0 %v4064
    %5178 = vmatpush1.bf16.msra.mxu0 %v4063
    %5179 = vmatprep.subr.bf16.mxu0 %v4068
    %5180 = vmatpush1.bf16.msra.mxu0 %v4067
    %5181 = vmatprep.subr.bf16.mxu0 %v4072
    %5182 = vmatpush1.bf16.msra.mxu0 %v4071
    %5183 = vmatprep.subr.bf16.mxu0 %v4076
    %5184 = vmatpush1.bf16.msra.mxu0 %v4075
    %5185 = vmatprep.subr.bf16.mxu0 %v4080
    %5186 = vmatpush1.bf16.msra.mxu0 %v4079
    %5187 = vmatprep.subr.bf16.mxu0 %v4084
    %5188 = vmatpush1.bf16.msra.mxu0 %v4083
    %5189 = vmatprep.subr.bf16.mxu0 %v4088
    %5190 = vmatpush1.bf16.msra.mxu0 %v4087
    %5191 = vmatprep.subr.bf16.mxu0 0
    %5192 = vmatpush1.bf16.msra.mxu0 0
    %5193 = vmatprep.subr.bf16.mxu0 0
    %5194 = vmatpush1.bf16.msra.mxu0 0
    %5195 = vmatprep.subr.bf16.mxu0 0
    %5196 = vmatpush1.bf16.msra.mxu0 0
    %5197 = vmatprep.subr.bf16.mxu0 0
    %5198 = vmatpush1.bf16.msra.mxu0 0
    %5199 = vmatprep.subr.bf16.mxu0 0
    %5200 = vmatpush1.bf16.msra.mxu0 0
    %5201 = vmatprep.subr.bf16.mxu0 0
    %5202 = vmatpush1.bf16.msra.mxu0 0
    %5203 = vmatprep.subr.bf16.mxu0 0
    %5204 = vmatpush1.bf16.msra.mxu0 0
    %5205 = vmatprep.subr.bf16.mxu0 0
    %5206 = vmatpush1.bf16.msra.mxu0 0
    %5207 = vmatprep.mubr.bf16.mxu0 0
    %5208 = vmatmul.mubr.bf16.gmra.mrb[0].mxu0 %v4940
    %v5209 = vpop.f32.mrb[0].mxu0
    %v5210 = vadd.f32 0.0, %v5209
    %v5211 = vpop.f32.mrb[0].mxu0
    %v5212 = vadd.f32 0.0, %v5211
    %v5213 = vpop.f32.mrb[0].mxu0
    %v5214 = vpop.f32.mrb[0].mxu0
    %5215 = vdwg.mxu0
    %v5216 = vadd.f32 %v3882, %v5169
    %v5217 = vadd.f32 %v3884, %v5171
    %v5218 = vadd.f32 %v3923, %v5210
    %v5219 = vadd.f32 %v3925, %v5212
    %v5220 = vxor.u32 %v5216, 2147483648
    %v5221 = vxor.u32 %v5217, 2147483648
    %v5222 = vxor.u32 %v5218, 2147483648
    %v5223 = vmul.f32 %v5220, 1.442695
    %v5224 = vpow.pop %v5223
    %v5225 = vmul.f32 %v5221, 1.442695
    %v5226 = vpow.pop %v5225
    %v5227 = vmul.f32 %v5222, 1.442695
    %v5228 = vpow.pop %v5227
    %v5229 = vadd.f32 %v5224, 1.0
    %v5230 = vadd.f32 %v5226, 1.0
    %v5231 = vadd.f32 %v5228, 1.0
    %v5232 = vrcp.pop %v5229
    %v5233 = vmul.f32 1.0, %v5232
    %v5234 = vrcp.pop %v5230
    %v5235 = vmul.f32 1.0, %v5234
    %v5236 = vrcp.pop %v5231
    %v5237 = vmul.f32 1.0, %v5236
    %v5238 = vtanh.pop %v5219
    %v5239 = vmul.f32 %v5235, %v4937
    %v5240 = vmul.f32 %v5233, %v5238
    %v5241 = vadd.f32 %v5239, %v5240
    %v5242 = vtanh.pop %v5241
    %v5243 = vmul.f32 %v5237, %v5242
    %v5244 = vpack.c.bf16 %v5243, %v5243
    %v5245 = vpack.c.bf16 %v5133, %v5133
    %5246 = vmatprep.subr.bf16.mxu0 %v4393
    %5247 = vmatpush1.bf16.msra.mxu0 %v4392
    %5248 = vmatprep.subr.bf16.mxu0 %v4397
    %5249 = vmatpush1.bf16.msra.mxu0 %v4396
    %5250 = vmatprep.subr.bf16.mxu0 %v4401
    %5251 = vmatpush1.bf16.msra.mxu0 %v4400
    %5252 = vmatprep.subr.bf16.mxu0 %v4405
    %5253 = vmatpush1.bf16.msra.mxu0 %v4404
    %5254 = vmatprep.subr.bf16.mxu0 %v4409
    %5255 = vmatpush1.bf16.msra.mxu0 %v4408
    %5256 = vmatprep.subr.bf16.mxu0 %v4413
    %5257 = vmatpush1.bf16.msra.mxu0 %v4412
    %5258 = vmatprep.subr.bf16.mxu0 %v4417
    %5259 = vmatpush1.bf16.msra.mxu0 %v4416
    %5260 = vmatprep.subr.bf16.mxu0 %v4421
    %5261 = vmatpush1.bf16.msra.mxu0 %v4420
    %5262 = vmatprep.subr.bf16.mxu0 0
    %5263 = vmatpush1.bf16.msra.mxu0 0
    %5264 = vmatprep.subr.bf16.mxu0 0
    %5265 = vmatpush1.bf16.msra.mxu0 0
    %5266 = vmatprep.subr.bf16.mxu0 0
    %5267 = vmatpush1.bf16.msra.mxu0 0
    %5268 = vmatprep.subr.bf16.mxu0 0
    %5269 = vmatpush1.bf16.msra.mxu0 0
    %5270 = vmatprep.subr.bf16.mxu0 0
    %5271 = vmatpush1.bf16.msra.mxu0 0
    %5272 = vmatprep.subr.bf16.mxu0 0
    %5273 = vmatpush1.bf16.msra.mxu0 0
    %5274 = vmatprep.subr.bf16.mxu0 0
    %5275 = vmatpush1.bf16.msra.mxu0 0
    %5276 = vmatprep.subr.bf16.mxu0 0
    %5277 = vmatpush1.bf16.msra.mxu0 0
    %5278 = vmatprep.mubr.bf16.mxu0 0
    %5279 = vmatmul.mubr.bf16.gmra.mrb[0].mxu0 %v5245
    %v5280 = vpop.f32.mrb[0].mxu0
    %v5281 = vadd.f32 0.0, %v5280
    %v5282 = vpop.f32.mrb[0].mxu0
    %v5283 = vadd.f32 0.0, %v5282
    %v5284 = vpop.f32.mrb[0].mxu0
    %v5285 = vpop.f32.mrb[0].mxu0
    %5286 = vdwg.mxu0
    %5287 = vmatprep.subr.bf16.mxu0 %v4395
    %5288 = vmatpush1.bf16.msra.mxu0 %v4394
    %5289 = vmatprep.subr.bf16.mxu0 %v4399
    %5290 = vmatpush1.bf16.msra.mxu0 %v4398
    %5291 = vmatprep.subr.bf16.mxu0 %v4403
    %5292 = vmatpush1.bf16.msra.mxu0 %v4402
    %5293 = vmatprep.subr.bf16.mxu0 %v4407
    %5294 = vmatpush1.bf16.msra.mxu0 %v4406
    %5295 = vmatprep.subr.bf16.mxu0 %v4411
    %5296 = vmatpush1.bf16.msra.mxu0 %v4410
    %5297 = vmatprep.subr.bf16.mxu0 %v4415
    %5298 = vmatpush1.bf16.msra.mxu0 %v4414
    %5299 = vmatprep.subr.bf16.mxu0 %v4419
    %5300 = vmatpush1.bf16.msra.mxu0 %v4418
    %5301 = vmatprep.subr.bf16.mxu0 %v4423
    %5302 = vmatpush1.bf16.msra.mxu0 %v4422
    %5303 = vmatprep.subr.bf16.mxu0 0
    %5304 = vmatpush1.bf16.msra.mxu0 0
    %5305 = vmatprep.subr.bf16.mxu0 0
    %5306 = vmatpush1.bf16.msra.mxu0 0
    %5307 = vmatprep.subr.bf16.mxu0 0
    %5308 = vmatpush1.bf16.msra.mxu0 0
    %5309 = vmatprep.subr.bf16.mxu0 0
    %5310 = vmatpush1.bf16.msra.mxu0 0
    %5311 = vmatprep.subr.bf16.mxu0 0
    %5312 = vmatpush1.bf16.msra.mxu0 0
    %5313 = vmatprep.subr.bf16.mxu0 0
    %5314 = vmatpush1.bf16.msra.mxu0 0
    %5315 = vmatprep.subr.bf16.mxu0 0
    %5316 = vmatpush1.bf16.msra.mxu0 0
    %5317 = vmatprep.subr.bf16.mxu0 0
    %5318 = vmatpush1.bf16.msra.mxu0 0
    %5319 = vmatprep.mubr.bf16.mxu0 0
    %5320 = vmatmul.mubr.bf16.gmra.mrb[0].mxu0 %v5245
    %v5321 = vpop.f32.mrb[0].mxu0
    %v5322 = vadd.f32 0.0, %v5321
    %v5323 = vpop.f32.mrb[0].mxu0
    %v5324 = vadd.f32 0.0, %v5323
    %v5325 = vpop.f32.mrb[0].mxu0
    %v5326 = vpop.f32.mrb[0].mxu0
    %5327 = vdwg.mxu0
    %5328 = vmatprep.subr.bf16.mxu0 %v4635
    %5329 = vmatpush1.bf16.msra.mxu0 %v4634
    %5330 = vmatprep.subr.bf16.mxu0 %v4639
    %5331 = vmatpush1.bf16.msra.mxu0 %v4638
    %5332 = vmatprep.subr.bf16.mxu0 %v4643
    %5333 = vmatpush1.bf16.msra.mxu0 %v4642
    %5334 = vmatprep.subr.bf16.mxu0 %v4647
    %5335 = vmatpush1.bf16.msra.mxu0 %v4646
    %5336 = vmatprep.subr.bf16.mxu0 %v4651
    %5337 = vmatpush1.bf16.msra.mxu0 %v4650
    %5338 = vmatprep.subr.bf16.mxu0 %v4655
    %5339 = vmatpush1.bf16.msra.mxu0 %v4654
    %5340 = vmatprep.subr.bf16.mxu0 %v4659
    %5341 = vmatpush1.bf16.msra.mxu0 %v4658
    %5342 = vmatprep.subr.bf16.mxu0 %v4663
    %5343 = vmatpush1.bf16.msra.mxu0 %v4662
    %5344 = vmatprep.subr.bf16.mxu0 0
    %5345 = vmatpush1.bf16.msra.mxu0 0
    %5346 = vmatprep.subr.bf16.mxu0 0
    %5347 = vmatpush1.bf16.msra.mxu0 0
    %5348 = vmatprep.subr.bf16.mxu0 0
    %5349 = vmatpush1.bf16.msra.mxu0 0
    %5350 = vmatprep.subr.bf16.mxu0 0
    %5351 = vmatpush1.bf16.msra.mxu0 0
    %5352 = vmatprep.subr.bf16.mxu0 0
    %5353 = vmatpush1.bf16.msra.mxu0 0
    %5354 = vmatprep.subr.bf16.mxu0 0
    %5355 = vmatpush1.bf16.msra.mxu0 0
    %5356 = vmatprep.subr.bf16.mxu0 0
    %5357 = vmatpush1.bf16.msra.mxu0 0
    %5358 = vmatprep.subr.bf16.mxu0 0
    %5359 = vmatpush1.bf16.msra.mxu0 0
    %5360 = vmatprep.mubr.bf16.mxu0 0
    %5361 = vmatmul.mubr.bf16.gmra.mrb[0].mxu0 %v5244
    %v5362 = vpop.f32.mrb[0].mxu0
    %v5363 = vadd.f32 %v5281, %v5362
    %v5364 = vpop.f32.mrb[0].mxu0
    %v5365 = vadd.f32 %v5283, %v5364
    %v5366 = vpop.f32.mrb[0].mxu0
    %v5367 = vpop.f32.mrb[0].mxu0
    %5368 = vdwg.mxu0
    %5369 = vmatprep.subr.bf16.mxu0 %v4637
    %5370 = vmatpush1.bf16.msra.mxu0 %v4636
    %5371 = vmatprep.subr.bf16.mxu0 %v4641
    %5372 = vmatpush1.bf16.msra.mxu0 %v4640
    %5373 = vmatprep.subr.bf16.mxu0 %v4645
    %5374 = vmatpush1.bf16.msra.mxu0 %v4644
    %5375 = vmatprep.subr.bf16.mxu0 %v4649
    %5376 = vmatpush1.bf16.msra.mxu0 %v4648
    %5377 = vmatprep.subr.bf16.mxu0 %v4653
    %5378 = vmatpush1.bf16.msra.mxu0 %v4652
    %5379 = vmatprep.subr.bf16.mxu0 %v4657
    %5380 = vmatpush1.bf16.msra.mxu0 %v4656
    %5381 = vmatprep.subr.bf16.mxu0 %v4661
    %5382 = vmatpush1.bf16.msra.mxu0 %v4660
    %5383 = vmatprep.subr.bf16.mxu0 %v4665
    %5384 = vmatpush1.bf16.msra.mxu0 %v4664
    %5385 = vmatprep.subr.bf16.mxu0 0
    %5386 = vmatpush1.bf16.msra.mxu0 0
    %5387 = vmatprep.subr.bf16.mxu0 0
    %5388 = vmatpush1.bf16.msra.mxu0 0
    %5389 = vmatprep.subr.bf16.mxu0 0
    %5390 = vmatpush1.bf16.msra.mxu0 0
    %5391 = vmatprep.subr.bf16.mxu0 0
    %5392 = vmatpush1.bf16.msra.mxu0 0
    %5393 = vmatprep.subr.bf16.mxu0 0
    %5394 = vmatpush1.bf16.msra.mxu0 0
    %5395 = vmatprep.subr.bf16.mxu0 0
    %5396 = vmatpush1.bf16.msra.mxu0 0
    %5397 = vmatprep.subr.bf16.mxu0 0
    %5398 = vmatpush1.bf16.msra.mxu0 0
    %5399 = vmatprep.subr.bf16.mxu0 0
    %5400 = vmatpush1.bf16.msra.mxu0 0
    %5401 = vmatprep.mubr.bf16.mxu0 0
    %5402 = vmatmul.mubr.bf16.gmra.mrb[0].mxu0 %v5244
    %v5403 = vpop.f32.mrb[0].mxu0
    %v5404 = vadd.f32 %v5322, %v5403
    %v5405 = vpop.f32.mrb[0].mxu0
    %v5406 = vadd.f32 %v5324, %v5405
    %v5407 = vpop.f32.mrb[0].mxu0
    %v5408 = vpop.f32.mrb[0].mxu0
    %5409 = vdwg.mxu0
    %v5410 = vadd.f32 %v5363, %v4785
    %v5411 = vadd.f32 %v5365, %v4789
    %v5412 = vadd.f32 %v5404, %v4793
    %v5413 = vadd.f32 %v5406, %v4797
    %v5414 = vxor.u32 %v5410, 2147483648
    %v5415 = vxor.u32 %v5411, 2147483648
    %v5416 = vxor.u32 %v5412, 2147483648
    %v5417 = vmul.f32 %v5414, 1.442695
    %v5418 = vpow.pop %v5417
    %v5419 = vmul.f32 %v5415, 1.442695
    %v5420 = vpow.pop %v5419
    %v5421 = vmul.f32 %v5416, 1.442695
    %v5422 = vpow.pop %v5421
    %v5423 = vadd.f32 %v5418, 1.0
    %v5424 = vadd.f32 %v5420, 1.0
    %v5425 = vadd.f32 %v5422, 1.0
    %v5426 = vrcp.pop %v5423
    %v5427 = vmul.f32 1.0, %v5426
    %v5428 = vrcp.pop %v5424
    %v5429 = vmul.f32 1.0, %v5428
    %v5430 = vrcp.pop %v5425
    %v5431 = vmul.f32 1.0, %v5430
    %v5432 = vtanh.pop %v5413
    %v5433 = vmul.f32 %v5429, %v5131
    %v5434 = vmul.f32 %v5427, %v5432
    %v5435 = vadd.f32 %v5433, %v5434
    %v5436 = vtanh.pop %v5435
    %v5437 = vmul.f32 %v5431, %v5436
    %5438 = vmatprep.subr.bf16.mxu0 %v4058
    %5439 = vmatpush1.bf16.msra.mxu0 %v4057
    %5440 = vmatprep.subr.bf16.mxu0 %v4062
    %5441 = vmatpush1.bf16.msra.mxu0 %v4061
    %5442 = vmatprep.subr.bf16.mxu0 %v4066
    %5443 = vmatpush1.bf16.msra.mxu0 %v4065
    %5444 = vmatprep.subr.bf16.mxu0 %v4070
    %5445 = vmatpush1.bf16.msra.mxu0 %v4069
    %5446 = vmatprep.subr.bf16.mxu0 %v4074
    %5447 = vmatpush1.bf16.msra.mxu0 %v4073
    %5448 = vmatprep.subr.bf16.mxu0 %v4078
    %5449 = vmatpush1.bf16.msra.mxu0 %v4077
    %5450 = vmatprep.subr.bf16.mxu0 %v4082
    %5451 = vmatpush1.bf16.msra.mxu0 %v4081
    %5452 = vmatprep.subr.bf16.mxu0 %v4086
    %5453 = vmatpush1.bf16.msra.mxu0 %v4085
    %5454 = vmatprep.subr.bf16.mxu0 0
    %5455 = vmatpush1.bf16.msra.mxu0 0
    %5456 = vmatprep.subr.bf16.mxu0 0
    %5457 = vmatpush1.bf16.msra.mxu0 0
    %5458 = vmatprep.subr.bf16.mxu0 0
    %5459 = vmatpush1.bf16.msra.mxu0 0
    %5460 = vmatprep.subr.bf16.mxu0 0
    %5461 = vmatpush1.bf16.msra.mxu0 0
    %5462 = vmatprep.subr.bf16.mxu0 0
    %5463 = vmatpush1.bf16.msra.mxu0 0
    %5464 = vmatprep.subr.bf16.mxu0 0
    %5465 = vmatpush1.bf16.msra.mxu0 0
    %5466 = vmatprep.subr.bf16.mxu0 0
    %5467 = vmatpush1.bf16.msra.mxu0 0
    %5468 = vmatprep.subr.bf16.mxu0 0
    %5469 = vmatpush1.bf16.msra.mxu0 0
    %5470 = vmatprep.mubr.bf16.mxu0 0
    %5471 = vmatmul.mubr.bf16.gmra.mrb[0].mxu0 %v5244
    %v5472 = vpop.f32.mrb[0].mxu0
    %v5473 = vadd.f32 0.0, %v5472
    %v5474 = vpop.f32.mrb[0].mxu0
    %v5475 = vadd.f32 0.0, %v5474
    %v5476 = vpop.f32.mrb[0].mxu0
    %v5477 = vpop.f32.mrb[0].mxu0
    %5478 = vdwg.mxu0
    %5479 = vmatprep.subr.bf16.mxu0 %v4060
    %5480 = vmatpush1.bf16.msra.mxu0 %v4059
    %5481 = vmatprep.subr.bf16.mxu0 %v4064
    %5482 = vmatpush1.bf16.msra.mxu0 %v4063
    %5483 = vmatprep.subr.bf16.mxu0 %v4068
    %5484 = vmatpush1.bf16.msra.mxu0 %v4067
    %5485 = vmatprep.subr.bf16.mxu0 %v4072
    %5486 = vmatpush1.bf16.msra.mxu0 %v4071
    %5487 = vmatprep.subr.bf16.mxu0 %v4076
    %5488 = vmatpush1.bf16.msra.mxu0 %v4075
    %5489 = vmatprep.subr.bf16.mxu0 %v4080
    %5490 = vmatpush1.bf16.msra.mxu0 %v4079
    %5491 = vmatprep.subr.bf16.mxu0 %v4084
    %5492 = vmatpush1.bf16.msra.mxu0 %v4083
    %5493 = vmatprep.subr.bf16.mxu0 %v4088
    %5494 = vmatpush1.bf16.msra.mxu0 %v4087
    %5495 = vmatprep.subr.bf16.mxu0 0
    %5496 = vmatpush1.bf16.msra.mxu0 0
    %5497 = vmatprep.subr.bf16.mxu0 0
    %5498 = vmatpush1.bf16.msra.mxu0 0
    %5499 = vmatprep.subr.bf16.mxu0 0
    %5500 = vmatpush1.bf16.msra.mxu0 0
    %5501 = vmatprep.subr.bf16.mxu0 0
    %5502 = vmatpush1.bf16.msra.mxu0 0
    %5503 = vmatprep.subr.bf16.mxu0 0
    %5504 = vmatpush1.bf16.msra.mxu0 0
    %5505 = vmatprep.subr.bf16.mxu0 0
    %5506 = vmatpush1.bf16.msra.mxu0 0
    %5507 = vmatprep.subr.bf16.mxu0 0
    %5508 = vmatpush1.bf16.msra.mxu0 0
    %5509 = vmatprep.subr.bf16.mxu0 0
    %5510 = vmatpush1.bf16.msra.mxu0 0
    %5511 = vmatprep.mubr.bf16.mxu0 0
    %5512 = vmatmul.mubr.bf16.gmra.mrb[0].mxu0 %v5244
    %v5513 = vpop.f32.mrb[0].mxu0
    %v5514 = vadd.f32 0.0, %v5513
    %v5515 = vpop.f32.mrb[0].mxu0
    %v5516 = vadd.f32 0.0, %v5515
    %v5517 = vpop.f32.mrb[0].mxu0
    %v5518 = vpop.f32.mrb[0].mxu0
    %5519 = vdwg.mxu0
    %v5520 = vadd.f32 %v3882, %v5473
    %v5521 = vadd.f32 %v3884, %v5475
    %v5522 = vadd.f32 %v3923, %v5514
    %v5523 = vadd.f32 %v3925, %v5516
    %v5524 = vxor.u32 %v5520, 2147483648
    %v5525 = vxor.u32 %v5521, 2147483648
    %v5526 = vxor.u32 %v5522, 2147483648
    %v5527 = vmul.f32 %v5524, 1.442695
    %v5528 = vpow.pop %v5527
    %v5529 = vmul.f32 %v5525, 1.442695
    %v5530 = vpow.pop %v5529
    %v5531 = vmul.f32 %v5526, 1.442695
    %v5532 = vpow.pop %v5531
    %v5533 = vadd.f32 %v5528, 1.0
    %v5534 = vadd.f32 %v5530, 1.0
    %v5535 = vadd.f32 %v5532, 1.0
    %v5536 = vrcp.pop %v5533
    %v5537 = vmul.f32 1.0, %v5536
    %v5538 = vrcp.pop %v5534
    %v5539 = vmul.f32 1.0, %v5538
    %v5540 = vrcp.pop %v5535
    %v5541 = vmul.f32 1.0, %v5540
    %v5542 = vtanh.pop %v5523
    %v5543 = vmul.f32 %v5539, %v5241
    %v5544 = vmul.f32 %v5537, %v5542
    %v5545 = vadd.f32 %v5543, %v5544
    %v5546 = vtanh.pop %v5545
    %v5547 = vmul.f32 %v5541, %v5546
    %v5548 = vpack.c.bf16 %v5547, %v5547
    %v5549 = vpack.c.bf16 %v5437, %v5437
    %5550 = vmatprep.subr.bf16.mxu0 %v4393
    %5551 = vmatpush1.bf16.msra.mxu0 %v4392
    %5552 = vmatprep.subr.bf16.mxu0 %v4397
    %5553 = vmatpush1.bf16.msra.mxu0 %v4396
    %5554 = vmatprep.subr.bf16.mxu0 %v4401
    %5555 = vmatpush1.bf16.msra.mxu0 %v4400
    %5556 = vmatprep.subr.bf16.mxu0 %v4405
    %5557 = vmatpush1.bf16.msra.mxu0 %v4404
    %5558 = vmatprep.subr.bf16.mxu0 %v4409
    %5559 = vmatpush1.bf16.msra.mxu0 %v4408
    %5560 = vmatprep.subr.bf16.mxu0 %v4413
    %5561 = vmatpush1.bf16.msra.mxu0 %v4412
    %5562 = vmatprep.subr.bf16.mxu0 %v4417
    %5563 = vmatpush1.bf16.msra.mxu0 %v4416
    %5564 = vmatprep.subr.bf16.mxu0 %v4421
    %5565 = vmatpush1.bf16.msra.mxu0 %v4420
    %5566 = vmatprep.subr.bf16.mxu0 0
    %5567 = vmatpush1.bf16.msra.mxu0 0
    %5568 = vmatprep.subr.bf16.mxu0 0
    %5569 = vmatpush1.bf16.msra.mxu0 0
    %5570 = vmatprep.subr.bf16.mxu0 0
    %5571 = vmatpush1.bf16.msra.mxu0 0
    %5572 = vmatprep.subr.bf16.mxu0 0
    %5573 = vmatpush1.bf16.msra.mxu0 0
    %5574 = vmatprep.subr.bf16.mxu0 0
    %5575 = vmatpush1.bf16.msra.mxu0 0
    %5576 = vmatprep.subr.bf16.mxu0 0
    %5577 = vmatpush1.bf16.msra.mxu0 0
    %5578 = vmatprep.subr.bf16.mxu0 0
    %5579 = vmatpush1.bf16.msra.mxu0 0
    %5580 = vmatprep.subr.bf16.mxu0 0
    %5581 = vmatpush1.bf16.msra.mxu0 0
    %5582 = vmatprep.mubr.bf16.mxu0 0
    %5583 = vmatmul.mubr.bf16.gmra.mrb[0].mxu0 %v5549
    %v5584 = vpop.f32.mrb[0].mxu0
    %v5585 = vadd.f32 0.0, %v5584
    %v5586 = vpop.f32.mrb[0].mxu0
    %v5587 = vadd.f32 0.0, %v5586
    %v5588 = vpop.f32.mrb[0].mxu0
    %v5589 = vpop.f32.mrb[0].mxu0
    %5590 = vdwg.mxu0
    %5591 = vmatprep.subr.bf16.mxu0 %v4395
    %5592 = vmatpush1.bf16.msra.mxu0 %v4394
    %5593 = vmatprep.subr.bf16.mxu0 %v4399
    %5594 = vmatpush1.bf16.msra.mxu0 %v4398
    %5595 = vmatprep.subr.bf16.mxu0 %v4403
    %5596 = vmatpush1.bf16.msra.mxu0 %v4402
    %5597 = vmatprep.subr.bf16.mxu0 %v4407
    %5598 = vmatpush1.bf16.msra.mxu0 %v4406
    %5599 = vmatprep.subr.bf16.mxu0 %v4411
    %5600 = vmatpush1.bf16.msra.mxu0 %v4410
    %5601 = vmatprep.subr.bf16.mxu0 %v4415
    %5602 = vmatpush1.bf16.msra.mxu0 %v4414
    %5603 = vmatprep.subr.bf16.mxu0 %v4419
    %5604 = vmatpush1.bf16.msra.mxu0 %v4418
    %5605 = vmatprep.subr.bf16.mxu0 %v4423
    %5606 = vmatpush1.bf16.msra.mxu0 %v4422
    %5607 = vmatprep.subr.bf16.mxu0 0
    %5608 = vmatpush1.bf16.msra.mxu0 0
    %5609 = vmatprep.subr.bf16.mxu0 0
    %5610 = vmatpush1.bf16.msra.mxu0 0
    %5611 = vmatprep.subr.bf16.mxu0 0
    %5612 = vmatpush1.bf16.msra.mxu0 0
    %5613 = vmatprep.subr.bf16.mxu0 0
    %5614 = vmatpush1.bf16.msra.mxu0 0
    %5615 = vmatprep.subr.bf16.mxu0 0
    %5616 = vmatpush1.bf16.msra.mxu0 0
    %5617 = vmatprep.subr.bf16.mxu0 0
    %5618 = vmatpush1.bf16.msra.mxu0 0
    %5619 = vmatprep.subr.bf16.mxu0 0
    %5620 = vmatpush1.bf16.msra.mxu0 0
    %5621 = vmatprep.subr.bf16.mxu0 0
    %5622 = vmatpush1.bf16.msra.mxu0 0
    %5623 = vmatprep.mubr.bf16.mxu0 0
    %5624 = vmatmul.mubr.bf16.gmra.mrb[0].mxu0 %v5549
    %v5625 = vpop.f32.mrb[0].mxu0
    %v5626 = vadd.f32 0.0, %v5625
    %v5627 = vpop.f32.mrb[0].mxu0
    %v5628 = vadd.f32 0.0, %v5627
    %v5629 = vpop.f32.mrb[0].mxu0
    %v5630 = vpop.f32.mrb[0].mxu0
    %5631 = vdwg.mxu0
    %5632 = vmatprep.subr.bf16.mxu0 %v4635
    %5633 = vmatpush1.bf16.msra.mxu0 %v4634
    %5634 = vmatprep.subr.bf16.mxu0 %v4639
    %5635 = vmatpush1.bf16.msra.mxu0 %v4638
    %5636 = vmatprep.subr.bf16.mxu0 %v4643
    %5637 = vmatpush1.bf16.msra.mxu0 %v4642
    %5638 = vmatprep.subr.bf16.mxu0 %v4647
    %5639 = vmatpush1.bf16.msra.mxu0 %v4646
    %5640 = vmatprep.subr.bf16.mxu0 %v4651
    %5641 = vmatpush1.bf16.msra.mxu0 %v4650
    %5642 = vmatprep.subr.bf16.mxu0 %v4655
    %5643 = vmatpush1.bf16.msra.mxu0 %v4654
    %5644 = vmatprep.subr.bf16.mxu0 %v4659
    %5645 = vmatpush1.bf16.msra.mxu0 %v4658
    %5646 = vmatprep.subr.bf16.mxu0 %v4663
    %5647 = vmatpush1.bf16.msra.mxu0 %v4662
    %5648 = vmatprep.subr.bf16.mxu0 0
    %5649 = vmatpush1.bf16.msra.mxu0 0
    %5650 = vmatprep.subr.bf16.mxu0 0
    %5651 = vmatpush1.bf16.msra.mxu0 0
    %5652 = vmatprep.subr.bf16.mxu0 0
    %5653 = vmatpush1.bf16.msra.mxu0 0
    %5654 = vmatprep.subr.bf16.mxu0 0
    %5655 = vmatpush1.bf16.msra.mxu0 0
    %5656 = vmatprep.subr.bf16.mxu0 0
    %5657 = vmatpush1.bf16.msra.mxu0 0
    %5658 = vmatprep.subr.bf16.mxu0 0
    %5659 = vmatpush1.bf16.msra.mxu0 0
    %5660 = vmatprep.subr.bf16.mxu0 0
    %5661 = vmatpush1.bf16.msra.mxu0 0
    %5662 = vmatprep.subr.bf16.mxu0 0
    %5663 = vmatpush1.bf16.msra.mxu0 0
    %5664 = vmatprep.mubr.bf16.mxu0 0
    %5665 = vmatmul.mubr.bf16.gmra.mrb[0].mxu0 %v5548
    %v5666 = vpop.f32.mrb[0].mxu0
    %v5667 = vadd.f32 %v5585, %v5666
    %v5668 = vpop.f32.mrb[0].mxu0
    %v5669 = vadd.f32 %v5587, %v5668
    %v5670 = vpop.f32.mrb[0].mxu0
    %v5671 = vpop.f32.mrb[0].mxu0
    %5672 = vdwg.mxu0
    %5673 = vmatprep.subr.bf16.mxu0 %v4637
    %5674 = vmatpush1.bf16.msra.mxu0 %v4636
    %5675 = vmatprep.subr.bf16.mxu0 %v4641
    %5676 = vmatpush1.bf16.msra.mxu0 %v4640
    %5677 = vmatprep.subr.bf16.mxu0 %v4645
    %5678 = vmatpush1.bf16.msra.mxu0 %v4644
    %5679 = vmatprep.subr.bf16.mxu0 %v4649
    %5680 = vmatpush1.bf16.msra.mxu0 %v4648
    %5681 = vmatprep.subr.bf16.mxu0 %v4653
    %5682 = vmatpush1.bf16.msra.mxu0 %v4652
    %5683 = vmatprep.subr.bf16.mxu0 %v4657
    %5684 = vmatpush1.bf16.msra.mxu0 %v4656
    %5685 = vmatprep.subr.bf16.mxu0 %v4661
    %5686 = vmatpush1.bf16.msra.mxu0 %v4660
    %5687 = vmatprep.subr.bf16.mxu0 %v4665
    %5688 = vmatpush1.bf16.msra.mxu0 %v4664
    %5689 = vmatprep.subr.bf16.mxu0 0
    %5690 = vmatpush1.bf16.msra.mxu0 0
    %5691 = vmatprep.subr.bf16.mxu0 0
    %5692 = vmatpush1.bf16.msra.mxu0 0
    %5693 = vmatprep.subr.bf16.mxu0 0
    %5694 = vmatpush1.bf16.msra.mxu0 0
    %5695 = vmatprep.subr.bf16.mxu0 0
    %5696 = vmatpush1.bf16.msra.mxu0 0
    %5697 = vmatprep.subr.bf16.mxu0 0
    %5698 = vmatpush1.bf16.msra.mxu0 0
    %5699 = vmatprep.subr.bf16.mxu0 0
    %5700 = vmatpush1.bf16.msra.mxu0 0
    %5701 = vmatprep.subr.bf16.mxu0 0
    %5702 = vmatpush1.bf16.msra.mxu0 0
    %5703 = vmatprep.subr.bf16.mxu0 0
    %5704 = vmatpush1.bf16.msra.mxu0 0
    %5705 = vmatprep.mubr.bf16.mxu0 0
    %5706 = vmatmul.mubr.bf16.gmra.mrb[0].mxu0 %v5548
    %v5707 = vpop.f32.mrb[0].mxu0
    %v5708 = vadd.f32 %v5626, %v5707
    %v5709 = vpop.f32.mrb[0].mxu0
    %v5710 = vadd.f32 %v5628, %v5709
    %v5711 = vpop.f32.mrb[0].mxu0
    %v5712 = vpop.f32.mrb[0].mxu0
    %5713 = vdwg.mxu0
    %v5714 = vadd.f32 %v5667, %v4785
    %v5715 = vadd.f32 %v5669, %v4789
    %v5716 = vadd.f32 %v5708, %v4793
    %v5717 = vadd.f32 %v5710, %v4797
    %v5718 = vxor.u32 %v5714, 2147483648
    %v5719 = vxor.u32 %v5715, 2147483648
    %v5720 = vxor.u32 %v5716, 2147483648
    %v5721 = vmul.f32 %v5718, 1.442695
    %v5722 = vpow.pop %v5721
    %v5723 = vmul.f32 %v5719, 1.442695
    %v5724 = vpow.pop %v5723
    %v5725 = vmul.f32 %v5720, 1.442695
    %v5726 = vpow.pop %v5725
    %v5727 = vadd.f32 %v5722, 1.0
    %v5728 = vadd.f32 %v5724, 1.0
    %v5729 = vadd.f32 %v5726, 1.0
    %v5730 = vrcp.pop %v5727
    %v5731 = vmul.f32 1.0, %v5730
    %v5732 = vrcp.pop %v5728
    %v5733 = vmul.f32 1.0, %v5732
    %v5734 = vrcp.pop %v5729
    %v5735 = vmul.f32 1.0, %v5734
    %v5736 = vtanh.pop %v5717
    %v5737 = vmul.f32 %v5733, %v5435
    %v5738 = vmul.f32 %v5731, %v5736
    %v5739 = vadd.f32 %v5737, %v5738
    %v5740 = vtanh.pop %v5739
    %v5741 = vmul.f32 %v5735, %v5740
    %5742 = vmatprep.subr.bf16.mxu0 %v4058
    %5743 = vmatpush1.bf16.msra.mxu0 %v4057
    %5744 = vmatprep.subr.bf16.mxu0 %v4062
    %5745 = vmatpush1.bf16.msra.mxu0 %v4061
    %5746 = vmatprep.subr.bf16.mxu0 %v4066
    %5747 = vmatpush1.bf16.msra.mxu0 %v4065
    %5748 = vmatprep.subr.bf16.mxu0 %v4070
    %5749 = vmatpush1.bf16.msra.mxu0 %v4069
    %5750 = vmatprep.subr.bf16.mxu0 %v4074
    %5751 = vmatpush1.bf16.msra.mxu0 %v4073
    %5752 = vmatprep.subr.bf16.mxu0 %v4078
    %5753 = vmatpush1.bf16.msra.mxu0 %v4077
    %5754 = vmatprep.subr.bf16.mxu0 %v4082
    %5755 = vmatpush1.bf16.msra.mxu0 %v4081
    %5756 = vmatprep.subr.bf16.mxu0 %v4086
    %5757 = vmatpush1.bf16.msra.mxu0 %v4085
    %5758 = vmatprep.subr.bf16.mxu0 0
    %5759 = vmatpush1.bf16.msra.mxu0 0
    %5760 = vmatprep.subr.bf16.mxu0 0
    %5761 = vmatpush1.bf16.msra.mxu0 0
    %5762 = vmatprep.subr.bf16.mxu0 0
    %5763 = vmatpush1.bf16.msra.mxu0 0
    %5764 = vmatprep.subr.bf16.mxu0 0
    %5765 = vmatpush1.bf16.msra.mxu0 0
    %5766 = vmatprep.subr.bf16.mxu0 0
    %5767 = vmatpush1.bf16.msra.mxu0 0
    %5768 = vmatprep.subr.bf16.mxu0 0
    %5769 = vmatpush1.bf16.msra.mxu0 0
    %5770 = vmatprep.subr.bf16.mxu0 0
    %5771 = vmatpush1.bf16.msra.mxu0 0
    %5772 = vmatprep.subr.bf16.mxu0 0
    %5773 = vmatpush1.bf16.msra.mxu0 0
    %5774 = vmatprep.mubr.bf16.mxu0 0
    %5775 = vmatmul.mubr.bf16.gmra.mrb[0].mxu0 %v5548
    %v5776 = vpop.f32.mrb[0].mxu0
    %v5777 = vadd.f32 0.0, %v5776
    %v5778 = vpop.f32.mrb[0].mxu0
    %v5779 = vadd.f32 0.0, %v5778
    %v5780 = vpop.f32.mrb[0].mxu0
    %v5781 = vpop.f32.mrb[0].mxu0
    %5782 = vdwg.mxu0
    %5783 = vmatprep.subr.bf16.mxu0 %v4060
    %5784 = vmatpush1.bf16.msra.mxu0 %v4059
    %5785 = vmatprep.subr.bf16.mxu0 %v4064
    %5786 = vmatpush1.bf16.msra.mxu0 %v4063
    %5787 = vmatprep.subr.bf16.mxu0 %v4068
    %5788 = vmatpush1.bf16.msra.mxu0 %v4067
    %5789 = vmatprep.subr.bf16.mxu0 %v4072
    %5790 = vmatpush1.bf16.msra.mxu0 %v4071
    %5791 = vmatprep.subr.bf16.mxu0 %v4076
    %5792 = vmatpush1.bf16.msra.mxu0 %v4075
    %5793 = vmatprep.subr.bf16.mxu0 %v4080
    %5794 = vmatpush1.bf16.msra.mxu0 %v4079
    %5795 = vmatprep.subr.bf16.mxu0 %v4084
    %5796 = vmatpush1.bf16.msra.mxu0 %v4083
    %5797 = vmatprep.subr.bf16.mxu0 %v4088
    %5798 = vmatpush1.bf16.msra.mxu0 %v4087
    %5799 = vmatprep.subr.bf16.mxu0 0
    %5800 = vmatpush1.bf16.msra.mxu0 0
    %5801 = vmatprep.subr.bf16.mxu0 0
    %5802 = vmatpush1.bf16.msra.mxu0 0
    %5803 = vmatprep.subr.bf16.mxu0 0
    %5804 = vmatpush1.bf16.msra.mxu0 0
    %5805 = vmatprep.subr.bf16.mxu0 0
    %5806 = vmatpush1.bf16.msra.mxu0 0
    %5807 = vmatprep.subr.bf16.mxu0 0
    %5808 = vmatpush1.bf16.msra.mxu0 0
    %5809 = vmatprep.subr.bf16.mxu0 0
    %5810 = vmatpush1.bf16.msra.mxu0 0
    %5811 = vmatprep.subr.bf16.mxu0 0
    %5812 = vmatpush1.bf16.msra.mxu0 0
    %5813 = vmatprep.subr.bf16.mxu0 0
    %5814 = vmatpush1.bf16.msra.mxu0 0
    %5815 = vmatprep.mubr.bf16.mxu0 0
    %5816 = vmatmul.mubr.bf16.gmra.mrb[0].mxu0 %v5548
    %v5817 = vpop.f32.mrb[0].mxu0
    %v5818 = vadd.f32 0.0, %v5817
    %v5819 = vpop.f32.mrb[0].mxu0
    %v5820 = vadd.f32 0.0, %v5819
    %v5821 = vpop.f32.mrb[0].mxu0
    %v5822 = vpop.f32.mrb[0].mxu0
    %5823 = vdwg.mxu0
    %v5824 = vadd.f32 %v3882, %v5777
    %v5825 = vadd.f32 %v3884, %v5779
    %v5826 = vadd.f32 %v3923, %v5818
    %v5827 = vadd.f32 %v3925, %v5820
    %v5828 = vxor.u32 %v5824, 2147483648
    %v5829 = vxor.u32 %v5825, 2147483648
    %v5830 = vxor.u32 %v5826, 2147483648
    %v5831 = vmul.f32 %v5828, 1.442695
    %v5832 = vpow.pop %v5831
    %v5833 = vmul.f32 %v5829, 1.442695
    %v5834 = vpow.pop %v5833
    %v5835 = vmul.f32 %v5830, 1.442695
    %v5836 = vpow.pop %v5835
    %v5837 = vadd.f32 %v5832, 1.0
    %v5838 = vadd.f32 %v5834, 1.0
    %v5839 = vadd.f32 %v5836, 1.0
    %v5840 = vrcp.pop %v5837
    %v5841 = vmul.f32 1.0, %v5840
    %v5842 = vrcp.pop %v5838
    %v5843 = vmul.f32 1.0, %v5842
    %v5844 = vrcp.pop %v5839
    %v5845 = vmul.f32 1.0, %v5844
    %v5846 = vtanh.pop %v5827
    %v5847 = vmul.f32 %v5843, %v5545
    %v5848 = vmul.f32 %v5841, %v5846
    %v5849 = vadd.f32 %v5847, %v5848
    %v5850 = vtanh.pop %v5849
    %v5851 = vmul.f32 %v5845, %v5850
    %v5852 = vpack.c.bf16 %v5851, %v5851
    %v5853 = vpack.c.bf16 %v5741, %v5741
    %5854 = vmatprep.subr.bf16.mxu0 %v4393
    %5855 = vmatpush1.bf16.msra.mxu0 %v4392
    %5856 = vmatprep.subr.bf16.mxu0 %v4397
    %5857 = vmatpush1.bf16.msra.mxu0 %v4396
    %5858 = vmatprep.subr.bf16.mxu0 %v4401
    %5859 = vmatpush1.bf16.msra.mxu0 %v4400
    %5860 = vmatprep.subr.bf16.mxu0 %v4405
    %5861 = vmatpush1.bf16.msra.mxu0 %v4404
    %5862 = vmatprep.subr.bf16.mxu0 %v4409
    %5863 = vmatpush1.bf16.msra.mxu0 %v4408
    %5864 = vmatprep.subr.bf16.mxu0 %v4413
    %5865 = vmatpush1.bf16.msra.mxu0 %v4412
    %5866 = vmatprep.subr.bf16.mxu0 %v4417
    %5867 = vmatpush1.bf16.msra.mxu0 %v4416
    %5868 = vmatprep.subr.bf16.mxu0 %v4421
    %5869 = vmatpush1.bf16.msra.mxu0 %v4420
    %5870 = vmatprep.subr.bf16.mxu0 0
    %5871 = vmatpush1.bf16.msra.mxu0 0
    %5872 = vmatprep.subr.bf16.mxu0 0
    %5873 = vmatpush1.bf16.msra.mxu0 0
    %5874 = vmatprep.subr.bf16.mxu0 0
    %5875 = vmatpush1.bf16.msra.mxu0 0
    %5876 = vmatprep.subr.bf16.mxu0 0
    %5877 = vmatpush1.bf16.msra.mxu0 0
    %5878 = vmatprep.subr.bf16.mxu0 0
    %5879 = vmatpush1.bf16.msra.mxu0 0
    %5880 = vmatprep.subr.bf16.mxu0 0
    %5881 = vmatpush1.bf16.msra.mxu0 0
    %5882 = vmatprep.subr.bf16.mxu0 0
    %5883 = vmatpush1.bf16.msra.mxu0 0
    %5884 = vmatprep.subr.bf16.mxu0 0
    %5885 = vmatpush1.bf16.msra.mxu0 0
    %5886 = vmatprep.mubr.bf16.mxu0 0
    %5887 = vmatmul.mubr.bf16.gmra.mrb[0].mxu0 %v5853
    %v5888 = vpop.f32.mrb[0].mxu0
    %v5889 = vadd.f32 0.0, %v5888
    %v5890 = vpop.f32.mrb[0].mxu0
    %v5891 = vadd.f32 0.0, %v5890
    %v5892 = vpop.f32.mrb[0].mxu0
    %v5893 = vpop.f32.mrb[0].mxu0
    %5894 = vdwg.mxu0
    %5895 = vmatprep.subr.bf16.mxu0 %v4395
    %5896 = vmatpush1.bf16.msra.mxu0 %v4394
    %5897 = vmatprep.subr.bf16.mxu0 %v4399
    %5898 = vmatpush1.bf16.msra.mxu0 %v4398
    %5899 = vmatprep.subr.bf16.mxu0 %v4403
    %5900 = vmatpush1.bf16.msra.mxu0 %v4402
    %5901 = vmatprep.subr.bf16.mxu0 %v4407
    %5902 = vmatpush1.bf16.msra.mxu0 %v4406
    %5903 = vmatprep.subr.bf16.mxu0 %v4411
    %5904 = vmatpush1.bf16.msra.mxu0 %v4410
    %5905 = vmatprep.subr.bf16.mxu0 %v4415
    %5906 = vmatpush1.bf16.msra.mxu0 %v4414
    %5907 = vmatprep.subr.bf16.mxu0 %v4419
    %5908 = vmatpush1.bf16.msra.mxu0 %v4418
    %5909 = vmatprep.subr.bf16.mxu0 %v4423
    %5910 = vmatpush1.bf16.msra.mxu0 %v4422
    %5911 = vmatprep.subr.bf16.mxu0 0
    %5912 = vmatpush1.bf16.msra.mxu0 0
    %5913 = vmatprep.subr.bf16.mxu0 0
    %5914 = vmatpush1.bf16.msra.mxu0 0
    %5915 = vmatprep.subr.bf16.mxu0 0
    %5916 = vmatpush1.bf16.msra.mxu0 0
    %5917 = vmatprep.subr.bf16.mxu0 0
    %5918 = vmatpush1.bf16.msra.mxu0 0
    %5919 = vmatprep.subr.bf16.mxu0 0
    %5920 = vmatpush1.bf16.msra.mxu0 0
    %5921 = vmatprep.subr.bf16.mxu0 0
    %5922 = vmatpush1.bf16.msra.mxu0 0
    %5923 = vmatprep.subr.bf16.mxu0 0
    %5924 = vmatpush1.bf16.msra.mxu0 0
    %5925 = vmatprep.subr.bf16.mxu0 0
    %5926 = vmatpush1.bf16.msra.mxu0 0
    %5927 = vmatprep.mubr.bf16.mxu0 0
    %5928 = vmatmul.mubr.bf16.gmra.mrb[0].mxu0 %v5853
    %v5929 = vpop.f32.mrb[0].mxu0
    %v5930 = vadd.f32 0.0, %v5929
    %v5931 = vpop.f32.mrb[0].mxu0
    %v5932 = vadd.f32 0.0, %v5931
    %v5933 = vpop.f32.mrb[0].mxu0
    %v5934 = vpop.f32.mrb[0].mxu0
    %5935 = vdwg.mxu0
    %5936 = vmatprep.subr.bf16.mxu0 %v4635
    %5937 = vmatpush1.bf16.msra.mxu0 %v4634
    %5938 = vmatprep.subr.bf16.mxu0 %v4639
    %5939 = vmatpush1.bf16.msra.mxu0 %v4638
    %5940 = vmatprep.subr.bf16.mxu0 %v4643
    %5941 = vmatpush1.bf16.msra.mxu0 %v4642
    %5942 = vmatprep.subr.bf16.mxu0 %v4647
    %5943 = vmatpush1.bf16.msra.mxu0 %v4646
    %5944 = vmatprep.subr.bf16.mxu0 %v4651
    %5945 = vmatpush1.bf16.msra.mxu0 %v4650
    %5946 = vmatprep.subr.bf16.mxu0 %v4655
    %5947 = vmatpush1.bf16.msra.mxu0 %v4654
    %5948 = vmatprep.subr.bf16.mxu0 %v4659
    %5949 = vmatpush1.bf16.msra.mxu0 %v4658
    %5950 = vmatprep.subr.bf16.mxu0 %v4663
    %5951 = vmatpush1.bf16.msra.mxu0 %v4662
    %5952 = vmatprep.subr.bf16.mxu0 0
    %5953 = vmatpush1.bf16.msra.mxu0 0
    %5954 = vmatprep.subr.bf16.mxu0 0
    %5955 = vmatpush1.bf16.msra.mxu0 0
    %5956 = vmatprep.subr.bf16.mxu0 0
    %5957 = vmatpush1.bf16.msra.mxu0 0
    %5958 = vmatprep.subr.bf16.mxu0 0
    %5959 = vmatpush1.bf16.msra.mxu0 0
    %5960 = vmatprep.subr.bf16.mxu0 0
    %5961 = vmatpush1.bf16.msra.mxu0 0
    %5962 = vmatprep.subr.bf16.mxu0 0
    %5963 = vmatpush1.bf16.msra.mxu0 0
    %5964 = vmatprep.subr.bf16.mxu0 0
    %5965 = vmatpush1.bf16.msra.mxu0 0
    %5966 = vmatprep.subr.bf16.mxu0 0
    %5967 = vmatpush1.bf16.msra.mxu0 0
    %5968 = vmatprep.mubr.bf16.mxu0 0
    %5969 = vmatmul.mubr.bf16.gmra.mrb[0].mxu0 %v5852
    %v5970 = vpop.f32.mrb[0].mxu0
    %v5971 = vadd.f32 %v5889, %v5970
    %v5972 = vpop.f32.mrb[0].mxu0
    %v5973 = vadd.f32 %v5891, %v5972
    %v5974 = vpop.f32.mrb[0].mxu0
    %v5975 = vpop.f32.mrb[0].mxu0
    %5976 = vdwg.mxu0
    %5977 = vmatprep.subr.bf16.mxu0 %v4637
    %5978 = vmatpush1.bf16.msra.mxu0 %v4636
    %5979 = vmatprep.subr.bf16.mxu0 %v4641
    %5980 = vmatpush1.bf16.msra.mxu0 %v4640
    %5981 = vmatprep.subr.bf16.mxu0 %v4645
    %5982 = vmatpush1.bf16.msra.mxu0 %v4644
    %5983 = vmatprep.subr.bf16.mxu0 %v4649
    %5984 = vmatpush1.bf16.msra.mxu0 %v4648
    %5985 = vmatprep.subr.bf16.mxu0 %v4653
    %5986 = vmatpush1.bf16.msra.mxu0 %v4652
    %5987 = vmatprep.subr.bf16.mxu0 %v4657
    %5988 = vmatpush1.bf16.msra.mxu0 %v4656
    %5989 = vmatprep.subr.bf16.mxu0 %v4661
    %5990 = vmatpush1.bf16.msra.mxu0 %v4660
    %5991 = vmatprep.subr.bf16.mxu0 %v4665
    %5992 = vmatpush1.bf16.msra.mxu0 %v4664
    %5993 = vmatprep.subr.bf16.mxu0 0
    %5994 = vmatpush1.bf16.msra.mxu0 0
    %5995 = vmatprep.subr.bf16.mxu0 0
    %5996 = vmatpush1.bf16.msra.mxu0 0
    %5997 = vmatprep.subr.bf16.mxu0 0
    %5998 = vmatpush1.bf16.msra.mxu0 0
    %5999 = vmatprep.subr.bf16.mxu0 0
    %6000 = vmatpush1.bf16.msra.mxu0 0
    %6001 = vmatprep.subr.bf16.mxu0 0
    %6002 = vmatpush1.bf16.msra.mxu0 0
    %6003 = vmatprep.subr.bf16.mxu0 0
    %6004 = vmatpush1.bf16.msra.mxu0 0
    %6005 = vmatprep.subr.bf16.mxu0 0
    %6006 = vmatpush1.bf16.msra.mxu0 0
    %6007 = vmatprep.subr.bf16.mxu0 0
    %6008 = vmatpush1.bf16.msra.mxu0 0
    %6009 = vmatprep.mubr.bf16.mxu0 0
    %6010 = vmatmul.mubr.bf16.gmra.mrb[0].mxu0 %v5852
    %v6011 = vpop.f32.mrb[0].mxu0
    %v6012 = vadd.f32 %v5930, %v6011
    %v6013 = vpop.f32.mrb[0].mxu0
    %v6014 = vadd.f32 %v5932, %v6013
    %v6015 = vpop.f32.mrb[0].mxu0
    %v6016 = vpop.f32.mrb[0].mxu0
    %6017 = vdwg.mxu0
    %v6018 = vadd.f32 %v5971, %v4785
    %v6019 = vadd.f32 %v5973, %v4789
    %v6020 = vadd.f32 %v6012, %v4793
    %v6021 = vadd.f32 %v6014, %v4797
    %v6022 = vxor.u32 %v6018, 2147483648
    %v6023 = vxor.u32 %v6019, 2147483648
    %v6024 = vxor.u32 %v6020, 2147483648
    %v6025 = vmul.f32 %v6022, 1.442695
    %v6026 = vpow.pop %v6025
    %v6027 = vmul.f32 %v6023, 1.442695
    %v6028 = vpow.pop %v6027
    %v6029 = vmul.f32 %v6024, 1.442695
    %v6030 = vpow.pop %v6029
    %v6031 = vadd.f32 %v6026, 1.0
    %v6032 = vadd.f32 %v6028, 1.0
    %v6033 = vadd.f32 %v6030, 1.0
    %v6034 = vrcp.pop %v6031
    %v6035 = vmul.f32 1.0, %v6034
    %v6036 = vrcp.pop %v6032
    %v6037 = vmul.f32 1.0, %v6036
    %v6038 = vrcp.pop %v6033
    %v6039 = vmul.f32 1.0, %v6038
    %v6040 = vtanh.pop %v6021
    %v6041 = vmul.f32 %v6037, %v5739
    %v6042 = vmul.f32 %v6035, %v6040
    %v6043 = vadd.f32 %v6041, %v6042
    %v6044 = vtanh.pop %v6043
    %v6045 = vmul.f32 %v6039, %v6044
    %6046 = vmatprep.subr.bf16.mxu0 %v4058
    %6047 = vmatpush1.bf16.msra.mxu0 %v4057
    %6048 = vmatprep.subr.bf16.mxu0 %v4062
    %6049 = vmatpush1.bf16.msra.mxu0 %v4061
    %6050 = vmatprep.subr.bf16.mxu0 %v4066
    %6051 = vmatpush1.bf16.msra.mxu0 %v4065
    %6052 = vmatprep.subr.bf16.mxu0 %v4070
    %6053 = vmatpush1.bf16.msra.mxu0 %v4069
    %6054 = vmatprep.subr.bf16.mxu0 %v4074
    %6055 = vmatpush1.bf16.msra.mxu0 %v4073
    %6056 = vmatprep.subr.bf16.mxu0 %v4078
    %6057 = vmatpush1.bf16.msra.mxu0 %v4077
    %6058 = vmatprep.subr.bf16.mxu0 %v4082
    %6059 = vmatpush1.bf16.msra.mxu0 %v4081
    %6060 = vmatprep.subr.bf16.mxu0 %v4086
    %6061 = vmatpush1.bf16.msra.mxu0 %v4085
    %6062 = vmatprep.subr.bf16.mxu0 0
    %6063 = vmatpush1.bf16.msra.mxu0 0
    %6064 = vmatprep.subr.bf16.mxu0 0
    %6065 = vmatpush1.bf16.msra.mxu0 0
    %6066 = vmatprep.subr.bf16.mxu0 0
    %6067 = vmatpush1.bf16.msra.mxu0 0
    %6068 = vmatprep.subr.bf16.mxu0 0
    %6069 = vmatpush1.bf16.msra.mxu0 0
    %6070 = vmatprep.subr.bf16.mxu0 0
    %6071 = vmatpush1.bf16.msra.mxu0 0
    %6072 = vmatprep.subr.bf16.mxu0 0
    %6073 = vmatpush1.bf16.msra.mxu0 0
    %6074 = vmatprep.subr.bf16.mxu0 0
    %6075 = vmatpush1.bf16.msra.mxu0 0
    %6076 = vmatprep.subr.bf16.mxu0 0
    %6077 = vmatpush1.bf16.msra.mxu0 0
    %6078 = vmatprep.mubr.bf16.mxu0 0
    %6079 = vmatmul.mubr.bf16.gmra.mrb[0].mxu0 %v5852
    %v6080 = vpop.f32.mrb[0].mxu0
    %v6081 = vadd.f32 0.0, %v6080
    %v6082 = vpop.f32.mrb[0].mxu0
    %v6083 = vadd.f32 0.0, %v6082
    %v6084 = vpop.f32.mrb[0].mxu0
    %v6085 = vpop.f32.mrb[0].mxu0
    %6086 = vdwg.mxu0
    %6087 = vmatprep.subr.bf16.mxu0 %v4060
    %6088 = vmatpush1.bf16.msra.mxu0 %v4059
    %6089 = vmatprep.subr.bf16.mxu0 %v4064
    %6090 = vmatpush1.bf16.msra.mxu0 %v4063
    %6091 = vmatprep.subr.bf16.mxu0 %v4068
    %6092 = vmatpush1.bf16.msra.mxu0 %v4067
    %6093 = vmatprep.subr.bf16.mxu0 %v4072
    %6094 = vmatpush1.bf16.msra.mxu0 %v4071
    %6095 = vmatprep.subr.bf16.mxu0 %v4076
    %6096 = vmatpush1.bf16.msra.mxu0 %v4075
    %6097 = vmatprep.subr.bf16.mxu0 %v4080
    %6098 = vmatpush1.bf16.msra.mxu0 %v4079
    %6099 = vmatprep.subr.bf16.mxu0 %v4084
    %6100 = vmatpush1.bf16.msra.mxu0 %v4083
    %6101 = vmatprep.subr.bf16.mxu0 %v4088
    %6102 = vmatpush1.bf16.msra.mxu0 %v4087
    %6103 = vmatprep.subr.bf16.mxu0 0
    %6104 = vmatpush1.bf16.msra.mxu0 0
    %6105 = vmatprep.subr.bf16.mxu0 0
    %6106 = vmatpush1.bf16.msra.mxu0 0
    %6107 = vmatprep.subr.bf16.mxu0 0
    %6108 = vmatpush1.bf16.msra.mxu0 0
    %6109 = vmatprep.subr.bf16.mxu0 0
    %6110 = vmatpush1.bf16.msra.mxu0 0
    %6111 = vmatprep.subr.bf16.mxu0 0
    %6112 = vmatpush1.bf16.msra.mxu0 0
    %6113 = vmatprep.subr.bf16.mxu0 0
    %6114 = vmatpush1.bf16.msra.mxu0 0
    %6115 = vmatprep.subr.bf16.mxu0 0
    %6116 = vmatpush1.bf16.msra.mxu0 0
    %6117 = vmatprep.subr.bf16.mxu0 0
    %6118 = vmatpush1.bf16.msra.mxu0 0
    %6119 = vmatprep.mubr.bf16.mxu0 0
    %6120 = vmatmul.mubr.bf16.gmra.mrb[0].mxu0 %v5852
    %v6121 = vpop.f32.mrb[0].mxu0
    %v6122 = vadd.f32 0.0, %v6121
    %v6123 = vpop.f32.mrb[0].mxu0
    %v6124 = vadd.f32 0.0, %v6123
    %v6125 = vpop.f32.mrb[0].mxu0
    %v6126 = vpop.f32.mrb[0].mxu0
    %6127 = vdwg.mxu0
    %v6128 = vadd.f32 %v3882, %v6081
    %v6129 = vadd.f32 %v3884, %v6083
    %v6130 = vadd.f32 %v3923, %v6122
    %v6131 = vadd.f32 %v3925, %v6124
    %v6132 = vxor.u32 %v6128, 2147483648
    %v6133 = vxor.u32 %v6129, 2147483648
    %v6134 = vxor.u32 %v6130, 2147483648
    %v6135 = vmul.f32 %v6132, 1.442695
    %v6136 = vpow.pop %v6135
    %v6137 = vmul.f32 %v6133, 1.442695
    %v6138 = vpow.pop %v6137
    %v6139 = vmul.f32 %v6134, 1.442695
    %v6140 = vpow.pop %v6139
    %v6141 = vadd.f32 %v6136, 1.0
    %v6142 = vadd.f32 %v6138, 1.0
    %v6143 = vadd.f32 %v6140, 1.0
    %v6144 = vrcp.pop %v6141
    %v6145 = vmul.f32 1.0, %v6144
    %v6146 = vrcp.pop %v6142
    %v6147 = vmul.f32 1.0, %v6146
    %v6148 = vrcp.pop %v6143
    %v6149 = vmul.f32 1.0, %v6148
    %v6150 = vtanh.pop %v6131
    %v6151 = vmul.f32 %v6147, %v5849
    %v6152 = vmul.f32 %v6145, %v6150
    %v6153 = vadd.f32 %v6151, %v6152
    %v6154 = vtanh.pop %v6153
    %v6155 = vmul.f32 %v6149, %v6154
    %v6156 = vpack.c.bf16 %v6155, %v6155
    %v6157 = vpack.c.bf16 %v6045, %v6045
    %6158 = vmatprep.subr.bf16.mxu0 %v4393
    %6159 = vmatpush1.bf16.msra.mxu0 %v4392
    %6160 = vmatprep.subr.bf16.mxu0 %v4397
    %6161 = vmatpush1.bf16.msra.mxu0 %v4396
    %6162 = vmatprep.subr.bf16.mxu0 %v4401
    %6163 = vmatpush1.bf16.msra.mxu0 %v4400
    %6164 = vmatprep.subr.bf16.mxu0 %v4405
    %6165 = vmatpush1.bf16.msra.mxu0 %v4404
    %6166 = vmatprep.subr.bf16.mxu0 %v4409
    %6167 = vmatpush1.bf16.msra.mxu0 %v4408
    %6168 = vmatprep.subr.bf16.mxu0 %v4413
    %6169 = vmatpush1.bf16.msra.mxu0 %v4412
    %6170 = vmatprep.subr.bf16.mxu0 %v4417
    %6171 = vmatpush1.bf16.msra.mxu0 %v4416
    %6172 = vmatprep.subr.bf16.mxu0 %v4421
    %6173 = vmatpush1.bf16.msra.mxu0 %v4420
    %6174 = vmatprep.subr.bf16.mxu0 0
    %6175 = vmatpush1.bf16.msra.mxu0 0
    %6176 = vmatprep.subr.bf16.mxu0 0
    %6177 = vmatpush1.bf16.msra.mxu0 0
    %6178 = vmatprep.subr.bf16.mxu0 0
    %6179 = vmatpush1.bf16.msra.mxu0 0
    %6180 = vmatprep.subr.bf16.mxu0 0
    %6181 = vmatpush1.bf16.msra.mxu0 0
    %6182 = vmatprep.subr.bf16.mxu0 0
    %6183 = vmatpush1.bf16.msra.mxu0 0
    %6184 = vmatprep.subr.bf16.mxu0 0
    %6185 = vmatpush1.bf16.msra.mxu0 0
    %6186 = vmatprep.subr.bf16.mxu0 0
    %6187 = vmatpush1.bf16.msra.mxu0 0
    %6188 = vmatprep.subr.bf16.mxu0 0
    %6189 = vmatpush1.bf16.msra.mxu0 0
    %6190 = vmatprep.mubr.bf16.mxu0 0
    %6191 = vmatmul.mubr.bf16.gmra.mrb[0].mxu0 %v6157
    %v6192 = vpop.f32.mrb[0].mxu0
    %v6193 = vadd.f32 0.0, %v6192
    %v6194 = vpop.f32.mrb[0].mxu0
    %v6195 = vadd.f32 0.0, %v6194
    %v6196 = vpop.f32.mrb[0].mxu0
    %v6197 = vpop.f32.mrb[0].mxu0
    %6198 = vdwg.mxu0
    %6199 = vmatprep.subr.bf16.mxu0 %v4395
    %6200 = vmatpush1.bf16.msra.mxu0 %v4394
    %6201 = vmatprep.subr.bf16.mxu0 %v4399
    %6202 = vmatpush1.bf16.msra.mxu0 %v4398
    %6203 = vmatprep.subr.bf16.mxu0 %v4403
    %6204 = vmatpush1.bf16.msra.mxu0 %v4402
    %6205 = vmatprep.subr.bf16.mxu0 %v4407
    %6206 = vmatpush1.bf16.msra.mxu0 %v4406
    %6207 = vmatprep.subr.bf16.mxu0 %v4411
    %6208 = vmatpush1.bf16.msra.mxu0 %v4410
    %6209 = vmatprep.subr.bf16.mxu0 %v4415
    %6210 = vmatpush1.bf16.msra.mxu0 %v4414
    %6211 = vmatprep.subr.bf16.mxu0 %v4419
    %6212 = vmatpush1.bf16.msra.mxu0 %v4418
    %6213 = vmatprep.subr.bf16.mxu0 %v4423
    %6214 = vmatpush1.bf16.msra.mxu0 %v4422
    %6215 = vmatprep.subr.bf16.mxu0 0
    %6216 = vmatpush1.bf16.msra.mxu0 0
    %6217 = vmatprep.subr.bf16.mxu0 0
    %6218 = vmatpush1.bf16.msra.mxu0 0
    %6219 = vmatprep.subr.bf16.mxu0 0
    %6220 = vmatpush1.bf16.msra.mxu0 0
    %6221 = vmatprep.subr.bf16.mxu0 0
    %6222 = vmatpush1.bf16.msra.mxu0 0
    %6223 = vmatprep.subr.bf16.mxu0 0
    %6224 = vmatpush1.bf16.msra.mxu0 0
    %6225 = vmatprep.subr.bf16.mxu0 0
    %6226 = vmatpush1.bf16.msra.mxu0 0
    %6227 = vmatprep.subr.bf16.mxu0 0
    %6228 = vmatpush1.bf16.msra.mxu0 0
    %6229 = vmatprep.subr.bf16.mxu0 0
    %6230 = vmatpush1.bf16.msra.mxu0 0
    %6231 = vmatprep.mubr.bf16.mxu0 0
    %6232 = vmatmul.mubr.bf16.gmra.mrb[0].mxu0 %v6157
    %v6233 = vpop.f32.mrb[0].mxu0
    %v6234 = vadd.f32 0.0, %v6233
    %v6235 = vpop.f32.mrb[0].mxu0
    %v6236 = vadd.f32 0.0, %v6235
    %v6237 = vpop.f32.mrb[0].mxu0
    %v6238 = vpop.f32.mrb[0].mxu0
    %6239 = vdwg.mxu0
    %6240 = vmatprep.subr.bf16.mxu0 %v4635
    %6241 = vmatpush1.bf16.msra.mxu0 %v4634
    %6242 = vmatprep.subr.bf16.mxu0 %v4639
    %6243 = vmatpush1.bf16.msra.mxu0 %v4638
    %6244 = vmatprep.subr.bf16.mxu0 %v4643
    %6245 = vmatpush1.bf16.msra.mxu0 %v4642
    %6246 = vmatprep.subr.bf16.mxu0 %v4647
    %6247 = vmatpush1.bf16.msra.mxu0 %v4646
    %6248 = vmatprep.subr.bf16.mxu0 %v4651
    %6249 = vmatpush1.bf16.msra.mxu0 %v4650
    %6250 = vmatprep.subr.bf16.mxu0 %v4655
    %6251 = vmatpush1.bf16.msra.mxu0 %v4654
    %6252 = vmatprep.subr.bf16.mxu0 %v4659
    %6253 = vmatpush1.bf16.msra.mxu0 %v4658
    %6254 = vmatprep.subr.bf16.mxu0 %v4663
    %6255 = vmatpush1.bf16.msra.mxu0 %v4662
    %6256 = vmatprep.subr.bf16.mxu0 0
    %6257 = vmatpush1.bf16.msra.mxu0 0
    %6258 = vmatprep.subr.bf16.mxu0 0
    %6259 = vmatpush1.bf16.msra.mxu0 0
    %6260 = vmatprep.subr.bf16.mxu0 0
    %6261 = vmatpush1.bf16.msra.mxu0 0
    %6262 = vmatprep.subr.bf16.mxu0 0
    %6263 = vmatpush1.bf16.msra.mxu0 0
    %6264 = vmatprep.subr.bf16.mxu0 0
    %6265 = vmatpush1.bf16.msra.mxu0 0
    %6266 = vmatprep.subr.bf16.mxu0 0
    %6267 = vmatpush1.bf16.msra.mxu0 0
    %6268 = vmatprep.subr.bf16.mxu0 0
    %6269 = vmatpush1.bf16.msra.mxu0 0
    %6270 = vmatprep.subr.bf16.mxu0 0
    %6271 = vmatpush1.bf16.msra.mxu0 0
    %6272 = vmatprep.mubr.bf16.mxu0 0
    %6273 = vmatmul.mubr.bf16.gmra.mrb[0].mxu0 %v6156
    %v6274 = vpop.f32.mrb[0].mxu0
    %v6275 = vadd.f32 %v6193, %v6274
    %v6276 = vpop.f32.mrb[0].mxu0
    %v6277 = vadd.f32 %v6195, %v6276
    %v6278 = vpop.f32.mrb[0].mxu0
    %v6279 = vpop.f32.mrb[0].mxu0
    %6280 = vdwg.mxu0
    %6281 = vmatprep.subr.bf16.mxu0 %v4637
    %6282 = vmatpush1.bf16.msra.mxu0 %v4636
    %6283 = vmatprep.subr.bf16.mxu0 %v4641
    %6284 = vmatpush1.bf16.msra.mxu0 %v4640
    %6285 = vmatprep.subr.bf16.mxu0 %v4645
    %6286 = vmatpush1.bf16.msra.mxu0 %v4644
    %6287 = vmatprep.subr.bf16.mxu0 %v4649
    %6288 = vmatpush1.bf16.msra.mxu0 %v4648
    %6289 = vmatprep.subr.bf16.mxu0 %v4653
    %6290 = vmatpush1.bf16.msra.mxu0 %v4652
    %6291 = vmatprep.subr.bf16.mxu0 %v4657
    %6292 = vmatpush1.bf16.msra.mxu0 %v4656
    %6293 = vmatprep.subr.bf16.mxu0 %v4661
    %6294 = vmatpush1.bf16.msra.mxu0 %v4660
    %6295 = vmatprep.subr.bf16.mxu0 %v4665
    %6296 = vmatpush1.bf16.msra.mxu0 %v4664
    %6297 = vmatprep.subr.bf16.mxu0 0
    %6298 = vmatpush1.bf16.msra.mxu0 0
    %6299 = vmatprep.subr.bf16.mxu0 0
    %6300 = vmatpush1.bf16.msra.mxu0 0
    %6301 = vmatprep.subr.bf16.mxu0 0
    %6302 = vmatpush1.bf16.msra.mxu0 0
    %6303 = vmatprep.subr.bf16.mxu0 0
    %6304 = vmatpush1.bf16.msra.mxu0 0
    %6305 = vmatprep.subr.bf16.mxu0 0
    %6306 = vmatpush1.bf16.msra.mxu0 0
    %6307 = vmatprep.subr.bf16.mxu0 0
    %6308 = vmatpush1.bf16.msra.mxu0 0
    %6309 = vmatprep.subr.bf16.mxu0 0
    %6310 = vmatpush1.bf16.msra.mxu0 0
    %6311 = vmatprep.subr.bf16.mxu0 0
    %6312 = vmatpush1.bf16.msra.mxu0 0
    %6313 = vmatprep.mubr.bf16.mxu0 0
    %6314 = vmatmul.mubr.bf16.gmra.mrb[0].mxu0 %v6156
    %v6315 = vpop.f32.mrb[0].mxu0
    %v6316 = vadd.f32 %v6234, %v6315
    %v6317 = vpop.f32.mrb[0].mxu0
    %v6318 = vadd.f32 %v6236, %v6317
    %v6319 = vpop.f32.mrb[0].mxu0
    %v6320 = vpop.f32.mrb[0].mxu0
    %6321 = vdwg.mxu0
    %v6322 = vadd.f32 %v6275, %v4785
    %v6323 = vadd.f32 %v6277, %v4789
    %v6324 = vadd.f32 %v6316, %v4793
    %v6325 = vadd.f32 %v6318, %v4797
    %v6326 = vxor.u32 %v6322, 2147483648
    %v6327 = vxor.u32 %v6323, 2147483648
    %v6328 = vxor.u32 %v6324, 2147483648
    %v6329 = vmul.f32 %v6326, 1.442695
    %v6330 = vpow.pop %v6329
    %v6331 = vmul.f32 %v6327, 1.442695
    %v6332 = vpow.pop %v6331
    %v6333 = vmul.f32 %v6328, 1.442695
    %v6334 = vpow.pop %v6333
    %v6335 = vadd.f32 %v6330, 1.0
    %v6336 = vadd.f32 %v6332, 1.0
    %v6337 = vadd.f32 %v6334, 1.0
    %v6338 = vrcp.pop %v6335
    %v6339 = vmul.f32 1.0, %v6338
    %v6340 = vrcp.pop %v6336
    %v6341 = vmul.f32 1.0, %v6340
    %v6342 = vrcp.pop %v6337
    %v6343 = vmul.f32 1.0, %v6342
    %v6344 = vtanh.pop %v6325
    %v6345 = vmul.f32 %v6341, %v6043
    %v6346 = vmul.f32 %v6339, %v6344
    %v6347 = vadd.f32 %v6345, %v6346
    %v6348 = vtanh.pop %v6347
    %v6349 = vmul.f32 %v6343, %v6348
    %6350 = vmatprep.subr.bf16.mxu0 %v4058
    %6351 = vmatpush1.bf16.msra.mxu0 %v4057
    %6352 = vmatprep.subr.bf16.mxu0 %v4062
    %6353 = vmatpush1.bf16.msra.mxu0 %v4061
    %6354 = vmatprep.subr.bf16.mxu0 %v4066
    %6355 = vmatpush1.bf16.msra.mxu0 %v4065
    %6356 = vmatprep.subr.bf16.mxu0 %v4070
    %6357 = vmatpush1.bf16.msra.mxu0 %v4069
    %6358 = vmatprep.subr.bf16.mxu0 %v4074
    %6359 = vmatpush1.bf16.msra.mxu0 %v4073
    %6360 = vmatprep.subr.bf16.mxu0 %v4078
    %6361 = vmatpush1.bf16.msra.mxu0 %v4077
    %6362 = vmatprep.subr.bf16.mxu0 %v4082
    %6363 = vmatpush1.bf16.msra.mxu0 %v4081
    %6364 = vmatprep.subr.bf16.mxu0 %v4086
    %6365 = vmatpush1.bf16.msra.mxu0 %v4085
    %6366 = vmatprep.subr.bf16.mxu0 0
    %6367 = vmatpush1.bf16.msra.mxu0 0
    %6368 = vmatprep.subr.bf16.mxu0 0
    %6369 = vmatpush1.bf16.msra.mxu0 0
    %6370 = vmatprep.subr.bf16.mxu0 0
    %6371 = vmatpush1.bf16.msra.mxu0 0
    %6372 = vmatprep.subr.bf16.mxu0 0
    %6373 = vmatpush1.bf16.msra.mxu0 0
    %6374 = vmatprep.subr.bf16.mxu0 0
    %6375 = vmatpush1.bf16.msra.mxu0 0
    %6376 = vmatprep.subr.bf16.mxu0 0
    %6377 = vmatpush1.bf16.msra.mxu0 0
    %6378 = vmatprep.subr.bf16.mxu0 0
    %6379 = vmatpush1.bf16.msra.mxu0 0
    %6380 = vmatprep.subr.bf16.mxu0 0
    %6381 = vmatpush1.bf16.msra.mxu0 0
    %6382 = vmatprep.mubr.bf16.mxu0 0
    %6383 = vmatmul.mubr.bf16.gmra.mrb[0].mxu0 %v6156
    %v6384 = vpop.f32.mrb[0].mxu0
    %v6385 = vadd.f32 0.0, %v6384
    %v6386 = vpop.f32.mrb[0].mxu0
    %v6387 = vadd.f32 0.0, %v6386
    %v6388 = vpop.f32.mrb[0].mxu0
    %v6389 = vpop.f32.mrb[0].mxu0
    %6390 = vdwg.mxu0
    %6391 = vmatprep.subr.bf16.mxu0 %v4060
    %6392 = vmatpush1.bf16.msra.mxu0 %v4059
    %6393 = vmatprep.subr.bf16.mxu0 %v4064
    %6394 = vmatpush1.bf16.msra.mxu0 %v4063
    %6395 = vmatprep.subr.bf16.mxu0 %v4068
    %6396 = vmatpush1.bf16.msra.mxu0 %v4067
    %6397 = vmatprep.subr.bf16.mxu0 %v4072
    %6398 = vmatpush1.bf16.msra.mxu0 %v4071
    %6399 = vmatprep.subr.bf16.mxu0 %v4076
    %6400 = vmatpush1.bf16.msra.mxu0 %v4075
    %6401 = vmatprep.subr.bf16.mxu0 %v4080
    %6402 = vmatpush1.bf16.msra.mxu0 %v4079
    %6403 = vmatprep.subr.bf16.mxu0 %v4084
    %6404 = vmatpush1.bf16.msra.mxu0 %v4083
    %6405 = vmatprep.subr.bf16.mxu0 %v4088
    %6406 = vmatpush1.bf16.msra.mxu0 %v4087
    %6407 = vmatprep.subr.bf16.mxu0 0
    %6408 = vmatpush1.bf16.msra.mxu0 0
    %6409 = vmatprep.subr.bf16.mxu0 0
    %6410 = vmatpush1.bf16.msra.mxu0 0
    %6411 = vmatprep.subr.bf16.mxu0 0
    %6412 = vmatpush1.bf16.msra.mxu0 0
    %6413 = vmatprep.subr.bf16.mxu0 0
    %6414 = vmatpush1.bf16.msra.mxu0 0
    %6415 = vmatprep.subr.bf16.mxu0 0
    %6416 = vmatpush1.bf16.msra.mxu0 0
    %6417 = vmatprep.subr.bf16.mxu0 0
    %6418 = vmatpush1.bf16.msra.mxu0 0
    %6419 = vmatprep.subr.bf16.mxu0 0
    %6420 = vmatpush1.bf16.msra.mxu0 0
    %6421 = vmatprep.subr.bf16.mxu0 0
    %6422 = vmatpush1.bf16.msra.mxu0 0
    %6423 = vmatprep.mubr.bf16.mxu0 0
    %6424 = vmatmul.mubr.bf16.gmra.mrb[0].mxu0 %v6156
    %v6425 = vpop.f32.mrb[0].mxu0
    %v6426 = vadd.f32 0.0, %v6425
    %v6427 = vpop.f32.mrb[0].mxu0
    %v6428 = vadd.f32 0.0, %v6427
    %v6429 = vpop.f32.mrb[0].mxu0
    %v6430 = vpop.f32.mrb[0].mxu0
    %6431 = vdwg.mxu0
    %v6432 = vadd.f32 %v3882, %v6385
    %v6433 = vadd.f32 %v3884, %v6387
    %v6434 = vadd.f32 %v3923, %v6426
    %v6435 = vadd.f32 %v3925, %v6428
    %v6436 = vxor.u32 %v6432, 2147483648
    %v6437 = vxor.u32 %v6433, 2147483648
    %v6438 = vxor.u32 %v6434, 2147483648
    %v6439 = vmul.f32 %v6436, 1.442695
    %v6440 = vpow.pop %v6439
    %v6441 = vmul.f32 %v6437, 1.442695
    %v6442 = vpow.pop %v6441
    %v6443 = vmul.f32 %v6438, 1.442695
    %v6444 = vpow.pop %v6443
    %v6445 = vadd.f32 %v6440, 1.0
    %v6446 = vadd.f32 %v6442, 1.0
    %v6447 = vadd.f32 %v6444, 1.0
    %v6448 = vrcp.pop %v6445
    %v6449 = vmul.f32 1.0, %v6448
    %v6450 = vrcp.pop %v6446
    %v6451 = vmul.f32 1.0, %v6450
    %v6452 = vrcp.pop %v6447
    %v6453 = vmul.f32 1.0, %v6452
    %v6454 = vtanh.pop %v6435
    %v6455 = vmul.f32 %v6451, %v6153
    %v6456 = vmul.f32 %v6449, %v6454
    %v6457 = vadd.f32 %v6455, %v6456
    %v6458 = vtanh.pop %v6457
    %v6459 = vmul.f32 %v6453, %v6458
    %v6460 = vpack.c.bf16 %v6459, %v6459
    %v6461 = vpack.c.bf16 %v6349, %v6349
    %6462 = vmatprep.subr.bf16.mxu0 %v4393
    %6463 = vmatpush1.bf16.msra.mxu0 %v4392
    %6464 = vmatprep.subr.bf16.mxu0 %v4397
    %6465 = vmatpush1.bf16.msra.mxu0 %v4396
    %6466 = vmatprep.subr.bf16.mxu0 %v4401
    %6467 = vmatpush1.bf16.msra.mxu0 %v4400
    %6468 = vmatprep.subr.bf16.mxu0 %v4405
    %6469 = vmatpush1.bf16.msra.mxu0 %v4404
    %6470 = vmatprep.subr.bf16.mxu0 %v4409
    %6471 = vmatpush1.bf16.msra.mxu0 %v4408
    %6472 = vmatprep.subr.bf16.mxu0 %v4413
    %6473 = vmatpush1.bf16.msra.mxu0 %v4412
    %6474 = vmatprep.subr.bf16.mxu0 %v4417
    %6475 = vmatpush1.bf16.msra.mxu0 %v4416
    %6476 = vmatprep.subr.bf16.mxu0 %v4421
    %6477 = vmatpush1.bf16.msra.mxu0 %v4420
    %6478 = vmatprep.subr.bf16.mxu0 0
    %6479 = vmatpush1.bf16.msra.mxu0 0
    %6480 = vmatprep.subr.bf16.mxu0 0
    %6481 = vmatpush1.bf16.msra.mxu0 0
    %6482 = vmatprep.subr.bf16.mxu0 0
    %6483 = vmatpush1.bf16.msra.mxu0 0
    %6484 = vmatprep.subr.bf16.mxu0 0
    %6485 = vmatpush1.bf16.msra.mxu0 0
    %6486 = vmatprep.subr.bf16.mxu0 0
    %6487 = vmatpush1.bf16.msra.mxu0 0
    %6488 = vmatprep.subr.bf16.mxu0 0
    %6489 = vmatpush1.bf16.msra.mxu0 0
    %6490 = vmatprep.subr.bf16.mxu0 0
    %6491 = vmatpush1.bf16.msra.mxu0 0
    %6492 = vmatprep.subr.bf16.mxu0 0
    %6493 = vmatpush1.bf16.msra.mxu0 0
    %6494 = vmatprep.mubr.bf16.mxu0 0
    %6495 = vmatmul.mubr.bf16.gmra.mrb[0].mxu0 %v6461
    %v6496 = vpop.f32.mrb[0].mxu0
    %v6497 = vadd.f32 0.0, %v6496
    %v6498 = vpop.f32.mrb[0].mxu0
    %v6499 = vadd.f32 0.0, %v6498
    %v6500 = vpop.f32.mrb[0].mxu0
    %v6501 = vpop.f32.mrb[0].mxu0
    %6502 = vdwg.mxu0
    %6503 = vmatprep.subr.bf16.mxu0 %v4395
    %6504 = vmatpush1.bf16.msra.mxu0 %v4394
    %6505 = vmatprep.subr.bf16.mxu0 %v4399
    %6506 = vmatpush1.bf16.msra.mxu0 %v4398
    %6507 = vmatprep.subr.bf16.mxu0 %v4403
    %6508 = vmatpush1.bf16.msra.mxu0 %v4402
    %6509 = vmatprep.subr.bf16.mxu0 %v4407
    %6510 = vmatpush1.bf16.msra.mxu0 %v4406
    %6511 = vmatprep.subr.bf16.mxu0 %v4411
    %6512 = vmatpush1.bf16.msra.mxu0 %v4410
    %6513 = vmatprep.subr.bf16.mxu0 %v4415
    %6514 = vmatpush1.bf16.msra.mxu0 %v4414
    %6515 = vmatprep.subr.bf16.mxu0 %v4419
    %6516 = vmatpush1.bf16.msra.mxu0 %v4418
    %6517 = vmatprep.subr.bf16.mxu0 %v4423
    %6518 = vmatpush1.bf16.msra.mxu0 %v4422
    %6519 = vmatprep.subr.bf16.mxu0 0
    %6520 = vmatpush1.bf16.msra.mxu0 0
    %6521 = vmatprep.subr.bf16.mxu0 0
    %6522 = vmatpush1.bf16.msra.mxu0 0
    %6523 = vmatprep.subr.bf16.mxu0 0
    %6524 = vmatpush1.bf16.msra.mxu0 0
    %6525 = vmatprep.subr.bf16.mxu0 0
    %6526 = vmatpush1.bf16.msra.mxu0 0
    %6527 = vmatprep.subr.bf16.mxu0 0
    %6528 = vmatpush1.bf16.msra.mxu0 0
    %6529 = vmatprep.subr.bf16.mxu0 0
    %6530 = vmatpush1.bf16.msra.mxu0 0
    %6531 = vmatprep.subr.bf16.mxu0 0
    %6532 = vmatpush1.bf16.msra.mxu0 0
    %6533 = vmatprep.subr.bf16.mxu0 0
    %6534 = vmatpush1.bf16.msra.mxu0 0
    %6535 = vmatprep.mubr.bf16.mxu0 0
    %6536 = vmatmul.mubr.bf16.gmra.mrb[0].mxu0 %v6461
    %v6537 = vpop.f32.mrb[0].mxu0
    %v6538 = vadd.f32 0.0, %v6537
    %v6539 = vpop.f32.mrb[0].mxu0
    %v6540 = vadd.f32 0.0, %v6539
    %v6541 = vpop.f32.mrb[0].mxu0
    %v6542 = vpop.f32.mrb[0].mxu0
    %6543 = vdwg.mxu0
    %6544 = vmatprep.subr.bf16.mxu0 %v4635
    %6545 = vmatpush1.bf16.msra.mxu0 %v4634
    %6546 = vmatprep.subr.bf16.mxu0 %v4639
    %6547 = vmatpush1.bf16.msra.mxu0 %v4638
    %6548 = vmatprep.subr.bf16.mxu0 %v4643
    %6549 = vmatpush1.bf16.msra.mxu0 %v4642
    %6550 = vmatprep.subr.bf16.mxu0 %v4647
    %6551 = vmatpush1.bf16.msra.mxu0 %v4646
    %6552 = vmatprep.subr.bf16.mxu0 %v4651
    %6553 = vmatpush1.bf16.msra.mxu0 %v4650
    %6554 = vmatprep.subr.bf16.mxu0 %v4655
    %6555 = vmatpush1.bf16.msra.mxu0 %v4654
    %6556 = vmatprep.subr.bf16.mxu0 %v4659
    %6557 = vmatpush1.bf16.msra.mxu0 %v4658
    %6558 = vmatprep.subr.bf16.mxu0 %v4663
    %6559 = vmatpush1.bf16.msra.mxu0 %v4662
    %6560 = vmatprep.subr.bf16.mxu0 0
    %6561 = vmatpush1.bf16.msra.mxu0 0
    %6562 = vmatprep.subr.bf16.mxu0 0
    %6563 = vmatpush1.bf16.msra.mxu0 0
    %6564 = vmatprep.subr.bf16.mxu0 0
    %6565 = vmatpush1.bf16.msra.mxu0 0
    %6566 = vmatprep.subr.bf16.mxu0 0
    %6567 = vmatpush1.bf16.msra.mxu0 0
    %6568 = vmatprep.subr.bf16.mxu0 0
    %6569 = vmatpush1.bf16.msra.mxu0 0
    %6570 = vmatprep.subr.bf16.mxu0 0
    %6571 = vmatpush1.bf16.msra.mxu0 0
    %6572 = vmatprep.subr.bf16.mxu0 0
    %6573 = vmatpush1.bf16.msra.mxu0 0
    %6574 = vmatprep.subr.bf16.mxu0 0
    %6575 = vmatpush1.bf16.msra.mxu0 0
    %6576 = vmatprep.mubr.bf16.mxu0 0
    %6577 = vmatmul.mubr.bf16.gmra.mrb[0].mxu0 %v6460
    %v6578 = vpop.f32.mrb[0].mxu0
    %v6579 = vadd.f32 %v6497, %v6578
    %v6580 = vpop.f32.mrb[0].mxu0
    %v6581 = vadd.f32 %v6499, %v6580
    %v6582 = vpop.f32.mrb[0].mxu0
    %v6583 = vpop.f32.mrb[0].mxu0
    %6584 = vdwg.mxu0
    %6585 = vmatprep.subr.bf16.mxu0 %v4637
    %6586 = vmatpush1.bf16.msra.mxu0 %v4636
    %6587 = vmatprep.subr.bf16.mxu0 %v4641
    %6588 = vmatpush1.bf16.msra.mxu0 %v4640
    %6589 = vmatprep.subr.bf16.mxu0 %v4645
    %6590 = vmatpush1.bf16.msra.mxu0 %v4644
    %6591 = vmatprep.subr.bf16.mxu0 %v4649
    %6592 = vmatpush1.bf16.msra.mxu0 %v4648
    %6593 = vmatprep.subr.bf16.mxu0 %v4653
    %6594 = vmatpush1.bf16.msra.mxu0 %v4652
    %6595 = vmatprep.subr.bf16.mxu0 %v4657
    %6596 = vmatpush1.bf16.msra.mxu0 %v4656
    %6597 = vmatprep.subr.bf16.mxu0 %v4661
    %6598 = vmatpush1.bf16.msra.mxu0 %v4660
    %6599 = vmatprep.subr.bf16.mxu0 %v4665
    %6600 = vmatpush1.bf16.msra.mxu0 %v4664
    %6601 = vmatprep.subr.bf16.mxu0 0
    %6602 = vmatpush1.bf16.msra.mxu0 0
    %6603 = vmatprep.subr.bf16.mxu0 0
    %6604 = vmatpush1.bf16.msra.mxu0 0
    %6605 = vmatprep.subr.bf16.mxu0 0
    %6606 = vmatpush1.bf16.msra.mxu0 0
    %6607 = vmatprep.subr.bf16.mxu0 0
    %6608 = vmatpush1.bf16.msra.mxu0 0
    %6609 = vmatprep.subr.bf16.mxu0 0
    %6610 = vmatpush1.bf16.msra.mxu0 0
    %6611 = vmatprep.subr.bf16.mxu0 0
    %6612 = vmatpush1.bf16.msra.mxu0 0
    %6613 = vmatprep.subr.bf16.mxu0 0
    %6614 = vmatpush1.bf16.msra.mxu0 0
    %6615 = vmatprep.subr.bf16.mxu0 0
    %6616 = vmatpush1.bf16.msra.mxu0 0
    %6617 = vmatprep.mubr.bf16.mxu0 0
    %6618 = vmatmul.mubr.bf16.gmra.mrb[0].mxu0 %v6460
    %v6619 = vpop.f32.mrb[0].mxu0
    %v6620 = vadd.f32 %v6538, %v6619
    %v6621 = vpop.f32.mrb[0].mxu0
    %v6622 = vadd.f32 %v6540, %v6621
    %v6623 = vpop.f32.mrb[0].mxu0
    %v6624 = vpop.f32.mrb[0].mxu0
    %6625 = vdwg.mxu0
    %v6626 = vadd.f32 %v6579, %v4785
    %v6627 = vadd.f32 %v6581, %v4789
    %v6628 = vadd.f32 %v6620, %v4793
    %v6629 = vadd.f32 %v6622, %v4797
    %v6630 = vxor.u32 %v6626, 2147483648
    %v6631 = vxor.u32 %v6627, 2147483648
    %v6632 = vxor.u32 %v6628, 2147483648
    %v6633 = vmul.f32 %v6630, 1.442695
    %v6634 = vpow.pop %v6633
    %v6635 = vmul.f32 %v6631, 1.442695
    %v6636 = vpow.pop %v6635
    %v6637 = vmul.f32 %v6632, 1.442695
    %v6638 = vpow.pop %v6637
    %v6639 = vadd.f32 %v6634, 1.0
    %v6640 = vadd.f32 %v6636, 1.0
    %v6641 = vadd.f32 %v6638, 1.0
    %v6642 = vrcp.pop %v6639
    %v6643 = vmul.f32 1.0, %v6642
    %v6644 = vrcp.pop %v6640
    %v6645 = vmul.f32 1.0, %v6644
    %v6646 = vrcp.pop %v6641
    %v6647 = vmul.f32 1.0, %v6646
    %v6648 = vtanh.pop %v6629
    %v6649 = vmul.f32 %v6645, %v6347
    %v6650 = vmul.f32 %v6643, %v6648
    %v6651 = vadd.f32 %v6649, %v6650
    %v6652 = vtanh.pop %v6651
    %v6653 = vmul.f32 %v6647, %v6652
    %6654 = vmatprep.subr.bf16.mxu0 %v4058
    %6655 = vmatpush1.bf16.msra.mxu0 %v4057
    %6656 = vmatprep.subr.bf16.mxu0 %v4062
    %6657 = vmatpush1.bf16.msra.mxu0 %v4061
    %6658 = vmatprep.subr.bf16.mxu0 %v4066
    %6659 = vmatpush1.bf16.msra.mxu0 %v4065
    %6660 = vmatprep.subr.bf16.mxu0 %v4070
    %6661 = vmatpush1.bf16.msra.mxu0 %v4069
    %6662 = vmatprep.subr.bf16.mxu0 %v4074
    %6663 = vmatpush1.bf16.msra.mxu0 %v4073
    %6664 = vmatprep.subr.bf16.mxu0 %v4078
    %6665 = vmatpush1.bf16.msra.mxu0 %v4077
    %6666 = vmatprep.subr.bf16.mxu0 %v4082
    %6667 = vmatpush1.bf16.msra.mxu0 %v4081
    %6668 = vmatprep.subr.bf16.mxu0 %v4086
    %6669 = vmatpush1.bf16.msra.mxu0 %v4085
    %6670 = vmatprep.subr.bf16.mxu0 0
    %6671 = vmatpush1.bf16.msra.mxu0 0
    %6672 = vmatprep.subr.bf16.mxu0 0
    %6673 = vmatpush1.bf16.msra.mxu0 0
    %6674 = vmatprep.subr.bf16.mxu0 0
    %6675 = vmatpush1.bf16.msra.mxu0 0
    %6676 = vmatprep.subr.bf16.mxu0 0
    %6677 = vmatpush1.bf16.msra.mxu0 0
    %6678 = vmatprep.subr.bf16.mxu0 0
    %6679 = vmatpush1.bf16.msra.mxu0 0
    %6680 = vmatprep.subr.bf16.mxu0 0
    %6681 = vmatpush1.bf16.msra.mxu0 0
    %6682 = vmatprep.subr.bf16.mxu0 0
    %6683 = vmatpush1.bf16.msra.mxu0 0
    %6684 = vmatprep.subr.bf16.mxu0 0
    %6685 = vmatpush1.bf16.msra.mxu0 0
    %6686 = vmatprep.mubr.bf16.mxu0 0
    %6687 = vmatmul.mubr.bf16.gmra.mrb[0].mxu0 %v6460
    %v6688 = vpop.f32.mrb[0].mxu0
    %v6689 = vadd.f32 0.0, %v6688
    %v6690 = vpop.f32.mrb[0].mxu0
    %v6691 = vadd.f32 0.0, %v6690
    %v6692 = vpop.f32.mrb[0].mxu0
    %v6693 = vpop.f32.mrb[0].mxu0
    %6694 = vdwg.mxu0
    %6695 = vmatprep.subr.bf16.mxu0 %v4060
    %6696 = vmatpush1.bf16.msra.mxu0 %v4059
    %6697 = vmatprep.subr.bf16.mxu0 %v4064
    %6698 = vmatpush1.bf16.msra.mxu0 %v4063
    %6699 = vmatprep.subr.bf16.mxu0 %v4068
    %6700 = vmatpush1.bf16.msra.mxu0 %v4067
    %6701 = vmatprep.subr.bf16.mxu0 %v4072
    %6702 = vmatpush1.bf16.msra.mxu0 %v4071
    %6703 = vmatprep.subr.bf16.mxu0 %v4076
    %6704 = vmatpush1.bf16.msra.mxu0 %v4075
    %6705 = vmatprep.subr.bf16.mxu0 %v4080
    %6706 = vmatpush1.bf16.msra.mxu0 %v4079
    %6707 = vmatprep.subr.bf16.mxu0 %v4084
    %6708 = vmatpush1.bf16.msra.mxu0 %v4083
    %6709 = vmatprep.subr.bf16.mxu0 %v4088
    %6710 = vmatpush1.bf16.msra.mxu0 %v4087
    %6711 = vmatprep.subr.bf16.mxu0 0
    %6712 = vmatpush1.bf16.msra.mxu0 0
    %6713 = vmatprep.subr.bf16.mxu0 0
    %6714 = vmatpush1.bf16.msra.mxu0 0
    %6715 = vmatprep.subr.bf16.mxu0 0
    %6716 = vmatpush1.bf16.msra.mxu0 0
    %6717 = vmatprep.subr.bf16.mxu0 0
    %6718 = vmatpush1.bf16.msra.mxu0 0
    %6719 = vmatprep.subr.bf16.mxu0 0
    %6720 = vmatpush1.bf16.msra.mxu0 0
    %6721 = vmatprep.subr.bf16.mxu0 0
    %6722 = vmatpush1.bf16.msra.mxu0 0
    %6723 = vmatprep.subr.bf16.mxu0 0
    %6724 = vmatpush1.bf16.msra.mxu0 0
    %6725 = vmatprep.subr.bf16.mxu0 0
    %6726 = vmatpush1.bf16.msra.mxu0 0
    %6727 = vmatprep.mubr.bf16.mxu0 0
    %6728 = vmatmul.mubr.bf16.gmra.mrb[0].mxu0 %v6460
    %v6729 = vpop.f32.mrb[0].mxu0
    %v6730 = vadd.f32 0.0, %v6729
    %v6731 = vpop.f32.mrb[0].mxu0
    %v6732 = vadd.f32 0.0, %v6731
    %v6733 = vpop.f32.mrb[0].mxu0
    %v6734 = vpop.f32.mrb[0].mxu0
    %6735 = vdwg.mxu0
    %v6736 = vadd.f32 %v3882, %v6689
    %v6737 = vadd.f32 %v3884, %v6691
    %v6738 = vadd.f32 %v3923, %v6730
    %v6739 = vadd.f32 %v3925, %v6732
    %v6740 = vxor.u32 %v6736, 2147483648
    %v6741 = vxor.u32 %v6737, 2147483648
    %v6742 = vxor.u32 %v6738, 2147483648
    %v6743 = vmul.f32 %v6740, 1.442695
    %v6744 = vpow.pop %v6743
    %v6745 = vmul.f32 %v6741, 1.442695
    %v6746 = vpow.pop %v6745
    %v6747 = vmul.f32 %v6742, 1.442695
    %v6748 = vpow.pop %v6747
    %v6749 = vadd.f32 %v6744, 1.0
    %v6750 = vadd.f32 %v6746, 1.0
    %v6751 = vadd.f32 %v6748, 1.0
    %v6752 = vrcp.pop %v6749
    %v6753 = vmul.f32 1.0, %v6752
    %v6754 = vrcp.pop %v6750
    %v6755 = vmul.f32 1.0, %v6754
    %v6756 = vrcp.pop %v6751
    %v6757 = vmul.f32 1.0, %v6756
    %v6758 = vtanh.pop %v6739
    %v6759 = vmul.f32 %v6755, %v6457
    %v6760 = vmul.f32 %v6753, %v6758
    %v6761 = vadd.f32 %v6759, %v6760
    %v6762 = vtanh.pop %v6761
    %v6763 = vmul.f32 %v6757, %v6762
    %v6764 = vpack.c.bf16 %v6763, %v6763
    %v6765 = vpack.c.bf16 %v6653, %v6653
    %6766 = vmatprep.subr.bf16.mxu0 %v4393
    %6767 = vmatpush1.bf16.msra.mxu0 %v4392
    %6768 = vmatprep.subr.bf16.mxu0 %v4397
    %6769 = vmatpush1.bf16.msra.mxu0 %v4396
    %6770 = vmatprep.subr.bf16.mxu0 %v4401
    %6771 = vmatpush1.bf16.msra.mxu0 %v4400
    %6772 = vmatprep.subr.bf16.mxu0 %v4405
    %6773 = vmatpush1.bf16.msra.mxu0 %v4404
    %6774 = vmatprep.subr.bf16.mxu0 %v4409
    %6775 = vmatpush1.bf16.msra.mxu0 %v4408
    %6776 = vmatprep.subr.bf16.mxu0 %v4413
    %6777 = vmatpush1.bf16.msra.mxu0 %v4412
    %6778 = vmatprep.subr.bf16.mxu0 %v4417
    %6779 = vmatpush1.bf16.msra.mxu0 %v4416
    %6780 = vmatprep.subr.bf16.mxu0 %v4421
    %6781 = vmatpush1.bf16.msra.mxu0 %v4420
    %6782 = vmatprep.subr.bf16.mxu0 0
    %6783 = vmatpush1.bf16.msra.mxu0 0
    %6784 = vmatprep.subr.bf16.mxu0 0
    %6785 = vmatpush1.bf16.msra.mxu0 0
    %6786 = vmatprep.subr.bf16.mxu0 0
    %6787 = vmatpush1.bf16.msra.mxu0 0
    %6788 = vmatprep.subr.bf16.mxu0 0
    %6789 = vmatpush1.bf16.msra.mxu0 0
    %6790 = vmatprep.subr.bf16.mxu0 0
    %6791 = vmatpush1.bf16.msra.mxu0 0
    %6792 = vmatprep.subr.bf16.mxu0 0
    %6793 = vmatpush1.bf16.msra.mxu0 0
    %6794 = vmatprep.subr.bf16.mxu0 0
    %6795 = vmatpush1.bf16.msra.mxu0 0
    %6796 = vmatprep.subr.bf16.mxu0 0
    %6797 = vmatpush1.bf16.msra.mxu0 0
    %6798 = vmatprep.mubr.bf16.mxu0 0
    %6799 = vmatmul.mubr.bf16.gmra.mrb[0].mxu0 %v6765
    %v6800 = vpop.f32.mrb[0].mxu0
    %v6801 = vadd.f32 0.0, %v6800
    %v6802 = vpop.f32.mrb[0].mxu0
    %v6803 = vadd.f32 0.0, %v6802
    %v6804 = vpop.f32.mrb[0].mxu0
    %v6805 = vpop.f32.mrb[0].mxu0
    %6806 = vdwg.mxu0
    %6807 = vmatprep.subr.bf16.mxu0 %v4395
    %6808 = vmatpush1.bf16.msra.mxu0 %v4394
    %6809 = vmatprep.subr.bf16.mxu0 %v4399
    %6810 = vmatpush1.bf16.msra.mxu0 %v4398
    %6811 = vmatprep.subr.bf16.mxu0 %v4403
    %6812 = vmatpush1.bf16.msra.mxu0 %v4402
    %6813 = vmatprep.subr.bf16.mxu0 %v4407
    %6814 = vmatpush1.bf16.msra.mxu0 %v4406
    %6815 = vmatprep.subr.bf16.mxu0 %v4411
    %6816 = vmatpush1.bf16.msra.mxu0 %v4410
    %6817 = vmatprep.subr.bf16.mxu0 %v4415
    %6818 = vmatpush1.bf16.msra.mxu0 %v4414
    %6819 = vmatprep.subr.bf16.mxu0 %v4419
    %6820 = vmatpush1.bf16.msra.mxu0 %v4418
    %6821 = vmatprep.subr.bf16.mxu0 %v4423
    %6822 = vmatpush1.bf16.msra.mxu0 %v4422
    %6823 = vmatprep.subr.bf16.mxu0 0
    %6824 = vmatpush1.bf16.msra.mxu0 0
    %6825 = vmatprep.subr.bf16.mxu0 0
    %6826 = vmatpush1.bf16.msra.mxu0 0
    %6827 = vmatprep.subr.bf16.mxu0 0
    %6828 = vmatpush1.bf16.msra.mxu0 0
    %6829 = vmatprep.subr.bf16.mxu0 0
    %6830 = vmatpush1.bf16.msra.mxu0 0
    %6831 = vmatprep.subr.bf16.mxu0 0
    %6832 = vmatpush1.bf16.msra.mxu0 0
    %6833 = vmatprep.subr.bf16.mxu0 0
    %6834 = vmatpush1.bf16.msra.mxu0 0
    %6835 = vmatprep.subr.bf16.mxu0 0
    %6836 = vmatpush1.bf16.msra.mxu0 0
    %6837 = vmatprep.subr.bf16.mxu0 0
    %6838 = vmatpush1.bf16.msra.mxu0 0
    %6839 = vmatprep.mubr.bf16.mxu0 0
    %6840 = vmatmul.mubr.bf16.gmra.mrb[0].mxu0 %v6765
    %v6841 = vpop.f32.mrb[0].mxu0
    %v6842 = vadd.f32 0.0, %v6841
    %v6843 = vpop.f32.mrb[0].mxu0
    %v6844 = vadd.f32 0.0, %v6843
    %v6845 = vpop.f32.mrb[0].mxu0
    %v6846 = vpop.f32.mrb[0].mxu0
    %6847 = vdwg.mxu0
    %6848 = vmatprep.subr.bf16.mxu0 %v4635
    %6849 = vmatpush1.bf16.msra.mxu0 %v4634
    %6850 = vmatprep.subr.bf16.mxu0 %v4639
    %6851 = vmatpush1.bf16.msra.mxu0 %v4638
    %6852 = vmatprep.subr.bf16.mxu0 %v4643
    %6853 = vmatpush1.bf16.msra.mxu0 %v4642
    %6854 = vmatprep.subr.bf16.mxu0 %v4647
    %6855 = vmatpush1.bf16.msra.mxu0 %v4646
    %6856 = vmatprep.subr.bf16.mxu0 %v4651
    %6857 = vmatpush1.bf16.msra.mxu0 %v4650
    %6858 = vmatprep.subr.bf16.mxu0 %v4655
    %6859 = vmatpush1.bf16.msra.mxu0 %v4654
    %6860 = vmatprep.subr.bf16.mxu0 %v4659
    %6861 = vmatpush1.bf16.msra.mxu0 %v4658
    %6862 = vmatprep.subr.bf16.mxu0 %v4663
    %6863 = vmatpush1.bf16.msra.mxu0 %v4662
    %6864 = vmatprep.subr.bf16.mxu0 0
    %6865 = vmatpush1.bf16.msra.mxu0 0
    %6866 = vmatprep.subr.bf16.mxu0 0
    %6867 = vmatpush1.bf16.msra.mxu0 0
    %6868 = vmatprep.subr.bf16.mxu0 0
    %6869 = vmatpush1.bf16.msra.mxu0 0
    %6870 = vmatprep.subr.bf16.mxu0 0
    %6871 = vmatpush1.bf16.msra.mxu0 0
    %6872 = vmatprep.subr.bf16.mxu0 0
    %6873 = vmatpush1.bf16.msra.mxu0 0
    %6874 = vmatprep.subr.bf16.mxu0 0
    %6875 = vmatpush1.bf16.msra.mxu0 0
    %6876 = vmatprep.subr.bf16.mxu0 0
    %6877 = vmatpush1.bf16.msra.mxu0 0
    %6878 = vmatprep.subr.bf16.mxu0 0
    %6879 = vmatpush1.bf16.msra.mxu0 0
    %6880 = vmatprep.mubr.bf16.mxu0 0
    %6881 = vmatmul.mubr.bf16.gmra.mrb[0].mxu0 %v6764
    %v6882 = vpop.f32.mrb[0].mxu0
    %v6883 = vadd.f32 %v6801, %v6882
    %v6884 = vpop.f32.mrb[0].mxu0
    %v6885 = vadd.f32 %v6803, %v6884
    %v6886 = vpop.f32.mrb[0].mxu0
    %v6887 = vpop.f32.mrb[0].mxu0
    %6888 = vdwg.mxu0
    %6889 = vmatprep.subr.bf16.mxu0 %v4637
    %6890 = vmatpush1.bf16.msra.mxu0 %v4636
    %6891 = vmatprep.subr.bf16.mxu0 %v4641
    %6892 = vmatpush1.bf16.msra.mxu0 %v4640
    %6893 = vmatprep.subr.bf16.mxu0 %v4645
    %6894 = vmatpush1.bf16.msra.mxu0 %v4644
    %6895 = vmatprep.subr.bf16.mxu0 %v4649
    %6896 = vmatpush1.bf16.msra.mxu0 %v4648
    %6897 = vmatprep.subr.bf16.mxu0 %v4653
    %6898 = vmatpush1.bf16.msra.mxu0 %v4652
    %6899 = vmatprep.subr.bf16.mxu0 %v4657
    %6900 = vmatpush1.bf16.msra.mxu0 %v4656
    %6901 = vmatprep.subr.bf16.mxu0 %v4661
    %6902 = vmatpush1.bf16.msra.mxu0 %v4660
    %6903 = vmatprep.subr.bf16.mxu0 %v4665
    %6904 = vmatpush1.bf16.msra.mxu0 %v4664
    %6905 = vmatprep.subr.bf16.mxu0 0
    %6906 = vmatpush1.bf16.msra.mxu0 0
    %6907 = vmatprep.subr.bf16.mxu0 0
    %6908 = vmatpush1.bf16.msra.mxu0 0
    %6909 = vmatprep.subr.bf16.mxu0 0
    %6910 = vmatpush1.bf16.msra.mxu0 0
    %6911 = vmatprep.subr.bf16.mxu0 0
    %6912 = vmatpush1.bf16.msra.mxu0 0
    %6913 = vmatprep.subr.bf16.mxu0 0
    %6914 = vmatpush1.bf16.msra.mxu0 0
    %6915 = vmatprep.subr.bf16.mxu0 0
    %6916 = vmatpush1.bf16.msra.mxu0 0
    %6917 = vmatprep.subr.bf16.mxu0 0
    %6918 = vmatpush1.bf16.msra.mxu0 0
    %6919 = vmatprep.subr.bf16.mxu0 0
    %6920 = vmatpush1.bf16.msra.mxu0 0
    %6921 = vmatprep.mubr.bf16.mxu0 0
    %6922 = vmatmul.mubr.bf16.gmra.mrb[0].mxu0 %v6764
    %v6923 = vpop.f32.mrb[0].mxu0
    %v6924 = vadd.f32 %v6842, %v6923
    %v6925 = vpop.f32.mrb[0].mxu0
    %v6926 = vadd.f32 %v6844, %v6925
    %v6927 = vpop.f32.mrb[0].mxu0
    %v6928 = vpop.f32.mrb[0].mxu0
    %6929 = vdwg.mxu0
    %v6930 = vadd.f32 %v6883, %v4785
    %v6931 = vadd.f32 %v6885, %v4789
    %v6932 = vadd.f32 %v6924, %v4793
    %v6933 = vadd.f32 %v6926, %v4797
    %v6934 = vxor.u32 %v6930, 2147483648
    %v6935 = vxor.u32 %v6931, 2147483648
    %v6936 = vxor.u32 %v6932, 2147483648
    %v6937 = vmul.f32 %v6934, 1.442695
    %v6938 = vpow.pop %v6937
    %v6939 = vmul.f32 %v6935, 1.442695
    %v6940 = vpow.pop %v6939
    %v6941 = vmul.f32 %v6936, 1.442695
    %v6942 = vpow.pop %v6941
    %v6943 = vadd.f32 %v6938, 1.0
    %v6944 = vadd.f32 %v6940, 1.0
    %v6945 = vadd.f32 %v6942, 1.0
    %v6946 = vrcp.pop %v6943
    %v6947 = vmul.f32 1.0, %v6946
    %v6948 = vrcp.pop %v6944
    %v6949 = vmul.f32 1.0, %v6948
    %v6950 = vrcp.pop %v6945
    %v6951 = vmul.f32 1.0, %v6950
    %v6952 = vtanh.pop %v6933
    %v6953 = vmul.f32 %v6949, %v6651
    %v6954 = vmul.f32 %v6947, %v6952
    %v6955 = vadd.f32 %v6953, %v6954
    %v6956 = vtanh.pop %v6955
    %v6957 = vmul.f32 %v6951, %v6956
    %v6959 = vrot.slane %v5133, 7
    %v6962 = vrot.slane %v5437, 6
    %v6965 = vrot.slane %v5741, 5
    %v6968 = vrot.slane %v6045, 4
    %v6971 = vrot.slane %v6349, 3
    %v6974 = vrot.slane %v6653, 2
    %v6977 = vrot.slane %v6957, 1
    %vm6979 = vcmask 1040384
    %v6980 = vsel %vm6979, %v4829, %v6959
    %vm6981 = vcmask 1041408
    %v6982 = vsel %vm6981, %v6980, %v6962
    %vm6983 = vcmask 1042432
    %v6984 = vsel %vm6983, %v6982, %v6965
    %vm6985 = vcmask 1043456
    %v6986 = vsel %vm6985, %v6984, %v6968
    %vm6987 = vcmask 1044480
    %v6988 = vsel %vm6987, %v6986, %v6971
    %vm6989 = vcmask 1045504
    %v6990 = vsel %vm6989, %v6988, %v6974
    %vm6991 = vcmask 1046528
    %v6992 = vsel %vm6991, %v6990, %v6977
    %v6993 = vpack.c.bf16 %v6992, %v6992
    %v6994 = vld [vmem:[#allocation15] sm:$0xf]
    %v6995 = vld [vmem:[#allocation15 + $0x4] sm:$0xf]
    %v6996 = vld [vmem:[#allocation15 + $0x8] sm:$0xf]
    %v6997 = vld [vmem:[#allocation15 + $0xc] sm:$0xf]
    %v6998 = vld [vmem:[#allocation15 + $0x10] sm:$0xf]
    %v6999 = vld [vmem:[#allocation15 + $0x14] sm:$0xf]
    %v7000 = vld [vmem:[#allocation15 + $0x18] sm:$0xf]
    %v7001 = vld [vmem:[#allocation15 + $0x1c] sm:$0xf]
    %v7002 = vld [vmem:[#allocation15 + $0x20] sm:$0xf]
    %v7003 = vld [vmem:[#allocation15 + $0x24] sm:$0xf]
    %v7004 = vld [vmem:[#allocation15 + $0x28] sm:$0xf]
    %v7005 = vld [vmem:[#allocation15 + $0x2c] sm:$0xf]
    %v7006 = vld [vmem:[#allocation15 + $0x30] sm:$0xf]
    %v7007 = vld [vmem:[#allocation15 + $0x34] sm:$0xf]
    %v7008 = vld [vmem:[#allocation15 + $0x38] sm:$0xf]
    %v7009 = vld [vmem:[#allocation15 + $0x3c] sm:$0xf]
    %v7010 = vld [vmem:[%s14] sm:$0x1]
    %v7012 = vlaneseq
    %v7013 = vshrl.u32 %v7012, 7
    %v7014 = vsub.s32 0, %v7013
    %v7015 = vrot.slane %v7010, %v7014
    %v7033 = vunpack.c.l.b16 %v6994
    %v7034 = vunpack.c.l.b16 %v6995
    %v7035 = vunpack.c.l.b16 %v6996
    %v7036 = vunpack.c.l.b16 %v6997
    %v7037 = vunpack.c.l.b16 %v6998
    %v7038 = vunpack.c.l.b16 %v6999
    %v7039 = vunpack.c.l.b16 %v7000
    %v7040 = vunpack.c.l.b16 %v7001
    %v7041 = vunpack.c.l.b16 %v7002
    %v7042 = vunpack.c.l.b16 %v7003
    %v7043 = vunpack.c.l.b16 %v7004
    %v7044 = vunpack.c.l.b16 %v7005
    %v7045 = vunpack.c.l.b16 %v7006
    %v7046 = vunpack.c.l.b16 %v7007
    %v7047 = vunpack.c.l.b16 %v7008
    %v7048 = vunpack.c.l.b16 %v7009
    %v7049 = vpack.c.b16 %v7034, %v7033
    %v7050 = vpack.c.b16 %v7036, %v7035
    %v7051 = vpack.c.b16 %v7038, %v7037
    %v7052 = vpack.c.b16 %v7040, %v7039
    %v7053 = vpack.c.b16 %v7042, %v7041
    %v7054 = vpack.c.b16 %v7044, %v7043
    %v7055 = vpack.c.b16 %v7046, %v7045
    %v7056 = vpack.c.b16 %v7048, %v7047
    %7065 = vmatprep.subr.bf16.mxu0 0
    %7066 = vmatpush1.bf16.msra.mxu0 %v7049
    %7067 = vmatprep.subr.bf16.mxu0 0
    %7068 = vmatpush1.bf16.msra.mxu0 %v7050
    %7069 = vmatprep.subr.bf16.mxu0 0
    %7070 = vmatpush1.bf16.msra.mxu0 %v7051
    %7071 = vmatprep.subr.bf16.mxu0 0
    %7072 = vmatpush1.bf16.msra.mxu0 %v7052
    %7073 = vmatprep.subr.bf16.mxu0 0
    %7074 = vmatpush1.bf16.msra.mxu0 %v7053
    %7075 = vmatprep.subr.bf16.mxu0 0
    %7076 = vmatpush1.bf16.msra.mxu0 %v7054
    %7077 = vmatprep.subr.bf16.mxu0 0
    %7078 = vmatpush1.bf16.msra.mxu0 %v7055
    %7079 = vmatprep.subr.bf16.mxu0 0
    %7080 = vmatpush1.bf16.msra.mxu0 %v7056
    %7081 = vmatprep.subr.bf16.mxu0 0
    %7082 = vmatpush1.bf16.msra.mxu0 0
    %7083 = vmatprep.subr.bf16.mxu0 0
    %7084 = vmatpush1.bf16.msra.mxu0 0
    %7085 = vmatprep.subr.bf16.mxu0 0
    %7086 = vmatpush1.bf16.msra.mxu0 0
    %7087 = vmatprep.subr.bf16.mxu0 0
    %7088 = vmatpush1.bf16.msra.mxu0 0
    %7089 = vmatprep.subr.bf16.mxu0 0
    %7090 = vmatpush1.bf16.msra.mxu0 0
    %7091 = vmatprep.subr.bf16.mxu0 0
    %7092 = vmatpush1.bf16.msra.mxu0 0
    %7093 = vmatprep.subr.bf16.mxu0 0
    %7094 = vmatpush1.bf16.msra.mxu0 0
    %7095 = vmatprep.subr.bf16.mxu0 0
    %7096 = vmatpush1.bf16.msra.mxu0 0
    %7097 = vmatprep.mubr.bf16.mxu0 0
    %7098 = vmatmul.mubr.bf16.gmra.mrb[0].mxu0 %v6993
    %v7099 = vpop.f32.mrb[0].mxu0
    %v7100 = vadd.f32 %v7015, %v7099
    %v7101 = vpop.f32.mrb[0].mxu0
    %v7102 = vpop.f32.mrb[0].mxu0
    %v7103 = vpop.f32.mrb[0].mxu0
    %7104 = vdwg.mxu0
    %7105 = vst [vmem:[%s15] sm:$0xff] %v7100
    // Predicated region
    $region98: #{rae_forward.1} parent=1 // pred_check
      _
    $region99: #{rae_forward.1} parent=1 // pred_check_branch
      %7107 = sbr.rel (0) target = $region101
    $region100: #{rae_forward.1} parent=1 // pred_region
      _
    $region101: #{rae_forward.1} parent=1 // pred_fallthru
      _
    // Predicated region
    $region102: #{rae_forward.1} parent=1 // pred_check
      _
    $region103: #{rae_forward.1} parent=1 // pred_check_branch
      %7109 = sbr.rel (0) target = $region105
    $region104: #{rae_forward.1} parent=1 // pred_region
      _
    $region105: #{rae_forward.1} parent=1 // pred_fallthru
      _
    %7110 = vsyncpa [#allocation3], 1
    %7111 = vsyncpa [#allocation5], 1
    %7112 = vsyncpa [#allocation8], 1
    %7113 = vsyncpa [#allocation11], 1
    %7114 = vsyncpa [#allocation14], 1

</llo_original>
